<compile_context>
chip_gen: v7x
topology: tpu7x:2x2x1
jax: 0.10.0
libtpu: 0.0.40
codegen_flags: <defaults>
</compile_context>

<pallas_src>
import functools

import jax
import jax.numpy as jnp
from jax.experimental import pallas as pl
from jax.experimental.pallas import tpu as pltpu


LN_EPS = 1e-5


def _round_up(x, m):
    return ((x + m - 1) // m) * m


def _layernorm_epilogue(y, g_ref, beta_ref, o_ref):
    """y: (TM, D) f32 = x + linear2(relu(linear1(x))) + b2. Writes o_ref."""
    inv_d = jnp.float32(1.0 / y.shape[-1])          # constant, no vector divide
    # One-pass mean / variance: the two cross-lane reduces issue back-to-back.
    s1 = jnp.sum(y, axis=-1, keepdims=True)
    s2 = jnp.sum(y * y, axis=-1, keepdims=True)
    mean = s1 * inv_d
    var = jnp.maximum(s2 * inv_d - mean * mean, 0.0)
    yn = (y - mean) * jax.lax.rsqrt(var + LN_EPS)    # EUP rsqrt
    out = yn * g_ref[...].astype(jnp.float32) + beta_ref[...].astype(jnp.float32)
    o_ref[...] = out.astype(o_ref.dtype)


def _ffn_kernel_fused(x_ref, w1_ref, b1_ref, w2_ref, b2_ref, g_ref, beta_ref,
                      o_ref):
    # Single F step: weights grid-invariant, no accumulator scratch / RMW.
    x = x_ref[...]
    xm = x if x.dtype == w1_ref.dtype else x.astype(w1_ref.dtype)
    h = jnp.dot(xm, w1_ref[...], preferred_element_type=jnp.float32)
    h = jnp.maximum(h + b1_ref[...].astype(jnp.float32), 0.0)          # ReLU
    y2 = jnp.dot(h.astype(w2_ref.dtype), w2_ref[...],
                 preferred_element_type=jnp.float32)
    y = x.astype(jnp.float32) + y2 + b2_ref[...].astype(jnp.float32)   # residual
    _layernorm_epilogue(y, g_ref, beta_ref, o_ref)


def _ffn_kernel_chunked(x_ref, w1_ref, b1_ref, w2_ref, b2_ref, g_ref, beta_ref,
                        o_ref, acc_ref):
    # Fallback path: hidden dim F chunked on a trailing "arbitrary" grid axis
    # with a (tm, D) f32 accumulator and pl.when init/finalize.
    f = pl.program_id(1)
    nf = pl.num_programs(1)

    @pl.when(f == 0)
    def _init():
        acc_ref[...] = jnp.zeros_like(acc_ref)

    x = x_ref[...]
    xm = x if x.dtype == w1_ref.dtype else x.astype(w1_ref.dtype)
    h = jnp.dot(xm, w1_ref[...], preferred_element_type=jnp.float32)
    h = jnp.maximum(h + b1_ref[...].astype(jnp.float32), 0.0)
    acc_ref[...] += jnp.dot(h.astype(w2_ref.dtype), w2_ref[...],
                            preferred_element_type=jnp.float32)

    @pl.when(f == nf - 1)
    def _finalize():
        y = x.astype(jnp.float32) + acc_ref[...] + b2_ref[...].astype(jnp.float32)
        _layernorm_epilogue(y, g_ref, beta_ref, o_ref)


def _param_spec(shape, index_map, single_buffer):
    # Grid-invariant parameter block: single-buffer when supported (halves its
    # VMEM footprint; the block is DMA'd only once either way).
    if single_buffer:
        return pl.BlockSpec(shape, index_map, pipeline_mode=pl.Buffered(1))
    return pl.BlockSpec(shape, index_map)


@functools.partial(
    jax.jit,
    static_argnames=("block_rows", "f_chunk", "activations_dtype",
                     "single_buffer_params"))
def ffn_layer_forward(tgt, w1, b1, w2, b2, gamma, beta,
                      block_rows=256, f_chunk=None,
                      activations_dtype=None, single_buffer_params=True):
    """forwardpost of FFNLayer. tgt: (seq, batch, d_model) -> same shape/dtype.

    w1: (d_model, dim_ff), b1: (1, dim_ff), w2: (dim_ff, d_model),
    b2/gamma/beta: (1, d_model). Weights may be bf16 (bf16 MXU path).
    activations_dtype (e.g. jnp.bfloat16) casts x / out at the kernel
    boundary; residual + LayerNorm are always computed in f32 inside.
    f_chunk=None keeps the whole hidden dim resident (weights DMA'd once);
    pass an explicit multiple of 128 (< dim_ff) to force the chunked path.
    """
    S, B, D = tgt.shape
    F = w1.shape[1]
    N = S * B
    out_dtype = tgt.dtype
    act_dtype = (jnp.dtype(activations_dtype) if activations_dtype is not None
                 else jnp.dtype(tgt.dtype))
    x = tgt.reshape(N, D).astype(act_dtype)

    # Row tile: MXU-sized, but always split into >= 2 row tiles so both of
    # v7x's TensorCores get work on decoder-sized N.
    tm = _round_up(min(block_rows, max(8, _round_up(pl.cdiv(N, 2), 8))), 8)
    n_rows = pl.cdiv(N, tm)

    ita = act_dtype.itemsize
    itw = jnp.dtype(w1.dtype).itemsize

    # Per-generation VMEM budget (v7x: 64 MiB/TC -> ~48 MiB usable;
    # v5e/v6e: 128 MiB -> up to ~96 MiB).
    try:
        vmem_cap = int(pltpu.get_tpu_info().vmem_capacity_bytes)
    except Exception:
        vmem_cap = 64 * 2**20                       # conservative fallback
    budget = max(min((vmem_cap * 3) // 4, 96 * 2**20), 32 * 2**20)

    wbuf = 1 if single_buffer_params else 2

    def fused_bytes(tm_):
        return (4 * tm_ * D * ita                   # x + out tiles, double-buffered
                + wbuf * 2 * D * F * itw            # w1 + w2 (grid-invariant)
                + wbuf * (F + 3 * D) * itw          # b1, b2, gamma, beta
                + tm_ * F * 4                       # f32 hidden activation
                + 2 * tm_ * D * 4)                  # f32 epilogue temporaries

    def chunked_bytes(tm_, fk_):
        return (4 * tm_ * D * ita
                + 4 * D * fk_ * itw                 # w1/w2 chunks, double-buffered
                + 2 * fk_ * itw + wbuf * 3 * D * itw
                + tm_ * fk_ * 4                     # f32 hidden chunk
                + tm_ * D * 4                       # f32 accumulator scratch
                + 2 * tm_ * D * 4)

    force_chunk = (f_chunk is not None and 0 < f_chunk < F
                   and F % f_chunk == 0 and f_chunk % 128 == 0)
    use_fused = (not force_chunk) and fused_bytes(tm) <= budget

    if use_fused:
        grid = (n_rows,)
        in_specs = [
            pl.BlockSpec((tm, D), lambda i: (i, 0)),                   # x rows
            _param_spec((D, F), lambda i: (0, 0), single_buffer_params),  # w1
            _param_spec((1, F), lambda i: (0, 0), single_buffer_params),  # b1
            _param_spec((F, D), lambda i: (0, 0), single_buffer_params),  # w2
            _param_spec((1, D), lambda i: (0, 0), single_buffer_params),  # b2
            _param_spec((1, D), lambda i: (0, 0), single_buffer_params),  # gamma
            _param_spec((1, D), lambda i: (0, 0), single_buffer_params),  # beta
        ]
        out_spec = pl.BlockSpec((tm, D), lambda i: (i, 0))
        scratch = []
        kernel = _ffn_kernel_fused
        semantics = ("parallel",)
        est = fused_bytes(tm)
        weight_passes = 1                            # weights fetched once
    else:
        if force_chunk:
            fk = f_chunk
        else:
            fk = F
            for cand in range(F - 128, 0, -128):     # largest fitting 128-multiple
                if F % cand == 0 and chunked_bytes(tm, cand) <= budget:
                    fk = cand
                    break
        grid = (n_rows, F // fk)
        in_specs = [
            pl.BlockSpec((tm, D), lambda i, f: (i, 0)),   # x rows (invariant in f)
            pl.BlockSpec((D, fk), lambda i, f: (0, f)),   # w1 chunk
            pl.BlockSpec((1, fk), lambda i, f: (0, f)),   # b1 chunk
            pl.BlockSpec((fk, D), lambda i, f: (f, 0)),   # w2 chunk
            _param_spec((1, D), lambda i, f: (0, 0), single_buffer_params),  # b2
            _param_spec((1, D), lambda i, f: (0, 0), single_buffer_params),  # gamma
            _param_spec((1, D), lambda i, f: (0, 0), single_buffer_params),  # beta
        ]
        out_spec = pl.BlockSpec((tm, D), lambda i, f: (i, 0))
        scratch = [pltpu.VMEM((tm, D), jnp.float32)]
        kernel = _ffn_kernel_chunked
        semantics = ("parallel", "arbitrary")
        est = chunked_bytes(tm, fk)
        weight_passes = n_rows                       # weights re-streamed per row tile

    vmem_limit = int(min(budget, max(16 * 2**20, 2 * est)))

    # Advisory cost estimate reflecting the actual schedule.
    cost = pl.CostEstimate(
        flops=int(4 * N * D * F),                    # two matmuls
        transcendentals=int(N),                      # one rsqrt per row
        bytes_accessed=int(ita * 2 * N * D
                           + itw * weight_passes * (2 * D * F + F)
                           + itw * 3 * D),
    )

    out = pl.pallas_call(
        kernel,
        out_shape=jax.ShapeDtypeStruct((N, D), act_dtype),
        grid_spec=pltpu.PrefetchScalarGridSpec(
            num_scalar_prefetch=0,
            grid=grid,
            in_specs=in_specs,
            out_specs=out_spec,
            scratch_shapes=scratch,
        ),
        compiler_params=pltpu.CompilerParams(
            dimension_semantics=semantics,
            vmem_limit_bytes=vmem_limit,
        ),
        cost_estimate=cost,
    )(x, w1, b1, w2, b2, gamma, beta)

    return out.reshape(S, B, D).astype(out_dtype)


def init_ffn_params(key, d_model, dim_feedforward):
    """Deterministic synthetic parameters matching the module's shapes.

    Weights xavier-uniform (resetparameters), biases nn.Linear default
    uniform(+-1/sqrt(fan_in)), LayerNorm gamma=1 / beta=0.
    """
    k1, k2, k3, k4 = jax.random.split(key, 4)

    def xavier(k, fan_in, fan_out):
        limit = jnp.sqrt(6.0 / (fan_in + fan_out))
        return jax.random.uniform(k, (fan_in, fan_out), jnp.float32, -limit, limit)

    w1 = xavier(k1, d_model, dim_feedforward)        # stored (in, out)
    w2 = xavier(k2, dim_feedforward, d_model)
    b1 = jax.random.uniform(k3, (1, dim_feedforward), jnp.float32,
                            -1.0 / jnp.sqrt(d_model), 1.0 / jnp.sqrt(d_model))
    b2 = jax.random.uniform(k4, (1, d_model), jnp.float32,
                            -1.0 / jnp.sqrt(dim_feedforward),
                            1.0 / jnp.sqrt(dim_feedforward))
    gamma = jnp.ones((1, d_model), jnp.float32)
    beta = jnp.zeros((1, d_model), jnp.float32)
    return w1, b1, w2, b2, gamma, beta


def _reference(tgt, w1, b1, w2, b2, gamma, beta):
    """Pure-JAX reference of forwardpost (dropout p=0.0 is identity)."""
    hi = jax.lax.Precision.HIGHEST
    h = jnp.maximum(jnp.dot(tgt, w1, precision=hi) + b1[0], 0.0)
    tgt2 = jnp.dot(h, w2, precision=hi) + b2[0]
    y = tgt + tgt2
    mean = jnp.mean(y, axis=-1, keepdims=True)
    var = jnp.mean((y - mean) ** 2, axis=-1, keepdims=True)
    return (y - mean) / jnp.sqrt(var + LN_EPS) * gamma[0] + beta[0]


if __name__ == "__main__":
    key = jax.random.PRNGKey(0)
    k_param, k_x = jax.random.split(key)

    # Real Mask2Former decoder-FFN shapes (still small): 100 queries, batch 2,
    # d_model=256, dim_feedforward=2048. D and F are multiples of 128 so tiles
    # are lane-dense and both matmuls fill the 256-wide MXU on v6e/v7x.
    seq, batch, d_model, dim_ff = 100, 2, 256, 2048

    w1, b1, w2, b2, gamma, beta = init_ffn_params(k_param, d_model, dim_ff)
    tgt = jax.random.normal(k_x, (seq, batch, d_model), jnp.float32)

    ref = _reference(tgt, w1, b1, w2, b2, gamma, beta)

    # 1) Default config: fused path (grid-invariant weights, single-buffered,
    #    no accumulator scratch), >= 2 row tiles on the parallel axis.
    sb = True
    try:
        out = jax.block_until_ready(
            ffn_layer_forward(tgt, w1, b1, w2, b2, gamma, beta))
    except Exception:
        # This jax build rejected pl.Buffered(1) single-buffering; retry with
        # default double-buffered parameter blocks (still DMA'd only once
        # because their block index never changes).
        sb = False
        out = jax.block_until_ready(
            ffn_layer_forward(tgt, w1, b1, w2, b2, gamma, beta,
                              single_buffer_params=False))
    assert out.shape == tgt.shape and out.dtype == tgt.dtype
    assert jnp.allclose(out, ref, atol=2e-3, rtol=2e-3), "mismatch (fused)"

    # 2) Forced F-chunked accumulator path with a partial last row tile.
    out2 = jax.block_until_ready(
        ffn_layer_forward(tgt, w1, b1, w2, b2, gamma, beta,
                          block_rows=64, f_chunk=256,
                          single_buffer_params=sb))
    assert jnp.allclose(out2, ref, atol=2e-3, rtol=2e-3), "mismatch (chunked)"

    # 3) bf16 weights + bf16 activations at the kernel boundary (bf16 MXU path
    #    on v6e/v7x); residual + LayerNorm stay f32 inside the kernel.
    w1b, b1b, w2b, b2b = (p.astype(jnp.bfloat16) for p in (w1, b1, w2, b2))
    out3 = jax.block_until_ready(
        ffn_layer_forward(tgt, w1b, b1b, w2b, b2b, gamma, beta,
                          activations_dtype=jnp.bfloat16,
                          single_buffer_params=sb))
    assert out3.shape == tgt.shape and out3.dtype == tgt.dtype
    assert jnp.allclose(out3, ref, atol=1e-1, rtol=1e-1), "mismatch (bf16)"

    print("KERNEL_OK")
</pallas_src>

<mosaic_0001>
module attributes {stable_mosaic.version = 11 : i64} {
  func.func @_ffn_kernel_fused(%arg0: i32, %arg1: memref<104x256xf32, #tpu.memory_space<vmem>>, %arg2: memref<256x2048xf32, #tpu.memory_space<vmem>>, %arg3: memref<1x2048xf32, #tpu.memory_space<vmem>>, %arg4: memref<2048x256xf32, #tpu.memory_space<vmem>>, %arg5: memref<1x256xf32, #tpu.memory_space<vmem>>, %arg6: memref<1x256xf32, #tpu.memory_space<vmem>>, %arg7: memref<1x256xf32, #tpu.memory_space<vmem>>, %arg8: memref<104x256xf32, #tpu.memory_space<vmem>>) attributes {dimension_semantics = [#tpu.dimension_semantics<parallel>], iteration_bounds = array<i64: 2>, scalar_prefetch = 0 : i64, scratch_operands = 0 : i64, tpu.core_type = #tpu.core_type<tc>, window_params = [{transform_indices = @transform_0, window_bounds = array<i64: 104, 256>}, {pipeline_mode = #tpu.pipeline_mode<synchronous>, transform_indices = @transform_1, window_bounds = array<i64: 256, 2048>}, {pipeline_mode = #tpu.pipeline_mode<synchronous>, transform_indices = @transform_2, window_bounds = array<i64: 1, 2048>}, {pipeline_mode = #tpu.pipeline_mode<synchronous>, transform_indices = @transform_3, window_bounds = array<i64: 2048, 256>}, {pipeline_mode = #tpu.pipeline_mode<synchronous>, transform_indices = @transform_4, window_bounds = array<i64: 1, 256>}, {pipeline_mode = #tpu.pipeline_mode<synchronous>, transform_indices = @transform_5, window_bounds = array<i64: 1, 256>}, {pipeline_mode = #tpu.pipeline_mode<synchronous>, transform_indices = @transform_6, window_bounds = array<i64: 1, 256>}, {transform_indices = @transform_7, window_bounds = array<i64: 104, 256>}]} {
    %c0 = arith.constant 0 : index
    %c0_0 = arith.constant 0 : index
    %0 = vector.load %arg1[%c0, %c0_0] : memref<104x256xf32, #tpu.memory_space<vmem>>, vector<104x256xf32>
    %c0_1 = arith.constant 0 : index
    %c0_2 = arith.constant 0 : index
    %1 = vector.load %arg2[%c0_1, %c0_2] : memref<256x2048xf32, #tpu.memory_space<vmem>>, vector<256x2048xf32>
    %cst = arith.constant dense<0.000000e+00> : vector<104x2048xf32>
    %2 = tpu.matmul %0, %1, %cst {dimension_numbers = #tpu.dot_dimension_numbers<[1], [0], [0], [1], [0, 0, 1, 1], [], []>} : vector<104x256xf32>, vector<256x2048xf32>, vector<104x2048xf32> -> vector<104x2048xf32>
    %c0_3 = arith.constant 0 : index
    %c0_4 = arith.constant 0 : index
    %3 = vector.load %arg3[%c0_3, %c0_4] : memref<1x2048xf32, #tpu.memory_space<vmem>>, vector<1x2048xf32>
    %4 = vector.broadcast %3 : vector<1x2048xf32> to vector<104x2048xf32>
    %5 = arith.addf %2, %4 : vector<104x2048xf32>
    %cst_5 = arith.constant 0.000000e+00 : f32
    %6 = vector.broadcast %cst_5 : f32 to vector<104x2048xf32>
    %7 = arith.maximumf %5, %6 : vector<104x2048xf32>
    %c0_6 = arith.constant 0 : index
    %c0_7 = arith.constant 0 : index
    %8 = vector.load %arg4[%c0_6, %c0_7] : memref<2048x256xf32, #tpu.memory_space<vmem>>, vector<2048x256xf32>
    %cst_8 = arith.constant dense<0.000000e+00> : vector<104x256xf32>
    %9 = tpu.matmul %7, %8, %cst_8 {dimension_numbers = #tpu.dot_dimension_numbers<[1], [0], [0], [1], [0, 0, 1, 1], [], []>} : vector<104x2048xf32>, vector<2048x256xf32>, vector<104x256xf32> -> vector<104x256xf32>
    %10 = arith.addf %0, %9 : vector<104x256xf32>
    %c0_9 = arith.constant 0 : index
    %c0_10 = arith.constant 0 : index
    %11 = vector.load %arg5[%c0_9, %c0_10] : memref<1x256xf32, #tpu.memory_space<vmem>>, vector<1x256xf32>
    %12 = vector.broadcast %11 : vector<1x256xf32> to vector<104x256xf32>
    %13 = arith.addf %10, %12 : vector<104x256xf32>
    %cst_11 = arith.constant dense<0.000000e+00> : vector<104xf32>
    %14 = vector.multi_reduction <add>, %13, %cst_11 [1] : vector<104x256xf32> to vector<104xf32>
    %15 = vector.shape_cast %14 : vector<104xf32> to vector<104x1xf32>
    %16 = arith.mulf %13, %13 : vector<104x256xf32>
    %cst_12 = arith.constant dense<0.000000e+00> : vector<104xf32>
    %17 = vector.multi_reduction <add>, %16, %cst_12 [1] : vector<104x256xf32> to vector<104xf32>
    %18 = vector.shape_cast %17 : vector<104xf32> to vector<104x1xf32>
    %cst_13 = arith.constant 3.906250e-03 : f32
    %19 = vector.broadcast %cst_13 : f32 to vector<104x1xf32>
    %20 = arith.mulf %15, %19 : vector<104x1xf32>
    %cst_14 = arith.constant 3.906250e-03 : f32
    %21 = vector.broadcast %cst_14 : f32 to vector<104x1xf32>
    %22 = arith.mulf %18, %21 : vector<104x1xf32>
    %23 = arith.mulf %20, %20 : vector<104x1xf32>
    %24 = arith.subf %22, %23 : vector<104x1xf32>
    %cst_15 = arith.constant 0.000000e+00 : f32
    %25 = vector.broadcast %cst_15 : f32 to vector<104x1xf32>
    %26 = arith.maximumf %24, %25 : vector<104x1xf32>
    %27 = vector.broadcast %20 : vector<104x1xf32> to vector<104x256xf32>
    %28 = arith.subf %13, %27 : vector<104x256xf32>
    %cst_16 = arith.constant 9.99999974E-6 : f32
    %29 = vector.broadcast %cst_16 : f32 to vector<104x1xf32>
    %30 = arith.addf %26, %29 : vector<104x1xf32>
    %31 = math.rsqrt %30 : vector<104x1xf32>
    %32 = vector.broadcast %31 : vector<104x1xf32> to vector<104x256xf32>
    %33 = arith.mulf %28, %32 : vector<104x256xf32>
    %c0_17 = arith.constant 0 : index
    %c0_18 = arith.constant 0 : index
    %34 = vector.load %arg6[%c0_17, %c0_18] : memref<1x256xf32, #tpu.memory_space<vmem>>, vector<1x256xf32>
    %35 = vector.broadcast %34 : vector<1x256xf32> to vector<104x256xf32>
    %36 = arith.mulf %33, %35 : vector<104x256xf32>
    %c0_19 = arith.constant 0 : index
    %c0_20 = arith.constant 0 : index
    %37 = vector.load %arg7[%c0_19, %c0_20] : memref<1x256xf32, #tpu.memory_space<vmem>>, vector<1x256xf32>
    %38 = vector.broadcast %37 : vector<1x256xf32> to vector<104x256xf32>
    %39 = arith.addf %36, %38 : vector<104x256xf32>
    %c0_21 = arith.constant 0 : index
    %c0_22 = arith.constant 0 : index
    %40 = vector.load %arg8[%c0_21, %c0_22] : memref<104x256xf32, #tpu.memory_space<vmem>>, vector<104x256xf32>
    tpu.vector_store %arg8[%c0_21, %c0_22], %39 {strides = array<i32>} : memref<104x256xf32, #tpu.memory_space<vmem>>, vector<104x256xf32>,
    return
  }
  func.func @transform_0(%arg0: i32) -> (i32, i32) {
    %c0_i32 = arith.constant 0 : i32
    %c0_i32_0 = arith.constant 0 : i32
    return %arg0, %c0_i32 : i32, i32
  }
  func.func @transform_1(%arg0: i32) -> (i32, i32) {
    %c0_i32 = arith.constant 0 : i32
    %c0_i32_0 = arith.constant 0 : i32
    %c0_i32_1 = arith.constant 0 : i32
    return %c0_i32, %c0_i32_0 : i32, i32
  }
  func.func @transform_2(%arg0: i32) -> (i32, i32) {
    %c0_i32 = arith.constant 0 : i32
    %c0_i32_0 = arith.constant 0 : i32
    %c0_i32_1 = arith.constant 0 : i32
    return %c0_i32, %c0_i32_0 : i32, i32
  }
  func.func @transform_3(%arg0: i32) -> (i32, i32) {
    %c0_i32 = arith.constant 0 : i32
    %c0_i32_0 = arith.constant 0 : i32
    %c0_i32_1 = arith.constant 0 : i32
    return %c0_i32, %c0_i32_0 : i32, i32
  }
  func.func @transform_4(%arg0: i32) -> (i32, i32) {
    %c0_i32 = arith.constant 0 : i32
    %c0_i32_0 = arith.constant 0 : i32
    %c0_i32_1 = arith.constant 0 : i32
    return %c0_i32, %c0_i32_0 : i32, i32
  }
  func.func @transform_5(%arg0: i32) -> (i32, i32) {
    %c0_i32 = arith.constant 0 : i32
    %c0_i32_0 = arith.constant 0 : i32
    %c0_i32_1 = arith.constant 0 : i32
    return %c0_i32, %c0_i32_0 : i32, i32
  }
  func.func @transform_6(%arg0: i32) -> (i32, i32) {
    %c0_i32 = arith.constant 0 : i32
    %c0_i32_0 = arith.constant 0 : i32
    %c0_i32_1 = arith.constant 0 : i32
    return %c0_i32, %c0_i32_0 : i32, i32
  }
  func.func @transform_7(%arg0: i32) -> (i32, i32) {
    %c0_i32 = arith.constant 0 : i32
    %c0_i32_0 = arith.constant 0 : i32
    return %arg0, %c0_i32 : i32, i32
  }
}

module attributes {stable_mosaic.version = 11 : i64} {
  func.func @_ffn_kernel_fused(%arg0: i32, %arg1: memref<104x256xf32, #tpu.memory_space<vmem>>, %arg2: memref<256x2048xf32, #tpu.memory_space<vmem>>, %arg3: memref<1x2048xf32, #tpu.memory_space<vmem>>, %arg4: memref<2048x256xf32, #tpu.memory_space<vmem>>, %arg5: memref<1x256xf32, #tpu.memory_space<vmem>>, %arg6: memref<1x256xf32, #tpu.memory_space<vmem>>, %arg7: memref<1x256xf32, #tpu.memory_space<vmem>>, %arg8: memref<104x256xf32, #tpu.memory_space<vmem>>) attributes {dimension_semantics = [#tpu.dimension_semantics<parallel>], iteration_bounds = array<i64: 2>, scalar_prefetch = 0 : i64, scratch_operands = 0 : i64, tpu.core_type = #tpu.core_type<tc>, window_params = [{transform_indices = @transform_0, window_bounds = array<i64: 104, 256>}, {pipeline_mode = #tpu.pipeline_mode<synchronous>, transform_indices = @transform_1, window_bounds = array<i64: 256, 2048>}, {pipeline_mode = #tpu.pipeline_mode<synchronous>, transform_indices = @transform_2, window_bounds = array<i64: 1, 2048>}, {pipeline_mode = #tpu.pipeline_mode<synchronous>, transform_indices = @transform_3, window_bounds = array<i64: 2048, 256>}, {pipeline_mode = #tpu.pipeline_mode<synchronous>, transform_indices = @transform_4, window_bounds = array<i64: 1, 256>}, {pipeline_mode = #tpu.pipeline_mode<synchronous>, transform_indices = @transform_5, window_bounds = array<i64: 1, 256>}, {pipeline_mode = #tpu.pipeline_mode<synchronous>, transform_indices = @transform_6, window_bounds = array<i64: 1, 256>}, {transform_indices = @transform_7, window_bounds = array<i64: 104, 256>}]} {
    %c0 = arith.constant 0 : index
    %c0_0 = arith.constant 0 : index
    %0 = vector.load %arg1[%c0, %c0_0] : memref<104x256xf32, #tpu.memory_space<vmem>>, vector<104x256xf32>
    %c0_1 = arith.constant 0 : index
    %c0_2 = arith.constant 0 : index
    %1 = vector.load %arg2[%c0_1, %c0_2] : memref<256x2048xf32, #tpu.memory_space<vmem>>, vector<256x2048xf32>
    %cst = arith.constant dense<0.000000e+00> : vector<104x2048xf32>
    %2 = tpu.matmul %0, %1, %cst {dimension_numbers = #tpu.dot_dimension_numbers<[1], [0], [0], [1], [0, 0, 1, 1], [], []>} : vector<104x256xf32>, vector<256x2048xf32>, vector<104x2048xf32> -> vector<104x2048xf32>
    %c0_3 = arith.constant 0 : index
    %c0_4 = arith.constant 0 : index
    %3 = vector.load %arg3[%c0_3, %c0_4] : memref<1x2048xf32, #tpu.memory_space<vmem>>, vector<1x2048xf32>
    %4 = vector.broadcast %3 : vector<1x2048xf32> to vector<104x2048xf32>
    %5 = arith.addf %2, %4 : vector<104x2048xf32>
    %cst_5 = arith.constant 0.000000e+00 : f32
    %6 = vector.broadcast %cst_5 : f32 to vector<104x2048xf32>
    %7 = arith.maximumf %5, %6 : vector<104x2048xf32>
    %c0_6 = arith.constant 0 : index
    %c0_7 = arith.constant 0 : index
    %8 = vector.load %arg4[%c0_6, %c0_7] : memref<2048x256xf32, #tpu.memory_space<vmem>>, vector<2048x256xf32>
    %cst_8 = arith.constant dense<0.000000e+00> : vector<104x256xf32>
    %9 = tpu.matmul %7, %8, %cst_8 {dimension_numbers = #tpu.dot_dimension_numbers<[1], [0], [0], [1], [0, 0, 1, 1], [], []>} : vector<104x2048xf32>, vector<2048x256xf32>, vector<104x256xf32> -> vector<104x256xf32>
    %10 = arith.addf %0, %9 : vector<104x256xf32>
    %c0_9 = arith.constant 0 : index
    %c0_10 = arith.constant 0 : index
    %11 = vector.load %arg5[%c0_9, %c0_10] : memref<1x256xf32, #tpu.memory_space<vmem>>, vector<1x256xf32>
    %12 = vector.broadcast %11 : vector<1x256xf32> to vector<104x256xf32>
    %13 = arith.addf %10, %12 : vector<104x256xf32>
    %cst_11 = arith.constant dense<0.000000e+00> : vector<104xf32>
    %14 = vector.multi_reduction <add>, %13, %cst_11 [1] : vector<104x256xf32> to vector<104xf32>
    %15 = vector.shape_cast %14 : vector<104xf32> to vector<104x1xf32>
    %16 = arith.mulf %13, %13 : vector<104x256xf32>
    %cst_12 = arith.constant dense<0.000000e+00> : vector<104xf32>
    %17 = vector.multi_reduction <add>, %16, %cst_12 [1] : vector<104x256xf32> to vector<104xf32>
    %18 = vector.shape_cast %17 : vector<104xf32> to vector<104x1xf32>
    %cst_13 = arith.constant 3.906250e-03 : f32
    %19 = vector.broadcast %cst_13 : f32 to vector<104x1xf32>
    %20 = arith.mulf %15, %19 : vector<104x1xf32>
    %cst_14 = arith.constant 3.906250e-03 : f32
    %21 = vector.broadcast %cst_14 : f32 to vector<104x1xf32>
    %22 = arith.mulf %18, %21 : vector<104x1xf32>
    %23 = arith.mulf %20, %20 : vector<104x1xf32>
    %24 = arith.subf %22, %23 : vector<104x1xf32>
    %cst_15 = arith.constant 0.000000e+00 : f32
    %25 = vector.broadcast %cst_15 : f32 to vector<104x1xf32>
    %26 = arith.maximumf %24, %25 : vector<104x1xf32>
    %27 = vector.broadcast %20 : vector<104x1xf32> to vector<104x256xf32>
    %28 = arith.subf %13, %27 : vector<104x256xf32>
    %cst_16 = arith.constant 9.99999974E-6 : f32
    %29 = vector.broadcast %cst_16 : f32 to vector<104x1xf32>
    %30 = arith.addf %26, %29 : vector<104x1xf32>
    %31 = math.rsqrt %30 : vector<104x1xf32>
    %32 = vector.broadcast %31 : vector<104x1xf32> to vector<104x256xf32>
    %33 = arith.mulf %28, %32 : vector<104x256xf32>
    %c0_17 = arith.constant 0 : index
    %c0_18 = arith.constant 0 : index
    %34 = vector.load %arg6[%c0_17, %c0_18] : memref<1x256xf32, #tpu.memory_space<vmem>>, vector<1x256xf32>
    %35 = vector.broadcast %34 : vector<1x256xf32> to vector<104x256xf32>
    %36 = arith.mulf %33, %35 : vector<104x256xf32>
    %c0_19 = arith.constant 0 : index
    %c0_20 = arith.constant 0 : index
    %37 = vector.load %arg7[%c0_19, %c0_20] : memref<1x256xf32, #tpu.memory_space<vmem>>, vector<1x256xf32>
    %38 = vector.broadcast %37 : vector<1x256xf32> to vector<104x256xf32>
    %39 = arith.addf %36, %38 : vector<104x256xf32>
    %c0_21 = arith.constant 0 : index
    %c0_22 = arith.constant 0 : index
    %40 = vector.load %arg8[%c0_21, %c0_22] : memref<104x256xf32, #tpu.memory_space<vmem>>, vector<104x256xf32>
    tpu.vector_store %arg8[%c0_21, %c0_22], %39 {strides = array<i32>} : memref<104x256xf32, #tpu.memory_space<vmem>>, vector<104x256xf32>,
    return
  }
  func.func @transform_0(%arg0: i32) -> (i32, i32) {
    %c0_i32 = arith.constant 0 : i32
    %c0_i32_0 = arith.constant 0 : i32
    return %arg0, %c0_i32 : i32, i32
  }
  func.func @transform_1(%arg0: i32) -> (i32, i32) {
    %c0_i32 = arith.constant 0 : i32
    %c0_i32_0 = arith.constant 0 : i32
    %c0_i32_1 = arith.constant 0 : i32
    return %c0_i32, %c0_i32_0 : i32, i32
  }
  func.func @transform_2(%arg0: i32) -> (i32, i32) {
    %c0_i32 = arith.constant 0 : i32
    %c0_i32_0 = arith.constant 0 : i32
    %c0_i32_1 = arith.constant 0 : i32
    return %c0_i32, %c0_i32_0 : i32, i32
  }
  func.func @transform_3(%arg0: i32) -> (i32, i32) {
    %c0_i32 = arith.constant 0 : i32
    %c0_i32_0 = arith.constant 0 : i32
    %c0_i32_1 = arith.constant 0 : i32
    return %c0_i32, %c0_i32_0 : i32, i32
  }
  func.func @transform_4(%arg0: i32) -> (i32, i32) {
    %c0_i32 = arith.constant 0 : i32
    %c0_i32_0 = arith.constant 0 : i32
    %c0_i32_1 = arith.constant 0 : i32
    return %c0_i32, %c0_i32_0 : i32, i32
  }
  func.func @transform_5(%arg0: i32) -> (i32, i32) {
    %c0_i32 = arith.constant 0 : i32
    %c0_i32_0 = arith.constant 0 : i32
    %c0_i32_1 = arith.constant 0 : i32
    return %c0_i32, %c0_i32_0 : i32, i32
  }
  func.func @transform_6(%arg0: i32) -> (i32, i32) {
    %c0_i32 = arith.constant 0 : i32
    %c0_i32_0 = arith.constant 0 : i32
    %c0_i32_1 = arith.constant 0 : i32
    return %c0_i32, %c0_i32_0 : i32, i32
  }
  func.func @transform_7(%arg0: i32) -> (i32, i32) {
    %c0_i32 = arith.constant 0 : i32
    %c0_i32_0 = arith.constant 0 : i32
    return %arg0, %c0_i32 : i32, i32
  }
}

</mosaic_0001>

<llo_original>
// kernel: ffn_layer_forward.1
$region0: #{ffn_layer_forward.1}
  #allocation0 [shape = 'u32[]', space=smem, size = 0x4, offset = 0x4, fixed_abs, tag = 'smem constant byte address 0x4 - core index']
  #allocation1 [shape = 'u32[144,128]{1,0:T(1,128)}', space=vmem, size = 0x12000, scoped, tag = 'internal scratch']
  %s0 = inlined_call_operand.vmem [shape: f32[200,256], index: 0, kind: input, shape index: {}]
  %s1 = inlined_call_operand.hbm [shape: f32[256,2048], index: 1, kind: input, shape index: {}]
  %s2 = inlined_call_operand.hbm [shape: f32[1,2048], index: 2, kind: input, shape index: {}]
  %s3 = inlined_call_operand.hbm [shape: f32[2048,256], index: 3, kind: input, shape index: {}]
  %s4 = inlined_call_operand.hbm [shape: f32[1,256], index: 4, kind: input, shape index: {}]
  %s5 = inlined_call_operand.hbm [shape: f32[1,256], index: 5, kind: input, shape index: {}]
  %s6 = inlined_call_operand.hbm [shape: f32[1,256], index: 6, kind: input, shape index: {}]
  %s7 = inlined_call_operand.vmem [shape: f32[200,256], index: 7, kind: output, shape index: {}]
  %s8 = sld [smem:[#allocation0]]
  $region111: #{ffn_layer_forward.1} parent=0
    _
  %s10 = ssub.s32 1, %s8
  %s11 = scalar_select 0, %s10, %s8
  $region1: #{ffn_layer_forward.1} parent=0
    #allocation2 [shape = 'u8[2097152]{0}', space=vmem, size = 0x200000, scoped, tag = 'input window, operand 1, single buffered']
    #allocation3 [shape = 's32[2]{0}', space=sflag, size = 0x8, scoped, tag = 'scoped memory for ffn_layer_forward.1']
    #allocation4 [shape = 'u8[8192]{0}', space=vmem, size = 0x2000, scoped, tag = 'input window, operand 2, single buffered']
    #allocation5 [shape = 's32[1]{0}', space=sflag, size = 0x4, scoped, tag = 'scoped memory for ffn_layer_forward.1']
    #allocation6 [shape = 'u8[2097152]{0}', space=vmem, size = 0x200000, scoped, tag = 'input window, operand 3, single buffered']
    #allocation7 [shape = 'u8[1024]{0}', space=vmem, size = 0x400, scoped, tag = 'input window, operand 4, single buffered']
    #allocation8 [shape = 's32[1]{0}', space=sflag, size = 0x4, scoped, tag = 'scoped memory for ffn_layer_forward.1']
    #allocation9 [shape = 'u8[1024]{0}', space=vmem, size = 0x400, scoped, tag = 'input window, operand 5, single buffered']
    #allocation10 [shape = 'u8[1024]{0}', space=vmem, size = 0x400, scoped, tag = 'input window, operand 6, single buffered']
    #allocation11 [shape = 's32[1]{0}', space=sflag, size = 0x4, scoped, tag = 'scoped memory for ffn_layer_forward.1']
    #allocation12 [shape = 'u8[212992]{0}', space=vmem, size = 0x34000, scoped, tag = 'output window, operand 0']
    %12 = vsyncpa [#allocation3], 0
    %13 = vsyncpa [#allocation5], 0
    %14 = vsyncpa [#allocation8], 0
    %15 = vsyncpa [#allocation11], 0
    loop: start=0, step=1, limit=4
    $region2: #{ffn_layer_forward.1} parent=1 // loop_pre_header
      _
    $region3: #{ffn_layer_forward.1} parent=1 // loop_header
      %s17 = sphi 0, %s21
      %p18 = scmp.ge.s32.totalorder %s17, 4
      %s27 = sphi 0, %s29
      %s30 = sphi 0, %s27
      %s31 = sphi 0, %s30
      %s47 = sphi 0, %s31
      %s51 = sphi 0, %s51
      %s53 = sphi 0, %s51
      %s54 = sphi 0, %s53
      %s68 = sphi 0, %s54
      %s72 = sphi 0, %s72
      %s74 = sphi 0, %s72
      %s75 = sphi 0, %s74
      %s89 = sphi 0, %s75
      %s93 = sphi 0, %s93
      %s95 = sphi 0, %s93
      %s96 = sphi 0, %s95
      %s110 = sphi 0, %s96
      %s114 = sphi 0, %s114
      %s116 = sphi 0, %s114
      %s117 = sphi 0, %s116
      %s131 = sphi 0, %s117
      %s135 = sphi 0, %s135
      %s137 = sphi 0, %s135
      %s138 = sphi 0, %s137
      %s152 = sphi 0, %s138
      %s156 = sphi 0, %s156
      %s158 = sphi 0, %s156
      %s159 = sphi 0, %s158
      %s173 = sphi 0, %s159
      %s179 = sphi 0, %s181
      %s182 = sphi 0, %s179
      %s183 = sphi 0, %s182
      %s199 = sphi 0, %s183
    $region4: #{ffn_layer_forward.1} parent=1 // loop_header_branch
      %20 = sbr.rel (%p18) target = $region8
    $region5: #{ffn_layer_forward.1} parent=1 // loop_body
      %s22 = ssub.s32 %s17, 1
      %s23 = ssub.s32 %s17, 2
      %s24 = sadd.s32 %s17, 1
      %s25 = ssub.s32 %s17, %s24
      %p26 = scmp.eq.s32.totalorder %s25, 0
      %s28 = sadd.s32 %s27, 1
      %s29 = scalar_select %p26, %s27, %s28
      %p32 = pneg %p26
      %p33 = scmp.eq.s32.totalorder %s17, 1
      %p34 = por %p32, %p33
      %p35 = scmp.ne.s32.totalorder %s27, %s30
      %p36 = scmp.eq.s32.totalorder %s17, 0
      %p37 = por %p35, %p36
      %p38 = scmp.ne.s32.totalorder %s27, %s30
      %p39 = scmp.eq.s32.totalorder %s22, 1
      %p40 = por %p38, %p39
      %p41 = scmp.ne.s32.totalorder %s30, %s31
      %p42 = scmp.eq.s32.totalorder %s22, 0
      %p43 = por %p41, %p42
      %p44 = scmp.ne.s32.totalorder %s30, %s31
      %p45 = scmp.eq.s32.totalorder %s23, 1
      %p46 = por %p44, %p45
      %p48 = scmp.ne.s32.totalorder %s31, %s47
      %p49 = scmp.eq.s32.totalorder %s23, 0
      %p50 = por %p48, %p49
      %s52 = sadd.s32 %s51, 1
      %p55 = scmp.eq.s32.totalorder %s17, 1
      %p56 = scmp.ne.s32.totalorder %s51, %s53
      %p57 = scmp.eq.s32.totalorder %s17, 0
      %p58 = por %p56, %p57
      %p59 = scmp.ne.s32.totalorder %s51, %s53
      %p60 = scmp.eq.s32.totalorder %s22, 1
      %p61 = por %p59, %p60
      %p62 = scmp.ne.s32.totalorder %s53, %s54
      %p63 = scmp.eq.s32.totalorder %s22, 0
      %p64 = por %p62, %p63
      %p65 = scmp.ne.s32.totalorder %s53, %s54
      %p66 = scmp.eq.s32.totalorder %s23, 1
      %p67 = por %p65, %p66
      %p69 = scmp.ne.s32.totalorder %s54, %s68
      %p70 = scmp.eq.s32.totalorder %s23, 0
      %p71 = por %p69, %p70
      %s73 = sadd.s32 %s72, 1
      %p76 = scmp.eq.s32.totalorder %s17, 1
      %p77 = scmp.ne.s32.totalorder %s72, %s74
      %p78 = scmp.eq.s32.totalorder %s17, 0
      %p79 = por %p77, %p78
      %p80 = scmp.ne.s32.totalorder %s72, %s74
      %p81 = scmp.eq.s32.totalorder %s22, 1
      %p82 = por %p80, %p81
      %p83 = scmp.ne.s32.totalorder %s74, %s75
      %p84 = scmp.eq.s32.totalorder %s22, 0
      %p85 = por %p83, %p84
      %p86 = scmp.ne.s32.totalorder %s74, %s75
      %p87 = scmp.eq.s32.totalorder %s23, 1
      %p88 = por %p86, %p87
      %p90 = scmp.ne.s32.totalorder %s75, %s89
      %p91 = scmp.eq.s32.totalorder %s23, 0
      %p92 = por %p90, %p91
      %s94 = sadd.s32 %s93, 1
      %p97 = scmp.eq.s32.totalorder %s17, 1
      %p98 = scmp.ne.s32.totalorder %s93, %s95
      %p99 = scmp.eq.s32.totalorder %s17, 0
      %p100 = por %p98, %p99
      %p101 = scmp.ne.s32.totalorder %s93, %s95
      %p102 = scmp.eq.s32.totalorder %s22, 1
      %p103 = por %p101, %p102
      %p104 = scmp.ne.s32.totalorder %s95, %s96
      %p105 = scmp.eq.s32.totalorder %s22, 0
      %p106 = por %p104, %p105
      %p107 = scmp.ne.s32.totalorder %s95, %s96
      %p108 = scmp.eq.s32.totalorder %s23, 1
      %p109 = por %p107, %p108
      %p111 = scmp.ne.s32.totalorder %s96, %s110
      %p112 = scmp.eq.s32.totalorder %s23, 0
      %p113 = por %p111, %p112
      %s115 = sadd.s32 %s114, 1
      %p118 = scmp.eq.s32.totalorder %s17, 1
      %p119 = scmp.ne.s32.totalorder %s114, %s116
      %p120 = scmp.eq.s32.totalorder %s17, 0
      %p121 = por %p119, %p120
      %p122 = scmp.ne.s32.totalorder %s114, %s116
      %p123 = scmp.eq.s32.totalorder %s22, 1
      %p124 = por %p122, %p123
      %p125 = scmp.ne.s32.totalorder %s116, %s117
      %p126 = scmp.eq.s32.totalorder %s22, 0
      %p127 = por %p125, %p126
      %p128 = scmp.ne.s32.totalorder %s116, %s117
      %p129 = scmp.eq.s32.totalorder %s23, 1
      %p130 = por %p128, %p129
      %p132 = scmp.ne.s32.totalorder %s117, %s131
      %p133 = scmp.eq.s32.totalorder %s23, 0
      %p134 = por %p132, %p133
      %s136 = sadd.s32 %s135, 1
      %p139 = scmp.eq.s32.totalorder %s17, 1
      %p140 = scmp.ne.s32.totalorder %s135, %s137
      %p141 = scmp.eq.s32.totalorder %s17, 0
      %p142 = por %p140, %p141
      %p143 = scmp.ne.s32.totalorder %s135, %s137
      %p144 = scmp.eq.s32.totalorder %s22, 1
      %p145 = por %p143, %p144
      %p146 = scmp.ne.s32.totalorder %s137, %s138
      %p147 = scmp.eq.s32.totalorder %s22, 0
      %p148 = por %p146, %p147
      %p149 = scmp.ne.s32.totalorder %s137, %s138
      %p150 = scmp.eq.s32.totalorder %s23, 1
      %p151 = por %p149, %p150
      %p153 = scmp.ne.s32.totalorder %s138, %s152
      %p154 = scmp.eq.s32.totalorder %s23, 0
      %p155 = por %p153, %p154
      %s157 = sadd.s32 %s156, 1
      %p160 = scmp.eq.s32.totalorder %s17, 1
      %p161 = scmp.ne.s32.totalorder %s156, %s158
      %p162 = scmp.eq.s32.totalorder %s17, 0
      %p163 = por %p161, %p162
      %p164 = scmp.ne.s32.totalorder %s156, %s158
      %p165 = scmp.eq.s32.totalorder %s22, 1
      %p166 = por %p164, %p165
      %p167 = scmp.ne.s32.totalorder %s158, %s159
      %p168 = scmp.eq.s32.totalorder %s22, 0
      %p169 = por %p167, %p168
      %p170 = scmp.ne.s32.totalorder %s158, %s159
      %p171 = scmp.eq.s32.totalorder %s23, 1
      %p172 = por %p170, %p171
      %p174 = scmp.ne.s32.totalorder %s159, %s173
      %p175 = scmp.eq.s32.totalorder %s23, 0
      %p176 = por %p174, %p175
      %s177 = ssub.s32 %s17, %s24
      %p178 = scmp.eq.s32.totalorder %s177, 0
      %s180 = sadd.s32 %s179, 1
      %s181 = scalar_select %p178, %s179, %s180
      %p184 = pneg %p178
      %p185 = scmp.eq.s32.totalorder %s17, 1
      %p186 = por %p184, %p185
      %p187 = scmp.ne.s32.totalorder %s179, %s182
      %p188 = scmp.eq.s32.totalorder %s17, 0
      %p189 = por %p187, %p188
      %p190 = scmp.ne.s32.totalorder %s179, %s182
      %p191 = scmp.eq.s32.totalorder %s22, 1
      %p192 = por %p190, %p191
      %p193 = scmp.ne.s32.totalorder %s182, %s183
      %p194 = scmp.eq.s32.totalorder %s22, 0
      %p195 = por %p193, %p194
      %p196 = scmp.ne.s32.totalorder %s182, %s183
      %p197 = scmp.eq.s32.totalorder %s23, 1
      %p198 = por %p196, %p197
      %p200 = scmp.ne.s32.totalorder %s183, %s199
      %p201 = scmp.eq.s32.totalorder %s23, 0
      %p202 = por %p200, %p201
      %p203 = scmp.le.s32.totalorder 1, %s17
      %p204 = scmp.lt.s32.totalorder %s17, 3
      %p205 = pnand %p203, %p204
      %p206 = pneg %p205
      // Predicated region
      $region9: #{ffn_layer_forward.1} parent=5 // pred_check
        _
      $region10: #{ffn_layer_forward.1} parent=5 // pred_check_branch
        %208 = sbr.rel (%p205) target = $region12
      $region11: #{ffn_layer_forward.1} parent=5 // pred_region
        %s209 = ssub.s32 %s17, 1
        // Predicated region
        $region13: #{ffn_layer_forward.1} parent=11 // pred_check
          %p210 = pneg %p64
        $region14: #{ffn_layer_forward.1} parent=11 // pred_check_branch
          %212 = sbr.rel (%p210) target = $region16
        $region15: #{ffn_layer_forward.1} parent=11 // pred_region
          %s214 = ssub.s32 65536, 65536
          %215 = vsyncadd [#allocation3], %s214
          %s216 = sshll.u32 [#allocation2], 4
          %s217 = int_to_ptr.vmem [resolvable:$true] %s216
          %222 = dma.hbm_to_vmem [thread:$0]  %s1, 65536, %s217, [#allocation3], 2048, 2048, 128
        $region16: #{ffn_layer_forward.1} parent=11 // pred_fallthru
          _
        // Predicated region
        $region17: #{ffn_layer_forward.1} parent=11 // pred_check
          %p223 = pneg %p85
        $region18: #{ffn_layer_forward.1} parent=11 // pred_check_branch
          %225 = sbr.rel (%p223) target = $region20
        $region19: #{ffn_layer_forward.1} parent=11 // pred_region
          %s227 = ssub.s32 256, 256
          %228 = vsyncadd [#allocation5], %s227
          %s230 = sshll.u32 [#allocation4], 4
          %s231 = int_to_ptr.vmem [resolvable:$true] %s230
          %233 = dma.hbm_to_vmem [thread:$0]  %s2, 256, %s231, [#allocation5]
        $region20: #{ffn_layer_forward.1} parent=11 // pred_fallthru
          _
        // Predicated region
        $region21: #{ffn_layer_forward.1} parent=11 // pred_check
          %p234 = pneg %p106
        $region22: #{ffn_layer_forward.1} parent=11 // pred_check_branch
          %236 = sbr.rel (%p234) target = $region24
        $region23: #{ffn_layer_forward.1} parent=11 // pred_region
          %s238 = ssub.s32 65536, 65536
          %239 = vsyncadd [#allocation5], %s238
          %s240 = sshll.u32 [#allocation6], 4
          %s241 = int_to_ptr.vmem [resolvable:$true] %s240
          %246 = dma.hbm_to_vmem [thread:$0]  %s3, 65536, %s241, [#allocation5], 256, 256, 16
        $region24: #{ffn_layer_forward.1} parent=11 // pred_fallthru
          _
        // Predicated region
        $region25: #{ffn_layer_forward.1} parent=11 // pred_check
          %p247 = pneg %p127
        $region26: #{ffn_layer_forward.1} parent=11 // pred_check_branch
          %249 = sbr.rel (%p247) target = $region28
        $region27: #{ffn_layer_forward.1} parent=11 // pred_region
          %s251 = ssub.s32 32, 32
          %252 = vsyncadd [#allocation8], %s251
          %s254 = sshll.u32 [#allocation7], 4
          %s255 = int_to_ptr.vmem [resolvable:$true] %s254
          %257 = dma.hbm_to_vmem [thread:$0]  %s4, 32, %s255, [#allocation8]
        $region28: #{ffn_layer_forward.1} parent=11 // pred_fallthru
          _
        // Predicated region
        $region29: #{ffn_layer_forward.1} parent=11 // pred_check
          %p258 = pneg %p148
        $region30: #{ffn_layer_forward.1} parent=11 // pred_check_branch
          %260 = sbr.rel (%p258) target = $region32
        $region31: #{ffn_layer_forward.1} parent=11 // pred_region
          %s262 = ssub.s32 32, 32
          %263 = vsyncadd [#allocation8], %s262
          %s265 = sshll.u32 [#allocation9], 4
          %s266 = int_to_ptr.vmem [resolvable:$true] %s265
          %268 = dma.hbm_to_vmem [thread:$0]  %s5, 32, %s266, [#allocation8]
        $region32: #{ffn_layer_forward.1} parent=11 // pred_fallthru
          _
        // Predicated region
        $region33: #{ffn_layer_forward.1} parent=11 // pred_check
          %p269 = pneg %p169
        $region34: #{ffn_layer_forward.1} parent=11 // pred_check_branch
          %271 = sbr.rel (%p269) target = $region36
        $region35: #{ffn_layer_forward.1} parent=11 // pred_region
          %s273 = ssub.s32 32, 32
          %274 = vsyncadd [#allocation11], %s273
          %s276 = sshll.u32 [#allocation10], 4
          %s277 = int_to_ptr.vmem [resolvable:$true] %s276
          %279 = dma.hbm_to_vmem [thread:$0]  %s6, 32, %s277, [#allocation11]
        $region36: #{ffn_layer_forward.1} parent=11 // pred_fallthru
          _
      $region12: #{ffn_layer_forward.1} parent=5 // pred_fallthru
        _
      %p280 = scmp.lt.s32.totalorder %s17, 2
      // Predicated region
      $region37: #{ffn_layer_forward.1} parent=5 // pred_check
        %p281 = pneg %p280
      $region38: #{ffn_layer_forward.1} parent=5 // pred_check_branch
        %283 = sbr.rel (%p281) target = $region40
      $region39: #{ffn_layer_forward.1} parent=5 // pred_region
        // Predicated region
        $region41: #{ffn_layer_forward.1} parent=39 // pred_check
          %p284 = pneg %p37
        $region42: #{ffn_layer_forward.1} parent=39 // pred_check_branch
          %286 = sbr.rel (%p284) target = $region44
        $region43: #{ffn_layer_forward.1} parent=39 // pred_region
          %s287 = smul.u32 13, %s17
          %s288 = ssub.s32 25, %s287
          %p289 = scmp.lt.s32.totalorder %s288, 13
          %s290 = scalar_select %p289, %s288, 13
          %s291 = smul.u32 128, %s290
          %s292 = smul.u32 %s291, 2
          %p293 = scmp.lt.s32.totalorder %s287, 24
          %s294 = scalar_select %p293, %s287, 24
          %s295 = smul.addr %s294, 2
          %s296 = smul.addr %s295, 8
          %s297 = scalar_lea.vmem %s0, %s296
          %s298 = smul.u32 13, %s17
          %s299 = ssub.s32 25, %s298
          %p300 = scmp.lt.s32.totalorder %s299, 13
          %s301 = scalar_select %p300, %s299, 13
          %s302 = smul.u32 128, %s301
          %s303 = smul.u32 %s302, 2
        $region44: #{ffn_layer_forward.1} parent=39 // pred_fallthru
          _
      $region40: #{ffn_layer_forward.1} parent=5 // pred_fallthru
        _
      %p304 = scmp.le.s32.totalorder 1, %s17
      %p305 = scmp.lt.s32.totalorder %s17, 3
      %p306 = pnand %p304, %p305
      %p307 = pneg %p306
      // Predicated region
      $region45: #{ffn_layer_forward.1} parent=5 // pred_check
        _
      $region46: #{ffn_layer_forward.1} parent=5 // pred_check_branch
        %309 = sbr.rel (%p306) target = $region48
      $region47: #{ffn_layer_forward.1} parent=5 // pred_region
        %s310 = ssub.s32 %s17, 1
        // Predicated region
        $region49: #{ffn_layer_forward.1} parent=47 // pred_check
          %p311 = pneg %p64
        $region50: #{ffn_layer_forward.1} parent=47 // pred_check_branch
          %313 = sbr.rel (%p311) target = $region52
        $region51: #{ffn_layer_forward.1} parent=47 // pred_region
          %314 = dma.done [#allocation3], 65536
        $region52: #{ffn_layer_forward.1} parent=47 // pred_fallthru
          _
        // Predicated region
        $region53: #{ffn_layer_forward.1} parent=47 // pred_check
          %p315 = pneg %p85
        $region54: #{ffn_layer_forward.1} parent=47 // pred_check_branch
          %317 = sbr.rel (%p315) target = $region56
        $region55: #{ffn_layer_forward.1} parent=47 // pred_region
          %318 = dma.done [#allocation5], 256
        $region56: #{ffn_layer_forward.1} parent=47 // pred_fallthru
          _
        // Predicated region
        $region57: #{ffn_layer_forward.1} parent=47 // pred_check
          %p319 = pneg %p106
        $region58: #{ffn_layer_forward.1} parent=47 // pred_check_branch
          %321 = sbr.rel (%p319) target = $region60
        $region59: #{ffn_layer_forward.1} parent=47 // pred_region
          %322 = dma.done [#allocation5], 65536
        $region60: #{ffn_layer_forward.1} parent=47 // pred_fallthru
          _
        // Predicated region
        $region61: #{ffn_layer_forward.1} parent=47 // pred_check
          %p323 = pneg %p127
        $region62: #{ffn_layer_forward.1} parent=47 // pred_check_branch
          %325 = sbr.rel (%p323) target = $region64
        $region63: #{ffn_layer_forward.1} parent=47 // pred_region
          %326 = dma.done [#allocation8], 32
        $region64: #{ffn_layer_forward.1} parent=47 // pred_fallthru
          _
        // Predicated region
        $region65: #{ffn_layer_forward.1} parent=47 // pred_check
          %p327 = pneg %p148
        $region66: #{ffn_layer_forward.1} parent=47 // pred_check_branch
          %329 = sbr.rel (%p327) target = $region68
        $region67: #{ffn_layer_forward.1} parent=47 // pred_region
          %330 = dma.done [#allocation8], 32
        $region68: #{ffn_layer_forward.1} parent=47 // pred_fallthru
          _
        // Predicated region
        $region69: #{ffn_layer_forward.1} parent=47 // pred_check
          %p331 = pneg %p169
        $region70: #{ffn_layer_forward.1} parent=47 // pred_check_branch
          %333 = sbr.rel (%p331) target = $region72
        $region71: #{ffn_layer_forward.1} parent=47 // pred_region
          %334 = dma.done [#allocation11], 32
        $region72: #{ffn_layer_forward.1} parent=47 // pred_fallthru
          _
        %s335 = smul.u32 13, %s22
        %s336 = ssub.s32 25, %s335
        %p337 = scmp.lt.s32.totalorder %s336, 13
        %s338 = scalar_select %p337, %s336, 13
        %s339 = smul.u32 128, %s338
        %s340 = smul.u32 %s339, 2
        %p341 = scmp.lt.s32.totalorder %s335, 24
        %s342 = scalar_select %p341, %s335, 24
        %s343 = smul.addr %s342, 2
        %s344 = smul.addr %s343, 8
        %s345 = scalar_lea.vmem %s0, %s344
        %p346 = pneg %p43
        %p347 = pneg %p40
        %p348 = pneg %p64
        %p349 = pneg %p61
        %p350 = pneg %p85
        %p351 = pneg %p82
        %p352 = pneg %p106
        %p353 = pneg %p103
        %p354 = pneg %p127
        %p355 = pneg %p124
        %p356 = pneg %p148
        %p357 = pneg %p145
        %p358 = pneg %p169
        %p359 = pneg %p166
        %p360 = pneg %p195
        %p361 = pneg %p192
        %s362 = sand.u32 %s182, 1
        %s363 = sand.u32 %s182, 1
        %s364 = smul.addr %s363, 208
        %s365 = scalar_lea.vmem [#allocation12], %s364
        %s366 = smul.u32 13, %s22
        %s367 = ssub.s32 25, %s366
        %p368 = scmp.lt.s32.totalorder %s367, 13
        %s369 = scalar_select %p368, %s367, 13
        %s370 = smul.u32 128, %s369
        %s371 = smul.u32 %s370, 2
        %p372 = scmp.lt.s32.totalorder %s366, 24
        %s373 = scalar_select %p372, %s366, 24
        %s374 = smul.addr %s373, 2
        %s375 = smul.addr %s374, 8
        %s376 = scalar_lea.vmem %s0, %s375
        %s377 = smul.u32 13, %s22
        %s378 = ssub.s32 25, %s377
        %p379 = scmp.lt.s32.totalorder %s378, 13
        %s380 = scalar_select %p379, %s378, 13
        %s381 = smul.u32 128, %s380
        %s382 = smul.u32 %s381, 2
        %s383 = smul.u32 13, %s22
        %s384 = ssub.s32 25, %s383
        %p385 = scmp.lt.s32.totalorder %s384, 13
        %s386 = scalar_select %p385, %s384, 13
        %s387 = smul.u32 128, %s386
        %s388 = smul.u32 %s387, 2
        %v389 = vld [vmem:[%s376] sm:$0xff]
        %v390 = vld [vmem:[%s376 + $0x8] sm:$0xff]
        %v391 = vld [vmem:[%s376 + $0x10] sm:$0xff]
        %v392 = vld [vmem:[%s376 + $0x18] sm:$0xff]
        %v393 = vld [vmem:[%s376 + $0x20] sm:$0xff]
        %v394 = vld [vmem:[%s376 + $0x28] sm:$0xff]
        %v395 = vld [vmem:[%s376 + $0x30] sm:$0xff]
        %v396 = vld [vmem:[%s376 + $0x38] sm:$0xff]
        %v397 = vld [vmem:[%s376 + $0x40] sm:$0xff]
        %v398 = vld [vmem:[%s376 + $0x48] sm:$0xff]
        %v399 = vld [vmem:[%s376 + $0x50] sm:$0xff]
        %v400 = vld [vmem:[%s376 + $0x58] sm:$0xff]
        %v401 = vld [vmem:[%s376 + $0x60] sm:$0xff]
        %v402 = vld [vmem:[%s376 + $0x68] sm:$0xff]
        %v403 = vld [vmem:[%s376 + $0x70] sm:$0xff]
        %v404 = vld [vmem:[%s376 + $0x78] sm:$0xff]
        %v405 = vld [vmem:[%s376 + $0x80] sm:$0xff]
        %v406 = vld [vmem:[%s376 + $0x88] sm:$0xff]
        %v407 = vld [vmem:[%s376 + $0x90] sm:$0xff]
        %v408 = vld [vmem:[%s376 + $0x98] sm:$0xff]
        %v409 = vld [vmem:[%s376 + $0xa0] sm:$0xff]
        %v410 = vld [vmem:[%s376 + $0xa8] sm:$0xff]
        %v411 = vld [vmem:[%s376 + $0xb0] sm:$0xff]
        %v412 = vld [vmem:[%s376 + $0xb8] sm:$0xff]
        %v413 = vld [vmem:[%s376 + $0xc0] sm:$0xff]
        %v414 = vld [vmem:[%s376 + $0xc8] sm:$0xff]
        %v415 = vld [vmem:[#allocation2] sm:$0xff]
        %v416 = vld [vmem:[#allocation2 + $0x8] sm:$0xff]
        %v417 = vld [vmem:[#allocation2 + $0x10] sm:$0xff]
        %v418 = vld [vmem:[#allocation2 + $0x18] sm:$0xff]
        %v419 = vld [vmem:[#allocation2 + $0x20] sm:$0xff]
        %v420 = vld [vmem:[#allocation2 + $0x28] sm:$0xff]
        %v421 = vld [vmem:[#allocation2 + $0x30] sm:$0xff]
        %v422 = vld [vmem:[#allocation2 + $0x38] sm:$0xff]
        %v423 = vld [vmem:[#allocation2 + $0x40] sm:$0xff]
        %v424 = vld [vmem:[#allocation2 + $0x48] sm:$0xff]
        %v425 = vld [vmem:[#allocation2 + $0x50] sm:$0xff]
        %v426 = vld [vmem:[#allocation2 + $0x58] sm:$0xff]
        %v427 = vld [vmem:[#allocation2 + $0x60] sm:$0xff]
        %v428 = vld [vmem:[#allocation2 + $0x68] sm:$0xff]
        %v429 = vld [vmem:[#allocation2 + $0x70] sm:$0xff]
        %v430 = vld [vmem:[#allocation2 + $0x78] sm:$0xff]
        %v431 = vld [vmem:[#allocation2 + $0x80] sm:$0xff]
        %v432 = vld [vmem:[#allocation2 + $0x88] sm:$0xff]
        %v433 = vld [vmem:[#allocation2 + $0x90] sm:$0xff]
        %v434 = vld [vmem:[#allocation2 + $0x98] sm:$0xff]
        %v435 = vld [vmem:[#allocation2 + $0xa0] sm:$0xff]
        %v436 = vld [vmem:[#allocation2 + $0xa8] sm:$0xff]
        %v437 = vld [vmem:[#allocation2 + $0xb0] sm:$0xff]
        %v438 = vld [vmem:[#allocation2 + $0xb8] sm:$0xff]
        %v439 = vld [vmem:[#allocation2 + $0xc0] sm:$0xff]
        %v440 = vld [vmem:[#allocation2 + $0xc8] sm:$0xff]
        %v441 = vld [vmem:[#allocation2 + $0xd0] sm:$0xff]
        %v442 = vld [vmem:[#allocation2 + $0xd8] sm:$0xff]
        %v443 = vld [vmem:[#allocation2 + $0xe0] sm:$0xff]
        %v444 = vld [vmem:[#allocation2 + $0xe8] sm:$0xff]
        %v445 = vld [vmem:[#allocation2 + $0xf0] sm:$0xff]
        %v446 = vld [vmem:[#allocation2 + $0xf8] sm:$0xff]
        %v447 = vld [vmem:[#allocation2 + $0x100] sm:$0xff]
        %v448 = vld [vmem:[#allocation2 + $0x108] sm:$0xff]
        %v449 = vld [vmem:[#allocation2 + $0x110] sm:$0xff]
        %v450 = vld [vmem:[#allocation2 + $0x118] sm:$0xff]
        %v451 = vld [vmem:[#allocation2 + $0x120] sm:$0xff]
        %v452 = vld [vmem:[#allocation2 + $0x128] sm:$0xff]
        %v453 = vld [vmem:[#allocation2 + $0x130] sm:$0xff]
        %v454 = vld [vmem:[#allocation2 + $0x138] sm:$0xff]
        %v455 = vld [vmem:[#allocation2 + $0x140] sm:$0xff]
        %v456 = vld [vmem:[#allocation2 + $0x148] sm:$0xff]
        %v457 = vld [vmem:[#allocation2 + $0x150] sm:$0xff]
        %v458 = vld [vmem:[#allocation2 + $0x158] sm:$0xff]
        %v459 = vld [vmem:[#allocation2 + $0x160] sm:$0xff]
        %v460 = vld [vmem:[#allocation2 + $0x168] sm:$0xff]
        %v461 = vld [vmem:[#allocation2 + $0x170] sm:$0xff]
        %v462 = vld [vmem:[#allocation2 + $0x178] sm:$0xff]
        %v463 = vld [vmem:[#allocation2 + $0x180] sm:$0xff]
        %v464 = vld [vmem:[#allocation2 + $0x188] sm:$0xff]
        %v465 = vld [vmem:[#allocation2 + $0x190] sm:$0xff]
        %v466 = vld [vmem:[#allocation2 + $0x198] sm:$0xff]
        %v467 = vld [vmem:[#allocation2 + $0x1a0] sm:$0xff]
        %v468 = vld [vmem:[#allocation2 + $0x1a8] sm:$0xff]
        %v469 = vld [vmem:[#allocation2 + $0x1b0] sm:$0xff]
        %v470 = vld [vmem:[#allocation2 + $0x1b8] sm:$0xff]
        %v471 = vld [vmem:[#allocation2 + $0x1c0] sm:$0xff]
        %v472 = vld [vmem:[#allocation2 + $0x1c8] sm:$0xff]
        %v473 = vld [vmem:[#allocation2 + $0x1d0] sm:$0xff]
        %v474 = vld [vmem:[#allocation2 + $0x1d8] sm:$0xff]
        %v475 = vld [vmem:[#allocation2 + $0x1e0] sm:$0xff]
        %v476 = vld [vmem:[#allocation2 + $0x1e8] sm:$0xff]
        %v477 = vld [vmem:[#allocation2 + $0x1f0] sm:$0xff]
        %v478 = vld [vmem:[#allocation2 + $0x1f8] sm:$0xff]
        %v479 = vld [vmem:[#allocation2 + $0x200] sm:$0xff]
        %v480 = vld [vmem:[#allocation2 + $0x208] sm:$0xff]
        %v481 = vld [vmem:[#allocation2 + $0x210] sm:$0xff]
        %v482 = vld [vmem:[#allocation2 + $0x218] sm:$0xff]
        %v483 = vld [vmem:[#allocation2 + $0x220] sm:$0xff]
        %v484 = vld [vmem:[#allocation2 + $0x228] sm:$0xff]
        %v485 = vld [vmem:[#allocation2 + $0x230] sm:$0xff]
        %v486 = vld [vmem:[#allocation2 + $0x238] sm:$0xff]
        %v487 = vld [vmem:[#allocation2 + $0x240] sm:$0xff]
        %v488 = vld [vmem:[#allocation2 + $0x248] sm:$0xff]
        %v489 = vld [vmem:[#allocation2 + $0x250] sm:$0xff]
        %v490 = vld [vmem:[#allocation2 + $0x258] sm:$0xff]
        %v491 = vld [vmem:[#allocation2 + $0x260] sm:$0xff]
        %v492 = vld [vmem:[#allocation2 + $0x268] sm:$0xff]
        %v493 = vld [vmem:[#allocation2 + $0x270] sm:$0xff]
        %v494 = vld [vmem:[#allocation2 + $0x278] sm:$0xff]
        %v495 = vld [vmem:[#allocation2 + $0x280] sm:$0xff]
        %v496 = vld [vmem:[#allocation2 + $0x288] sm:$0xff]
        %v497 = vld [vmem:[#allocation2 + $0x290] sm:$0xff]
        %v498 = vld [vmem:[#allocation2 + $0x298] sm:$0xff]
        %v499 = vld [vmem:[#allocation2 + $0x2a0] sm:$0xff]
        %v500 = vld [vmem:[#allocation2 + $0x2a8] sm:$0xff]
        %v501 = vld [vmem:[#allocation2 + $0x2b0] sm:$0xff]
        %v502 = vld [vmem:[#allocation2 + $0x2b8] sm:$0xff]
        %v503 = vld [vmem:[#allocation2 + $0x2c0] sm:$0xff]
        %v504 = vld [vmem:[#allocation2 + $0x2c8] sm:$0xff]
        %v505 = vld [vmem:[#allocation2 + $0x2d0] sm:$0xff]
        %v506 = vld [vmem:[#allocation2 + $0x2d8] sm:$0xff]
        %v507 = vld [vmem:[#allocation2 + $0x2e0] sm:$0xff]
        %v508 = vld [vmem:[#allocation2 + $0x2e8] sm:$0xff]
        %v509 = vld [vmem:[#allocation2 + $0x2f0] sm:$0xff]
        %v510 = vld [vmem:[#allocation2 + $0x2f8] sm:$0xff]
        %v511 = vld [vmem:[#allocation2 + $0x300] sm:$0xff]
        %v512 = vld [vmem:[#allocation2 + $0x308] sm:$0xff]
        %v513 = vld [vmem:[#allocation2 + $0x310] sm:$0xff]
        %v514 = vld [vmem:[#allocation2 + $0x318] sm:$0xff]
        %v515 = vld [vmem:[#allocation2 + $0x320] sm:$0xff]
        %v516 = vld [vmem:[#allocation2 + $0x328] sm:$0xff]
        %v517 = vld [vmem:[#allocation2 + $0x330] sm:$0xff]
        %v518 = vld [vmem:[#allocation2 + $0x338] sm:$0xff]
        %v519 = vld [vmem:[#allocation2 + $0x340] sm:$0xff]
        %v520 = vld [vmem:[#allocation2 + $0x348] sm:$0xff]
        %v521 = vld [vmem:[#allocation2 + $0x350] sm:$0xff]
        %v522 = vld [vmem:[#allocation2 + $0x358] sm:$0xff]
        %v523 = vld [vmem:[#allocation2 + $0x360] sm:$0xff]
        %v524 = vld [vmem:[#allocation2 + $0x368] sm:$0xff]
        %v525 = vld [vmem:[#allocation2 + $0x370] sm:$0xff]
        %v526 = vld [vmem:[#allocation2 + $0x378] sm:$0xff]
        %v527 = vld [vmem:[#allocation2 + $0x380] sm:$0xff]
        %v528 = vld [vmem:[#allocation2 + $0x388] sm:$0xff]
        %v529 = vld [vmem:[#allocation2 + $0x390] sm:$0xff]
        %v530 = vld [vmem:[#allocation2 + $0x398] sm:$0xff]
        %v531 = vld [vmem:[#allocation2 + $0x3a0] sm:$0xff]
        %v532 = vld [vmem:[#allocation2 + $0x3a8] sm:$0xff]
        %v533 = vld [vmem:[#allocation2 + $0x3b0] sm:$0xff]
        %v534 = vld [vmem:[#allocation2 + $0x3b8] sm:$0xff]
        %v535 = vld [vmem:[#allocation2 + $0x3c0] sm:$0xff]
        %v536 = vld [vmem:[#allocation2 + $0x3c8] sm:$0xff]
        %v537 = vld [vmem:[#allocation2 + $0x3d0] sm:$0xff]
        %v538 = vld [vmem:[#allocation2 + $0x3d8] sm:$0xff]
        %v539 = vld [vmem:[#allocation2 + $0x3e0] sm:$0xff]
        %v540 = vld [vmem:[#allocation2 + $0x3e8] sm:$0xff]
        %v541 = vld [vmem:[#allocation2 + $0x3f0] sm:$0xff]
        %v542 = vld [vmem:[#allocation2 + $0x3f8] sm:$0xff]
        %v543 = vld [vmem:[#allocation2 + $0x400] sm:$0xff]
        %v544 = vld [vmem:[#allocation2 + $0x408] sm:$0xff]
        %v545 = vld [vmem:[#allocation2 + $0x410] sm:$0xff]
        %v546 = vld [vmem:[#allocation2 + $0x418] sm:$0xff]
        %v547 = vld [vmem:[#allocation2 + $0x420] sm:$0xff]
        %v548 = vld [vmem:[#allocation2 + $0x428] sm:$0xff]
        %v549 = vld [vmem:[#allocation2 + $0x430] sm:$0xff]
        %v550 = vld [vmem:[#allocation2 + $0x438] sm:$0xff]
        %v551 = vld [vmem:[#allocation2 + $0x440] sm:$0xff]
        %v552 = vld [vmem:[#allocation2 + $0x448] sm:$0xff]
        %v553 = vld [vmem:[#allocation2 + $0x450] sm:$0xff]
        %v554 = vld [vmem:[#allocation2 + $0x458] sm:$0xff]
        %v555 = vld [vmem:[#allocation2 + $0x460] sm:$0xff]
        %v556 = vld [vmem:[#allocation2 + $0x468] sm:$0xff]
        %v557 = vld [vmem:[#allocation2 + $0x470] sm:$0xff]
        %v558 = vld [vmem:[#allocation2 + $0x478] sm:$0xff]
        %v559 = vld [vmem:[#allocation2 + $0x480] sm:$0xff]
        %v560 = vld [vmem:[#allocation2 + $0x488] sm:$0xff]
        %v561 = vld [vmem:[#allocation2 + $0x490] sm:$0xff]
        %v562 = vld [vmem:[#allocation2 + $0x498] sm:$0xff]
        %v563 = vld [vmem:[#allocation2 + $0x4a0] sm:$0xff]
        %v564 = vld [vmem:[#allocation2 + $0x4a8] sm:$0xff]
        %v565 = vld [vmem:[#allocation2 + $0x4b0] sm:$0xff]
        %v566 = vld [vmem:[#allocation2 + $0x4b8] sm:$0xff]
        %v567 = vld [vmem:[#allocation2 + $0x4c0] sm:$0xff]
        %v568 = vld [vmem:[#allocation2 + $0x4c8] sm:$0xff]
        %v569 = vld [vmem:[#allocation2 + $0x4d0] sm:$0xff]
        %v570 = vld [vmem:[#allocation2 + $0x4d8] sm:$0xff]
        %v571 = vld [vmem:[#allocation2 + $0x4e0] sm:$0xff]
        %v572 = vld [vmem:[#allocation2 + $0x4e8] sm:$0xff]
        %v573 = vld [vmem:[#allocation2 + $0x4f0] sm:$0xff]
        %v574 = vld [vmem:[#allocation2 + $0x4f8] sm:$0xff]
        %v575 = vld [vmem:[#allocation2 + $0x500] sm:$0xff]
        %v576 = vld [vmem:[#allocation2 + $0x508] sm:$0xff]
        %v577 = vld [vmem:[#allocation2 + $0x510] sm:$0xff]
        %v578 = vld [vmem:[#allocation2 + $0x518] sm:$0xff]
        %v579 = vld [vmem:[#allocation2 + $0x520] sm:$0xff]
        %v580 = vld [vmem:[#allocation2 + $0x528] sm:$0xff]
        %v581 = vld [vmem:[#allocation2 + $0x530] sm:$0xff]
        %v582 = vld [vmem:[#allocation2 + $0x538] sm:$0xff]
        %v583 = vld [vmem:[#allocation2 + $0x540] sm:$0xff]
        %v584 = vld [vmem:[#allocation2 + $0x548] sm:$0xff]
        %v585 = vld [vmem:[#allocation2 + $0x550] sm:$0xff]
        %v586 = vld [vmem:[#allocation2 + $0x558] sm:$0xff]
        %v587 = vld [vmem:[#allocation2 + $0x560] sm:$0xff]
        %v588 = vld [vmem:[#allocation2 + $0x568] sm:$0xff]
        %v589 = vld [vmem:[#allocation2 + $0x570] sm:$0xff]
        %v590 = vld [vmem:[#allocation2 + $0x578] sm:$0xff]
        %v591 = vld [vmem:[#allocation2 + $0x580] sm:$0xff]
        %v592 = vld [vmem:[#allocation2 + $0x588] sm:$0xff]
        %v593 = vld [vmem:[#allocation2 + $0x590] sm:$0xff]
        %v594 = vld [vmem:[#allocation2 + $0x598] sm:$0xff]
        %v595 = vld [vmem:[#allocation2 + $0x5a0] sm:$0xff]
        %v596 = vld [vmem:[#allocation2 + $0x5a8] sm:$0xff]
        %v597 = vld [vmem:[#allocation2 + $0x5b0] sm:$0xff]
        %v598 = vld [vmem:[#allocation2 + $0x5b8] sm:$0xff]
        %v599 = vld [vmem:[#allocation2 + $0x5c0] sm:$0xff]
        %v600 = vld [vmem:[#allocation2 + $0x5c8] sm:$0xff]
        %v601 = vld [vmem:[#allocation2 + $0x5d0] sm:$0xff]
        %v602 = vld [vmem:[#allocation2 + $0x5d8] sm:$0xff]
        %v603 = vld [vmem:[#allocation2 + $0x5e0] sm:$0xff]
        %v604 = vld [vmem:[#allocation2 + $0x5e8] sm:$0xff]
        %v605 = vld [vmem:[#allocation2 + $0x5f0] sm:$0xff]
        %v606 = vld [vmem:[#allocation2 + $0x5f8] sm:$0xff]
        %v607 = vld [vmem:[#allocation2 + $0x600] sm:$0xff]
        %v608 = vld [vmem:[#allocation2 + $0x608] sm:$0xff]
        %v609 = vld [vmem:[#allocation2 + $0x610] sm:$0xff]
        %v610 = vld [vmem:[#allocation2 + $0x618] sm:$0xff]
        %v611 = vld [vmem:[#allocation2 + $0x620] sm:$0xff]
        %v612 = vld [vmem:[#allocation2 + $0x628] sm:$0xff]
        %v613 = vld [vmem:[#allocation2 + $0x630] sm:$0xff]
        %v614 = vld [vmem:[#allocation2 + $0x638] sm:$0xff]
        %v615 = vld [vmem:[#allocation2 + $0x640] sm:$0xff]
        %v616 = vld [vmem:[#allocation2 + $0x648] sm:$0xff]
        %v617 = vld [vmem:[#allocation2 + $0x650] sm:$0xff]
        %v618 = vld [vmem:[#allocation2 + $0x658] sm:$0xff]
        %v619 = vld [vmem:[#allocation2 + $0x660] sm:$0xff]
        %v620 = vld [vmem:[#allocation2 + $0x668] sm:$0xff]
        %v621 = vld [vmem:[#allocation2 + $0x670] sm:$0xff]
        %v622 = vld [vmem:[#allocation2 + $0x678] sm:$0xff]
        %v623 = vld [vmem:[#allocation2 + $0x680] sm:$0xff]
        %v624 = vld [vmem:[#allocation2 + $0x688] sm:$0xff]
        %v625 = vld [vmem:[#allocation2 + $0x690] sm:$0xff]
        %v626 = vld [vmem:[#allocation2 + $0x698] sm:$0xff]
        %v627 = vld [vmem:[#allocation2 + $0x6a0] sm:$0xff]
        %v628 = vld [vmem:[#allocation2 + $0x6a8] sm:$0xff]
        %v629 = vld [vmem:[#allocation2 + $0x6b0] sm:$0xff]
        %v630 = vld [vmem:[#allocation2 + $0x6b8] sm:$0xff]
        %v631 = vld [vmem:[#allocation2 + $0x6c0] sm:$0xff]
        %v632 = vld [vmem:[#allocation2 + $0x6c8] sm:$0xff]
        %v633 = vld [vmem:[#allocation2 + $0x6d0] sm:$0xff]
        %v634 = vld [vmem:[#allocation2 + $0x6d8] sm:$0xff]
        %v635 = vld [vmem:[#allocation2 + $0x6e0] sm:$0xff]
        %v636 = vld [vmem:[#allocation2 + $0x6e8] sm:$0xff]
        %v637 = vld [vmem:[#allocation2 + $0x6f0] sm:$0xff]
        %v638 = vld [vmem:[#allocation2 + $0x6f8] sm:$0xff]
        %v639 = vld [vmem:[#allocation2 + $0x700] sm:$0xff]
        %v640 = vld [vmem:[#allocation2 + $0x708] sm:$0xff]
        %v641 = vld [vmem:[#allocation2 + $0x710] sm:$0xff]
        %v642 = vld [vmem:[#allocation2 + $0x718] sm:$0xff]
        %v643 = vld [vmem:[#allocation2 + $0x720] sm:$0xff]
        %v644 = vld [vmem:[#allocation2 + $0x728] sm:$0xff]
        %v645 = vld [vmem:[#allocation2 + $0x730] sm:$0xff]
        %v646 = vld [vmem:[#allocation2 + $0x738] sm:$0xff]
        %v647 = vld [vmem:[#allocation2 + $0x740] sm:$0xff]
        %v648 = vld [vmem:[#allocation2 + $0x748] sm:$0xff]
        %v649 = vld [vmem:[#allocation2 + $0x750] sm:$0xff]
        %v650 = vld [vmem:[#allocation2 + $0x758] sm:$0xff]
        %v651 = vld [vmem:[#allocation2 + $0x760] sm:$0xff]
        %v652 = vld [vmem:[#allocation2 + $0x768] sm:$0xff]
        %v653 = vld [vmem:[#allocation2 + $0x770] sm:$0xff]
        %v654 = vld [vmem:[#allocation2 + $0x778] sm:$0xff]
        %v655 = vld [vmem:[#allocation2 + $0x780] sm:$0xff]
        %v656 = vld [vmem:[#allocation2 + $0x788] sm:$0xff]
        %v657 = vld [vmem:[#allocation2 + $0x790] sm:$0xff]
        %v658 = vld [vmem:[#allocation2 + $0x798] sm:$0xff]
        %v659 = vld [vmem:[#allocation2 + $0x7a0] sm:$0xff]
        %v660 = vld [vmem:[#allocation2 + $0x7a8] sm:$0xff]
        %v661 = vld [vmem:[#allocation2 + $0x7b0] sm:$0xff]
        %v662 = vld [vmem:[#allocation2 + $0x7b8] sm:$0xff]
        %v663 = vld [vmem:[#allocation2 + $0x7c0] sm:$0xff]
        %v664 = vld [vmem:[#allocation2 + $0x7c8] sm:$0xff]
        %v665 = vld [vmem:[#allocation2 + $0x7d0] sm:$0xff]
        %v666 = vld [vmem:[#allocation2 + $0x7d8] sm:$0xff]
        %v667 = vld [vmem:[#allocation2 + $0x7e0] sm:$0xff]
        %v668 = vld [vmem:[#allocation2 + $0x7e8] sm:$0xff]
        %v669 = vld [vmem:[#allocation2 + $0x7f0] sm:$0xff]
        %v670 = vld [vmem:[#allocation2 + $0x7f8] sm:$0xff]
        %v671 = vld [vmem:[#allocation2 + $0x800] sm:$0xff]
        %v672 = vld [vmem:[#allocation2 + $0x808] sm:$0xff]
        %v673 = vld [vmem:[#allocation2 + $0x810] sm:$0xff]
        %v674 = vld [vmem:[#allocation2 + $0x818] sm:$0xff]
        %v675 = vld [vmem:[#allocation2 + $0x820] sm:$0xff]
        %v676 = vld [vmem:[#allocation2 + $0x828] sm:$0xff]
        %v677 = vld [vmem:[#allocation2 + $0x830] sm:$0xff]
        %v678 = vld [vmem:[#allocation2 + $0x838] sm:$0xff]
        %v679 = vld [vmem:[#allocation2 + $0x840] sm:$0xff]
        %v680 = vld [vmem:[#allocation2 + $0x848] sm:$0xff]
        %v681 = vld [vmem:[#allocation2 + $0x850] sm:$0xff]
        %v682 = vld [vmem:[#allocation2 + $0x858] sm:$0xff]
        %v683 = vld [vmem:[#allocation2 + $0x860] sm:$0xff]
        %v684 = vld [vmem:[#allocation2 + $0x868] sm:$0xff]
        %v685 = vld [vmem:[#allocation2 + $0x870] sm:$0xff]
        %v686 = vld [vmem:[#allocation2 + $0x878] sm:$0xff]
        %v687 = vld [vmem:[#allocation2 + $0x880] sm:$0xff]
        %v688 = vld [vmem:[#allocation2 + $0x888] sm:$0xff]
        %v689 = vld [vmem:[#allocation2 + $0x890] sm:$0xff]
        %v690 = vld [vmem:[#allocation2 + $0x898] sm:$0xff]
        %v691 = vld [vmem:[#allocation2 + $0x8a0] sm:$0xff]
        %v692 = vld [vmem:[#allocation2 + $0x8a8] sm:$0xff]
        %v693 = vld [vmem:[#allocation2 + $0x8b0] sm:$0xff]
        %v694 = vld [vmem:[#allocation2 + $0x8b8] sm:$0xff]
        %v695 = vld [vmem:[#allocation2 + $0x8c0] sm:$0xff]
        %v696 = vld [vmem:[#allocation2 + $0x8c8] sm:$0xff]
        %v697 = vld [vmem:[#allocation2 + $0x8d0] sm:$0xff]
        %v698 = vld [vmem:[#allocation2 + $0x8d8] sm:$0xff]
        %v699 = vld [vmem:[#allocation2 + $0x8e0] sm:$0xff]
        %v700 = vld [vmem:[#allocation2 + $0x8e8] sm:$0xff]
        %v701 = vld [vmem:[#allocation2 + $0x8f0] sm:$0xff]
        %v702 = vld [vmem:[#allocation2 + $0x8f8] sm:$0xff]
        %v703 = vld [vmem:[#allocation2 + $0x900] sm:$0xff]
        %v704 = vld [vmem:[#allocation2 + $0x908] sm:$0xff]
        %v705 = vld [vmem:[#allocation2 + $0x910] sm:$0xff]
        %v706 = vld [vmem:[#allocation2 + $0x918] sm:$0xff]
        %v707 = vld [vmem:[#allocation2 + $0x920] sm:$0xff]
        %v708 = vld [vmem:[#allocation2 + $0x928] sm:$0xff]
        %v709 = vld [vmem:[#allocation2 + $0x930] sm:$0xff]
        %v710 = vld [vmem:[#allocation2 + $0x938] sm:$0xff]
        %v711 = vld [vmem:[#allocation2 + $0x940] sm:$0xff]
        %v712 = vld [vmem:[#allocation2 + $0x948] sm:$0xff]
        %v713 = vld [vmem:[#allocation2 + $0x950] sm:$0xff]
        %v714 = vld [vmem:[#allocation2 + $0x958] sm:$0xff]
        %v715 = vld [vmem:[#allocation2 + $0x960] sm:$0xff]
        %v716 = vld [vmem:[#allocation2 + $0x968] sm:$0xff]
        %v717 = vld [vmem:[#allocation2 + $0x970] sm:$0xff]
        %v718 = vld [vmem:[#allocation2 + $0x978] sm:$0xff]
        %v719 = vld [vmem:[#allocation2 + $0x980] sm:$0xff]
        %v720 = vld [vmem:[#allocation2 + $0x988] sm:$0xff]
        %v721 = vld [vmem:[#allocation2 + $0x990] sm:$0xff]
        %v722 = vld [vmem:[#allocation2 + $0x998] sm:$0xff]
        %v723 = vld [vmem:[#allocation2 + $0x9a0] sm:$0xff]
        %v724 = vld [vmem:[#allocation2 + $0x9a8] sm:$0xff]
        %v725 = vld [vmem:[#allocation2 + $0x9b0] sm:$0xff]
        %v726 = vld [vmem:[#allocation2 + $0x9b8] sm:$0xff]
        %v727 = vld [vmem:[#allocation2 + $0x9c0] sm:$0xff]
        %v728 = vld [vmem:[#allocation2 + $0x9c8] sm:$0xff]
        %v729 = vld [vmem:[#allocation2 + $0x9d0] sm:$0xff]
        %v730 = vld [vmem:[#allocation2 + $0x9d8] sm:$0xff]
        %v731 = vld [vmem:[#allocation2 + $0x9e0] sm:$0xff]
        %v732 = vld [vmem:[#allocation2 + $0x9e8] sm:$0xff]
        %v733 = vld [vmem:[#allocation2 + $0x9f0] sm:$0xff]
        %v734 = vld [vmem:[#allocation2 + $0x9f8] sm:$0xff]
        %v735 = vld [vmem:[#allocation2 + $0xa00] sm:$0xff]
        %v736 = vld [vmem:[#allocation2 + $0xa08] sm:$0xff]
        %v737 = vld [vmem:[#allocation2 + $0xa10] sm:$0xff]
        %v738 = vld [vmem:[#allocation2 + $0xa18] sm:$0xff]
        %v739 = vld [vmem:[#allocation2 + $0xa20] sm:$0xff]
        %v740 = vld [vmem:[#allocation2 + $0xa28] sm:$0xff]
        %v741 = vld [vmem:[#allocation2 + $0xa30] sm:$0xff]
        %v742 = vld [vmem:[#allocation2 + $0xa38] sm:$0xff]
        %v743 = vld [vmem:[#allocation2 + $0xa40] sm:$0xff]
        %v744 = vld [vmem:[#allocation2 + $0xa48] sm:$0xff]
        %v745 = vld [vmem:[#allocation2 + $0xa50] sm:$0xff]
        %v746 = vld [vmem:[#allocation2 + $0xa58] sm:$0xff]
        %v747 = vld [vmem:[#allocation2 + $0xa60] sm:$0xff]
        %v748 = vld [vmem:[#allocation2 + $0xa68] sm:$0xff]
        %v749 = vld [vmem:[#allocation2 + $0xa70] sm:$0xff]
        %v750 = vld [vmem:[#allocation2 + $0xa78] sm:$0xff]
        %v751 = vld [vmem:[#allocation2 + $0xa80] sm:$0xff]
        %v752 = vld [vmem:[#allocation2 + $0xa88] sm:$0xff]
        %v753 = vld [vmem:[#allocation2 + $0xa90] sm:$0xff]
        %v754 = vld [vmem:[#allocation2 + $0xa98] sm:$0xff]
        %v755 = vld [vmem:[#allocation2 + $0xaa0] sm:$0xff]
        %v756 = vld [vmem:[#allocation2 + $0xaa8] sm:$0xff]
        %v757 = vld [vmem:[#allocation2 + $0xab0] sm:$0xff]
        %v758 = vld [vmem:[#allocation2 + $0xab8] sm:$0xff]
        %v759 = vld [vmem:[#allocation2 + $0xac0] sm:$0xff]
        %v760 = vld [vmem:[#allocation2 + $0xac8] sm:$0xff]
        %v761 = vld [vmem:[#allocation2 + $0xad0] sm:$0xff]
        %v762 = vld [vmem:[#allocation2 + $0xad8] sm:$0xff]
        %v763 = vld [vmem:[#allocation2 + $0xae0] sm:$0xff]
        %v764 = vld [vmem:[#allocation2 + $0xae8] sm:$0xff]
        %v765 = vld [vmem:[#allocation2 + $0xaf0] sm:$0xff]
        %v766 = vld [vmem:[#allocation2 + $0xaf8] sm:$0xff]
        %v767 = vld [vmem:[#allocation2 + $0xb00] sm:$0xff]
        %v768 = vld [vmem:[#allocation2 + $0xb08] sm:$0xff]
        %v769 = vld [vmem:[#allocation2 + $0xb10] sm:$0xff]
        %v770 = vld [vmem:[#allocation2 + $0xb18] sm:$0xff]
        %v771 = vld [vmem:[#allocation2 + $0xb20] sm:$0xff]
        %v772 = vld [vmem:[#allocation2 + $0xb28] sm:$0xff]
        %v773 = vld [vmem:[#allocation2 + $0xb30] sm:$0xff]
        %v774 = vld [vmem:[#allocation2 + $0xb38] sm:$0xff]
        %v775 = vld [vmem:[#allocation2 + $0xb40] sm:$0xff]
        %v776 = vld [vmem:[#allocation2 + $0xb48] sm:$0xff]
        %v777 = vld [vmem:[#allocation2 + $0xb50] sm:$0xff]
        %v778 = vld [vmem:[#allocation2 + $0xb58] sm:$0xff]
        %v779 = vld [vmem:[#allocation2 + $0xb60] sm:$0xff]
        %v780 = vld [vmem:[#allocation2 + $0xb68] sm:$0xff]
        %v781 = vld [vmem:[#allocation2 + $0xb70] sm:$0xff]
        %v782 = vld [vmem:[#allocation2 + $0xb78] sm:$0xff]
        %v783 = vld [vmem:[#allocation2 + $0xb80] sm:$0xff]
        %v784 = vld [vmem:[#allocation2 + $0xb88] sm:$0xff]
        %v785 = vld [vmem:[#allocation2 + $0xb90] sm:$0xff]
        %v786 = vld [vmem:[#allocation2 + $0xb98] sm:$0xff]
        %v787 = vld [vmem:[#allocation2 + $0xba0] sm:$0xff]
        %v788 = vld [vmem:[#allocation2 + $0xba8] sm:$0xff]
        %v789 = vld [vmem:[#allocation2 + $0xbb0] sm:$0xff]
        %v790 = vld [vmem:[#allocation2 + $0xbb8] sm:$0xff]
        %v791 = vld [vmem:[#allocation2 + $0xbc0] sm:$0xff]
        %v792 = vld [vmem:[#allocation2 + $0xbc8] sm:$0xff]
        %v793 = vld [vmem:[#allocation2 + $0xbd0] sm:$0xff]
        %v794 = vld [vmem:[#allocation2 + $0xbd8] sm:$0xff]
        %v795 = vld [vmem:[#allocation2 + $0xbe0] sm:$0xff]
        %v796 = vld [vmem:[#allocation2 + $0xbe8] sm:$0xff]
        %v797 = vld [vmem:[#allocation2 + $0xbf0] sm:$0xff]
        %v798 = vld [vmem:[#allocation2 + $0xbf8] sm:$0xff]
        %v799 = vld [vmem:[#allocation2 + $0xc00] sm:$0xff]
        %v800 = vld [vmem:[#allocation2 + $0xc08] sm:$0xff]
        %v801 = vld [vmem:[#allocation2 + $0xc10] sm:$0xff]
        %v802 = vld [vmem:[#allocation2 + $0xc18] sm:$0xff]
        %v803 = vld [vmem:[#allocation2 + $0xc20] sm:$0xff]
        %v804 = vld [vmem:[#allocation2 + $0xc28] sm:$0xff]
        %v805 = vld [vmem:[#allocation2 + $0xc30] sm:$0xff]
        %v806 = vld [vmem:[#allocation2 + $0xc38] sm:$0xff]
        %v807 = vld [vmem:[#allocation2 + $0xc40] sm:$0xff]
        %v808 = vld [vmem:[#allocation2 + $0xc48] sm:$0xff]
        %v809 = vld [vmem:[#allocation2 + $0xc50] sm:$0xff]
        %v810 = vld [vmem:[#allocation2 + $0xc58] sm:$0xff]
        %v811 = vld [vmem:[#allocation2 + $0xc60] sm:$0xff]
        %v812 = vld [vmem:[#allocation2 + $0xc68] sm:$0xff]
        %v813 = vld [vmem:[#allocation2 + $0xc70] sm:$0xff]
        %v814 = vld [vmem:[#allocation2 + $0xc78] sm:$0xff]
        %v815 = vld [vmem:[#allocation2 + $0xc80] sm:$0xff]
        %v816 = vld [vmem:[#allocation2 + $0xc88] sm:$0xff]
        %v817 = vld [vmem:[#allocation2 + $0xc90] sm:$0xff]
        %v818 = vld [vmem:[#allocation2 + $0xc98] sm:$0xff]
        %v819 = vld [vmem:[#allocation2 + $0xca0] sm:$0xff]
        %v820 = vld [vmem:[#allocation2 + $0xca8] sm:$0xff]
        %v821 = vld [vmem:[#allocation2 + $0xcb0] sm:$0xff]
        %v822 = vld [vmem:[#allocation2 + $0xcb8] sm:$0xff]
        %v823 = vld [vmem:[#allocation2 + $0xcc0] sm:$0xff]
        %v824 = vld [vmem:[#allocation2 + $0xcc8] sm:$0xff]
        %v825 = vld [vmem:[#allocation2 + $0xcd0] sm:$0xff]
        %v826 = vld [vmem:[#allocation2 + $0xcd8] sm:$0xff]
        %v827 = vld [vmem:[#allocation2 + $0xce0] sm:$0xff]
        %v828 = vld [vmem:[#allocation2 + $0xce8] sm:$0xff]
        %v829 = vld [vmem:[#allocation2 + $0xcf0] sm:$0xff]
        %v830 = vld [vmem:[#allocation2 + $0xcf8] sm:$0xff]
        %v831 = vld [vmem:[#allocation2 + $0xd00] sm:$0xff]
        %v832 = vld [vmem:[#allocation2 + $0xd08] sm:$0xff]
        %v833 = vld [vmem:[#allocation2 + $0xd10] sm:$0xff]
        %v834 = vld [vmem:[#allocation2 + $0xd18] sm:$0xff]
        %v835 = vld [vmem:[#allocation2 + $0xd20] sm:$0xff]
        %v836 = vld [vmem:[#allocation2 + $0xd28] sm:$0xff]
        %v837 = vld [vmem:[#allocation2 + $0xd30] sm:$0xff]
        %v838 = vld [vmem:[#allocation2 + $0xd38] sm:$0xff]
        %v839 = vld [vmem:[#allocation2 + $0xd40] sm:$0xff]
        %v840 = vld [vmem:[#allocation2 + $0xd48] sm:$0xff]
        %v841 = vld [vmem:[#allocation2 + $0xd50] sm:$0xff]
        %v842 = vld [vmem:[#allocation2 + $0xd58] sm:$0xff]
        %v843 = vld [vmem:[#allocation2 + $0xd60] sm:$0xff]
        %v844 = vld [vmem:[#allocation2 + $0xd68] sm:$0xff]
        %v845 = vld [vmem:[#allocation2 + $0xd70] sm:$0xff]
        %v846 = vld [vmem:[#allocation2 + $0xd78] sm:$0xff]
        %v847 = vld [vmem:[#allocation2 + $0xd80] sm:$0xff]
        %v848 = vld [vmem:[#allocation2 + $0xd88] sm:$0xff]
        %v849 = vld [vmem:[#allocation2 + $0xd90] sm:$0xff]
        %v850 = vld [vmem:[#allocation2 + $0xd98] sm:$0xff]
        %v851 = vld [vmem:[#allocation2 + $0xda0] sm:$0xff]
        %v852 = vld [vmem:[#allocation2 + $0xda8] sm:$0xff]
        %v853 = vld [vmem:[#allocation2 + $0xdb0] sm:$0xff]
        %v854 = vld [vmem:[#allocation2 + $0xdb8] sm:$0xff]
        %v855 = vld [vmem:[#allocation2 + $0xdc0] sm:$0xff]
        %v856 = vld [vmem:[#allocation2 + $0xdc8] sm:$0xff]
        %v857 = vld [vmem:[#allocation2 + $0xdd0] sm:$0xff]
        %v858 = vld [vmem:[#allocation2 + $0xdd8] sm:$0xff]
        %v859 = vld [vmem:[#allocation2 + $0xde0] sm:$0xff]
        %v860 = vld [vmem:[#allocation2 + $0xde8] sm:$0xff]
        %v861 = vld [vmem:[#allocation2 + $0xdf0] sm:$0xff]
        %v862 = vld [vmem:[#allocation2 + $0xdf8] sm:$0xff]
        %v863 = vld [vmem:[#allocation2 + $0xe00] sm:$0xff]
        %v864 = vld [vmem:[#allocation2 + $0xe08] sm:$0xff]
        %v865 = vld [vmem:[#allocation2 + $0xe10] sm:$0xff]
        %v866 = vld [vmem:[#allocation2 + $0xe18] sm:$0xff]
        %v867 = vld [vmem:[#allocation2 + $0xe20] sm:$0xff]
        %v868 = vld [vmem:[#allocation2 + $0xe28] sm:$0xff]
        %v869 = vld [vmem:[#allocation2 + $0xe30] sm:$0xff]
        %v870 = vld [vmem:[#allocation2 + $0xe38] sm:$0xff]
        %v871 = vld [vmem:[#allocation2 + $0xe40] sm:$0xff]
        %v872 = vld [vmem:[#allocation2 + $0xe48] sm:$0xff]
        %v873 = vld [vmem:[#allocation2 + $0xe50] sm:$0xff]
        %v874 = vld [vmem:[#allocation2 + $0xe58] sm:$0xff]
        %v875 = vld [vmem:[#allocation2 + $0xe60] sm:$0xff]
        %v876 = vld [vmem:[#allocation2 + $0xe68] sm:$0xff]
        %v877 = vld [vmem:[#allocation2 + $0xe70] sm:$0xff]
        %v878 = vld [vmem:[#allocation2 + $0xe78] sm:$0xff]
        %v879 = vld [vmem:[#allocation2 + $0xe80] sm:$0xff]
        %v880 = vld [vmem:[#allocation2 + $0xe88] sm:$0xff]
        %v881 = vld [vmem:[#allocation2 + $0xe90] sm:$0xff]
        %v882 = vld [vmem:[#allocation2 + $0xe98] sm:$0xff]
        %v883 = vld [vmem:[#allocation2 + $0xea0] sm:$0xff]
        %v884 = vld [vmem:[#allocation2 + $0xea8] sm:$0xff]
        %v885 = vld [vmem:[#allocation2 + $0xeb0] sm:$0xff]
        %v886 = vld [vmem:[#allocation2 + $0xeb8] sm:$0xff]
        %v887 = vld [vmem:[#allocation2 + $0xec0] sm:$0xff]
        %v888 = vld [vmem:[#allocation2 + $0xec8] sm:$0xff]
        %v889 = vld [vmem:[#allocation2 + $0xed0] sm:$0xff]
        %v890 = vld [vmem:[#allocation2 + $0xed8] sm:$0xff]
        %v891 = vld [vmem:[#allocation2 + $0xee0] sm:$0xff]
        %v892 = vld [vmem:[#allocation2 + $0xee8] sm:$0xff]
        %v893 = vld [vmem:[#allocation2 + $0xef0] sm:$0xff]
        %v894 = vld [vmem:[#allocation2 + $0xef8] sm:$0xff]
        %v895 = vld [vmem:[#allocation2 + $0xf00] sm:$0xff]
        %v896 = vld [vmem:[#allocation2 + $0xf08] sm:$0xff]
        %v897 = vld [vmem:[#allocation2 + $0xf10] sm:$0xff]
        %v898 = vld [vmem:[#allocation2 + $0xf18] sm:$0xff]
        %v899 = vld [vmem:[#allocation2 + $0xf20] sm:$0xff]
        %v900 = vld [vmem:[#allocation2 + $0xf28] sm:$0xff]
        %v901 = vld [vmem:[#allocation2 + $0xf30] sm:$0xff]
        %v902 = vld [vmem:[#allocation2 + $0xf38] sm:$0xff]
        %v903 = vld [vmem:[#allocation2 + $0xf40] sm:$0xff]
        %v904 = vld [vmem:[#allocation2 + $0xf48] sm:$0xff]
        %v905 = vld [vmem:[#allocation2 + $0xf50] sm:$0xff]
        %v906 = vld [vmem:[#allocation2 + $0xf58] sm:$0xff]
        %v907 = vld [vmem:[#allocation2 + $0xf60] sm:$0xff]
        %v908 = vld [vmem:[#allocation2 + $0xf68] sm:$0xff]
        %v909 = vld [vmem:[#allocation2 + $0xf70] sm:$0xff]
        %v910 = vld [vmem:[#allocation2 + $0xf78] sm:$0xff]
        %v911 = vld [vmem:[#allocation2 + $0xf80] sm:$0xff]
        %v912 = vld [vmem:[#allocation2 + $0xf88] sm:$0xff]
        %v913 = vld [vmem:[#allocation2 + $0xf90] sm:$0xff]
        %v914 = vld [vmem:[#allocation2 + $0xf98] sm:$0xff]
        %v915 = vld [vmem:[#allocation2 + $0xfa0] sm:$0xff]
        %v916 = vld [vmem:[#allocation2 + $0xfa8] sm:$0xff]
        %v917 = vld [vmem:[#allocation2 + $0xfb0] sm:$0xff]
        %v918 = vld [vmem:[#allocation2 + $0xfb8] sm:$0xff]
        %v919 = vld [vmem:[#allocation2 + $0xfc0] sm:$0xff]
        %v920 = vld [vmem:[#allocation2 + $0xfc8] sm:$0xff]
        %v921 = vld [vmem:[#allocation2 + $0xfd0] sm:$0xff]
        %v922 = vld [vmem:[#allocation2 + $0xfd8] sm:$0xff]
        %v923 = vld [vmem:[#allocation2 + $0xfe0] sm:$0xff]
        %v924 = vld [vmem:[#allocation2 + $0xfe8] sm:$0xff]
        %v925 = vld [vmem:[#allocation2 + $0xff0] sm:$0xff]
        %v926 = vld [vmem:[#allocation2 + $0xff8] sm:$0xff]
        %v927 = vld [vmem:[#allocation4] sm:$0xff]
        %v928 = vld [vmem:[#allocation4 + $0x8] sm:$0xff]
        %v931 = vlaneseq
        %v932 = vshrl.u32 %v931, 7
        %v933 = vsub.s32 0, %v932
        %v934 = vrot.slane %v927, %v933
        %v935 = vlaneseq
        %v936 = vshrl.u32 %v935, 7
        %v937 = vsub.s32 1, %v936
        %v938 = vrot.slane %v927, %v937
        %v939 = vlaneseq
        %v940 = vshrl.u32 %v939, 7
        %v941 = vsub.s32 2, %v940
        %v942 = vrot.slane %v927, %v941
        %v943 = vlaneseq
        %v944 = vshrl.u32 %v943, 7
        %v945 = vsub.s32 3, %v944
        %v946 = vrot.slane %v927, %v945
        %v947 = vlaneseq
        %v948 = vshrl.u32 %v947, 7
        %v949 = vsub.s32 4, %v948
        %v950 = vrot.slane %v927, %v949
        %v951 = vlaneseq
        %v952 = vshrl.u32 %v951, 7
        %v953 = vsub.s32 5, %v952
        %v954 = vrot.slane %v927, %v953
        %v955 = vlaneseq
        %v956 = vshrl.u32 %v955, 7
        %v957 = vsub.s32 6, %v956
        %v958 = vrot.slane %v927, %v957
        %v959 = vlaneseq
        %v960 = vshrl.u32 %v959, 7
        %v961 = vsub.s32 7, %v960
        %v962 = vrot.slane %v927, %v961
        %v963 = vlaneseq
        %v964 = vshrl.u32 %v963, 7
        %v965 = vsub.s32 0, %v964
        %v966 = vrot.slane %v928, %v965
        %v967 = vlaneseq
        %v968 = vshrl.u32 %v967, 7
        %v969 = vsub.s32 1, %v968
        %v970 = vrot.slane %v928, %v969
        %v971 = vlaneseq
        %v972 = vshrl.u32 %v971, 7
        %v973 = vsub.s32 2, %v972
        %v974 = vrot.slane %v928, %v973
        %v975 = vlaneseq
        %v976 = vshrl.u32 %v975, 7
        %v977 = vsub.s32 3, %v976
        %v978 = vrot.slane %v928, %v977
        %v979 = vlaneseq
        %v980 = vshrl.u32 %v979, 7
        %v981 = vsub.s32 4, %v980
        %v982 = vrot.slane %v928, %v981
        %v983 = vlaneseq
        %v984 = vshrl.u32 %v983, 7
        %v985 = vsub.s32 5, %v984
        %v986 = vrot.slane %v928, %v985
        %v987 = vlaneseq
        %v988 = vshrl.u32 %v987, 7
        %v989 = vsub.s32 6, %v988
        %v990 = vrot.slane %v928, %v989
        %v991 = vlaneseq
        %v992 = vshrl.u32 %v991, 7
        %v993 = vsub.s32 7, %v992
        %v994 = vrot.slane %v928, %v993
        %1011 = vmatprep.subr.mxu0 %v416
        %1012 = vmatpush1.msra.mxu0 %v415
        %1013 = vmatprep.subr.mxu0 %v432
        %1014 = vmatpush1.msra.mxu0 %v431
        %1015 = vmatprep.subr.mxu0 %v448
        %1016 = vmatpush1.msra.mxu0 %v447
        %1017 = vmatprep.subr.mxu0 %v464
        %1018 = vmatpush1.msra.mxu0 %v463
        %1019 = vmatprep.subr.mxu0 %v480
        %1020 = vmatpush1.msra.mxu0 %v479
        %1021 = vmatprep.subr.mxu0 %v496
        %1022 = vmatpush1.msra.mxu0 %v495
        %1023 = vmatprep.subr.mxu0 %v512
        %1024 = vmatpush1.msra.mxu0 %v511
        %1025 = vmatprep.subr.mxu0 %v528
        %1026 = vmatpush1.msra.mxu0 %v527
        %1027 = vmatprep.subr.mxu0 %v544
        %1028 = vmatpush1.msra.mxu0 %v543
        %1029 = vmatprep.subr.mxu0 %v560
        %1030 = vmatpush1.msra.mxu0 %v559
        %1031 = vmatprep.subr.mxu0 %v576
        %1032 = vmatpush1.msra.mxu0 %v575
        %1033 = vmatprep.subr.mxu0 %v592
        %1034 = vmatpush1.msra.mxu0 %v591
        %1035 = vmatprep.subr.mxu0 %v608
        %1036 = vmatpush1.msra.mxu0 %v607
        %1037 = vmatprep.subr.mxu0 %v624
        %1038 = vmatpush1.msra.mxu0 %v623
        %1039 = vmatprep.subr.mxu0 %v640
        %1040 = vmatpush1.msra.mxu0 %v639
        %1041 = vmatprep.subr.mxu0 %v656
        %1042 = vmatpush1.msra.mxu0 %v655
        %1043 = vmatprep.subr.mxu0 %v672
        %1044 = vmatpush1.msra.mxu0 %v671
        %1045 = vmatprep.subr.mxu0 %v688
        %1046 = vmatpush1.msra.mxu0 %v687
        %1047 = vmatprep.subr.mxu0 %v704
        %1048 = vmatpush1.msra.mxu0 %v703
        %1049 = vmatprep.subr.mxu0 %v720
        %1050 = vmatpush1.msra.mxu0 %v719
        %1051 = vmatprep.subr.mxu0 %v736
        %1052 = vmatpush1.msra.mxu0 %v735
        %1053 = vmatprep.subr.mxu0 %v752
        %1054 = vmatpush1.msra.mxu0 %v751
        %1055 = vmatprep.subr.mxu0 %v768
        %1056 = vmatpush1.msra.mxu0 %v767
        %1057 = vmatprep.subr.mxu0 %v784
        %1058 = vmatpush1.msra.mxu0 %v783
        %1059 = vmatprep.subr.mxu0 %v800
        %1060 = vmatpush1.msra.mxu0 %v799
        %1061 = vmatprep.subr.mxu0 %v816
        %1062 = vmatpush1.msra.mxu0 %v815
        %1063 = vmatprep.subr.mxu0 %v832
        %1064 = vmatpush1.msra.mxu0 %v831
        %1065 = vmatprep.subr.mxu0 %v848
        %1066 = vmatpush1.msra.mxu0 %v847
        %1067 = vmatprep.subr.mxu0 %v864
        %1068 = vmatpush1.msra.mxu0 %v863
        %1069 = vmatprep.subr.mxu0 %v880
        %1070 = vmatpush1.msra.mxu0 %v879
        %1071 = vmatprep.subr.mxu0 %v896
        %1072 = vmatpush1.msra.mxu0 %v895
        %1073 = vmatprep.subr.mxu0 %v912
        %1074 = vmatpush1.msra.mxu0 %v911
        %1075 = vmatprep.mubr.f32.mxu0 %v390
        %1076 = vmatmul.mubr.f32.gmra.mrb[0].mxu0 %v389
        %v1077 = vpop.f32.mrb[0].mxu0
        %v1078 = vadd.f32 %v934, %v1077
        %v1079 = vpop.f32.mrb[0].mxu0
        %v1080 = vadd.f32 %v938, %v1079
        %1081 = vmatprep.mubr.f32.mxu0 %v392
        %1082 = vmatmul.mubr.f32.gmra.mrb[0].mxu0 %v391
        %v1083 = vpop.f32.mrb[0].mxu0
        %v1084 = vadd.f32 %v934, %v1083
        %v1085 = vpop.f32.mrb[0].mxu0
        %v1086 = vadd.f32 %v938, %v1085
        %1087 = vmatprep.mubr.f32.mxu0 %v394
        %1088 = vmatmul.mubr.f32.gmra.mrb[0].mxu0 %v393
        %v1089 = vpop.f32.mrb[0].mxu0
        %v1090 = vadd.f32 %v934, %v1089
        %v1091 = vpop.f32.mrb[0].mxu0
        %v1092 = vadd.f32 %v938, %v1091
        %1093 = vmatprep.mubr.f32.mxu0 %v396
        %1094 = vmatmul.mubr.f32.gmra.mrb[0].mxu0 %v395
        %v1095 = vpop.f32.mrb[0].mxu0
        %v1096 = vadd.f32 %v934, %v1095
        %v1097 = vpop.f32.mrb[0].mxu0
        %v1098 = vadd.f32 %v938, %v1097
        %1099 = vmatprep.mubr.f32.mxu0 %v398
        %1100 = vmatmul.mubr.f32.gmra.mrb[0].mxu0 %v397
        %v1101 = vpop.f32.mrb[0].mxu0
        %v1102 = vadd.f32 %v934, %v1101
        %v1103 = vpop.f32.mrb[0].mxu0
        %v1104 = vadd.f32 %v938, %v1103
        %1105 = vmatprep.mubr.f32.mxu0 %v400
        %1106 = vmatmul.mubr.f32.gmra.mrb[0].mxu0 %v399
        %v1107 = vpop.f32.mrb[0].mxu0
        %v1108 = vadd.f32 %v934, %v1107
        %v1109 = vpop.f32.mrb[0].mxu0
        %v1110 = vadd.f32 %v938, %v1109
        %1111 = vmatprep.mubr.f32.mxu0 %v402
        %1112 = vmatmul.mubr.f32.gmra.mrb[0].mxu0 %v401
        %v1113 = vpop.f32.mrb[0].mxu0
        %v1114 = vadd.f32 %v934, %v1113
        %v1115 = vpop.f32.mrb[0].mxu0
        %v1116 = vadd.f32 %v938, %v1115
        %1117 = vmatprep.mubr.f32.mxu0 %v404
        %1118 = vmatmul.mubr.f32.gmra.mrb[0].mxu0 %v403
        %v1119 = vpop.f32.mrb[0].mxu0
        %v1120 = vadd.f32 %v934, %v1119
        %v1121 = vpop.f32.mrb[0].mxu0
        %v1122 = vadd.f32 %v938, %v1121
        %1123 = vmatprep.mubr.f32.mxu0 %v406
        %1124 = vmatmul.mubr.f32.gmra.mrb[0].mxu0 %v405
        %v1125 = vpop.f32.mrb[0].mxu0
        %v1126 = vadd.f32 %v934, %v1125
        %v1127 = vpop.f32.mrb[0].mxu0
        %v1128 = vadd.f32 %v938, %v1127
        %1129 = vmatprep.mubr.f32.mxu0 %v408
        %1130 = vmatmul.mubr.f32.gmra.mrb[0].mxu0 %v407
        %v1131 = vpop.f32.mrb[0].mxu0
        %v1132 = vadd.f32 %v934, %v1131
        %v1133 = vpop.f32.mrb[0].mxu0
        %v1134 = vadd.f32 %v938, %v1133
        %1135 = vmatprep.mubr.f32.mxu0 %v410
        %1136 = vmatmul.mubr.f32.gmra.mrb[0].mxu0 %v409
        %v1137 = vpop.f32.mrb[0].mxu0
        %v1138 = vadd.f32 %v934, %v1137
        %v1139 = vpop.f32.mrb[0].mxu0
        %v1140 = vadd.f32 %v938, %v1139
        %1141 = vmatprep.mubr.f32.mxu0 %v412
        %1142 = vmatmul.mubr.f32.gmra.mrb[0].mxu0 %v411
        %v1143 = vpop.f32.mrb[0].mxu0
        %v1144 = vadd.f32 %v934, %v1143
        %v1145 = vpop.f32.mrb[0].mxu0
        %v1146 = vadd.f32 %v938, %v1145
        %1147 = vmatprep.mubr.f32.mxu0 %v414
        %1148 = vmatmul.mubr.f32.gmra.mrb[0].mxu0 %v413
        %v1149 = vpop.f32.mrb[0].mxu0
        %v1150 = vadd.f32 %v934, %v1149
        %v1151 = vpop.f32.mrb[0].mxu0
        %v1152 = vadd.f32 %v938, %v1151
        %1153 = vdwg.mxu0
        %1154 = vmatprep.subr.mxu0 %v418
        %1155 = vmatpush1.msra.mxu0 %v417
        %1156 = vmatprep.subr.mxu0 %v434
        %1157 = vmatpush1.msra.mxu0 %v433
        %1158 = vmatprep.subr.mxu0 %v450
        %1159 = vmatpush1.msra.mxu0 %v449
        %1160 = vmatprep.subr.mxu0 %v466
        %1161 = vmatpush1.msra.mxu0 %v465
        %1162 = vmatprep.subr.mxu0 %v482
        %1163 = vmatpush1.msra.mxu0 %v481
        %1164 = vmatprep.subr.mxu0 %v498
        %1165 = vmatpush1.msra.mxu0 %v497
        %1166 = vmatprep.subr.mxu0 %v514
        %1167 = vmatpush1.msra.mxu0 %v513
        %1168 = vmatprep.subr.mxu0 %v530
        %1169 = vmatpush1.msra.mxu0 %v529
        %1170 = vmatprep.subr.mxu0 %v546
        %1171 = vmatpush1.msra.mxu0 %v545
        %1172 = vmatprep.subr.mxu0 %v562
        %1173 = vmatpush1.msra.mxu0 %v561
        %1174 = vmatprep.subr.mxu0 %v578
        %1175 = vmatpush1.msra.mxu0 %v577
        %1176 = vmatprep.subr.mxu0 %v594
        %1177 = vmatpush1.msra.mxu0 %v593
        %1178 = vmatprep.subr.mxu0 %v610
        %1179 = vmatpush1.msra.mxu0 %v609
        %1180 = vmatprep.subr.mxu0 %v626
        %1181 = vmatpush1.msra.mxu0 %v625
        %1182 = vmatprep.subr.mxu0 %v642
        %1183 = vmatpush1.msra.mxu0 %v641
        %1184 = vmatprep.subr.mxu0 %v658
        %1185 = vmatpush1.msra.mxu0 %v657
        %1186 = vmatprep.subr.mxu0 %v674
        %1187 = vmatpush1.msra.mxu0 %v673
        %1188 = vmatprep.subr.mxu0 %v690
        %1189 = vmatpush1.msra.mxu0 %v689
        %1190 = vmatprep.subr.mxu0 %v706
        %1191 = vmatpush1.msra.mxu0 %v705
        %1192 = vmatprep.subr.mxu0 %v722
        %1193 = vmatpush1.msra.mxu0 %v721
        %1194 = vmatprep.subr.mxu0 %v738
        %1195 = vmatpush1.msra.mxu0 %v737
        %1196 = vmatprep.subr.mxu0 %v754
        %1197 = vmatpush1.msra.mxu0 %v753
        %1198 = vmatprep.subr.mxu0 %v770
        %1199 = vmatpush1.msra.mxu0 %v769
        %1200 = vmatprep.subr.mxu0 %v786
        %1201 = vmatpush1.msra.mxu0 %v785
        %1202 = vmatprep.subr.mxu0 %v802
        %1203 = vmatpush1.msra.mxu0 %v801
        %1204 = vmatprep.subr.mxu0 %v818
        %1205 = vmatpush1.msra.mxu0 %v817
        %1206 = vmatprep.subr.mxu0 %v834
        %1207 = vmatpush1.msra.mxu0 %v833
        %1208 = vmatprep.subr.mxu0 %v850
        %1209 = vmatpush1.msra.mxu0 %v849
        %1210 = vmatprep.subr.mxu0 %v866
        %1211 = vmatpush1.msra.mxu0 %v865
        %1212 = vmatprep.subr.mxu0 %v882
        %1213 = vmatpush1.msra.mxu0 %v881
        %1214 = vmatprep.subr.mxu0 %v898
        %1215 = vmatpush1.msra.mxu0 %v897
        %1216 = vmatprep.subr.mxu0 %v914
        %1217 = vmatpush1.msra.mxu0 %v913
        %1218 = vmatprep.mubr.f32.mxu0 %v390
        %1219 = vmatmul.mubr.f32.gmra.mrb[0].mxu0 %v389
        %v1220 = vpop.f32.mrb[0].mxu0
        %v1221 = vadd.f32 %v942, %v1220
        %v1222 = vpop.f32.mrb[0].mxu0
        %v1223 = vadd.f32 %v946, %v1222
        %1224 = vmatprep.mubr.f32.mxu0 %v392
        %1225 = vmatmul.mubr.f32.gmra.mrb[0].mxu0 %v391
        %v1226 = vpop.f32.mrb[0].mxu0
        %v1227 = vadd.f32 %v942, %v1226
        %v1228 = vpop.f32.mrb[0].mxu0
        %v1229 = vadd.f32 %v946, %v1228
        %1230 = vmatprep.mubr.f32.mxu0 %v394
        %1231 = vmatmul.mubr.f32.gmra.mrb[0].mxu0 %v393
        %v1232 = vpop.f32.mrb[0].mxu0
        %v1233 = vadd.f32 %v942, %v1232
        %v1234 = vpop.f32.mrb[0].mxu0
        %v1235 = vadd.f32 %v946, %v1234
        %1236 = vmatprep.mubr.f32.mxu0 %v396
        %1237 = vmatmul.mubr.f32.gmra.mrb[0].mxu0 %v395
        %v1238 = vpop.f32.mrb[0].mxu0
        %v1239 = vadd.f32 %v942, %v1238
        %v1240 = vpop.f32.mrb[0].mxu0
        %v1241 = vadd.f32 %v946, %v1240
        %1242 = vmatprep.mubr.f32.mxu0 %v398
        %1243 = vmatmul.mubr.f32.gmra.mrb[0].mxu0 %v397
        %v1244 = vpop.f32.mrb[0].mxu0
        %v1245 = vadd.f32 %v942, %v1244
        %v1246 = vpop.f32.mrb[0].mxu0
        %v1247 = vadd.f32 %v946, %v1246
        %1248 = vmatprep.mubr.f32.mxu0 %v400
        %1249 = vmatmul.mubr.f32.gmra.mrb[0].mxu0 %v399
        %v1250 = vpop.f32.mrb[0].mxu0
        %v1251 = vadd.f32 %v942, %v1250
        %v1252 = vpop.f32.mrb[0].mxu0
        %v1253 = vadd.f32 %v946, %v1252
        %1254 = vmatprep.mubr.f32.mxu0 %v402
        %1255 = vmatmul.mubr.f32.gmra.mrb[0].mxu0 %v401
        %v1256 = vpop.f32.mrb[0].mxu0
        %v1257 = vadd.f32 %v942, %v1256
        %v1258 = vpop.f32.mrb[0].mxu0
        %v1259 = vadd.f32 %v946, %v1258
        %1260 = vmatprep.mubr.f32.mxu0 %v404
        %1261 = vmatmul.mubr.f32.gmra.mrb[0].mxu0 %v403
        %v1262 = vpop.f32.mrb[0].mxu0
        %v1263 = vadd.f32 %v942, %v1262
        %v1264 = vpop.f32.mrb[0].mxu0
        %v1265 = vadd.f32 %v946, %v1264
        %1266 = vmatprep.mubr.f32.mxu0 %v406
        %1267 = vmatmul.mubr.f32.gmra.mrb[0].mxu0 %v405
        %v1268 = vpop.f32.mrb[0].mxu0
        %v1269 = vadd.f32 %v942, %v1268
        %v1270 = vpop.f32.mrb[0].mxu0
        %v1271 = vadd.f32 %v946, %v1270
        %1272 = vmatprep.mubr.f32.mxu0 %v408
        %1273 = vmatmul.mubr.f32.gmra.mrb[0].mxu0 %v407
        %v1274 = vpop.f32.mrb[0].mxu0
        %v1275 = vadd.f32 %v942, %v1274
        %v1276 = vpop.f32.mrb[0].mxu0
        %v1277 = vadd.f32 %v946, %v1276
        %1278 = vmatprep.mubr.f32.mxu0 %v410
        %1279 = vmatmul.mubr.f32.gmra.mrb[0].mxu0 %v409
        %v1280 = vpop.f32.mrb[0].mxu0
        %v1281 = vadd.f32 %v942, %v1280
        %v1282 = vpop.f32.mrb[0].mxu0
        %v1283 = vadd.f32 %v946, %v1282
        %1284 = vmatprep.mubr.f32.mxu0 %v412
        %1285 = vmatmul.mubr.f32.gmra.mrb[0].mxu0 %v411
        %v1286 = vpop.f32.mrb[0].mxu0
        %v1287 = vadd.f32 %v942, %v1286
        %v1288 = vpop.f32.mrb[0].mxu0
        %v1289 = vadd.f32 %v946, %v1288
        %1290 = vmatprep.mubr.f32.mxu0 %v414
        %1291 = vmatmul.mubr.f32.gmra.mrb[0].mxu0 %v413
        %v1292 = vpop.f32.mrb[0].mxu0
        %v1293 = vadd.f32 %v942, %v1292
        %v1294 = vpop.f32.mrb[0].mxu0
        %v1295 = vadd.f32 %v946, %v1294
        %1296 = vdwg.mxu0
        %1297 = vmatprep.subr.mxu0 %v420
        %1298 = vmatpush1.msra.mxu0 %v419
        %1299 = vmatprep.subr.mxu0 %v436
        %1300 = vmatpush1.msra.mxu0 %v435
        %1301 = vmatprep.subr.mxu0 %v452
        %1302 = vmatpush1.msra.mxu0 %v451
        %1303 = vmatprep.subr.mxu0 %v468
        %1304 = vmatpush1.msra.mxu0 %v467
        %1305 = vmatprep.subr.mxu0 %v484
        %1306 = vmatpush1.msra.mxu0 %v483
        %1307 = vmatprep.subr.mxu0 %v500
        %1308 = vmatpush1.msra.mxu0 %v499
        %1309 = vmatprep.subr.mxu0 %v516
        %1310 = vmatpush1.msra.mxu0 %v515
        %1311 = vmatprep.subr.mxu0 %v532
        %1312 = vmatpush1.msra.mxu0 %v531
        %1313 = vmatprep.subr.mxu0 %v548
        %1314 = vmatpush1.msra.mxu0 %v547
        %1315 = vmatprep.subr.mxu0 %v564
        %1316 = vmatpush1.msra.mxu0 %v563
        %1317 = vmatprep.subr.mxu0 %v580
        %1318 = vmatpush1.msra.mxu0 %v579
        %1319 = vmatprep.subr.mxu0 %v596
        %1320 = vmatpush1.msra.mxu0 %v595
        %1321 = vmatprep.subr.mxu0 %v612
        %1322 = vmatpush1.msra.mxu0 %v611
        %1323 = vmatprep.subr.mxu0 %v628
        %1324 = vmatpush1.msra.mxu0 %v627
        %1325 = vmatprep.subr.mxu0 %v644
        %1326 = vmatpush1.msra.mxu0 %v643
        %1327 = vmatprep.subr.mxu0 %v660
        %1328 = vmatpush1.msra.mxu0 %v659
        %1329 = vmatprep.subr.mxu0 %v676
        %1330 = vmatpush1.msra.mxu0 %v675
        %1331 = vmatprep.subr.mxu0 %v692
        %1332 = vmatpush1.msra.mxu0 %v691
        %1333 = vmatprep.subr.mxu0 %v708
        %1334 = vmatpush1.msra.mxu0 %v707
        %1335 = vmatprep.subr.mxu0 %v724
        %1336 = vmatpush1.msra.mxu0 %v723
        %1337 = vmatprep.subr.mxu0 %v740
        %1338 = vmatpush1.msra.mxu0 %v739
        %1339 = vmatprep.subr.mxu0 %v756
        %1340 = vmatpush1.msra.mxu0 %v755
        %1341 = vmatprep.subr.mxu0 %v772
        %1342 = vmatpush1.msra.mxu0 %v771
        %1343 = vmatprep.subr.mxu0 %v788
        %1344 = vmatpush1.msra.mxu0 %v787
        %1345 = vmatprep.subr.mxu0 %v804
        %1346 = vmatpush1.msra.mxu0 %v803
        %1347 = vmatprep.subr.mxu0 %v820
        %1348 = vmatpush1.msra.mxu0 %v819
        %1349 = vmatprep.subr.mxu0 %v836
        %1350 = vmatpush1.msra.mxu0 %v835
        %1351 = vmatprep.subr.mxu0 %v852
        %1352 = vmatpush1.msra.mxu0 %v851
        %1353 = vmatprep.subr.mxu0 %v868
        %1354 = vmatpush1.msra.mxu0 %v867
        %1355 = vmatprep.subr.mxu0 %v884
        %1356 = vmatpush1.msra.mxu0 %v883
        %1357 = vmatprep.subr.mxu0 %v900
        %1358 = vmatpush1.msra.mxu0 %v899
        %1359 = vmatprep.subr.mxu0 %v916
        %1360 = vmatpush1.msra.mxu0 %v915
        %1361 = vmatprep.mubr.f32.mxu0 %v390
        %1362 = vmatmul.mubr.f32.gmra.mrb[0].mxu0 %v389
        %v1363 = vpop.f32.mrb[0].mxu0
        %v1364 = vadd.f32 %v950, %v1363
        %v1365 = vpop.f32.mrb[0].mxu0
        %v1366 = vadd.f32 %v954, %v1365
        %1367 = vmatprep.mubr.f32.mxu0 %v392
        %1368 = vmatmul.mubr.f32.gmra.mrb[0].mxu0 %v391
        %v1369 = vpop.f32.mrb[0].mxu0
        %v1370 = vadd.f32 %v950, %v1369
        %v1371 = vpop.f32.mrb[0].mxu0
        %v1372 = vadd.f32 %v954, %v1371
        %1373 = vmatprep.mubr.f32.mxu0 %v394
        %1374 = vmatmul.mubr.f32.gmra.mrb[0].mxu0 %v393
        %v1375 = vpop.f32.mrb[0].mxu0
        %v1376 = vadd.f32 %v950, %v1375
        %v1377 = vpop.f32.mrb[0].mxu0
        %v1378 = vadd.f32 %v954, %v1377
        %1379 = vmatprep.mubr.f32.mxu0 %v396
        %1380 = vmatmul.mubr.f32.gmra.mrb[0].mxu0 %v395
        %v1381 = vpop.f32.mrb[0].mxu0
        %v1382 = vadd.f32 %v950, %v1381
        %v1383 = vpop.f32.mrb[0].mxu0
        %v1384 = vadd.f32 %v954, %v1383
        %1385 = vmatprep.mubr.f32.mxu0 %v398
        %1386 = vmatmul.mubr.f32.gmra.mrb[0].mxu0 %v397
        %v1387 = vpop.f32.mrb[0].mxu0
        %v1388 = vadd.f32 %v950, %v1387
        %v1389 = vpop.f32.mrb[0].mxu0
        %v1390 = vadd.f32 %v954, %v1389
        %1391 = vmatprep.mubr.f32.mxu0 %v400
        %1392 = vmatmul.mubr.f32.gmra.mrb[0].mxu0 %v399
        %v1393 = vpop.f32.mrb[0].mxu0
        %v1394 = vadd.f32 %v950, %v1393
        %v1395 = vpop.f32.mrb[0].mxu0
        %v1396 = vadd.f32 %v954, %v1395
        %1397 = vmatprep.mubr.f32.mxu0 %v402
        %1398 = vmatmul.mubr.f32.gmra.mrb[0].mxu0 %v401
        %v1399 = vpop.f32.mrb[0].mxu0
        %v1400 = vadd.f32 %v950, %v1399
        %v1401 = vpop.f32.mrb[0].mxu0
        %v1402 = vadd.f32 %v954, %v1401
        %1403 = vmatprep.mubr.f32.mxu0 %v404
        %1404 = vmatmul.mubr.f32.gmra.mrb[0].mxu0 %v403
        %v1405 = vpop.f32.mrb[0].mxu0
        %v1406 = vadd.f32 %v950, %v1405
        %v1407 = vpop.f32.mrb[0].mxu0
        %v1408 = vadd.f32 %v954, %v1407
        %1409 = vmatprep.mubr.f32.mxu0 %v406
        %1410 = vmatmul.mubr.f32.gmra.mrb[0].mxu0 %v405
        %v1411 = vpop.f32.mrb[0].mxu0
        %v1412 = vadd.f32 %v950, %v1411
        %v1413 = vpop.f32.mrb[0].mxu0
        %v1414 = vadd.f32 %v954, %v1413
        %1415 = vmatprep.mubr.f32.mxu0 %v408
        %1416 = vmatmul.mubr.f32.gmra.mrb[0].mxu0 %v407
        %v1417 = vpop.f32.mrb[0].mxu0
        %v1418 = vadd.f32 %v950, %v1417
        %v1419 = vpop.f32.mrb[0].mxu0
        %v1420 = vadd.f32 %v954, %v1419
        %1421 = vmatprep.mubr.f32.mxu0 %v410
        %1422 = vmatmul.mubr.f32.gmra.mrb[0].mxu0 %v409
        %v1423 = vpop.f32.mrb[0].mxu0
        %v1424 = vadd.f32 %v950, %v1423
        %v1425 = vpop.f32.mrb[0].mxu0
        %v1426 = vadd.f32 %v954, %v1425
        %1427 = vmatprep.mubr.f32.mxu0 %v412
        %1428 = vmatmul.mubr.f32.gmra.mrb[0].mxu0 %v411
        %v1429 = vpop.f32.mrb[0].mxu0
        %v1430 = vadd.f32 %v950, %v1429
        %v1431 = vpop.f32.mrb[0].mxu0
        %v1432 = vadd.f32 %v954, %v1431
        %1433 = vmatprep.mubr.f32.mxu0 %v414
        %1434 = vmatmul.mubr.f32.gmra.mrb[0].mxu0 %v413
        %v1435 = vpop.f32.mrb[0].mxu0
        %v1436 = vadd.f32 %v950, %v1435
        %v1437 = vpop.f32.mrb[0].mxu0
        %v1438 = vadd.f32 %v954, %v1437
        %1439 = vdwg.mxu0
        %1440 = vmatprep.subr.mxu0 %v422
        %1441 = vmatpush1.msra.mxu0 %v421
        %1442 = vmatprep.subr.mxu0 %v438
        %1443 = vmatpush1.msra.mxu0 %v437
        %1444 = vmatprep.subr.mxu0 %v454
        %1445 = vmatpush1.msra.mxu0 %v453
        %1446 = vmatprep.subr.mxu0 %v470
        %1447 = vmatpush1.msra.mxu0 %v469
        %1448 = vmatprep.subr.mxu0 %v486
        %1449 = vmatpush1.msra.mxu0 %v485
        %1450 = vmatprep.subr.mxu0 %v502
        %1451 = vmatpush1.msra.mxu0 %v501
        %1452 = vmatprep.subr.mxu0 %v518
        %1453 = vmatpush1.msra.mxu0 %v517
        %1454 = vmatprep.subr.mxu0 %v534
        %1455 = vmatpush1.msra.mxu0 %v533
        %1456 = vmatprep.subr.mxu0 %v550
        %1457 = vmatpush1.msra.mxu0 %v549
        %1458 = vmatprep.subr.mxu0 %v566
        %1459 = vmatpush1.msra.mxu0 %v565
        %1460 = vmatprep.subr.mxu0 %v582
        %1461 = vmatpush1.msra.mxu0 %v581
        %1462 = vmatprep.subr.mxu0 %v598
        %1463 = vmatpush1.msra.mxu0 %v597
        %1464 = vmatprep.subr.mxu0 %v614
        %1465 = vmatpush1.msra.mxu0 %v613
        %1466 = vmatprep.subr.mxu0 %v630
        %1467 = vmatpush1.msra.mxu0 %v629
        %1468 = vmatprep.subr.mxu0 %v646
        %1469 = vmatpush1.msra.mxu0 %v645
        %1470 = vmatprep.subr.mxu0 %v662
        %1471 = vmatpush1.msra.mxu0 %v661
        %1472 = vmatprep.subr.mxu0 %v678
        %1473 = vmatpush1.msra.mxu0 %v677
        %1474 = vmatprep.subr.mxu0 %v694
        %1475 = vmatpush1.msra.mxu0 %v693
        %1476 = vmatprep.subr.mxu0 %v710
        %1477 = vmatpush1.msra.mxu0 %v709
        %1478 = vmatprep.subr.mxu0 %v726
        %1479 = vmatpush1.msra.mxu0 %v725
        %1480 = vmatprep.subr.mxu0 %v742
        %1481 = vmatpush1.msra.mxu0 %v741
        %1482 = vmatprep.subr.mxu0 %v758
        %1483 = vmatpush1.msra.mxu0 %v757
        %1484 = vmatprep.subr.mxu0 %v774
        %1485 = vmatpush1.msra.mxu0 %v773
        %1486 = vmatprep.subr.mxu0 %v790
        %1487 = vmatpush1.msra.mxu0 %v789
        %1488 = vmatprep.subr.mxu0 %v806
        %1489 = vmatpush1.msra.mxu0 %v805
        %1490 = vmatprep.subr.mxu0 %v822
        %1491 = vmatpush1.msra.mxu0 %v821
        %1492 = vmatprep.subr.mxu0 %v838
        %1493 = vmatpush1.msra.mxu0 %v837
        %1494 = vmatprep.subr.mxu0 %v854
        %1495 = vmatpush1.msra.mxu0 %v853
        %1496 = vmatprep.subr.mxu0 %v870
        %1497 = vmatpush1.msra.mxu0 %v869
        %1498 = vmatprep.subr.mxu0 %v886
        %1499 = vmatpush1.msra.mxu0 %v885
        %1500 = vmatprep.subr.mxu0 %v902
        %1501 = vmatpush1.msra.mxu0 %v901
        %1502 = vmatprep.subr.mxu0 %v918
        %1503 = vmatpush1.msra.mxu0 %v917
        %1504 = vmatprep.mubr.f32.mxu0 %v390
        %1505 = vmatmul.mubr.f32.gmra.mrb[0].mxu0 %v389
        %v1506 = vpop.f32.mrb[0].mxu0
        %v1507 = vadd.f32 %v958, %v1506
        %v1508 = vpop.f32.mrb[0].mxu0
        %v1509 = vadd.f32 %v962, %v1508
        %1510 = vmatprep.mubr.f32.mxu0 %v392
        %1511 = vmatmul.mubr.f32.gmra.mrb[0].mxu0 %v391
        %v1512 = vpop.f32.mrb[0].mxu0
        %v1513 = vadd.f32 %v958, %v1512
        %v1514 = vpop.f32.mrb[0].mxu0
        %v1515 = vadd.f32 %v962, %v1514
        %1516 = vmatprep.mubr.f32.mxu0 %v394
        %1517 = vmatmul.mubr.f32.gmra.mrb[0].mxu0 %v393
        %v1518 = vpop.f32.mrb[0].mxu0
        %v1519 = vadd.f32 %v958, %v1518
        %v1520 = vpop.f32.mrb[0].mxu0
        %v1521 = vadd.f32 %v962, %v1520
        %1522 = vmatprep.mubr.f32.mxu0 %v396
        %1523 = vmatmul.mubr.f32.gmra.mrb[0].mxu0 %v395
        %v1524 = vpop.f32.mrb[0].mxu0
        %v1525 = vadd.f32 %v958, %v1524
        %v1526 = vpop.f32.mrb[0].mxu0
        %v1527 = vadd.f32 %v962, %v1526
        %1528 = vmatprep.mubr.f32.mxu0 %v398
        %1529 = vmatmul.mubr.f32.gmra.mrb[0].mxu0 %v397
        %v1530 = vpop.f32.mrb[0].mxu0
        %v1531 = vadd.f32 %v958, %v1530
        %v1532 = vpop.f32.mrb[0].mxu0
        %v1533 = vadd.f32 %v962, %v1532
        %1534 = vmatprep.mubr.f32.mxu0 %v400
        %1535 = vmatmul.mubr.f32.gmra.mrb[0].mxu0 %v399
        %v1536 = vpop.f32.mrb[0].mxu0
        %v1537 = vadd.f32 %v958, %v1536
        %v1538 = vpop.f32.mrb[0].mxu0
        %v1539 = vadd.f32 %v962, %v1538
        %1540 = vmatprep.mubr.f32.mxu0 %v402
        %1541 = vmatmul.mubr.f32.gmra.mrb[0].mxu0 %v401
        %v1542 = vpop.f32.mrb[0].mxu0
        %v1543 = vadd.f32 %v958, %v1542
        %v1544 = vpop.f32.mrb[0].mxu0
        %v1545 = vadd.f32 %v962, %v1544
        %1546 = vmatprep.mubr.f32.mxu0 %v404
        %1547 = vmatmul.mubr.f32.gmra.mrb[0].mxu0 %v403
        %v1548 = vpop.f32.mrb[0].mxu0
        %v1549 = vadd.f32 %v958, %v1548
        %v1550 = vpop.f32.mrb[0].mxu0
        %v1551 = vadd.f32 %v962, %v1550
        %1552 = vmatprep.mubr.f32.mxu0 %v406
        %1553 = vmatmul.mubr.f32.gmra.mrb[0].mxu0 %v405
        %v1554 = vpop.f32.mrb[0].mxu0
        %v1555 = vadd.f32 %v958, %v1554
        %v1556 = vpop.f32.mrb[0].mxu0
        %v1557 = vadd.f32 %v962, %v1556
        %1558 = vmatprep.mubr.f32.mxu0 %v408
        %1559 = vmatmul.mubr.f32.gmra.mrb[0].mxu0 %v407
        %v1560 = vpop.f32.mrb[0].mxu0
        %v1561 = vadd.f32 %v958, %v1560
        %v1562 = vpop.f32.mrb[0].mxu0
        %v1563 = vadd.f32 %v962, %v1562
        %1564 = vmatprep.mubr.f32.mxu0 %v410
        %1565 = vmatmul.mubr.f32.gmra.mrb[0].mxu0 %v409
        %v1566 = vpop.f32.mrb[0].mxu0
        %v1567 = vadd.f32 %v958, %v1566
        %v1568 = vpop.f32.mrb[0].mxu0
        %v1569 = vadd.f32 %v962, %v1568
        %1570 = vmatprep.mubr.f32.mxu0 %v412
        %1571 = vmatmul.mubr.f32.gmra.mrb[0].mxu0 %v411
        %v1572 = vpop.f32.mrb[0].mxu0
        %v1573 = vadd.f32 %v958, %v1572
        %v1574 = vpop.f32.mrb[0].mxu0
        %v1575 = vadd.f32 %v962, %v1574
        %1576 = vmatprep.mubr.f32.mxu0 %v414
        %1577 = vmatmul.mubr.f32.gmra.mrb[0].mxu0 %v413
        %v1578 = vpop.f32.mrb[0].mxu0
        %v1579 = vadd.f32 %v958, %v1578
        %v1580 = vpop.f32.mrb[0].mxu0
        %v1581 = vadd.f32 %v962, %v1580
        %1582 = vdwg.mxu0
        %1583 = vmatprep.subr.mxu0 %v424
        %1584 = vmatpush1.msra.mxu0 %v423
        %1585 = vmatprep.subr.mxu0 %v440
        %1586 = vmatpush1.msra.mxu0 %v439
        %1587 = vmatprep.subr.mxu0 %v456
        %1588 = vmatpush1.msra.mxu0 %v455
        %1589 = vmatprep.subr.mxu0 %v472
        %1590 = vmatpush1.msra.mxu0 %v471
        %1591 = vmatprep.subr.mxu0 %v488
        %1592 = vmatpush1.msra.mxu0 %v487
        %1593 = vmatprep.subr.mxu0 %v504
        %1594 = vmatpush1.msra.mxu0 %v503
        %1595 = vmatprep.subr.mxu0 %v520
        %1596 = vmatpush1.msra.mxu0 %v519
        %1597 = vmatprep.subr.mxu0 %v536
        %1598 = vmatpush1.msra.mxu0 %v535
        %1599 = vmatprep.subr.mxu0 %v552
        %1600 = vmatpush1.msra.mxu0 %v551
        %1601 = vmatprep.subr.mxu0 %v568
        %1602 = vmatpush1.msra.mxu0 %v567
        %1603 = vmatprep.subr.mxu0 %v584
        %1604 = vmatpush1.msra.mxu0 %v583
        %1605 = vmatprep.subr.mxu0 %v600
        %1606 = vmatpush1.msra.mxu0 %v599
        %1607 = vmatprep.subr.mxu0 %v616
        %1608 = vmatpush1.msra.mxu0 %v615
        %1609 = vmatprep.subr.mxu0 %v632
        %1610 = vmatpush1.msra.mxu0 %v631
        %1611 = vmatprep.subr.mxu0 %v648
        %1612 = vmatpush1.msra.mxu0 %v647
        %1613 = vmatprep.subr.mxu0 %v664
        %1614 = vmatpush1.msra.mxu0 %v663
        %1615 = vmatprep.subr.mxu0 %v680
        %1616 = vmatpush1.msra.mxu0 %v679
        %1617 = vmatprep.subr.mxu0 %v696
        %1618 = vmatpush1.msra.mxu0 %v695
        %1619 = vmatprep.subr.mxu0 %v712
        %1620 = vmatpush1.msra.mxu0 %v711
        %1621 = vmatprep.subr.mxu0 %v728
        %1622 = vmatpush1.msra.mxu0 %v727
        %1623 = vmatprep.subr.mxu0 %v744
        %1624 = vmatpush1.msra.mxu0 %v743
        %1625 = vmatprep.subr.mxu0 %v760
        %1626 = vmatpush1.msra.mxu0 %v759
        %1627 = vmatprep.subr.mxu0 %v776
        %1628 = vmatpush1.msra.mxu0 %v775
        %1629 = vmatprep.subr.mxu0 %v792
        %1630 = vmatpush1.msra.mxu0 %v791
        %1631 = vmatprep.subr.mxu0 %v808
        %1632 = vmatpush1.msra.mxu0 %v807
        %1633 = vmatprep.subr.mxu0 %v824
        %1634 = vmatpush1.msra.mxu0 %v823
        %1635 = vmatprep.subr.mxu0 %v840
        %1636 = vmatpush1.msra.mxu0 %v839
        %1637 = vmatprep.subr.mxu0 %v856
        %1638 = vmatpush1.msra.mxu0 %v855
        %1639 = vmatprep.subr.mxu0 %v872
        %1640 = vmatpush1.msra.mxu0 %v871
        %1641 = vmatprep.subr.mxu0 %v888
        %1642 = vmatpush1.msra.mxu0 %v887
        %1643 = vmatprep.subr.mxu0 %v904
        %1644 = vmatpush1.msra.mxu0 %v903
        %1645 = vmatprep.subr.mxu0 %v920
        %1646 = vmatpush1.msra.mxu0 %v919
        %1647 = vmatprep.mubr.f32.mxu0 %v390
        %1648 = vmatmul.mubr.f32.gmra.mrb[0].mxu0 %v389
        %v1649 = vpop.f32.mrb[0].mxu0
        %v1650 = vadd.f32 %v966, %v1649
        %v1651 = vpop.f32.mrb[0].mxu0
        %v1652 = vadd.f32 %v970, %v1651
        %1653 = vmatprep.mubr.f32.mxu0 %v392
        %1654 = vmatmul.mubr.f32.gmra.mrb[0].mxu0 %v391
        %v1655 = vpop.f32.mrb[0].mxu0
        %v1656 = vadd.f32 %v966, %v1655
        %v1657 = vpop.f32.mrb[0].mxu0
        %v1658 = vadd.f32 %v970, %v1657
        %1659 = vmatprep.mubr.f32.mxu0 %v394
        %1660 = vmatmul.mubr.f32.gmra.mrb[0].mxu0 %v393
        %v1661 = vpop.f32.mrb[0].mxu0
        %v1662 = vadd.f32 %v966, %v1661
        %v1663 = vpop.f32.mrb[0].mxu0
        %v1664 = vadd.f32 %v970, %v1663
        %1665 = vmatprep.mubr.f32.mxu0 %v396
        %1666 = vmatmul.mubr.f32.gmra.mrb[0].mxu0 %v395
        %v1667 = vpop.f32.mrb[0].mxu0
        %v1668 = vadd.f32 %v966, %v1667
        %v1669 = vpop.f32.mrb[0].mxu0
        %v1670 = vadd.f32 %v970, %v1669
        %1671 = vmatprep.mubr.f32.mxu0 %v398
        %1672 = vmatmul.mubr.f32.gmra.mrb[0].mxu0 %v397
        %v1673 = vpop.f32.mrb[0].mxu0
        %v1674 = vadd.f32 %v966, %v1673
        %v1675 = vpop.f32.mrb[0].mxu0
        %v1676 = vadd.f32 %v970, %v1675
        %1677 = vmatprep.mubr.f32.mxu0 %v400
        %1678 = vmatmul.mubr.f32.gmra.mrb[0].mxu0 %v399
        %v1679 = vpop.f32.mrb[0].mxu0
        %v1680 = vadd.f32 %v966, %v1679
        %v1681 = vpop.f32.mrb[0].mxu0
        %v1682 = vadd.f32 %v970, %v1681
        %1683 = vmatprep.mubr.f32.mxu0 %v402
        %1684 = vmatmul.mubr.f32.gmra.mrb[0].mxu0 %v401
        %v1685 = vpop.f32.mrb[0].mxu0
        %v1686 = vadd.f32 %v966, %v1685
        %v1687 = vpop.f32.mrb[0].mxu0
        %v1688 = vadd.f32 %v970, %v1687
        %1689 = vmatprep.mubr.f32.mxu0 %v404
        %1690 = vmatmul.mubr.f32.gmra.mrb[0].mxu0 %v403
        %v1691 = vpop.f32.mrb[0].mxu0
        %v1692 = vadd.f32 %v966, %v1691
        %v1693 = vpop.f32.mrb[0].mxu0
        %v1694 = vadd.f32 %v970, %v1693
        %1695 = vmatprep.mubr.f32.mxu0 %v406
        %1696 = vmatmul.mubr.f32.gmra.mrb[0].mxu0 %v405
        %v1697 = vpop.f32.mrb[0].mxu0
        %v1698 = vadd.f32 %v966, %v1697
        %v1699 = vpop.f32.mrb[0].mxu0
        %v1700 = vadd.f32 %v970, %v1699
        %1701 = vmatprep.mubr.f32.mxu0 %v408
        %1702 = vmatmul.mubr.f32.gmra.mrb[0].mxu0 %v407
        %v1703 = vpop.f32.mrb[0].mxu0
        %v1704 = vadd.f32 %v966, %v1703
        %v1705 = vpop.f32.mrb[0].mxu0
        %v1706 = vadd.f32 %v970, %v1705
        %1707 = vmatprep.mubr.f32.mxu0 %v410
        %1708 = vmatmul.mubr.f32.gmra.mrb[0].mxu0 %v409
        %v1709 = vpop.f32.mrb[0].mxu0
        %v1710 = vadd.f32 %v966, %v1709
        %v1711 = vpop.f32.mrb[0].mxu0
        %v1712 = vadd.f32 %v970, %v1711
        %1713 = vmatprep.mubr.f32.mxu0 %v412
        %1714 = vmatmul.mubr.f32.gmra.mrb[0].mxu0 %v411
        %v1715 = vpop.f32.mrb[0].mxu0
        %v1716 = vadd.f32 %v966, %v1715
        %v1717 = vpop.f32.mrb[0].mxu0
        %v1718 = vadd.f32 %v970, %v1717
        %1719 = vmatprep.mubr.f32.mxu0 %v414
        %1720 = vmatmul.mubr.f32.gmra.mrb[0].mxu0 %v413
        %v1721 = vpop.f32.mrb[0].mxu0
        %v1722 = vadd.f32 %v966, %v1721
        %v1723 = vpop.f32.mrb[0].mxu0
        %v1724 = vadd.f32 %v970, %v1723
        %1725 = vdwg.mxu0
        %1726 = vmatprep.subr.mxu0 %v426
        %1727 = vmatpush1.msra.mxu0 %v425
        %1728 = vmatprep.subr.mxu0 %v442
        %1729 = vmatpush1.msra.mxu0 %v441
        %1730 = vmatprep.subr.mxu0 %v458
        %1731 = vmatpush1.msra.mxu0 %v457
        %1732 = vmatprep.subr.mxu0 %v474
        %1733 = vmatpush1.msra.mxu0 %v473
        %1734 = vmatprep.subr.mxu0 %v490
        %1735 = vmatpush1.msra.mxu0 %v489
        %1736 = vmatprep.subr.mxu0 %v506
        %1737 = vmatpush1.msra.mxu0 %v505
        %1738 = vmatprep.subr.mxu0 %v522
        %1739 = vmatpush1.msra.mxu0 %v521
        %1740 = vmatprep.subr.mxu0 %v538
        %1741 = vmatpush1.msra.mxu0 %v537
        %1742 = vmatprep.subr.mxu0 %v554
        %1743 = vmatpush1.msra.mxu0 %v553
        %1744 = vmatprep.subr.mxu0 %v570
        %1745 = vmatpush1.msra.mxu0 %v569
        %1746 = vmatprep.subr.mxu0 %v586
        %1747 = vmatpush1.msra.mxu0 %v585
        %1748 = vmatprep.subr.mxu0 %v602
        %1749 = vmatpush1.msra.mxu0 %v601
        %1750 = vmatprep.subr.mxu0 %v618
        %1751 = vmatpush1.msra.mxu0 %v617
        %1752 = vmatprep.subr.mxu0 %v634
        %1753 = vmatpush1.msra.mxu0 %v633
        %1754 = vmatprep.subr.mxu0 %v650
        %1755 = vmatpush1.msra.mxu0 %v649
        %1756 = vmatprep.subr.mxu0 %v666
        %1757 = vmatpush1.msra.mxu0 %v665
        %1758 = vmatprep.subr.mxu0 %v682
        %1759 = vmatpush1.msra.mxu0 %v681
        %1760 = vmatprep.subr.mxu0 %v698
        %1761 = vmatpush1.msra.mxu0 %v697
        %1762 = vmatprep.subr.mxu0 %v714
        %1763 = vmatpush1.msra.mxu0 %v713
        %1764 = vmatprep.subr.mxu0 %v730
        %1765 = vmatpush1.msra.mxu0 %v729
        %1766 = vmatprep.subr.mxu0 %v746
        %1767 = vmatpush1.msra.mxu0 %v745
        %1768 = vmatprep.subr.mxu0 %v762
        %1769 = vmatpush1.msra.mxu0 %v761
        %1770 = vmatprep.subr.mxu0 %v778
        %1771 = vmatpush1.msra.mxu0 %v777
        %1772 = vmatprep.subr.mxu0 %v794
        %1773 = vmatpush1.msra.mxu0 %v793
        %1774 = vmatprep.subr.mxu0 %v810
        %1775 = vmatpush1.msra.mxu0 %v809
        %1776 = vmatprep.subr.mxu0 %v826
        %1777 = vmatpush1.msra.mxu0 %v825
        %1778 = vmatprep.subr.mxu0 %v842
        %1779 = vmatpush1.msra.mxu0 %v841
        %1780 = vmatprep.subr.mxu0 %v858
        %1781 = vmatpush1.msra.mxu0 %v857
        %1782 = vmatprep.subr.mxu0 %v874
        %1783 = vmatpush1.msra.mxu0 %v873
        %1784 = vmatprep.subr.mxu0 %v890
        %1785 = vmatpush1.msra.mxu0 %v889
        %1786 = vmatprep.subr.mxu0 %v906
        %1787 = vmatpush1.msra.mxu0 %v905
        %1788 = vmatprep.subr.mxu0 %v922
        %1789 = vmatpush1.msra.mxu0 %v921
        %1790 = vmatprep.mubr.f32.mxu0 %v390
        %1791 = vmatmul.mubr.f32.gmra.mrb[0].mxu0 %v389
        %v1792 = vpop.f32.mrb[0].mxu0
        %v1793 = vadd.f32 %v974, %v1792
        %v1794 = vpop.f32.mrb[0].mxu0
        %v1795 = vadd.f32 %v978, %v1794
        %1796 = vmatprep.mubr.f32.mxu0 %v392
        %1797 = vmatmul.mubr.f32.gmra.mrb[0].mxu0 %v391
        %v1798 = vpop.f32.mrb[0].mxu0
        %v1799 = vadd.f32 %v974, %v1798
        %v1800 = vpop.f32.mrb[0].mxu0
        %v1801 = vadd.f32 %v978, %v1800
        %1802 = vmatprep.mubr.f32.mxu0 %v394
        %1803 = vmatmul.mubr.f32.gmra.mrb[0].mxu0 %v393
        %v1804 = vpop.f32.mrb[0].mxu0
        %v1805 = vadd.f32 %v974, %v1804
        %v1806 = vpop.f32.mrb[0].mxu0
        %v1807 = vadd.f32 %v978, %v1806
        %1808 = vmatprep.mubr.f32.mxu0 %v396
        %1809 = vmatmul.mubr.f32.gmra.mrb[0].mxu0 %v395
        %v1810 = vpop.f32.mrb[0].mxu0
        %v1811 = vadd.f32 %v974, %v1810
        %v1812 = vpop.f32.mrb[0].mxu0
        %v1813 = vadd.f32 %v978, %v1812
        %1814 = vmatprep.mubr.f32.mxu0 %v398
        %1815 = vmatmul.mubr.f32.gmra.mrb[0].mxu0 %v397
        %v1816 = vpop.f32.mrb[0].mxu0
        %v1817 = vadd.f32 %v974, %v1816
        %v1818 = vpop.f32.mrb[0].mxu0
        %v1819 = vadd.f32 %v978, %v1818
        %1820 = vmatprep.mubr.f32.mxu0 %v400
        %1821 = vmatmul.mubr.f32.gmra.mrb[0].mxu0 %v399
        %v1822 = vpop.f32.mrb[0].mxu0
        %v1823 = vadd.f32 %v974, %v1822
        %v1824 = vpop.f32.mrb[0].mxu0
        %v1825 = vadd.f32 %v978, %v1824
        %1826 = vmatprep.mubr.f32.mxu0 %v402
        %1827 = vmatmul.mubr.f32.gmra.mrb[0].mxu0 %v401
        %v1828 = vpop.f32.mrb[0].mxu0
        %v1829 = vadd.f32 %v974, %v1828
        %v1830 = vpop.f32.mrb[0].mxu0
        %v1831 = vadd.f32 %v978, %v1830
        %1832 = vmatprep.mubr.f32.mxu0 %v404
        %1833 = vmatmul.mubr.f32.gmra.mrb[0].mxu0 %v403
        %v1834 = vpop.f32.mrb[0].mxu0
        %v1835 = vadd.f32 %v974, %v1834
        %v1836 = vpop.f32.mrb[0].mxu0
        %v1837 = vadd.f32 %v978, %v1836
        %1838 = vmatprep.mubr.f32.mxu0 %v406
        %1839 = vmatmul.mubr.f32.gmra.mrb[0].mxu0 %v405
        %v1840 = vpop.f32.mrb[0].mxu0
        %v1841 = vadd.f32 %v974, %v1840
        %v1842 = vpop.f32.mrb[0].mxu0
        %v1843 = vadd.f32 %v978, %v1842
        %1844 = vmatprep.mubr.f32.mxu0 %v408
        %1845 = vmatmul.mubr.f32.gmra.mrb[0].mxu0 %v407
        %v1846 = vpop.f32.mrb[0].mxu0
        %v1847 = vadd.f32 %v974, %v1846
        %v1848 = vpop.f32.mrb[0].mxu0
        %v1849 = vadd.f32 %v978, %v1848
        %1850 = vmatprep.mubr.f32.mxu0 %v410
        %1851 = vmatmul.mubr.f32.gmra.mrb[0].mxu0 %v409
        %v1852 = vpop.f32.mrb[0].mxu0
        %v1853 = vadd.f32 %v974, %v1852
        %v1854 = vpop.f32.mrb[0].mxu0
        %v1855 = vadd.f32 %v978, %v1854
        %1856 = vmatprep.mubr.f32.mxu0 %v412
        %1857 = vmatmul.mubr.f32.gmra.mrb[0].mxu0 %v411
        %v1858 = vpop.f32.mrb[0].mxu0
        %v1859 = vadd.f32 %v974, %v1858
        %v1860 = vpop.f32.mrb[0].mxu0
        %v1861 = vadd.f32 %v978, %v1860
        %1862 = vmatprep.mubr.f32.mxu0 %v414
        %1863 = vmatmul.mubr.f32.gmra.mrb[0].mxu0 %v413
        %v1864 = vpop.f32.mrb[0].mxu0
        %v1865 = vadd.f32 %v974, %v1864
        %v1866 = vpop.f32.mrb[0].mxu0
        %v1867 = vadd.f32 %v978, %v1866
        %1868 = vdwg.mxu0
        %1869 = vmatprep.subr.mxu0 %v428
        %1870 = vmatpush1.msra.mxu0 %v427
        %1871 = vmatprep.subr.mxu0 %v444
        %1872 = vmatpush1.msra.mxu0 %v443
        %1873 = vmatprep.subr.mxu0 %v460
        %1874 = vmatpush1.msra.mxu0 %v459
        %1875 = vmatprep.subr.mxu0 %v476
        %1876 = vmatpush1.msra.mxu0 %v475
        %1877 = vmatprep.subr.mxu0 %v492
        %1878 = vmatpush1.msra.mxu0 %v491
        %1879 = vmatprep.subr.mxu0 %v508
        %1880 = vmatpush1.msra.mxu0 %v507
        %1881 = vmatprep.subr.mxu0 %v524
        %1882 = vmatpush1.msra.mxu0 %v523
        %1883 = vmatprep.subr.mxu0 %v540
        %1884 = vmatpush1.msra.mxu0 %v539
        %1885 = vmatprep.subr.mxu0 %v556
        %1886 = vmatpush1.msra.mxu0 %v555
        %1887 = vmatprep.subr.mxu0 %v572
        %1888 = vmatpush1.msra.mxu0 %v571
        %1889 = vmatprep.subr.mxu0 %v588
        %1890 = vmatpush1.msra.mxu0 %v587
        %1891 = vmatprep.subr.mxu0 %v604
        %1892 = vmatpush1.msra.mxu0 %v603
        %1893 = vmatprep.subr.mxu0 %v620
        %1894 = vmatpush1.msra.mxu0 %v619
        %1895 = vmatprep.subr.mxu0 %v636
        %1896 = vmatpush1.msra.mxu0 %v635
        %1897 = vmatprep.subr.mxu0 %v652
        %1898 = vmatpush1.msra.mxu0 %v651
        %1899 = vmatprep.subr.mxu0 %v668
        %1900 = vmatpush1.msra.mxu0 %v667
        %1901 = vmatprep.subr.mxu0 %v684
        %1902 = vmatpush1.msra.mxu0 %v683
        %1903 = vmatprep.subr.mxu0 %v700
        %1904 = vmatpush1.msra.mxu0 %v699
        %1905 = vmatprep.subr.mxu0 %v716
        %1906 = vmatpush1.msra.mxu0 %v715
        %1907 = vmatprep.subr.mxu0 %v732
        %1908 = vmatpush1.msra.mxu0 %v731
        %1909 = vmatprep.subr.mxu0 %v748
        %1910 = vmatpush1.msra.mxu0 %v747
        %1911 = vmatprep.subr.mxu0 %v764
        %1912 = vmatpush1.msra.mxu0 %v763
        %1913 = vmatprep.subr.mxu0 %v780
        %1914 = vmatpush1.msra.mxu0 %v779
        %1915 = vmatprep.subr.mxu0 %v796
        %1916 = vmatpush1.msra.mxu0 %v795
        %1917 = vmatprep.subr.mxu0 %v812
        %1918 = vmatpush1.msra.mxu0 %v811
        %1919 = vmatprep.subr.mxu0 %v828
        %1920 = vmatpush1.msra.mxu0 %v827
        %1921 = vmatprep.subr.mxu0 %v844
        %1922 = vmatpush1.msra.mxu0 %v843
        %1923 = vmatprep.subr.mxu0 %v860
        %1924 = vmatpush1.msra.mxu0 %v859
        %1925 = vmatprep.subr.mxu0 %v876
        %1926 = vmatpush1.msra.mxu0 %v875
        %1927 = vmatprep.subr.mxu0 %v892
        %1928 = vmatpush1.msra.mxu0 %v891
        %1929 = vmatprep.subr.mxu0 %v908
        %1930 = vmatpush1.msra.mxu0 %v907
        %1931 = vmatprep.subr.mxu0 %v924
        %1932 = vmatpush1.msra.mxu0 %v923
        %1933 = vmatprep.mubr.f32.mxu0 %v390
        %1934 = vmatmul.mubr.f32.gmra.mrb[0].mxu0 %v389
        %v1935 = vpop.f32.mrb[0].mxu0
        %v1936 = vadd.f32 %v982, %v1935
        %v1937 = vpop.f32.mrb[0].mxu0
        %v1938 = vadd.f32 %v986, %v1937
        %1939 = vmatprep.mubr.f32.mxu0 %v392
        %1940 = vmatmul.mubr.f32.gmra.mrb[0].mxu0 %v391
        %v1941 = vpop.f32.mrb[0].mxu0
        %v1942 = vadd.f32 %v982, %v1941
        %v1943 = vpop.f32.mrb[0].mxu0
        %v1944 = vadd.f32 %v986, %v1943
        %1945 = vmatprep.mubr.f32.mxu0 %v394
        %1946 = vmatmul.mubr.f32.gmra.mrb[0].mxu0 %v393
        %v1947 = vpop.f32.mrb[0].mxu0
        %v1948 = vadd.f32 %v982, %v1947
        %v1949 = vpop.f32.mrb[0].mxu0
        %v1950 = vadd.f32 %v986, %v1949
        %1951 = vmatprep.mubr.f32.mxu0 %v396
        %1952 = vmatmul.mubr.f32.gmra.mrb[0].mxu0 %v395
        %v1953 = vpop.f32.mrb[0].mxu0
        %v1954 = vadd.f32 %v982, %v1953
        %v1955 = vpop.f32.mrb[0].mxu0
        %v1956 = vadd.f32 %v986, %v1955
        %1957 = vmatprep.mubr.f32.mxu0 %v398
        %1958 = vmatmul.mubr.f32.gmra.mrb[0].mxu0 %v397
        %v1959 = vpop.f32.mrb[0].mxu0
        %v1960 = vadd.f32 %v982, %v1959
        %v1961 = vpop.f32.mrb[0].mxu0
        %v1962 = vadd.f32 %v986, %v1961
        %1963 = vmatprep.mubr.f32.mxu0 %v400
        %1964 = vmatmul.mubr.f32.gmra.mrb[0].mxu0 %v399
        %v1965 = vpop.f32.mrb[0].mxu0
        %v1966 = vadd.f32 %v982, %v1965
        %v1967 = vpop.f32.mrb[0].mxu0
        %v1968 = vadd.f32 %v986, %v1967
        %1969 = vmatprep.mubr.f32.mxu0 %v402
        %1970 = vmatmul.mubr.f32.gmra.mrb[0].mxu0 %v401
        %v1971 = vpop.f32.mrb[0].mxu0
        %v1972 = vadd.f32 %v982, %v1971
        %v1973 = vpop.f32.mrb[0].mxu0
        %v1974 = vadd.f32 %v986, %v1973
        %1975 = vmatprep.mubr.f32.mxu0 %v404
        %1976 = vmatmul.mubr.f32.gmra.mrb[0].mxu0 %v403
        %v1977 = vpop.f32.mrb[0].mxu0
        %v1978 = vadd.f32 %v982, %v1977
        %v1979 = vpop.f32.mrb[0].mxu0
        %v1980 = vadd.f32 %v986, %v1979
        %1981 = vmatprep.mubr.f32.mxu0 %v406
        %1982 = vmatmul.mubr.f32.gmra.mrb[0].mxu0 %v405
        %v1983 = vpop.f32.mrb[0].mxu0
        %v1984 = vadd.f32 %v982, %v1983
        %v1985 = vpop.f32.mrb[0].mxu0
        %v1986 = vadd.f32 %v986, %v1985
        %1987 = vmatprep.mubr.f32.mxu0 %v408
        %1988 = vmatmul.mubr.f32.gmra.mrb[0].mxu0 %v407
        %v1989 = vpop.f32.mrb[0].mxu0
        %v1990 = vadd.f32 %v982, %v1989
        %v1991 = vpop.f32.mrb[0].mxu0
        %v1992 = vadd.f32 %v986, %v1991
        %1993 = vmatprep.mubr.f32.mxu0 %v410
        %1994 = vmatmul.mubr.f32.gmra.mrb[0].mxu0 %v409
        %v1995 = vpop.f32.mrb[0].mxu0
        %v1996 = vadd.f32 %v982, %v1995
        %v1997 = vpop.f32.mrb[0].mxu0
        %v1998 = vadd.f32 %v986, %v1997
        %1999 = vmatprep.mubr.f32.mxu0 %v412
        %2000 = vmatmul.mubr.f32.gmra.mrb[0].mxu0 %v411
        %v2001 = vpop.f32.mrb[0].mxu0
        %v2002 = vadd.f32 %v982, %v2001
        %v2003 = vpop.f32.mrb[0].mxu0
        %v2004 = vadd.f32 %v986, %v2003
        %2005 = vmatprep.mubr.f32.mxu0 %v414
        %2006 = vmatmul.mubr.f32.gmra.mrb[0].mxu0 %v413
        %v2007 = vpop.f32.mrb[0].mxu0
        %v2008 = vadd.f32 %v982, %v2007
        %v2009 = vpop.f32.mrb[0].mxu0
        %v2010 = vadd.f32 %v986, %v2009
        %2011 = vdwg.mxu0
        %2012 = vmatprep.subr.mxu0 %v430
        %2013 = vmatpush1.msra.mxu0 %v429
        %2014 = vmatprep.subr.mxu0 %v446
        %2015 = vmatpush1.msra.mxu0 %v445
        %2016 = vmatprep.subr.mxu0 %v462
        %2017 = vmatpush1.msra.mxu0 %v461
        %2018 = vmatprep.subr.mxu0 %v478
        %2019 = vmatpush1.msra.mxu0 %v477
        %2020 = vmatprep.subr.mxu0 %v494
        %2021 = vmatpush1.msra.mxu0 %v493
        %2022 = vmatprep.subr.mxu0 %v510
        %2023 = vmatpush1.msra.mxu0 %v509
        %2024 = vmatprep.subr.mxu0 %v526
        %2025 = vmatpush1.msra.mxu0 %v525
        %2026 = vmatprep.subr.mxu0 %v542
        %2027 = vmatpush1.msra.mxu0 %v541
        %2028 = vmatprep.subr.mxu0 %v558
        %2029 = vmatpush1.msra.mxu0 %v557
        %2030 = vmatprep.subr.mxu0 %v574
        %2031 = vmatpush1.msra.mxu0 %v573
        %2032 = vmatprep.subr.mxu0 %v590
        %2033 = vmatpush1.msra.mxu0 %v589
        %2034 = vmatprep.subr.mxu0 %v606
        %2035 = vmatpush1.msra.mxu0 %v605
        %2036 = vmatprep.subr.mxu0 %v622
        %2037 = vmatpush1.msra.mxu0 %v621
        %2038 = vmatprep.subr.mxu0 %v638
        %2039 = vmatpush1.msra.mxu0 %v637
        %2040 = vmatprep.subr.mxu0 %v654
        %2041 = vmatpush1.msra.mxu0 %v653
        %2042 = vmatprep.subr.mxu0 %v670
        %2043 = vmatpush1.msra.mxu0 %v669
        %2044 = vmatprep.subr.mxu0 %v686
        %2045 = vmatpush1.msra.mxu0 %v685
        %2046 = vmatprep.subr.mxu0 %v702
        %2047 = vmatpush1.msra.mxu0 %v701
        %2048 = vmatprep.subr.mxu0 %v718
        %2049 = vmatpush1.msra.mxu0 %v717
        %2050 = vmatprep.subr.mxu0 %v734
        %2051 = vmatpush1.msra.mxu0 %v733
        %2052 = vmatprep.subr.mxu0 %v750
        %2053 = vmatpush1.msra.mxu0 %v749
        %2054 = vmatprep.subr.mxu0 %v766
        %2055 = vmatpush1.msra.mxu0 %v765
        %2056 = vmatprep.subr.mxu0 %v782
        %2057 = vmatpush1.msra.mxu0 %v781
        %2058 = vmatprep.subr.mxu0 %v798
        %2059 = vmatpush1.msra.mxu0 %v797
        %2060 = vmatprep.subr.mxu0 %v814
        %2061 = vmatpush1.msra.mxu0 %v813
        %2062 = vmatprep.subr.mxu0 %v830
        %2063 = vmatpush1.msra.mxu0 %v829
        %2064 = vmatprep.subr.mxu0 %v846
        %2065 = vmatpush1.msra.mxu0 %v845
        %2066 = vmatprep.subr.mxu0 %v862
        %2067 = vmatpush1.msra.mxu0 %v861
        %2068 = vmatprep.subr.mxu0 %v878
        %2069 = vmatpush1.msra.mxu0 %v877
        %2070 = vmatprep.subr.mxu0 %v894
        %2071 = vmatpush1.msra.mxu0 %v893
        %2072 = vmatprep.subr.mxu0 %v910
        %2073 = vmatpush1.msra.mxu0 %v909
        %2074 = vmatprep.subr.mxu0 %v926
        %2075 = vmatpush1.msra.mxu0 %v925
        %2076 = vmatprep.mubr.f32.mxu0 %v390
        %2077 = vmatmul.mubr.f32.gmra.mrb[0].mxu0 %v389
        %v2078 = vpop.f32.mrb[0].mxu0
        %v2079 = vadd.f32 %v990, %v2078
        %v2080 = vpop.f32.mrb[0].mxu0
        %v2081 = vadd.f32 %v994, %v2080
        %2082 = vmatprep.mubr.f32.mxu0 %v392
        %2083 = vmatmul.mubr.f32.gmra.mrb[0].mxu0 %v391
        %v2084 = vpop.f32.mrb[0].mxu0
        %v2085 = vadd.f32 %v990, %v2084
        %v2086 = vpop.f32.mrb[0].mxu0
        %v2087 = vadd.f32 %v994, %v2086
        %2088 = vmatprep.mubr.f32.mxu0 %v394
        %2089 = vmatmul.mubr.f32.gmra.mrb[0].mxu0 %v393
        %v2090 = vpop.f32.mrb[0].mxu0
        %v2091 = vadd.f32 %v990, %v2090
        %v2092 = vpop.f32.mrb[0].mxu0
        %v2093 = vadd.f32 %v994, %v2092
        %2094 = vmatprep.mubr.f32.mxu0 %v396
        %2095 = vmatmul.mubr.f32.gmra.mrb[0].mxu0 %v395
        %v2096 = vpop.f32.mrb[0].mxu0
        %v2097 = vadd.f32 %v990, %v2096
        %v2098 = vpop.f32.mrb[0].mxu0
        %v2099 = vadd.f32 %v994, %v2098
        %2100 = vmatprep.mubr.f32.mxu0 %v398
        %2101 = vmatmul.mubr.f32.gmra.mrb[0].mxu0 %v397
        %v2102 = vpop.f32.mrb[0].mxu0
        %v2103 = vadd.f32 %v990, %v2102
        %v2104 = vpop.f32.mrb[0].mxu0
        %v2105 = vadd.f32 %v994, %v2104
        %2106 = vmatprep.mubr.f32.mxu0 %v400
        %2107 = vmatmul.mubr.f32.gmra.mrb[0].mxu0 %v399
        %v2108 = vpop.f32.mrb[0].mxu0
        %v2109 = vadd.f32 %v990, %v2108
        %v2110 = vpop.f32.mrb[0].mxu0
        %v2111 = vadd.f32 %v994, %v2110
        %2112 = vmatprep.mubr.f32.mxu0 %v402
        %2113 = vmatmul.mubr.f32.gmra.mrb[0].mxu0 %v401
        %v2114 = vpop.f32.mrb[0].mxu0
        %v2115 = vadd.f32 %v990, %v2114
        %v2116 = vpop.f32.mrb[0].mxu0
        %v2117 = vadd.f32 %v994, %v2116
        %2118 = vmatprep.mubr.f32.mxu0 %v404
        %2119 = vmatmul.mubr.f32.gmra.mrb[0].mxu0 %v403
        %v2120 = vpop.f32.mrb[0].mxu0
        %v2121 = vadd.f32 %v990, %v2120
        %v2122 = vpop.f32.mrb[0].mxu0
        %v2123 = vadd.f32 %v994, %v2122
        %2124 = vmatprep.mubr.f32.mxu0 %v406
        %2125 = vmatmul.mubr.f32.gmra.mrb[0].mxu0 %v405
        %v2126 = vpop.f32.mrb[0].mxu0
        %v2127 = vadd.f32 %v990, %v2126
        %v2128 = vpop.f32.mrb[0].mxu0
        %v2129 = vadd.f32 %v994, %v2128
        %2130 = vmatprep.mubr.f32.mxu0 %v408
        %2131 = vmatmul.mubr.f32.gmra.mrb[0].mxu0 %v407
        %v2132 = vpop.f32.mrb[0].mxu0
        %v2133 = vadd.f32 %v990, %v2132
        %v2134 = vpop.f32.mrb[0].mxu0
        %v2135 = vadd.f32 %v994, %v2134
        %2136 = vmatprep.mubr.f32.mxu0 %v410
        %2137 = vmatmul.mubr.f32.gmra.mrb[0].mxu0 %v409
        %v2138 = vpop.f32.mrb[0].mxu0
        %v2139 = vadd.f32 %v990, %v2138
        %v2140 = vpop.f32.mrb[0].mxu0
        %v2141 = vadd.f32 %v994, %v2140
        %2142 = vmatprep.mubr.f32.mxu0 %v412
        %2143 = vmatmul.mubr.f32.gmra.mrb[0].mxu0 %v411
        %v2144 = vpop.f32.mrb[0].mxu0
        %v2145 = vadd.f32 %v990, %v2144
        %v2146 = vpop.f32.mrb[0].mxu0
        %v2147 = vadd.f32 %v994, %v2146
        %2148 = vmatprep.mubr.f32.mxu0 %v414
        %2149 = vmatmul.mubr.f32.gmra.mrb[0].mxu0 %v413
        %v2150 = vpop.f32.mrb[0].mxu0
        %v2151 = vadd.f32 %v990, %v2150
        %v2152 = vpop.f32.mrb[0].mxu0
        %v2153 = vadd.f32 %v994, %v2152
        %2154 = vdwg.mxu0
        %v2155 = vmax.f32 %v1078, 0.0
        %v2156 = vmax.f32 %v1080, 0.0
        %v2157 = vmax.f32 %v1221, 0.0
        %v2158 = vmax.f32 %v1223, 0.0
        %v2159 = vmax.f32 %v1364, 0.0
        %v2160 = vmax.f32 %v1366, 0.0
        %v2161 = vmax.f32 %v1507, 0.0
        %v2162 = vmax.f32 %v1509, 0.0
        %v2163 = vmax.f32 %v1650, 0.0
        %v2164 = vmax.f32 %v1652, 0.0
        %v2165 = vmax.f32 %v1793, 0.0
        %v2166 = vmax.f32 %v1795, 0.0
        %v2167 = vmax.f32 %v1936, 0.0
        %v2168 = vmax.f32 %v1938, 0.0
        %v2169 = vmax.f32 %v2079, 0.0
        %v2170 = vmax.f32 %v2081, 0.0
        %v2171 = vmax.f32 %v1084, 0.0
        %v2172 = vmax.f32 %v1086, 0.0
        %v2173 = vmax.f32 %v1227, 0.0
        %v2174 = vmax.f32 %v1229, 0.0
        %v2175 = vmax.f32 %v1370, 0.0
        %v2176 = vmax.f32 %v1372, 0.0
        %v2177 = vmax.f32 %v1513, 0.0
        %v2178 = vmax.f32 %v1515, 0.0
        %v2179 = vmax.f32 %v1656, 0.0
        %v2180 = vmax.f32 %v1658, 0.0
        %v2181 = vmax.f32 %v1799, 0.0
        %v2182 = vmax.f32 %v1801, 0.0
        %v2183 = vmax.f32 %v1942, 0.0
        %v2184 = vmax.f32 %v1944, 0.0
        %v2185 = vmax.f32 %v2085, 0.0
        %v2186 = vmax.f32 %v2087, 0.0
        %v2187 = vmax.f32 %v1090, 0.0
        %v2188 = vmax.f32 %v1092, 0.0
        %v2189 = vmax.f32 %v1233, 0.0
        %v2190 = vmax.f32 %v1235, 0.0
        %v2191 = vmax.f32 %v1376, 0.0
        %v2192 = vmax.f32 %v1378, 0.0
        %v2193 = vmax.f32 %v1519, 0.0
        %v2194 = vmax.f32 %v1521, 0.0
        %v2195 = vmax.f32 %v1662, 0.0
        %v2196 = vmax.f32 %v1664, 0.0
        %v2197 = vmax.f32 %v1805, 0.0
        %v2198 = vmax.f32 %v1807, 0.0
        %v2199 = vmax.f32 %v1948, 0.0
        %v2200 = vmax.f32 %v1950, 0.0
        %v2201 = vmax.f32 %v2091, 0.0
        %v2202 = vmax.f32 %v2093, 0.0
        %v2203 = vmax.f32 %v1096, 0.0
        %v2204 = vmax.f32 %v1098, 0.0
        %v2205 = vmax.f32 %v1239, 0.0
        %v2206 = vmax.f32 %v1241, 0.0
        %v2207 = vmax.f32 %v1382, 0.0
        %v2208 = vmax.f32 %v1384, 0.0
        %v2209 = vmax.f32 %v1525, 0.0
        %v2210 = vmax.f32 %v1527, 0.0
        %v2211 = vmax.f32 %v1668, 0.0
        %v2212 = vmax.f32 %v1670, 0.0
        %v2213 = vmax.f32 %v1811, 0.0
        %v2214 = vmax.f32 %v1813, 0.0
        %v2215 = vmax.f32 %v1954, 0.0
        %v2216 = vmax.f32 %v1956, 0.0
        %v2217 = vmax.f32 %v2097, 0.0
        %v2218 = vmax.f32 %v2099, 0.0
        %v2219 = vmax.f32 %v1102, 0.0
        %v2220 = vmax.f32 %v1104, 0.0
        %v2221 = vmax.f32 %v1245, 0.0
        %v2222 = vmax.f32 %v1247, 0.0
        %v2223 = vmax.f32 %v1388, 0.0
        %v2224 = vmax.f32 %v1390, 0.0
        %v2225 = vmax.f32 %v1531, 0.0
        %v2226 = vmax.f32 %v1533, 0.0
        %v2227 = vmax.f32 %v1674, 0.0
        %v2228 = vmax.f32 %v1676, 0.0
        %v2229 = vmax.f32 %v1817, 0.0
        %v2230 = vmax.f32 %v1819, 0.0
        %v2231 = vmax.f32 %v1960, 0.0
        %v2232 = vmax.f32 %v1962, 0.0
        %v2233 = vmax.f32 %v2103, 0.0
        %v2234 = vmax.f32 %v2105, 0.0
        %v2235 = vmax.f32 %v1108, 0.0
        %v2236 = vmax.f32 %v1110, 0.0
        %v2237 = vmax.f32 %v1251, 0.0
        %v2238 = vmax.f32 %v1253, 0.0
        %v2239 = vmax.f32 %v1394, 0.0
        %v2240 = vmax.f32 %v1396, 0.0
        %v2241 = vmax.f32 %v1537, 0.0
        %v2242 = vmax.f32 %v1539, 0.0
        %v2243 = vmax.f32 %v1680, 0.0
        %v2244 = vmax.f32 %v1682, 0.0
        %v2245 = vmax.f32 %v1823, 0.0
        %v2246 = vmax.f32 %v1825, 0.0
        %v2247 = vmax.f32 %v1966, 0.0
        %v2248 = vmax.f32 %v1968, 0.0
        %v2249 = vmax.f32 %v2109, 0.0
        %v2250 = vmax.f32 %v2111, 0.0
        %v2251 = vmax.f32 %v1114, 0.0
        %v2252 = vmax.f32 %v1116, 0.0
        %v2253 = vmax.f32 %v1257, 0.0
        %v2254 = vmax.f32 %v1259, 0.0
        %v2255 = vmax.f32 %v1400, 0.0
        %v2256 = vmax.f32 %v1402, 0.0
        %v2257 = vmax.f32 %v1543, 0.0
        %v2258 = vmax.f32 %v1545, 0.0
        %v2259 = vmax.f32 %v1686, 0.0
        %v2260 = vmax.f32 %v1688, 0.0
        %v2261 = vmax.f32 %v1829, 0.0
        %v2262 = vmax.f32 %v1831, 0.0
        %v2263 = vmax.f32 %v1972, 0.0
        %v2264 = vmax.f32 %v1974, 0.0
        %v2265 = vmax.f32 %v2115, 0.0
        %v2266 = vmax.f32 %v2117, 0.0
        %v2267 = vmax.f32 %v1120, 0.0
        %v2268 = vmax.f32 %v1122, 0.0
        %v2269 = vmax.f32 %v1263, 0.0
        %v2270 = vmax.f32 %v1265, 0.0
        %v2271 = vmax.f32 %v1406, 0.0
        %v2272 = vmax.f32 %v1408, 0.0
        %v2273 = vmax.f32 %v1549, 0.0
        %v2274 = vmax.f32 %v1551, 0.0
        %v2275 = vmax.f32 %v1692, 0.0
        %v2276 = vmax.f32 %v1694, 0.0
        %v2277 = vmax.f32 %v1835, 0.0
        %v2278 = vmax.f32 %v1837, 0.0
        %v2279 = vmax.f32 %v1978, 0.0
        %v2280 = vmax.f32 %v1980, 0.0
        %v2281 = vmax.f32 %v2121, 0.0
        %v2282 = vmax.f32 %v2123, 0.0
        %v2283 = vmax.f32 %v1126, 0.0
        %v2284 = vmax.f32 %v1128, 0.0
        %v2285 = vmax.f32 %v1269, 0.0
        %v2286 = vmax.f32 %v1271, 0.0
        %v2287 = vmax.f32 %v1412, 0.0
        %v2288 = vmax.f32 %v1414, 0.0
        %v2289 = vmax.f32 %v1555, 0.0
        %v2290 = vmax.f32 %v1557, 0.0
        %v2291 = vmax.f32 %v1698, 0.0
        %v2292 = vmax.f32 %v1700, 0.0
        %v2293 = vmax.f32 %v1841, 0.0
        %v2294 = vmax.f32 %v1843, 0.0
        %v2295 = vmax.f32 %v1984, 0.0
        %v2296 = vmax.f32 %v1986, 0.0
        %v2297 = vmax.f32 %v2127, 0.0
        %v2298 = vmax.f32 %v2129, 0.0
        %v2299 = vmax.f32 %v1132, 0.0
        %v2300 = vmax.f32 %v1134, 0.0
        %v2301 = vmax.f32 %v1275, 0.0
        %v2302 = vmax.f32 %v1277, 0.0
        %v2303 = vmax.f32 %v1418, 0.0
        %v2304 = vmax.f32 %v1420, 0.0
        %v2305 = vmax.f32 %v1561, 0.0
        %v2306 = vmax.f32 %v1563, 0.0
        %v2307 = vmax.f32 %v1704, 0.0
        %v2308 = vmax.f32 %v1706, 0.0
        %v2309 = vmax.f32 %v1847, 0.0
        %v2310 = vmax.f32 %v1849, 0.0
        %v2311 = vmax.f32 %v1990, 0.0
        %v2312 = vmax.f32 %v1992, 0.0
        %v2313 = vmax.f32 %v2133, 0.0
        %v2314 = vmax.f32 %v2135, 0.0
        %v2315 = vmax.f32 %v1138, 0.0
        %v2316 = vmax.f32 %v1140, 0.0
        %v2317 = vmax.f32 %v1281, 0.0
        %v2318 = vmax.f32 %v1283, 0.0
        %v2319 = vmax.f32 %v1424, 0.0
        %v2320 = vmax.f32 %v1426, 0.0
        %v2321 = vmax.f32 %v1567, 0.0
        %v2322 = vmax.f32 %v1569, 0.0
        %v2323 = vmax.f32 %v1710, 0.0
        %v2324 = vmax.f32 %v1712, 0.0
        %v2325 = vmax.f32 %v1853, 0.0
        %v2326 = vmax.f32 %v1855, 0.0
        %v2327 = vmax.f32 %v1996, 0.0
        %v2328 = vmax.f32 %v1998, 0.0
        %v2329 = vmax.f32 %v2139, 0.0
        %v2330 = vmax.f32 %v2141, 0.0
        %v2331 = vmax.f32 %v1144, 0.0
        %v2332 = vmax.f32 %v1146, 0.0
        %v2333 = vmax.f32 %v1287, 0.0
        %v2334 = vmax.f32 %v1289, 0.0
        %v2335 = vmax.f32 %v1430, 0.0
        %v2336 = vmax.f32 %v1432, 0.0
        %v2337 = vmax.f32 %v1573, 0.0
        %v2338 = vmax.f32 %v1575, 0.0
        %v2339 = vmax.f32 %v1716, 0.0
        %v2340 = vmax.f32 %v1718, 0.0
        %v2341 = vmax.f32 %v1859, 0.0
        %v2342 = vmax.f32 %v1861, 0.0
        %v2343 = vmax.f32 %v2002, 0.0
        %v2344 = vmax.f32 %v2004, 0.0
        %v2345 = vmax.f32 %v2145, 0.0
        %v2346 = vmax.f32 %v2147, 0.0
        %v2347 = vmax.f32 %v1150, 0.0
        %v2348 = vmax.f32 %v1152, 0.0
        %v2349 = vmax.f32 %v1293, 0.0
        %v2350 = vmax.f32 %v1295, 0.0
        %v2351 = vmax.f32 %v1436, 0.0
        %v2352 = vmax.f32 %v1438, 0.0
        %v2353 = vmax.f32 %v1579, 0.0
        %v2354 = vmax.f32 %v1581, 0.0
        %v2355 = vmax.f32 %v1722, 0.0
        %v2356 = vmax.f32 %v1724, 0.0
        %v2357 = vmax.f32 %v1865, 0.0
        %v2358 = vmax.f32 %v1867, 0.0
        %v2359 = vmax.f32 %v2008, 0.0
        %v2360 = vmax.f32 %v2010, 0.0
        %v2361 = vmax.f32 %v2151, 0.0
        %v2362 = vmax.f32 %v2153, 0.0
        %v2363 = vld [vmem:[#allocation6] sm:$0xff]
        %v2364 = vld [vmem:[#allocation6 + $0x8] sm:$0xff]
        %v2365 = vld [vmem:[#allocation6 + $0x10] sm:$0xff]
        %v2366 = vld [vmem:[#allocation6 + $0x18] sm:$0xff]
        %v2367 = vld [vmem:[#allocation6 + $0x20] sm:$0xff]
        %v2368 = vld [vmem:[#allocation6 + $0x28] sm:$0xff]
        %v2369 = vld [vmem:[#allocation6 + $0x30] sm:$0xff]
        %v2370 = vld [vmem:[#allocation6 + $0x38] sm:$0xff]
        %v2371 = vld [vmem:[#allocation6 + $0x40] sm:$0xff]
        %v2372 = vld [vmem:[#allocation6 + $0x48] sm:$0xff]
        %v2373 = vld [vmem:[#allocation6 + $0x50] sm:$0xff]
        %v2374 = vld [vmem:[#allocation6 + $0x58] sm:$0xff]
        %v2375 = vld [vmem:[#allocation6 + $0x60] sm:$0xff]
        %v2376 = vld [vmem:[#allocation6 + $0x68] sm:$0xff]
        %v2377 = vld [vmem:[#allocation6 + $0x70] sm:$0xff]
        %v2378 = vld [vmem:[#allocation6 + $0x78] sm:$0xff]
        %v2379 = vld [vmem:[#allocation6 + $0x80] sm:$0xff]
        %v2380 = vld [vmem:[#allocation6 + $0x88] sm:$0xff]
        %v2381 = vld [vmem:[#allocation6 + $0x90] sm:$0xff]
        %v2382 = vld [vmem:[#allocation6 + $0x98] sm:$0xff]
        %v2383 = vld [vmem:[#allocation6 + $0xa0] sm:$0xff]
        %v2384 = vld [vmem:[#allocation6 + $0xa8] sm:$0xff]
        %v2385 = vld [vmem:[#allocation6 + $0xb0] sm:$0xff]
        %v2386 = vld [vmem:[#allocation6 + $0xb8] sm:$0xff]
        %v2387 = vld [vmem:[#allocation6 + $0xc0] sm:$0xff]
        %v2388 = vld [vmem:[#allocation6 + $0xc8] sm:$0xff]
        %v2389 = vld [vmem:[#allocation6 + $0xd0] sm:$0xff]
        %v2390 = vld [vmem:[#allocation6 + $0xd8] sm:$0xff]
        %v2391 = vld [vmem:[#allocation6 + $0xe0] sm:$0xff]
        %v2392 = vld [vmem:[#allocation6 + $0xe8] sm:$0xff]
        %v2393 = vld [vmem:[#allocation6 + $0xf0] sm:$0xff]
        %v2394 = vld [vmem:[#allocation6 + $0xf8] sm:$0xff]
        %v2395 = vld [vmem:[#allocation6 + $0x100] sm:$0xff]
        %v2396 = vld [vmem:[#allocation6 + $0x108] sm:$0xff]
        %v2397 = vld [vmem:[#allocation6 + $0x110] sm:$0xff]
        %v2398 = vld [vmem:[#allocation6 + $0x118] sm:$0xff]
        %v2399 = vld [vmem:[#allocation6 + $0x120] sm:$0xff]
        %v2400 = vld [vmem:[#allocation6 + $0x128] sm:$0xff]
        %v2401 = vld [vmem:[#allocation6 + $0x130] sm:$0xff]
        %v2402 = vld [vmem:[#allocation6 + $0x138] sm:$0xff]
        %v2403 = vld [vmem:[#allocation6 + $0x140] sm:$0xff]
        %v2404 = vld [vmem:[#allocation6 + $0x148] sm:$0xff]
        %v2405 = vld [vmem:[#allocation6 + $0x150] sm:$0xff]
        %v2406 = vld [vmem:[#allocation6 + $0x158] sm:$0xff]
        %v2407 = vld [vmem:[#allocation6 + $0x160] sm:$0xff]
        %v2408 = vld [vmem:[#allocation6 + $0x168] sm:$0xff]
        %v2409 = vld [vmem:[#allocation6 + $0x170] sm:$0xff]
        %v2410 = vld [vmem:[#allocation6 + $0x178] sm:$0xff]
        %v2411 = vld [vmem:[#allocation6 + $0x180] sm:$0xff]
        %v2412 = vld [vmem:[#allocation6 + $0x188] sm:$0xff]
        %v2413 = vld [vmem:[#allocation6 + $0x190] sm:$0xff]
        %v2414 = vld [vmem:[#allocation6 + $0x198] sm:$0xff]
        %v2415 = vld [vmem:[#allocation6 + $0x1a0] sm:$0xff]
        %v2416 = vld [vmem:[#allocation6 + $0x1a8] sm:$0xff]
        %v2417 = vld [vmem:[#allocation6 + $0x1b0] sm:$0xff]
        %v2418 = vld [vmem:[#allocation6 + $0x1b8] sm:$0xff]
        %v2419 = vld [vmem:[#allocation6 + $0x1c0] sm:$0xff]
        %v2420 = vld [vmem:[#allocation6 + $0x1c8] sm:$0xff]
        %v2421 = vld [vmem:[#allocation6 + $0x1d0] sm:$0xff]
        %v2422 = vld [vmem:[#allocation6 + $0x1d8] sm:$0xff]
        %v2423 = vld [vmem:[#allocation6 + $0x1e0] sm:$0xff]
        %v2424 = vld [vmem:[#allocation6 + $0x1e8] sm:$0xff]
        %v2425 = vld [vmem:[#allocation6 + $0x1f0] sm:$0xff]
        %v2426 = vld [vmem:[#allocation6 + $0x1f8] sm:$0xff]
        %v2427 = vld [vmem:[#allocation6 + $0x200] sm:$0xff]
        %v2428 = vld [vmem:[#allocation6 + $0x208] sm:$0xff]
        %v2429 = vld [vmem:[#allocation6 + $0x210] sm:$0xff]
        %v2430 = vld [vmem:[#allocation6 + $0x218] sm:$0xff]
        %v2431 = vld [vmem:[#allocation6 + $0x220] sm:$0xff]
        %v2432 = vld [vmem:[#allocation6 + $0x228] sm:$0xff]
        %v2433 = vld [vmem:[#allocation6 + $0x230] sm:$0xff]
        %v2434 = vld [vmem:[#allocation6 + $0x238] sm:$0xff]
        %v2435 = vld [vmem:[#allocation6 + $0x240] sm:$0xff]
        %v2436 = vld [vmem:[#allocation6 + $0x248] sm:$0xff]
        %v2437 = vld [vmem:[#allocation6 + $0x250] sm:$0xff]
        %v2438 = vld [vmem:[#allocation6 + $0x258] sm:$0xff]
        %v2439 = vld [vmem:[#allocation6 + $0x260] sm:$0xff]
        %v2440 = vld [vmem:[#allocation6 + $0x268] sm:$0xff]
        %v2441 = vld [vmem:[#allocation6 + $0x270] sm:$0xff]
        %v2442 = vld [vmem:[#allocation6 + $0x278] sm:$0xff]
        %v2443 = vld [vmem:[#allocation6 + $0x280] sm:$0xff]
        %v2444 = vld [vmem:[#allocation6 + $0x288] sm:$0xff]
        %v2445 = vld [vmem:[#allocation6 + $0x290] sm:$0xff]
        %v2446 = vld [vmem:[#allocation6 + $0x298] sm:$0xff]
        %v2447 = vld [vmem:[#allocation6 + $0x2a0] sm:$0xff]
        %v2448 = vld [vmem:[#allocation6 + $0x2a8] sm:$0xff]
        %v2449 = vld [vmem:[#allocation6 + $0x2b0] sm:$0xff]
        %v2450 = vld [vmem:[#allocation6 + $0x2b8] sm:$0xff]
        %v2451 = vld [vmem:[#allocation6 + $0x2c0] sm:$0xff]
        %v2452 = vld [vmem:[#allocation6 + $0x2c8] sm:$0xff]
        %v2453 = vld [vmem:[#allocation6 + $0x2d0] sm:$0xff]
        %v2454 = vld [vmem:[#allocation6 + $0x2d8] sm:$0xff]
        %v2455 = vld [vmem:[#allocation6 + $0x2e0] sm:$0xff]
        %v2456 = vld [vmem:[#allocation6 + $0x2e8] sm:$0xff]
        %v2457 = vld [vmem:[#allocation6 + $0x2f0] sm:$0xff]
        %v2458 = vld [vmem:[#allocation6 + $0x2f8] sm:$0xff]
        %v2459 = vld [vmem:[#allocation6 + $0x300] sm:$0xff]
        %v2460 = vld [vmem:[#allocation6 + $0x308] sm:$0xff]
        %v2461 = vld [vmem:[#allocation6 + $0x310] sm:$0xff]
        %v2462 = vld [vmem:[#allocation6 + $0x318] sm:$0xff]
        %v2463 = vld [vmem:[#allocation6 + $0x320] sm:$0xff]
        %v2464 = vld [vmem:[#allocation6 + $0x328] sm:$0xff]
        %v2465 = vld [vmem:[#allocation6 + $0x330] sm:$0xff]
        %v2466 = vld [vmem:[#allocation6 + $0x338] sm:$0xff]
        %v2467 = vld [vmem:[#allocation6 + $0x340] sm:$0xff]
        %v2468 = vld [vmem:[#allocation6 + $0x348] sm:$0xff]
        %v2469 = vld [vmem:[#allocation6 + $0x350] sm:$0xff]
        %v2470 = vld [vmem:[#allocation6 + $0x358] sm:$0xff]
        %v2471 = vld [vmem:[#allocation6 + $0x360] sm:$0xff]
        %v2472 = vld [vmem:[#allocation6 + $0x368] sm:$0xff]
        %v2473 = vld [vmem:[#allocation6 + $0x370] sm:$0xff]
        %v2474 = vld [vmem:[#allocation6 + $0x378] sm:$0xff]
        %v2475 = vld [vmem:[#allocation6 + $0x380] sm:$0xff]
        %v2476 = vld [vmem:[#allocation6 + $0x388] sm:$0xff]
        %v2477 = vld [vmem:[#allocation6 + $0x390] sm:$0xff]
        %v2478 = vld [vmem:[#allocation6 + $0x398] sm:$0xff]
        %v2479 = vld [vmem:[#allocation6 + $0x3a0] sm:$0xff]
        %v2480 = vld [vmem:[#allocation6 + $0x3a8] sm:$0xff]
        %v2481 = vld [vmem:[#allocation6 + $0x3b0] sm:$0xff]
        %v2482 = vld [vmem:[#allocation6 + $0x3b8] sm:$0xff]
        %v2483 = vld [vmem:[#allocation6 + $0x3c0] sm:$0xff]
        %v2484 = vld [vmem:[#allocation6 + $0x3c8] sm:$0xff]
        %v2485 = vld [vmem:[#allocation6 + $0x3d0] sm:$0xff]
        %v2486 = vld [vmem:[#allocation6 + $0x3d8] sm:$0xff]
        %v2487 = vld [vmem:[#allocation6 + $0x3e0] sm:$0xff]
        %v2488 = vld [vmem:[#allocation6 + $0x3e8] sm:$0xff]
        %v2489 = vld [vmem:[#allocation6 + $0x3f0] sm:$0xff]
        %v2490 = vld [vmem:[#allocation6 + $0x3f8] sm:$0xff]
        %v2491 = vld [vmem:[#allocation6 + $0x400] sm:$0xff]
        %v2492 = vld [vmem:[#allocation6 + $0x408] sm:$0xff]
        %v2493 = vld [vmem:[#allocation6 + $0x410] sm:$0xff]
        %v2494 = vld [vmem:[#allocation6 + $0x418] sm:$0xff]
        %v2495 = vld [vmem:[#allocation6 + $0x420] sm:$0xff]
        %v2496 = vld [vmem:[#allocation6 + $0x428] sm:$0xff]
        %v2497 = vld [vmem:[#allocation6 + $0x430] sm:$0xff]
        %v2498 = vld [vmem:[#allocation6 + $0x438] sm:$0xff]
        %v2499 = vld [vmem:[#allocation6 + $0x440] sm:$0xff]
        %v2500 = vld [vmem:[#allocation6 + $0x448] sm:$0xff]
        %v2501 = vld [vmem:[#allocation6 + $0x450] sm:$0xff]
        %v2502 = vld [vmem:[#allocation6 + $0x458] sm:$0xff]
        %v2503 = vld [vmem:[#allocation6 + $0x460] sm:$0xff]
        %v2504 = vld [vmem:[#allocation6 + $0x468] sm:$0xff]
        %v2505 = vld [vmem:[#allocation6 + $0x470] sm:$0xff]
        %v2506 = vld [vmem:[#allocation6 + $0x478] sm:$0xff]
        %v2507 = vld [vmem:[#allocation6 + $0x480] sm:$0xff]
        %v2508 = vld [vmem:[#allocation6 + $0x488] sm:$0xff]
        %v2509 = vld [vmem:[#allocation6 + $0x490] sm:$0xff]
        %v2510 = vld [vmem:[#allocation6 + $0x498] sm:$0xff]
        %v2511 = vld [vmem:[#allocation6 + $0x4a0] sm:$0xff]
        %v2512 = vld [vmem:[#allocation6 + $0x4a8] sm:$0xff]
        %v2513 = vld [vmem:[#allocation6 + $0x4b0] sm:$0xff]
        %v2514 = vld [vmem:[#allocation6 + $0x4b8] sm:$0xff]
        %v2515 = vld [vmem:[#allocation6 + $0x4c0] sm:$0xff]
        %v2516 = vld [vmem:[#allocation6 + $0x4c8] sm:$0xff]
        %v2517 = vld [vmem:[#allocation6 + $0x4d0] sm:$0xff]
        %v2518 = vld [vmem:[#allocation6 + $0x4d8] sm:$0xff]
        %v2519 = vld [vmem:[#allocation6 + $0x4e0] sm:$0xff]
        %v2520 = vld [vmem:[#allocation6 + $0x4e8] sm:$0xff]
        %v2521 = vld [vmem:[#allocation6 + $0x4f0] sm:$0xff]
        %v2522 = vld [vmem:[#allocation6 + $0x4f8] sm:$0xff]
        %v2523 = vld [vmem:[#allocation6 + $0x500] sm:$0xff]
        %v2524 = vld [vmem:[#allocation6 + $0x508] sm:$0xff]
        %v2525 = vld [vmem:[#allocation6 + $0x510] sm:$0xff]
        %v2526 = vld [vmem:[#allocation6 + $0x518] sm:$0xff]
        %v2527 = vld [vmem:[#allocation6 + $0x520] sm:$0xff]
        %v2528 = vld [vmem:[#allocation6 + $0x528] sm:$0xff]
        %v2529 = vld [vmem:[#allocation6 + $0x530] sm:$0xff]
        %v2530 = vld [vmem:[#allocation6 + $0x538] sm:$0xff]
        %v2531 = vld [vmem:[#allocation6 + $0x540] sm:$0xff]
        %v2532 = vld [vmem:[#allocation6 + $0x548] sm:$0xff]
        %v2533 = vld [vmem:[#allocation6 + $0x550] sm:$0xff]
        %v2534 = vld [vmem:[#allocation6 + $0x558] sm:$0xff]
        %v2535 = vld [vmem:[#allocation6 + $0x560] sm:$0xff]
        %v2536 = vld [vmem:[#allocation6 + $0x568] sm:$0xff]
        %v2537 = vld [vmem:[#allocation6 + $0x570] sm:$0xff]
        %v2538 = vld [vmem:[#allocation6 + $0x578] sm:$0xff]
        %v2539 = vld [vmem:[#allocation6 + $0x580] sm:$0xff]
        %v2540 = vld [vmem:[#allocation6 + $0x588] sm:$0xff]
        %v2541 = vld [vmem:[#allocation6 + $0x590] sm:$0xff]
        %v2542 = vld [vmem:[#allocation6 + $0x598] sm:$0xff]
        %v2543 = vld [vmem:[#allocation6 + $0x5a0] sm:$0xff]
        %v2544 = vld [vmem:[#allocation6 + $0x5a8] sm:$0xff]
        %v2545 = vld [vmem:[#allocation6 + $0x5b0] sm:$0xff]
        %v2546 = vld [vmem:[#allocation6 + $0x5b8] sm:$0xff]
        %v2547 = vld [vmem:[#allocation6 + $0x5c0] sm:$0xff]
        %v2548 = vld [vmem:[#allocation6 + $0x5c8] sm:$0xff]
        %v2549 = vld [vmem:[#allocation6 + $0x5d0] sm:$0xff]
        %v2550 = vld [vmem:[#allocation6 + $0x5d8] sm:$0xff]
        %v2551 = vld [vmem:[#allocation6 + $0x5e0] sm:$0xff]
        %v2552 = vld [vmem:[#allocation6 + $0x5e8] sm:$0xff]
        %v2553 = vld [vmem:[#allocation6 + $0x5f0] sm:$0xff]
        %v2554 = vld [vmem:[#allocation6 + $0x5f8] sm:$0xff]
        %v2555 = vld [vmem:[#allocation6 + $0x600] sm:$0xff]
        %v2556 = vld [vmem:[#allocation6 + $0x608] sm:$0xff]
        %v2557 = vld [vmem:[#allocation6 + $0x610] sm:$0xff]
        %v2558 = vld [vmem:[#allocation6 + $0x618] sm:$0xff]
        %v2559 = vld [vmem:[#allocation6 + $0x620] sm:$0xff]
        %v2560 = vld [vmem:[#allocation6 + $0x628] sm:$0xff]
        %v2561 = vld [vmem:[#allocation6 + $0x630] sm:$0xff]
        %v2562 = vld [vmem:[#allocation6 + $0x638] sm:$0xff]
        %v2563 = vld [vmem:[#allocation6 + $0x640] sm:$0xff]
        %v2564 = vld [vmem:[#allocation6 + $0x648] sm:$0xff]
        %v2565 = vld [vmem:[#allocation6 + $0x650] sm:$0xff]
        %v2566 = vld [vmem:[#allocation6 + $0x658] sm:$0xff]
        %v2567 = vld [vmem:[#allocation6 + $0x660] sm:$0xff]
        %v2568 = vld [vmem:[#allocation6 + $0x668] sm:$0xff]
        %v2569 = vld [vmem:[#allocation6 + $0x670] sm:$0xff]
        %v2570 = vld [vmem:[#allocation6 + $0x678] sm:$0xff]
        %v2571 = vld [vmem:[#allocation6 + $0x680] sm:$0xff]
        %v2572 = vld [vmem:[#allocation6 + $0x688] sm:$0xff]
        %v2573 = vld [vmem:[#allocation6 + $0x690] sm:$0xff]
        %v2574 = vld [vmem:[#allocation6 + $0x698] sm:$0xff]
        %v2575 = vld [vmem:[#allocation6 + $0x6a0] sm:$0xff]
        %v2576 = vld [vmem:[#allocation6 + $0x6a8] sm:$0xff]
        %v2577 = vld [vmem:[#allocation6 + $0x6b0] sm:$0xff]
        %v2578 = vld [vmem:[#allocation6 + $0x6b8] sm:$0xff]
        %v2579 = vld [vmem:[#allocation6 + $0x6c0] sm:$0xff]
        %v2580 = vld [vmem:[#allocation6 + $0x6c8] sm:$0xff]
        %v2581 = vld [vmem:[#allocation6 + $0x6d0] sm:$0xff]
        %v2582 = vld [vmem:[#allocation6 + $0x6d8] sm:$0xff]
        %v2583 = vld [vmem:[#allocation6 + $0x6e0] sm:$0xff]
        %v2584 = vld [vmem:[#allocation6 + $0x6e8] sm:$0xff]
        %v2585 = vld [vmem:[#allocation6 + $0x6f0] sm:$0xff]
        %v2586 = vld [vmem:[#allocation6 + $0x6f8] sm:$0xff]
        %v2587 = vld [vmem:[#allocation6 + $0x700] sm:$0xff]
        %v2588 = vld [vmem:[#allocation6 + $0x708] sm:$0xff]
        %v2589 = vld [vmem:[#allocation6 + $0x710] sm:$0xff]
        %v2590 = vld [vmem:[#allocation6 + $0x718] sm:$0xff]
        %v2591 = vld [vmem:[#allocation6 + $0x720] sm:$0xff]
        %v2592 = vld [vmem:[#allocation6 + $0x728] sm:$0xff]
        %v2593 = vld [vmem:[#allocation6 + $0x730] sm:$0xff]
        %v2594 = vld [vmem:[#allocation6 + $0x738] sm:$0xff]
        %v2595 = vld [vmem:[#allocation6 + $0x740] sm:$0xff]
        %v2596 = vld [vmem:[#allocation6 + $0x748] sm:$0xff]
        %v2597 = vld [vmem:[#allocation6 + $0x750] sm:$0xff]
        %v2598 = vld [vmem:[#allocation6 + $0x758] sm:$0xff]
        %v2599 = vld [vmem:[#allocation6 + $0x760] sm:$0xff]
        %v2600 = vld [vmem:[#allocation6 + $0x768] sm:$0xff]
        %v2601 = vld [vmem:[#allocation6 + $0x770] sm:$0xff]
        %v2602 = vld [vmem:[#allocation6 + $0x778] sm:$0xff]
        %v2603 = vld [vmem:[#allocation6 + $0x780] sm:$0xff]
        %v2604 = vld [vmem:[#allocation6 + $0x788] sm:$0xff]
        %v2605 = vld [vmem:[#allocation6 + $0x790] sm:$0xff]
        %v2606 = vld [vmem:[#allocation6 + $0x798] sm:$0xff]
        %v2607 = vld [vmem:[#allocation6 + $0x7a0] sm:$0xff]
        %v2608 = vld [vmem:[#allocation6 + $0x7a8] sm:$0xff]
        %v2609 = vld [vmem:[#allocation6 + $0x7b0] sm:$0xff]
        %v2610 = vld [vmem:[#allocation6 + $0x7b8] sm:$0xff]
        %v2611 = vld [vmem:[#allocation6 + $0x7c0] sm:$0xff]
        %v2612 = vld [vmem:[#allocation6 + $0x7c8] sm:$0xff]
        %v2613 = vld [vmem:[#allocation6 + $0x7d0] sm:$0xff]
        %v2614 = vld [vmem:[#allocation6 + $0x7d8] sm:$0xff]
        %v2615 = vld [vmem:[#allocation6 + $0x7e0] sm:$0xff]
        %v2616 = vld [vmem:[#allocation6 + $0x7e8] sm:$0xff]
        %v2617 = vld [vmem:[#allocation6 + $0x7f0] sm:$0xff]
        %v2618 = vld [vmem:[#allocation6 + $0x7f8] sm:$0xff]
        %v2619 = vld [vmem:[#allocation6 + $0x800] sm:$0xff]
        %v2620 = vld [vmem:[#allocation6 + $0x808] sm:$0xff]
        %v2621 = vld [vmem:[#allocation6 + $0x810] sm:$0xff]
        %v2622 = vld [vmem:[#allocation6 + $0x818] sm:$0xff]
        %v2623 = vld [vmem:[#allocation6 + $0x820] sm:$0xff]
        %v2624 = vld [vmem:[#allocation6 + $0x828] sm:$0xff]
        %v2625 = vld [vmem:[#allocation6 + $0x830] sm:$0xff]
        %v2626 = vld [vmem:[#allocation6 + $0x838] sm:$0xff]
        %v2627 = vld [vmem:[#allocation6 + $0x840] sm:$0xff]
        %v2628 = vld [vmem:[#allocation6 + $0x848] sm:$0xff]
        %v2629 = vld [vmem:[#allocation6 + $0x850] sm:$0xff]
        %v2630 = vld [vmem:[#allocation6 + $0x858] sm:$0xff]
        %v2631 = vld [vmem:[#allocation6 + $0x860] sm:$0xff]
        %v2632 = vld [vmem:[#allocation6 + $0x868] sm:$0xff]
        %v2633 = vld [vmem:[#allocation6 + $0x870] sm:$0xff]
        %v2634 = vld [vmem:[#allocation6 + $0x878] sm:$0xff]
        %v2635 = vld [vmem:[#allocation6 + $0x880] sm:$0xff]
        %v2636 = vld [vmem:[#allocation6 + $0x888] sm:$0xff]
        %v2637 = vld [vmem:[#allocation6 + $0x890] sm:$0xff]
        %v2638 = vld [vmem:[#allocation6 + $0x898] sm:$0xff]
        %v2639 = vld [vmem:[#allocation6 + $0x8a0] sm:$0xff]
        %v2640 = vld [vmem:[#allocation6 + $0x8a8] sm:$0xff]
        %v2641 = vld [vmem:[#allocation6 + $0x8b0] sm:$0xff]
        %v2642 = vld [vmem:[#allocation6 + $0x8b8] sm:$0xff]
        %v2643 = vld [vmem:[#allocation6 + $0x8c0] sm:$0xff]
        %v2644 = vld [vmem:[#allocation6 + $0x8c8] sm:$0xff]
        %v2645 = vld [vmem:[#allocation6 + $0x8d0] sm:$0xff]
        %v2646 = vld [vmem:[#allocation6 + $0x8d8] sm:$0xff]
        %v2647 = vld [vmem:[#allocation6 + $0x8e0] sm:$0xff]
        %v2648 = vld [vmem:[#allocation6 + $0x8e8] sm:$0xff]
        %v2649 = vld [vmem:[#allocation6 + $0x8f0] sm:$0xff]
        %v2650 = vld [vmem:[#allocation6 + $0x8f8] sm:$0xff]
        %v2651 = vld [vmem:[#allocation6 + $0x900] sm:$0xff]
        %v2652 = vld [vmem:[#allocation6 + $0x908] sm:$0xff]
        %v2653 = vld [vmem:[#allocation6 + $0x910] sm:$0xff]
        %v2654 = vld [vmem:[#allocation6 + $0x918] sm:$0xff]
        %v2655 = vld [vmem:[#allocation6 + $0x920] sm:$0xff]
        %v2656 = vld [vmem:[#allocation6 + $0x928] sm:$0xff]
        %v2657 = vld [vmem:[#allocation6 + $0x930] sm:$0xff]
        %v2658 = vld [vmem:[#allocation6 + $0x938] sm:$0xff]
        %v2659 = vld [vmem:[#allocation6 + $0x940] sm:$0xff]
        %v2660 = vld [vmem:[#allocation6 + $0x948] sm:$0xff]
        %v2661 = vld [vmem:[#allocation6 + $0x950] sm:$0xff]
        %v2662 = vld [vmem:[#allocation6 + $0x958] sm:$0xff]
        %v2663 = vld [vmem:[#allocation6 + $0x960] sm:$0xff]
        %v2664 = vld [vmem:[#allocation6 + $0x968] sm:$0xff]
        %v2665 = vld [vmem:[#allocation6 + $0x970] sm:$0xff]
        %v2666 = vld [vmem:[#allocation6 + $0x978] sm:$0xff]
        %v2667 = vld [vmem:[#allocation6 + $0x980] sm:$0xff]
        %v2668 = vld [vmem:[#allocation6 + $0x988] sm:$0xff]
        %v2669 = vld [vmem:[#allocation6 + $0x990] sm:$0xff]
        %v2670 = vld [vmem:[#allocation6 + $0x998] sm:$0xff]
        %v2671 = vld [vmem:[#allocation6 + $0x9a0] sm:$0xff]
        %v2672 = vld [vmem:[#allocation6 + $0x9a8] sm:$0xff]
        %v2673 = vld [vmem:[#allocation6 + $0x9b0] sm:$0xff]
        %v2674 = vld [vmem:[#allocation6 + $0x9b8] sm:$0xff]
        %v2675 = vld [vmem:[#allocation6 + $0x9c0] sm:$0xff]
        %v2676 = vld [vmem:[#allocation6 + $0x9c8] sm:$0xff]
        %v2677 = vld [vmem:[#allocation6 + $0x9d0] sm:$0xff]
        %v2678 = vld [vmem:[#allocation6 + $0x9d8] sm:$0xff]
        %v2679 = vld [vmem:[#allocation6 + $0x9e0] sm:$0xff]
        %v2680 = vld [vmem:[#allocation6 + $0x9e8] sm:$0xff]
        %v2681 = vld [vmem:[#allocation6 + $0x9f0] sm:$0xff]
        %v2682 = vld [vmem:[#allocation6 + $0x9f8] sm:$0xff]
        %v2683 = vld [vmem:[#allocation6 + $0xa00] sm:$0xff]
        %v2684 = vld [vmem:[#allocation6 + $0xa08] sm:$0xff]
        %v2685 = vld [vmem:[#allocation6 + $0xa10] sm:$0xff]
        %v2686 = vld [vmem:[#allocation6 + $0xa18] sm:$0xff]
        %v2687 = vld [vmem:[#allocation6 + $0xa20] sm:$0xff]
        %v2688 = vld [vmem:[#allocation6 + $0xa28] sm:$0xff]
        %v2689 = vld [vmem:[#allocation6 + $0xa30] sm:$0xff]
        %v2690 = vld [vmem:[#allocation6 + $0xa38] sm:$0xff]
        %v2691 = vld [vmem:[#allocation6 + $0xa40] sm:$0xff]
        %v2692 = vld [vmem:[#allocation6 + $0xa48] sm:$0xff]
        %v2693 = vld [vmem:[#allocation6 + $0xa50] sm:$0xff]
        %v2694 = vld [vmem:[#allocation6 + $0xa58] sm:$0xff]
        %v2695 = vld [vmem:[#allocation6 + $0xa60] sm:$0xff]
        %v2696 = vld [vmem:[#allocation6 + $0xa68] sm:$0xff]
        %v2697 = vld [vmem:[#allocation6 + $0xa70] sm:$0xff]
        %v2698 = vld [vmem:[#allocation6 + $0xa78] sm:$0xff]
        %v2699 = vld [vmem:[#allocation6 + $0xa80] sm:$0xff]
        %v2700 = vld [vmem:[#allocation6 + $0xa88] sm:$0xff]
        %v2701 = vld [vmem:[#allocation6 + $0xa90] sm:$0xff]
        %v2702 = vld [vmem:[#allocation6 + $0xa98] sm:$0xff]
        %v2703 = vld [vmem:[#allocation6 + $0xaa0] sm:$0xff]
        %v2704 = vld [vmem:[#allocation6 + $0xaa8] sm:$0xff]
        %v2705 = vld [vmem:[#allocation6 + $0xab0] sm:$0xff]
        %v2706 = vld [vmem:[#allocation6 + $0xab8] sm:$0xff]
        %v2707 = vld [vmem:[#allocation6 + $0xac0] sm:$0xff]
        %v2708 = vld [vmem:[#allocation6 + $0xac8] sm:$0xff]
        %v2709 = vld [vmem:[#allocation6 + $0xad0] sm:$0xff]
        %v2710 = vld [vmem:[#allocation6 + $0xad8] sm:$0xff]
        %v2711 = vld [vmem:[#allocation6 + $0xae0] sm:$0xff]
        %v2712 = vld [vmem:[#allocation6 + $0xae8] sm:$0xff]
        %v2713 = vld [vmem:[#allocation6 + $0xaf0] sm:$0xff]
        %v2714 = vld [vmem:[#allocation6 + $0xaf8] sm:$0xff]
        %v2715 = vld [vmem:[#allocation6 + $0xb00] sm:$0xff]
        %v2716 = vld [vmem:[#allocation6 + $0xb08] sm:$0xff]
        %v2717 = vld [vmem:[#allocation6 + $0xb10] sm:$0xff]
        %v2718 = vld [vmem:[#allocation6 + $0xb18] sm:$0xff]
        %v2719 = vld [vmem:[#allocation6 + $0xb20] sm:$0xff]
        %v2720 = vld [vmem:[#allocation6 + $0xb28] sm:$0xff]
        %v2721 = vld [vmem:[#allocation6 + $0xb30] sm:$0xff]
        %v2722 = vld [vmem:[#allocation6 + $0xb38] sm:$0xff]
        %v2723 = vld [vmem:[#allocation6 + $0xb40] sm:$0xff]
        %v2724 = vld [vmem:[#allocation6 + $0xb48] sm:$0xff]
        %v2725 = vld [vmem:[#allocation6 + $0xb50] sm:$0xff]
        %v2726 = vld [vmem:[#allocation6 + $0xb58] sm:$0xff]
        %v2727 = vld [vmem:[#allocation6 + $0xb60] sm:$0xff]
        %v2728 = vld [vmem:[#allocation6 + $0xb68] sm:$0xff]
        %v2729 = vld [vmem:[#allocation6 + $0xb70] sm:$0xff]
        %v2730 = vld [vmem:[#allocation6 + $0xb78] sm:$0xff]
        %v2731 = vld [vmem:[#allocation6 + $0xb80] sm:$0xff]
        %v2732 = vld [vmem:[#allocation6 + $0xb88] sm:$0xff]
        %v2733 = vld [vmem:[#allocation6 + $0xb90] sm:$0xff]
        %v2734 = vld [vmem:[#allocation6 + $0xb98] sm:$0xff]
        %v2735 = vld [vmem:[#allocation6 + $0xba0] sm:$0xff]
        %v2736 = vld [vmem:[#allocation6 + $0xba8] sm:$0xff]
        %v2737 = vld [vmem:[#allocation6 + $0xbb0] sm:$0xff]
        %v2738 = vld [vmem:[#allocation6 + $0xbb8] sm:$0xff]
        %v2739 = vld [vmem:[#allocation6 + $0xbc0] sm:$0xff]
        %v2740 = vld [vmem:[#allocation6 + $0xbc8] sm:$0xff]
        %v2741 = vld [vmem:[#allocation6 + $0xbd0] sm:$0xff]
        %v2742 = vld [vmem:[#allocation6 + $0xbd8] sm:$0xff]
        %v2743 = vld [vmem:[#allocation6 + $0xbe0] sm:$0xff]
        %v2744 = vld [vmem:[#allocation6 + $0xbe8] sm:$0xff]
        %v2745 = vld [vmem:[#allocation6 + $0xbf0] sm:$0xff]
        %v2746 = vld [vmem:[#allocation6 + $0xbf8] sm:$0xff]
        %v2747 = vld [vmem:[#allocation6 + $0xc00] sm:$0xff]
        %v2748 = vld [vmem:[#allocation6 + $0xc08] sm:$0xff]
        %v2749 = vld [vmem:[#allocation6 + $0xc10] sm:$0xff]
        %v2750 = vld [vmem:[#allocation6 + $0xc18] sm:$0xff]
        %v2751 = vld [vmem:[#allocation6 + $0xc20] sm:$0xff]
        %v2752 = vld [vmem:[#allocation6 + $0xc28] sm:$0xff]
        %v2753 = vld [vmem:[#allocation6 + $0xc30] sm:$0xff]
        %v2754 = vld [vmem:[#allocation6 + $0xc38] sm:$0xff]
        %v2755 = vld [vmem:[#allocation6 + $0xc40] sm:$0xff]
        %v2756 = vld [vmem:[#allocation6 + $0xc48] sm:$0xff]
        %v2757 = vld [vmem:[#allocation6 + $0xc50] sm:$0xff]
        %v2758 = vld [vmem:[#allocation6 + $0xc58] sm:$0xff]
        %v2759 = vld [vmem:[#allocation6 + $0xc60] sm:$0xff]
        %v2760 = vld [vmem:[#allocation6 + $0xc68] sm:$0xff]
        %v2761 = vld [vmem:[#allocation6 + $0xc70] sm:$0xff]
        %v2762 = vld [vmem:[#allocation6 + $0xc78] sm:$0xff]
        %v2763 = vld [vmem:[#allocation6 + $0xc80] sm:$0xff]
        %v2764 = vld [vmem:[#allocation6 + $0xc88] sm:$0xff]
        %v2765 = vld [vmem:[#allocation6 + $0xc90] sm:$0xff]
        %v2766 = vld [vmem:[#allocation6 + $0xc98] sm:$0xff]
        %v2767 = vld [vmem:[#allocation6 + $0xca0] sm:$0xff]
        %v2768 = vld [vmem:[#allocation6 + $0xca8] sm:$0xff]
        %v2769 = vld [vmem:[#allocation6 + $0xcb0] sm:$0xff]
        %v2770 = vld [vmem:[#allocation6 + $0xcb8] sm:$0xff]
        %v2771 = vld [vmem:[#allocation6 + $0xcc0] sm:$0xff]
        %v2772 = vld [vmem:[#allocation6 + $0xcc8] sm:$0xff]
        %v2773 = vld [vmem:[#allocation6 + $0xcd0] sm:$0xff]
        %v2774 = vld [vmem:[#allocation6 + $0xcd8] sm:$0xff]
        %v2775 = vld [vmem:[#allocation6 + $0xce0] sm:$0xff]
        %v2776 = vld [vmem:[#allocation6 + $0xce8] sm:$0xff]
        %v2777 = vld [vmem:[#allocation6 + $0xcf0] sm:$0xff]
        %v2778 = vld [vmem:[#allocation6 + $0xcf8] sm:$0xff]
        %v2779 = vld [vmem:[#allocation6 + $0xd00] sm:$0xff]
        %v2780 = vld [vmem:[#allocation6 + $0xd08] sm:$0xff]
        %v2781 = vld [vmem:[#allocation6 + $0xd10] sm:$0xff]
        %v2782 = vld [vmem:[#allocation6 + $0xd18] sm:$0xff]
        %v2783 = vld [vmem:[#allocation6 + $0xd20] sm:$0xff]
        %v2784 = vld [vmem:[#allocation6 + $0xd28] sm:$0xff]
        %v2785 = vld [vmem:[#allocation6 + $0xd30] sm:$0xff]
        %v2786 = vld [vmem:[#allocation6 + $0xd38] sm:$0xff]
        %v2787 = vld [vmem:[#allocation6 + $0xd40] sm:$0xff]
        %v2788 = vld [vmem:[#allocation6 + $0xd48] sm:$0xff]
        %v2789 = vld [vmem:[#allocation6 + $0xd50] sm:$0xff]
        %v2790 = vld [vmem:[#allocation6 + $0xd58] sm:$0xff]
        %v2791 = vld [vmem:[#allocation6 + $0xd60] sm:$0xff]
        %v2792 = vld [vmem:[#allocation6 + $0xd68] sm:$0xff]
        %v2793 = vld [vmem:[#allocation6 + $0xd70] sm:$0xff]
        %v2794 = vld [vmem:[#allocation6 + $0xd78] sm:$0xff]
        %v2795 = vld [vmem:[#allocation6 + $0xd80] sm:$0xff]
        %v2796 = vld [vmem:[#allocation6 + $0xd88] sm:$0xff]
        %v2797 = vld [vmem:[#allocation6 + $0xd90] sm:$0xff]
        %v2798 = vld [vmem:[#allocation6 + $0xd98] sm:$0xff]
        %v2799 = vld [vmem:[#allocation6 + $0xda0] sm:$0xff]
        %v2800 = vld [vmem:[#allocation6 + $0xda8] sm:$0xff]
        %v2801 = vld [vmem:[#allocation6 + $0xdb0] sm:$0xff]
        %v2802 = vld [vmem:[#allocation6 + $0xdb8] sm:$0xff]
        %v2803 = vld [vmem:[#allocation6 + $0xdc0] sm:$0xff]
        %v2804 = vld [vmem:[#allocation6 + $0xdc8] sm:$0xff]
        %v2805 = vld [vmem:[#allocation6 + $0xdd0] sm:$0xff]
        %v2806 = vld [vmem:[#allocation6 + $0xdd8] sm:$0xff]
        %v2807 = vld [vmem:[#allocation6 + $0xde0] sm:$0xff]
        %v2808 = vld [vmem:[#allocation6 + $0xde8] sm:$0xff]
        %v2809 = vld [vmem:[#allocation6 + $0xdf0] sm:$0xff]
        %v2810 = vld [vmem:[#allocation6 + $0xdf8] sm:$0xff]
        %v2811 = vld [vmem:[#allocation6 + $0xe00] sm:$0xff]
        %v2812 = vld [vmem:[#allocation6 + $0xe08] sm:$0xff]
        %v2813 = vld [vmem:[#allocation6 + $0xe10] sm:$0xff]
        %v2814 = vld [vmem:[#allocation6 + $0xe18] sm:$0xff]
        %v2815 = vld [vmem:[#allocation6 + $0xe20] sm:$0xff]
        %v2816 = vld [vmem:[#allocation6 + $0xe28] sm:$0xff]
        %v2817 = vld [vmem:[#allocation6 + $0xe30] sm:$0xff]
        %v2818 = vld [vmem:[#allocation6 + $0xe38] sm:$0xff]
        %v2819 = vld [vmem:[#allocation6 + $0xe40] sm:$0xff]
        %v2820 = vld [vmem:[#allocation6 + $0xe48] sm:$0xff]
        %v2821 = vld [vmem:[#allocation6 + $0xe50] sm:$0xff]
        %v2822 = vld [vmem:[#allocation6 + $0xe58] sm:$0xff]
        %v2823 = vld [vmem:[#allocation6 + $0xe60] sm:$0xff]
        %v2824 = vld [vmem:[#allocation6 + $0xe68] sm:$0xff]
        %v2825 = vld [vmem:[#allocation6 + $0xe70] sm:$0xff]
        %v2826 = vld [vmem:[#allocation6 + $0xe78] sm:$0xff]
        %v2827 = vld [vmem:[#allocation6 + $0xe80] sm:$0xff]
        %v2828 = vld [vmem:[#allocation6 + $0xe88] sm:$0xff]
        %v2829 = vld [vmem:[#allocation6 + $0xe90] sm:$0xff]
        %v2830 = vld [vmem:[#allocation6 + $0xe98] sm:$0xff]
        %v2831 = vld [vmem:[#allocation6 + $0xea0] sm:$0xff]
        %v2832 = vld [vmem:[#allocation6 + $0xea8] sm:$0xff]
        %v2833 = vld [vmem:[#allocation6 + $0xeb0] sm:$0xff]
        %v2834 = vld [vmem:[#allocation6 + $0xeb8] sm:$0xff]
        %v2835 = vld [vmem:[#allocation6 + $0xec0] sm:$0xff]
        %v2836 = vld [vmem:[#allocation6 + $0xec8] sm:$0xff]
        %v2837 = vld [vmem:[#allocation6 + $0xed0] sm:$0xff]
        %v2838 = vld [vmem:[#allocation6 + $0xed8] sm:$0xff]
        %v2839 = vld [vmem:[#allocation6 + $0xee0] sm:$0xff]
        %v2840 = vld [vmem:[#allocation6 + $0xee8] sm:$0xff]
        %v2841 = vld [vmem:[#allocation6 + $0xef0] sm:$0xff]
        %v2842 = vld [vmem:[#allocation6 + $0xef8] sm:$0xff]
        %v2843 = vld [vmem:[#allocation6 + $0xf00] sm:$0xff]
        %v2844 = vld [vmem:[#allocation6 + $0xf08] sm:$0xff]
        %v2845 = vld [vmem:[#allocation6 + $0xf10] sm:$0xff]
        %v2846 = vld [vmem:[#allocation6 + $0xf18] sm:$0xff]
        %v2847 = vld [vmem:[#allocation6 + $0xf20] sm:$0xff]
        %v2848 = vld [vmem:[#allocation6 + $0xf28] sm:$0xff]
        %v2849 = vld [vmem:[#allocation6 + $0xf30] sm:$0xff]
        %v2850 = vld [vmem:[#allocation6 + $0xf38] sm:$0xff]
        %v2851 = vld [vmem:[#allocation6 + $0xf40] sm:$0xff]
        %v2852 = vld [vmem:[#allocation6 + $0xf48] sm:$0xff]
        %v2853 = vld [vmem:[#allocation6 + $0xf50] sm:$0xff]
        %v2854 = vld [vmem:[#allocation6 + $0xf58] sm:$0xff]
        %v2855 = vld [vmem:[#allocation6 + $0xf60] sm:$0xff]
        %v2856 = vld [vmem:[#allocation6 + $0xf68] sm:$0xff]
        %v2857 = vld [vmem:[#allocation6 + $0xf70] sm:$0xff]
        %v2858 = vld [vmem:[#allocation6 + $0xf78] sm:$0xff]
        %v2859 = vld [vmem:[#allocation6 + $0xf80] sm:$0xff]
        %v2860 = vld [vmem:[#allocation6 + $0xf88] sm:$0xff]
        %v2861 = vld [vmem:[#allocation6 + $0xf90] sm:$0xff]
        %v2862 = vld [vmem:[#allocation6 + $0xf98] sm:$0xff]
        %v2863 = vld [vmem:[#allocation6 + $0xfa0] sm:$0xff]
        %v2864 = vld [vmem:[#allocation6 + $0xfa8] sm:$0xff]
        %v2865 = vld [vmem:[#allocation6 + $0xfb0] sm:$0xff]
        %v2866 = vld [vmem:[#allocation6 + $0xfb8] sm:$0xff]
        %v2867 = vld [vmem:[#allocation6 + $0xfc0] sm:$0xff]
        %v2868 = vld [vmem:[#allocation6 + $0xfc8] sm:$0xff]
        %v2869 = vld [vmem:[#allocation6 + $0xfd0] sm:$0xff]
        %v2870 = vld [vmem:[#allocation6 + $0xfd8] sm:$0xff]
        %v2871 = vld [vmem:[#allocation6 + $0xfe0] sm:$0xff]
        %v2872 = vld [vmem:[#allocation6 + $0xfe8] sm:$0xff]
        %v2873 = vld [vmem:[#allocation6 + $0xff0] sm:$0xff]
        %v2874 = vld [vmem:[#allocation6 + $0xff8] sm:$0xff]
        %2875 = vmatprep.subr.mxu0 %v2364
        %2876 = vmatpush1.msra.mxu0 %v2363
        %2877 = vmatprep.subr.mxu0 %v2366
        %2878 = vmatpush1.msra.mxu0 %v2365
        %2879 = vmatprep.subr.mxu0 %v2368
        %2880 = vmatpush1.msra.mxu0 %v2367
        %2881 = vmatprep.subr.mxu0 %v2370
        %2882 = vmatpush1.msra.mxu0 %v2369
        %2883 = vmatprep.subr.mxu0 %v2372
        %2884 = vmatpush1.msra.mxu0 %v2371
        %2885 = vmatprep.subr.mxu0 %v2374
        %2886 = vmatpush1.msra.mxu0 %v2373
        %2887 = vmatprep.subr.mxu0 %v2376
        %2888 = vmatpush1.msra.mxu0 %v2375
        %2889 = vmatprep.subr.mxu0 %v2378
        %2890 = vmatpush1.msra.mxu0 %v2377
        %2891 = vmatprep.subr.mxu0 %v2380
        %2892 = vmatpush1.msra.mxu0 %v2379
        %2893 = vmatprep.subr.mxu0 %v2382
        %2894 = vmatpush1.msra.mxu0 %v2381
        %2895 = vmatprep.subr.mxu0 %v2384
        %2896 = vmatpush1.msra.mxu0 %v2383
        %2897 = vmatprep.subr.mxu0 %v2386
        %2898 = vmatpush1.msra.mxu0 %v2385
        %2899 = vmatprep.subr.mxu0 %v2388
        %2900 = vmatpush1.msra.mxu0 %v2387
        %2901 = vmatprep.subr.mxu0 %v2390
        %2902 = vmatpush1.msra.mxu0 %v2389
        %2903 = vmatprep.subr.mxu0 %v2392
        %2904 = vmatpush1.msra.mxu0 %v2391
        %2905 = vmatprep.subr.mxu0 %v2394
        %2906 = vmatpush1.msra.mxu0 %v2393
        %2907 = vmatprep.subr.mxu0 %v2396
        %2908 = vmatpush1.msra.mxu0 %v2395
        %2909 = vmatprep.subr.mxu0 %v2398
        %2910 = vmatpush1.msra.mxu0 %v2397
        %2911 = vmatprep.subr.mxu0 %v2400
        %2912 = vmatpush1.msra.mxu0 %v2399
        %2913 = vmatprep.subr.mxu0 %v2402
        %2914 = vmatpush1.msra.mxu0 %v2401
        %2915 = vmatprep.subr.mxu0 %v2404
        %2916 = vmatpush1.msra.mxu0 %v2403
        %2917 = vmatprep.subr.mxu0 %v2406
        %2918 = vmatpush1.msra.mxu0 %v2405
        %2919 = vmatprep.subr.mxu0 %v2408
        %2920 = vmatpush1.msra.mxu0 %v2407
        %2921 = vmatprep.subr.mxu0 %v2410
        %2922 = vmatpush1.msra.mxu0 %v2409
        %2923 = vmatprep.subr.mxu0 %v2412
        %2924 = vmatpush1.msra.mxu0 %v2411
        %2925 = vmatprep.subr.mxu0 %v2414
        %2926 = vmatpush1.msra.mxu0 %v2413
        %2927 = vmatprep.subr.mxu0 %v2416
        %2928 = vmatpush1.msra.mxu0 %v2415
        %2929 = vmatprep.subr.mxu0 %v2418
        %2930 = vmatpush1.msra.mxu0 %v2417
        %2931 = vmatprep.subr.mxu0 %v2420
        %2932 = vmatpush1.msra.mxu0 %v2419
        %2933 = vmatprep.subr.mxu0 %v2422
        %2934 = vmatpush1.msra.mxu0 %v2421
        %2935 = vmatprep.subr.mxu0 %v2424
        %2936 = vmatpush1.msra.mxu0 %v2423
        %2937 = vmatprep.subr.mxu0 %v2426
        %2938 = vmatpush1.msra.mxu0 %v2425
        %2939 = vmatprep.mubr.f32.mxu0 %v2156
        %2940 = vmatmul.mubr.f32.gmra.mrb[0].mxu0 %v2155
        %v2941 = vpop.f32.mrb[0].mxu0
        %v2942 = vadd.f32 0.0, %v2941
        %v2943 = vpop.f32.mrb[0].mxu0
        %v2944 = vadd.f32 0.0, %v2943
        %2945 = vmatprep.mubr.f32.mxu0 %v2172
        %2946 = vmatmul.mubr.f32.gmra.mrb[0].mxu0 %v2171
        %v2947 = vpop.f32.mrb[0].mxu0
        %v2948 = vadd.f32 0.0, %v2947
        %v2949 = vpop.f32.mrb[0].mxu0
        %v2950 = vadd.f32 0.0, %v2949
        %2951 = vmatprep.mubr.f32.mxu0 %v2188
        %2952 = vmatmul.mubr.f32.gmra.mrb[0].mxu0 %v2187
        %v2953 = vpop.f32.mrb[0].mxu0
        %v2954 = vadd.f32 0.0, %v2953
        %v2955 = vpop.f32.mrb[0].mxu0
        %v2956 = vadd.f32 0.0, %v2955
        %2957 = vmatprep.mubr.f32.mxu0 %v2204
        %2958 = vmatmul.mubr.f32.gmra.mrb[0].mxu0 %v2203
        %v2959 = vpop.f32.mrb[0].mxu0
        %v2960 = vadd.f32 0.0, %v2959
        %v2961 = vpop.f32.mrb[0].mxu0
        %v2962 = vadd.f32 0.0, %v2961
        %2963 = vmatprep.mubr.f32.mxu0 %v2220
        %2964 = vmatmul.mubr.f32.gmra.mrb[0].mxu0 %v2219
        %v2965 = vpop.f32.mrb[0].mxu0
        %v2966 = vadd.f32 0.0, %v2965
        %v2967 = vpop.f32.mrb[0].mxu0
        %v2968 = vadd.f32 0.0, %v2967
        %2969 = vmatprep.mubr.f32.mxu0 %v2236
        %2970 = vmatmul.mubr.f32.gmra.mrb[0].mxu0 %v2235
        %v2971 = vpop.f32.mrb[0].mxu0
        %v2972 = vadd.f32 0.0, %v2971
        %v2973 = vpop.f32.mrb[0].mxu0
        %v2974 = vadd.f32 0.0, %v2973
        %2975 = vmatprep.mubr.f32.mxu0 %v2252
        %2976 = vmatmul.mubr.f32.gmra.mrb[0].mxu0 %v2251
        %v2977 = vpop.f32.mrb[0].mxu0
        %v2978 = vadd.f32 0.0, %v2977
        %v2979 = vpop.f32.mrb[0].mxu0
        %v2980 = vadd.f32 0.0, %v2979
        %2981 = vmatprep.mubr.f32.mxu0 %v2268
        %2982 = vmatmul.mubr.f32.gmra.mrb[0].mxu0 %v2267
        %v2983 = vpop.f32.mrb[0].mxu0
        %v2984 = vadd.f32 0.0, %v2983
        %v2985 = vpop.f32.mrb[0].mxu0
        %v2986 = vadd.f32 0.0, %v2985
        %2987 = vmatprep.mubr.f32.mxu0 %v2284
        %2988 = vmatmul.mubr.f32.gmra.mrb[0].mxu0 %v2283
        %v2989 = vpop.f32.mrb[0].mxu0
        %v2990 = vadd.f32 0.0, %v2989
        %v2991 = vpop.f32.mrb[0].mxu0
        %v2992 = vadd.f32 0.0, %v2991
        %2993 = vmatprep.mubr.f32.mxu0 %v2300
        %2994 = vmatmul.mubr.f32.gmra.mrb[0].mxu0 %v2299
        %v2995 = vpop.f32.mrb[0].mxu0
        %v2996 = vadd.f32 0.0, %v2995
        %v2997 = vpop.f32.mrb[0].mxu0
        %v2998 = vadd.f32 0.0, %v2997
        %2999 = vmatprep.mubr.f32.mxu0 %v2316
        %3000 = vmatmul.mubr.f32.gmra.mrb[0].mxu0 %v2315
        %v3001 = vpop.f32.mrb[0].mxu0
        %v3002 = vadd.f32 0.0, %v3001
        %v3003 = vpop.f32.mrb[0].mxu0
        %v3004 = vadd.f32 0.0, %v3003
        %3005 = vmatprep.mubr.f32.mxu0 %v2332
        %3006 = vmatmul.mubr.f32.gmra.mrb[0].mxu0 %v2331
        %v3007 = vpop.f32.mrb[0].mxu0
        %v3008 = vadd.f32 0.0, %v3007
        %v3009 = vpop.f32.mrb[0].mxu0
        %v3010 = vadd.f32 0.0, %v3009
        %3011 = vmatprep.mubr.f32.mxu0 %v2348
        %3012 = vmatmul.mubr.f32.gmra.mrb[0].mxu0 %v2347
        %v3013 = vpop.f32.mrb[0].mxu0
        %v3014 = vadd.f32 0.0, %v3013
        %v3015 = vpop.f32.mrb[0].mxu0
        %v3016 = vadd.f32 0.0, %v3015
        %3017 = vdwg.mxu0
        %3018 = vmatprep.subr.mxu0 %v2428
        %3019 = vmatpush1.msra.mxu0 %v2427
        %3020 = vmatprep.subr.mxu0 %v2430
        %3021 = vmatpush1.msra.mxu0 %v2429
        %3022 = vmatprep.subr.mxu0 %v2432
        %3023 = vmatpush1.msra.mxu0 %v2431
        %3024 = vmatprep.subr.mxu0 %v2434
        %3025 = vmatpush1.msra.mxu0 %v2433
        %3026 = vmatprep.subr.mxu0 %v2436
        %3027 = vmatpush1.msra.mxu0 %v2435
        %3028 = vmatprep.subr.mxu0 %v2438
        %3029 = vmatpush1.msra.mxu0 %v2437
        %3030 = vmatprep.subr.mxu0 %v2440
        %3031 = vmatpush1.msra.mxu0 %v2439
        %3032 = vmatprep.subr.mxu0 %v2442
        %3033 = vmatpush1.msra.mxu0 %v2441
        %3034 = vmatprep.subr.mxu0 %v2444
        %3035 = vmatpush1.msra.mxu0 %v2443
        %3036 = vmatprep.subr.mxu0 %v2446
        %3037 = vmatpush1.msra.mxu0 %v2445
        %3038 = vmatprep.subr.mxu0 %v2448
        %3039 = vmatpush1.msra.mxu0 %v2447
        %3040 = vmatprep.subr.mxu0 %v2450
        %3041 = vmatpush1.msra.mxu0 %v2449
        %3042 = vmatprep.subr.mxu0 %v2452
        %3043 = vmatpush1.msra.mxu0 %v2451
        %3044 = vmatprep.subr.mxu0 %v2454
        %3045 = vmatpush1.msra.mxu0 %v2453
        %3046 = vmatprep.subr.mxu0 %v2456
        %3047 = vmatpush1.msra.mxu0 %v2455
        %3048 = vmatprep.subr.mxu0 %v2458
        %3049 = vmatpush1.msra.mxu0 %v2457
        %3050 = vmatprep.subr.mxu0 %v2460
        %3051 = vmatpush1.msra.mxu0 %v2459
        %3052 = vmatprep.subr.mxu0 %v2462
        %3053 = vmatpush1.msra.mxu0 %v2461
        %3054 = vmatprep.subr.mxu0 %v2464
        %3055 = vmatpush1.msra.mxu0 %v2463
        %3056 = vmatprep.subr.mxu0 %v2466
        %3057 = vmatpush1.msra.mxu0 %v2465
        %3058 = vmatprep.subr.mxu0 %v2468
        %3059 = vmatpush1.msra.mxu0 %v2467
        %3060 = vmatprep.subr.mxu0 %v2470
        %3061 = vmatpush1.msra.mxu0 %v2469
        %3062 = vmatprep.subr.mxu0 %v2472
        %3063 = vmatpush1.msra.mxu0 %v2471
        %3064 = vmatprep.subr.mxu0 %v2474
        %3065 = vmatpush1.msra.mxu0 %v2473
        %3066 = vmatprep.subr.mxu0 %v2476
        %3067 = vmatpush1.msra.mxu0 %v2475
        %3068 = vmatprep.subr.mxu0 %v2478
        %3069 = vmatpush1.msra.mxu0 %v2477
        %3070 = vmatprep.subr.mxu0 %v2480
        %3071 = vmatpush1.msra.mxu0 %v2479
        %3072 = vmatprep.subr.mxu0 %v2482
        %3073 = vmatpush1.msra.mxu0 %v2481
        %3074 = vmatprep.subr.mxu0 %v2484
        %3075 = vmatpush1.msra.mxu0 %v2483
        %3076 = vmatprep.subr.mxu0 %v2486
        %3077 = vmatpush1.msra.mxu0 %v2485
        %3078 = vmatprep.subr.mxu0 %v2488
        %3079 = vmatpush1.msra.mxu0 %v2487
        %3080 = vmatprep.subr.mxu0 %v2490
        %3081 = vmatpush1.msra.mxu0 %v2489
        %3082 = vmatprep.mubr.f32.mxu0 %v2158
        %3083 = vmatmul.mubr.f32.gmra.mrb[0].mxu0 %v2157
        %v3084 = vpop.f32.mrb[0].mxu0
        %v3085 = vadd.f32 %v2942, %v3084
        %v3086 = vpop.f32.mrb[0].mxu0
        %v3087 = vadd.f32 %v2944, %v3086
        %3088 = vmatprep.mubr.f32.mxu0 %v2174
        %3089 = vmatmul.mubr.f32.gmra.mrb[0].mxu0 %v2173
        %v3090 = vpop.f32.mrb[0].mxu0
        %v3091 = vadd.f32 %v2948, %v3090
        %v3092 = vpop.f32.mrb[0].mxu0
        %v3093 = vadd.f32 %v2950, %v3092
        %3094 = vmatprep.mubr.f32.mxu0 %v2190
        %3095 = vmatmul.mubr.f32.gmra.mrb[0].mxu0 %v2189
        %v3096 = vpop.f32.mrb[0].mxu0
        %v3097 = vadd.f32 %v2954, %v3096
        %v3098 = vpop.f32.mrb[0].mxu0
        %v3099 = vadd.f32 %v2956, %v3098
        %3100 = vmatprep.mubr.f32.mxu0 %v2206
        %3101 = vmatmul.mubr.f32.gmra.mrb[0].mxu0 %v2205
        %v3102 = vpop.f32.mrb[0].mxu0
        %v3103 = vadd.f32 %v2960, %v3102
        %v3104 = vpop.f32.mrb[0].mxu0
        %v3105 = vadd.f32 %v2962, %v3104
        %3106 = vmatprep.mubr.f32.mxu0 %v2222
        %3107 = vmatmul.mubr.f32.gmra.mrb[0].mxu0 %v2221
        %v3108 = vpop.f32.mrb[0].mxu0
        %v3109 = vadd.f32 %v2966, %v3108
        %v3110 = vpop.f32.mrb[0].mxu0
        %v3111 = vadd.f32 %v2968, %v3110
        %3112 = vmatprep.mubr.f32.mxu0 %v2238
        %3113 = vmatmul.mubr.f32.gmra.mrb[0].mxu0 %v2237
        %v3114 = vpop.f32.mrb[0].mxu0
        %v3115 = vadd.f32 %v2972, %v3114
        %v3116 = vpop.f32.mrb[0].mxu0
        %v3117 = vadd.f32 %v2974, %v3116
        %3118 = vmatprep.mubr.f32.mxu0 %v2254
        %3119 = vmatmul.mubr.f32.gmra.mrb[0].mxu0 %v2253
        %v3120 = vpop.f32.mrb[0].mxu0
        %v3121 = vadd.f32 %v2978, %v3120
        %v3122 = vpop.f32.mrb[0].mxu0
        %v3123 = vadd.f32 %v2980, %v3122
        %3124 = vmatprep.mubr.f32.mxu0 %v2270
        %3125 = vmatmul.mubr.f32.gmra.mrb[0].mxu0 %v2269
        %v3126 = vpop.f32.mrb[0].mxu0
        %v3127 = vadd.f32 %v2984, %v3126
        %v3128 = vpop.f32.mrb[0].mxu0
        %v3129 = vadd.f32 %v2986, %v3128
        %3130 = vmatprep.mubr.f32.mxu0 %v2286
        %3131 = vmatmul.mubr.f32.gmra.mrb[0].mxu0 %v2285
        %v3132 = vpop.f32.mrb[0].mxu0
        %v3133 = vadd.f32 %v2990, %v3132
        %v3134 = vpop.f32.mrb[0].mxu0
        %v3135 = vadd.f32 %v2992, %v3134
        %3136 = vmatprep.mubr.f32.mxu0 %v2302
        %3137 = vmatmul.mubr.f32.gmra.mrb[0].mxu0 %v2301
        %v3138 = vpop.f32.mrb[0].mxu0
        %v3139 = vadd.f32 %v2996, %v3138
        %v3140 = vpop.f32.mrb[0].mxu0
        %v3141 = vadd.f32 %v2998, %v3140
        %3142 = vmatprep.mubr.f32.mxu0 %v2318
        %3143 = vmatmul.mubr.f32.gmra.mrb[0].mxu0 %v2317
        %v3144 = vpop.f32.mrb[0].mxu0
        %v3145 = vadd.f32 %v3002, %v3144
        %v3146 = vpop.f32.mrb[0].mxu0
        %v3147 = vadd.f32 %v3004, %v3146
        %3148 = vmatprep.mubr.f32.mxu0 %v2334
        %3149 = vmatmul.mubr.f32.gmra.mrb[0].mxu0 %v2333
        %v3150 = vpop.f32.mrb[0].mxu0
        %v3151 = vadd.f32 %v3008, %v3150
        %v3152 = vpop.f32.mrb[0].mxu0
        %v3153 = vadd.f32 %v3010, %v3152
        %3154 = vmatprep.mubr.f32.mxu0 %v2350
        %3155 = vmatmul.mubr.f32.gmra.mrb[0].mxu0 %v2349
        %v3156 = vpop.f32.mrb[0].mxu0
        %v3157 = vadd.f32 %v3014, %v3156
        %v3158 = vpop.f32.mrb[0].mxu0
        %v3159 = vadd.f32 %v3016, %v3158
        %3160 = vdwg.mxu0
        %3161 = vmatprep.subr.mxu0 %v2492
        %3162 = vmatpush1.msra.mxu0 %v2491
        %3163 = vmatprep.subr.mxu0 %v2494
        %3164 = vmatpush1.msra.mxu0 %v2493
        %3165 = vmatprep.subr.mxu0 %v2496
        %3166 = vmatpush1.msra.mxu0 %v2495
        %3167 = vmatprep.subr.mxu0 %v2498
        %3168 = vmatpush1.msra.mxu0 %v2497
        %3169 = vmatprep.subr.mxu0 %v2500
        %3170 = vmatpush1.msra.mxu0 %v2499
        %3171 = vmatprep.subr.mxu0 %v2502
        %3172 = vmatpush1.msra.mxu0 %v2501
        %3173 = vmatprep.subr.mxu0 %v2504
        %3174 = vmatpush1.msra.mxu0 %v2503
        %3175 = vmatprep.subr.mxu0 %v2506
        %3176 = vmatpush1.msra.mxu0 %v2505
        %3177 = vmatprep.subr.mxu0 %v2508
        %3178 = vmatpush1.msra.mxu0 %v2507
        %3179 = vmatprep.subr.mxu0 %v2510
        %3180 = vmatpush1.msra.mxu0 %v2509
        %3181 = vmatprep.subr.mxu0 %v2512
        %3182 = vmatpush1.msra.mxu0 %v2511
        %3183 = vmatprep.subr.mxu0 %v2514
        %3184 = vmatpush1.msra.mxu0 %v2513
        %3185 = vmatprep.subr.mxu0 %v2516
        %3186 = vmatpush1.msra.mxu0 %v2515
        %3187 = vmatprep.subr.mxu0 %v2518
        %3188 = vmatpush1.msra.mxu0 %v2517
        %3189 = vmatprep.subr.mxu0 %v2520
        %3190 = vmatpush1.msra.mxu0 %v2519
        %3191 = vmatprep.subr.mxu0 %v2522
        %3192 = vmatpush1.msra.mxu0 %v2521
        %3193 = vmatprep.subr.mxu0 %v2524
        %3194 = vmatpush1.msra.mxu0 %v2523
        %3195 = vmatprep.subr.mxu0 %v2526
        %3196 = vmatpush1.msra.mxu0 %v2525
        %3197 = vmatprep.subr.mxu0 %v2528
        %3198 = vmatpush1.msra.mxu0 %v2527
        %3199 = vmatprep.subr.mxu0 %v2530
        %3200 = vmatpush1.msra.mxu0 %v2529
        %3201 = vmatprep.subr.mxu0 %v2532
        %3202 = vmatpush1.msra.mxu0 %v2531
        %3203 = vmatprep.subr.mxu0 %v2534
        %3204 = vmatpush1.msra.mxu0 %v2533
        %3205 = vmatprep.subr.mxu0 %v2536
        %3206 = vmatpush1.msra.mxu0 %v2535
        %3207 = vmatprep.subr.mxu0 %v2538
        %3208 = vmatpush1.msra.mxu0 %v2537
        %3209 = vmatprep.subr.mxu0 %v2540
        %3210 = vmatpush1.msra.mxu0 %v2539
        %3211 = vmatprep.subr.mxu0 %v2542
        %3212 = vmatpush1.msra.mxu0 %v2541
        %3213 = vmatprep.subr.mxu0 %v2544
        %3214 = vmatpush1.msra.mxu0 %v2543
        %3215 = vmatprep.subr.mxu0 %v2546
        %3216 = vmatpush1.msra.mxu0 %v2545
        %3217 = vmatprep.subr.mxu0 %v2548
        %3218 = vmatpush1.msra.mxu0 %v2547
        %3219 = vmatprep.subr.mxu0 %v2550
        %3220 = vmatpush1.msra.mxu0 %v2549
        %3221 = vmatprep.subr.mxu0 %v2552
        %3222 = vmatpush1.msra.mxu0 %v2551
        %3223 = vmatprep.subr.mxu0 %v2554
        %3224 = vmatpush1.msra.mxu0 %v2553
        %3225 = vmatprep.mubr.f32.mxu0 %v2160
        %3226 = vmatmul.mubr.f32.gmra.mrb[0].mxu0 %v2159
        %v3227 = vpop.f32.mrb[0].mxu0
        %v3228 = vadd.f32 %v3085, %v3227
        %v3229 = vpop.f32.mrb[0].mxu0
        %v3230 = vadd.f32 %v3087, %v3229
        %3231 = vmatprep.mubr.f32.mxu0 %v2176
        %3232 = vmatmul.mubr.f32.gmra.mrb[0].mxu0 %v2175
        %v3233 = vpop.f32.mrb[0].mxu0
        %v3234 = vadd.f32 %v3091, %v3233
        %v3235 = vpop.f32.mrb[0].mxu0
        %v3236 = vadd.f32 %v3093, %v3235
        %3237 = vmatprep.mubr.f32.mxu0 %v2192
        %3238 = vmatmul.mubr.f32.gmra.mrb[0].mxu0 %v2191
        %v3239 = vpop.f32.mrb[0].mxu0
        %v3240 = vadd.f32 %v3097, %v3239
        %v3241 = vpop.f32.mrb[0].mxu0
        %v3242 = vadd.f32 %v3099, %v3241
        %3243 = vmatprep.mubr.f32.mxu0 %v2208
        %3244 = vmatmul.mubr.f32.gmra.mrb[0].mxu0 %v2207
        %v3245 = vpop.f32.mrb[0].mxu0
        %v3246 = vadd.f32 %v3103, %v3245
        %v3247 = vpop.f32.mrb[0].mxu0
        %v3248 = vadd.f32 %v3105, %v3247
        %3249 = vmatprep.mubr.f32.mxu0 %v2224
        %3250 = vmatmul.mubr.f32.gmra.mrb[0].mxu0 %v2223
        %v3251 = vpop.f32.mrb[0].mxu0
        %v3252 = vadd.f32 %v3109, %v3251
        %v3253 = vpop.f32.mrb[0].mxu0
        %v3254 = vadd.f32 %v3111, %v3253
        %3255 = vmatprep.mubr.f32.mxu0 %v2240
        %3256 = vmatmul.mubr.f32.gmra.mrb[0].mxu0 %v2239
        %v3257 = vpop.f32.mrb[0].mxu0
        %v3258 = vadd.f32 %v3115, %v3257
        %v3259 = vpop.f32.mrb[0].mxu0
        %v3260 = vadd.f32 %v3117, %v3259
        %3261 = vmatprep.mubr.f32.mxu0 %v2256
        %3262 = vmatmul.mubr.f32.gmra.mrb[0].mxu0 %v2255
        %v3263 = vpop.f32.mrb[0].mxu0
        %v3264 = vadd.f32 %v3121, %v3263
        %v3265 = vpop.f32.mrb[0].mxu0
        %v3266 = vadd.f32 %v3123, %v3265
        %3267 = vmatprep.mubr.f32.mxu0 %v2272
        %3268 = vmatmul.mubr.f32.gmra.mrb[0].mxu0 %v2271
        %v3269 = vpop.f32.mrb[0].mxu0
        %v3270 = vadd.f32 %v3127, %v3269
        %v3271 = vpop.f32.mrb[0].mxu0
        %v3272 = vadd.f32 %v3129, %v3271
        %3273 = vmatprep.mubr.f32.mxu0 %v2288
        %3274 = vmatmul.mubr.f32.gmra.mrb[0].mxu0 %v2287
        %v3275 = vpop.f32.mrb[0].mxu0
        %v3276 = vadd.f32 %v3133, %v3275
        %v3277 = vpop.f32.mrb[0].mxu0
        %v3278 = vadd.f32 %v3135, %v3277
        %3279 = vmatprep.mubr.f32.mxu0 %v2304
        %3280 = vmatmul.mubr.f32.gmra.mrb[0].mxu0 %v2303
        %v3281 = vpop.f32.mrb[0].mxu0
        %v3282 = vadd.f32 %v3139, %v3281
        %v3283 = vpop.f32.mrb[0].mxu0
        %v3284 = vadd.f32 %v3141, %v3283
        %3285 = vmatprep.mubr.f32.mxu0 %v2320
        %3286 = vmatmul.mubr.f32.gmra.mrb[0].mxu0 %v2319
        %v3287 = vpop.f32.mrb[0].mxu0
        %v3288 = vadd.f32 %v3145, %v3287
        %v3289 = vpop.f32.mrb[0].mxu0
        %v3290 = vadd.f32 %v3147, %v3289
        %3291 = vmatprep.mubr.f32.mxu0 %v2336
        %3292 = vmatmul.mubr.f32.gmra.mrb[0].mxu0 %v2335
        %v3293 = vpop.f32.mrb[0].mxu0
        %v3294 = vadd.f32 %v3151, %v3293
        %v3295 = vpop.f32.mrb[0].mxu0
        %v3296 = vadd.f32 %v3153, %v3295
        %3297 = vmatprep.mubr.f32.mxu0 %v2352
        %3298 = vmatmul.mubr.f32.gmra.mrb[0].mxu0 %v2351
        %v3299 = vpop.f32.mrb[0].mxu0
        %v3300 = vadd.f32 %v3157, %v3299
        %v3301 = vpop.f32.mrb[0].mxu0
        %v3302 = vadd.f32 %v3159, %v3301
        %3303 = vdwg.mxu0
        %3304 = vmatprep.subr.mxu0 %v2556
        %3305 = vmatpush1.msra.mxu0 %v2555
        %3306 = vmatprep.subr.mxu0 %v2558
        %3307 = vmatpush1.msra.mxu0 %v2557
        %3308 = vmatprep.subr.mxu0 %v2560
        %3309 = vmatpush1.msra.mxu0 %v2559
        %3310 = vmatprep.subr.mxu0 %v2562
        %3311 = vmatpush1.msra.mxu0 %v2561
        %3312 = vmatprep.subr.mxu0 %v2564
        %3313 = vmatpush1.msra.mxu0 %v2563
        %3314 = vmatprep.subr.mxu0 %v2566
        %3315 = vmatpush1.msra.mxu0 %v2565
        %3316 = vmatprep.subr.mxu0 %v2568
        %3317 = vmatpush1.msra.mxu0 %v2567
        %3318 = vmatprep.subr.mxu0 %v2570
        %3319 = vmatpush1.msra.mxu0 %v2569
        %3320 = vmatprep.subr.mxu0 %v2572
        %3321 = vmatpush1.msra.mxu0 %v2571
        %3322 = vmatprep.subr.mxu0 %v2574
        %3323 = vmatpush1.msra.mxu0 %v2573
        %3324 = vmatprep.subr.mxu0 %v2576
        %3325 = vmatpush1.msra.mxu0 %v2575
        %3326 = vmatprep.subr.mxu0 %v2578
        %3327 = vmatpush1.msra.mxu0 %v2577
        %3328 = vmatprep.subr.mxu0 %v2580
        %3329 = vmatpush1.msra.mxu0 %v2579
        %3330 = vmatprep.subr.mxu0 %v2582
        %3331 = vmatpush1.msra.mxu0 %v2581
        %3332 = vmatprep.subr.mxu0 %v2584
        %3333 = vmatpush1.msra.mxu0 %v2583
        %3334 = vmatprep.subr.mxu0 %v2586
        %3335 = vmatpush1.msra.mxu0 %v2585
        %3336 = vmatprep.subr.mxu0 %v2588
        %3337 = vmatpush1.msra.mxu0 %v2587
        %3338 = vmatprep.subr.mxu0 %v2590
        %3339 = vmatpush1.msra.mxu0 %v2589
        %3340 = vmatprep.subr.mxu0 %v2592
        %3341 = vmatpush1.msra.mxu0 %v2591
        %3342 = vmatprep.subr.mxu0 %v2594
        %3343 = vmatpush1.msra.mxu0 %v2593
        %3344 = vmatprep.subr.mxu0 %v2596
        %3345 = vmatpush1.msra.mxu0 %v2595
        %3346 = vmatprep.subr.mxu0 %v2598
        %3347 = vmatpush1.msra.mxu0 %v2597
        %3348 = vmatprep.subr.mxu0 %v2600
        %3349 = vmatpush1.msra.mxu0 %v2599
        %3350 = vmatprep.subr.mxu0 %v2602
        %3351 = vmatpush1.msra.mxu0 %v2601
        %3352 = vmatprep.subr.mxu0 %v2604
        %3353 = vmatpush1.msra.mxu0 %v2603
        %3354 = vmatprep.subr.mxu0 %v2606
        %3355 = vmatpush1.msra.mxu0 %v2605
        %3356 = vmatprep.subr.mxu0 %v2608
        %3357 = vmatpush1.msra.mxu0 %v2607
        %3358 = vmatprep.subr.mxu0 %v2610
        %3359 = vmatpush1.msra.mxu0 %v2609
        %3360 = vmatprep.subr.mxu0 %v2612
        %3361 = vmatpush1.msra.mxu0 %v2611
        %3362 = vmatprep.subr.mxu0 %v2614
        %3363 = vmatpush1.msra.mxu0 %v2613
        %3364 = vmatprep.subr.mxu0 %v2616
        %3365 = vmatpush1.msra.mxu0 %v2615
        %3366 = vmatprep.subr.mxu0 %v2618
        %3367 = vmatpush1.msra.mxu0 %v2617
        %3368 = vmatprep.mubr.f32.mxu0 %v2162
        %3369 = vmatmul.mubr.f32.gmra.mrb[0].mxu0 %v2161
        %v3370 = vpop.f32.mrb[0].mxu0
        %v3371 = vadd.f32 %v3228, %v3370
        %v3372 = vpop.f32.mrb[0].mxu0
        %v3373 = vadd.f32 %v3230, %v3372
        %3374 = vmatprep.mubr.f32.mxu0 %v2178
        %3375 = vmatmul.mubr.f32.gmra.mrb[0].mxu0 %v2177
        %v3376 = vpop.f32.mrb[0].mxu0
        %v3377 = vadd.f32 %v3234, %v3376
        %v3378 = vpop.f32.mrb[0].mxu0
        %v3379 = vadd.f32 %v3236, %v3378
        %3380 = vmatprep.mubr.f32.mxu0 %v2194
        %3381 = vmatmul.mubr.f32.gmra.mrb[0].mxu0 %v2193
        %v3382 = vpop.f32.mrb[0].mxu0
        %v3383 = vadd.f32 %v3240, %v3382
        %v3384 = vpop.f32.mrb[0].mxu0
        %v3385 = vadd.f32 %v3242, %v3384
        %3386 = vmatprep.mubr.f32.mxu0 %v2210
        %3387 = vmatmul.mubr.f32.gmra.mrb[0].mxu0 %v2209
        %v3388 = vpop.f32.mrb[0].mxu0
        %v3389 = vadd.f32 %v3246, %v3388
        %v3390 = vpop.f32.mrb[0].mxu0
        %v3391 = vadd.f32 %v3248, %v3390
        %3392 = vmatprep.mubr.f32.mxu0 %v2226
        %3393 = vmatmul.mubr.f32.gmra.mrb[0].mxu0 %v2225
        %v3394 = vpop.f32.mrb[0].mxu0
        %v3395 = vadd.f32 %v3252, %v3394
        %v3396 = vpop.f32.mrb[0].mxu0
        %v3397 = vadd.f32 %v3254, %v3396
        %3398 = vmatprep.mubr.f32.mxu0 %v2242
        %3399 = vmatmul.mubr.f32.gmra.mrb[0].mxu0 %v2241
        %v3400 = vpop.f32.mrb[0].mxu0
        %v3401 = vadd.f32 %v3258, %v3400
        %v3402 = vpop.f32.mrb[0].mxu0
        %v3403 = vadd.f32 %v3260, %v3402
        %3404 = vmatprep.mubr.f32.mxu0 %v2258
        %3405 = vmatmul.mubr.f32.gmra.mrb[0].mxu0 %v2257
        %v3406 = vpop.f32.mrb[0].mxu0
        %v3407 = vadd.f32 %v3264, %v3406
        %v3408 = vpop.f32.mrb[0].mxu0
        %v3409 = vadd.f32 %v3266, %v3408
        %3410 = vmatprep.mubr.f32.mxu0 %v2274
        %3411 = vmatmul.mubr.f32.gmra.mrb[0].mxu0 %v2273
        %v3412 = vpop.f32.mrb[0].mxu0
        %v3413 = vadd.f32 %v3270, %v3412
        %v3414 = vpop.f32.mrb[0].mxu0
        %v3415 = vadd.f32 %v3272, %v3414
        %3416 = vmatprep.mubr.f32.mxu0 %v2290
        %3417 = vmatmul.mubr.f32.gmra.mrb[0].mxu0 %v2289
        %v3418 = vpop.f32.mrb[0].mxu0
        %v3419 = vadd.f32 %v3276, %v3418
        %v3420 = vpop.f32.mrb[0].mxu0
        %v3421 = vadd.f32 %v3278, %v3420
        %3422 = vmatprep.mubr.f32.mxu0 %v2306
        %3423 = vmatmul.mubr.f32.gmra.mrb[0].mxu0 %v2305
        %v3424 = vpop.f32.mrb[0].mxu0
        %v3425 = vadd.f32 %v3282, %v3424
        %v3426 = vpop.f32.mrb[0].mxu0
        %v3427 = vadd.f32 %v3284, %v3426
        %3428 = vmatprep.mubr.f32.mxu0 %v2322
        %3429 = vmatmul.mubr.f32.gmra.mrb[0].mxu0 %v2321
        %v3430 = vpop.f32.mrb[0].mxu0
        %v3431 = vadd.f32 %v3288, %v3430
        %v3432 = vpop.f32.mrb[0].mxu0
        %v3433 = vadd.f32 %v3290, %v3432
        %3434 = vmatprep.mubr.f32.mxu0 %v2338
        %3435 = vmatmul.mubr.f32.gmra.mrb[0].mxu0 %v2337
        %v3436 = vpop.f32.mrb[0].mxu0
        %v3437 = vadd.f32 %v3294, %v3436
        %v3438 = vpop.f32.mrb[0].mxu0
        %v3439 = vadd.f32 %v3296, %v3438
        %3440 = vmatprep.mubr.f32.mxu0 %v2354
        %3441 = vmatmul.mubr.f32.gmra.mrb[0].mxu0 %v2353
        %v3442 = vpop.f32.mrb[0].mxu0
        %v3443 = vadd.f32 %v3300, %v3442
        %v3444 = vpop.f32.mrb[0].mxu0
        %v3445 = vadd.f32 %v3302, %v3444
        %3446 = vdwg.mxu0
        %3447 = vmatprep.subr.mxu0 %v2620
        %3448 = vmatpush1.msra.mxu0 %v2619
        %3449 = vmatprep.subr.mxu0 %v2622
        %3450 = vmatpush1.msra.mxu0 %v2621
        %3451 = vmatprep.subr.mxu0 %v2624
        %3452 = vmatpush1.msra.mxu0 %v2623
        %3453 = vmatprep.subr.mxu0 %v2626
        %3454 = vmatpush1.msra.mxu0 %v2625
        %3455 = vmatprep.subr.mxu0 %v2628
        %3456 = vmatpush1.msra.mxu0 %v2627
        %3457 = vmatprep.subr.mxu0 %v2630
        %3458 = vmatpush1.msra.mxu0 %v2629
        %3459 = vmatprep.subr.mxu0 %v2632
        %3460 = vmatpush1.msra.mxu0 %v2631
        %3461 = vmatprep.subr.mxu0 %v2634
        %3462 = vmatpush1.msra.mxu0 %v2633
        %3463 = vmatprep.subr.mxu0 %v2636
        %3464 = vmatpush1.msra.mxu0 %v2635
        %3465 = vmatprep.subr.mxu0 %v2638
        %3466 = vmatpush1.msra.mxu0 %v2637
        %3467 = vmatprep.subr.mxu0 %v2640
        %3468 = vmatpush1.msra.mxu0 %v2639
        %3469 = vmatprep.subr.mxu0 %v2642
        %3470 = vmatpush1.msra.mxu0 %v2641
        %3471 = vmatprep.subr.mxu0 %v2644
        %3472 = vmatpush1.msra.mxu0 %v2643
        %3473 = vmatprep.subr.mxu0 %v2646
        %3474 = vmatpush1.msra.mxu0 %v2645
        %3475 = vmatprep.subr.mxu0 %v2648
        %3476 = vmatpush1.msra.mxu0 %v2647
        %3477 = vmatprep.subr.mxu0 %v2650
        %3478 = vmatpush1.msra.mxu0 %v2649
        %3479 = vmatprep.subr.mxu0 %v2652
        %3480 = vmatpush1.msra.mxu0 %v2651
        %3481 = vmatprep.subr.mxu0 %v2654
        %3482 = vmatpush1.msra.mxu0 %v2653
        %3483 = vmatprep.subr.mxu0 %v2656
        %3484 = vmatpush1.msra.mxu0 %v2655
        %3485 = vmatprep.subr.mxu0 %v2658
        %3486 = vmatpush1.msra.mxu0 %v2657
        %3487 = vmatprep.subr.mxu0 %v2660
        %3488 = vmatpush1.msra.mxu0 %v2659
        %3489 = vmatprep.subr.mxu0 %v2662
        %3490 = vmatpush1.msra.mxu0 %v2661
        %3491 = vmatprep.subr.mxu0 %v2664
        %3492 = vmatpush1.msra.mxu0 %v2663
        %3493 = vmatprep.subr.mxu0 %v2666
        %3494 = vmatpush1.msra.mxu0 %v2665
        %3495 = vmatprep.subr.mxu0 %v2668
        %3496 = vmatpush1.msra.mxu0 %v2667
        %3497 = vmatprep.subr.mxu0 %v2670
        %3498 = vmatpush1.msra.mxu0 %v2669
        %3499 = vmatprep.subr.mxu0 %v2672
        %3500 = vmatpush1.msra.mxu0 %v2671
        %3501 = vmatprep.subr.mxu0 %v2674
        %3502 = vmatpush1.msra.mxu0 %v2673
        %3503 = vmatprep.subr.mxu0 %v2676
        %3504 = vmatpush1.msra.mxu0 %v2675
        %3505 = vmatprep.subr.mxu0 %v2678
        %3506 = vmatpush1.msra.mxu0 %v2677
        %3507 = vmatprep.subr.mxu0 %v2680
        %3508 = vmatpush1.msra.mxu0 %v2679
        %3509 = vmatprep.subr.mxu0 %v2682
        %3510 = vmatpush1.msra.mxu0 %v2681
        %3511 = vmatprep.mubr.f32.mxu0 %v2164
        %3512 = vmatmul.mubr.f32.gmra.mrb[0].mxu0 %v2163
        %v3513 = vpop.f32.mrb[0].mxu0
        %v3514 = vadd.f32 %v3371, %v3513
        %v3515 = vpop.f32.mrb[0].mxu0
        %v3516 = vadd.f32 %v3373, %v3515
        %3517 = vmatprep.mubr.f32.mxu0 %v2180
        %3518 = vmatmul.mubr.f32.gmra.mrb[0].mxu0 %v2179
        %v3519 = vpop.f32.mrb[0].mxu0
        %v3520 = vadd.f32 %v3377, %v3519
        %v3521 = vpop.f32.mrb[0].mxu0
        %v3522 = vadd.f32 %v3379, %v3521
        %3523 = vmatprep.mubr.f32.mxu0 %v2196
        %3524 = vmatmul.mubr.f32.gmra.mrb[0].mxu0 %v2195
        %v3525 = vpop.f32.mrb[0].mxu0
        %v3526 = vadd.f32 %v3383, %v3525
        %v3527 = vpop.f32.mrb[0].mxu0
        %v3528 = vadd.f32 %v3385, %v3527
        %3529 = vmatprep.mubr.f32.mxu0 %v2212
        %3530 = vmatmul.mubr.f32.gmra.mrb[0].mxu0 %v2211
        %v3531 = vpop.f32.mrb[0].mxu0
        %v3532 = vadd.f32 %v3389, %v3531
        %v3533 = vpop.f32.mrb[0].mxu0
        %v3534 = vadd.f32 %v3391, %v3533
        %3535 = vmatprep.mubr.f32.mxu0 %v2228
        %3536 = vmatmul.mubr.f32.gmra.mrb[0].mxu0 %v2227
        %v3537 = vpop.f32.mrb[0].mxu0
        %v3538 = vadd.f32 %v3395, %v3537
        %v3539 = vpop.f32.mrb[0].mxu0
        %v3540 = vadd.f32 %v3397, %v3539
        %3541 = vmatprep.mubr.f32.mxu0 %v2244
        %3542 = vmatmul.mubr.f32.gmra.mrb[0].mxu0 %v2243
        %v3543 = vpop.f32.mrb[0].mxu0
        %v3544 = vadd.f32 %v3401, %v3543
        %v3545 = vpop.f32.mrb[0].mxu0
        %v3546 = vadd.f32 %v3403, %v3545
        %3547 = vmatprep.mubr.f32.mxu0 %v2260
        %3548 = vmatmul.mubr.f32.gmra.mrb[0].mxu0 %v2259
        %v3549 = vpop.f32.mrb[0].mxu0
        %v3550 = vadd.f32 %v3407, %v3549
        %v3551 = vpop.f32.mrb[0].mxu0
        %v3552 = vadd.f32 %v3409, %v3551
        %3553 = vmatprep.mubr.f32.mxu0 %v2276
        %3554 = vmatmul.mubr.f32.gmra.mrb[0].mxu0 %v2275
        %v3555 = vpop.f32.mrb[0].mxu0
        %v3556 = vadd.f32 %v3413, %v3555
        %v3557 = vpop.f32.mrb[0].mxu0
        %v3558 = vadd.f32 %v3415, %v3557
        %3559 = vmatprep.mubr.f32.mxu0 %v2292
        %3560 = vmatmul.mubr.f32.gmra.mrb[0].mxu0 %v2291
        %v3561 = vpop.f32.mrb[0].mxu0
        %v3562 = vadd.f32 %v3419, %v3561
        %v3563 = vpop.f32.mrb[0].mxu0
        %v3564 = vadd.f32 %v3421, %v3563
        %3565 = vmatprep.mubr.f32.mxu0 %v2308
        %3566 = vmatmul.mubr.f32.gmra.mrb[0].mxu0 %v2307
        %v3567 = vpop.f32.mrb[0].mxu0
        %v3568 = vadd.f32 %v3425, %v3567
        %v3569 = vpop.f32.mrb[0].mxu0
        %v3570 = vadd.f32 %v3427, %v3569
        %3571 = vmatprep.mubr.f32.mxu0 %v2324
        %3572 = vmatmul.mubr.f32.gmra.mrb[0].mxu0 %v2323
        %v3573 = vpop.f32.mrb[0].mxu0
        %v3574 = vadd.f32 %v3431, %v3573
        %v3575 = vpop.f32.mrb[0].mxu0
        %v3576 = vadd.f32 %v3433, %v3575
        %3577 = vmatprep.mubr.f32.mxu0 %v2340
        %3578 = vmatmul.mubr.f32.gmra.mrb[0].mxu0 %v2339
        %v3579 = vpop.f32.mrb[0].mxu0
        %v3580 = vadd.f32 %v3437, %v3579
        %v3581 = vpop.f32.mrb[0].mxu0
        %v3582 = vadd.f32 %v3439, %v3581
        %3583 = vmatprep.mubr.f32.mxu0 %v2356
        %3584 = vmatmul.mubr.f32.gmra.mrb[0].mxu0 %v2355
        %v3585 = vpop.f32.mrb[0].mxu0
        %v3586 = vadd.f32 %v3443, %v3585
        %v3587 = vpop.f32.mrb[0].mxu0
        %v3588 = vadd.f32 %v3445, %v3587
        %3589 = vdwg.mxu0
        %3590 = vmatprep.subr.mxu0 %v2684
        %3591 = vmatpush1.msra.mxu0 %v2683
        %3592 = vmatprep.subr.mxu0 %v2686
        %3593 = vmatpush1.msra.mxu0 %v2685
        %3594 = vmatprep.subr.mxu0 %v2688
        %3595 = vmatpush1.msra.mxu0 %v2687
        %3596 = vmatprep.subr.mxu0 %v2690
        %3597 = vmatpush1.msra.mxu0 %v2689
        %3598 = vmatprep.subr.mxu0 %v2692
        %3599 = vmatpush1.msra.mxu0 %v2691
        %3600 = vmatprep.subr.mxu0 %v2694
        %3601 = vmatpush1.msra.mxu0 %v2693
        %3602 = vmatprep.subr.mxu0 %v2696
        %3603 = vmatpush1.msra.mxu0 %v2695
        %3604 = vmatprep.subr.mxu0 %v2698
        %3605 = vmatpush1.msra.mxu0 %v2697
        %3606 = vmatprep.subr.mxu0 %v2700
        %3607 = vmatpush1.msra.mxu0 %v2699
        %3608 = vmatprep.subr.mxu0 %v2702
        %3609 = vmatpush1.msra.mxu0 %v2701
        %3610 = vmatprep.subr.mxu0 %v2704
        %3611 = vmatpush1.msra.mxu0 %v2703
        %3612 = vmatprep.subr.mxu0 %v2706
        %3613 = vmatpush1.msra.mxu0 %v2705
        %3614 = vmatprep.subr.mxu0 %v2708
        %3615 = vmatpush1.msra.mxu0 %v2707
        %3616 = vmatprep.subr.mxu0 %v2710
        %3617 = vmatpush1.msra.mxu0 %v2709
        %3618 = vmatprep.subr.mxu0 %v2712
        %3619 = vmatpush1.msra.mxu0 %v2711
        %3620 = vmatprep.subr.mxu0 %v2714
        %3621 = vmatpush1.msra.mxu0 %v2713
        %3622 = vmatprep.subr.mxu0 %v2716
        %3623 = vmatpush1.msra.mxu0 %v2715
        %3624 = vmatprep.subr.mxu0 %v2718
        %3625 = vmatpush1.msra.mxu0 %v2717
        %3626 = vmatprep.subr.mxu0 %v2720
        %3627 = vmatpush1.msra.mxu0 %v2719
        %3628 = vmatprep.subr.mxu0 %v2722
        %3629 = vmatpush1.msra.mxu0 %v2721
        %3630 = vmatprep.subr.mxu0 %v2724
        %3631 = vmatpush1.msra.mxu0 %v2723
        %3632 = vmatprep.subr.mxu0 %v2726
        %3633 = vmatpush1.msra.mxu0 %v2725
        %3634 = vmatprep.subr.mxu0 %v2728
        %3635 = vmatpush1.msra.mxu0 %v2727
        %3636 = vmatprep.subr.mxu0 %v2730
        %3637 = vmatpush1.msra.mxu0 %v2729
        %3638 = vmatprep.subr.mxu0 %v2732
        %3639 = vmatpush1.msra.mxu0 %v2731
        %3640 = vmatprep.subr.mxu0 %v2734
        %3641 = vmatpush1.msra.mxu0 %v2733
        %3642 = vmatprep.subr.mxu0 %v2736
        %3643 = vmatpush1.msra.mxu0 %v2735
        %3644 = vmatprep.subr.mxu0 %v2738
        %3645 = vmatpush1.msra.mxu0 %v2737
        %3646 = vmatprep.subr.mxu0 %v2740
        %3647 = vmatpush1.msra.mxu0 %v2739
        %3648 = vmatprep.subr.mxu0 %v2742
        %3649 = vmatpush1.msra.mxu0 %v2741
        %3650 = vmatprep.subr.mxu0 %v2744
        %3651 = vmatpush1.msra.mxu0 %v2743
        %3652 = vmatprep.subr.mxu0 %v2746
        %3653 = vmatpush1.msra.mxu0 %v2745
        %3654 = vmatprep.mubr.f32.mxu0 %v2166
        %3655 = vmatmul.mubr.f32.gmra.mrb[0].mxu0 %v2165
        %v3656 = vpop.f32.mrb[0].mxu0
        %v3657 = vadd.f32 %v3514, %v3656
        %v3658 = vpop.f32.mrb[0].mxu0
        %v3659 = vadd.f32 %v3516, %v3658
        %3660 = vmatprep.mubr.f32.mxu0 %v2182
        %3661 = vmatmul.mubr.f32.gmra.mrb[0].mxu0 %v2181
        %v3662 = vpop.f32.mrb[0].mxu0
        %v3663 = vadd.f32 %v3520, %v3662
        %v3664 = vpop.f32.mrb[0].mxu0
        %v3665 = vadd.f32 %v3522, %v3664
        %3666 = vmatprep.mubr.f32.mxu0 %v2198
        %3667 = vmatmul.mubr.f32.gmra.mrb[0].mxu0 %v2197
        %v3668 = vpop.f32.mrb[0].mxu0
        %v3669 = vadd.f32 %v3526, %v3668
        %v3670 = vpop.f32.mrb[0].mxu0
        %v3671 = vadd.f32 %v3528, %v3670
        %3672 = vmatprep.mubr.f32.mxu0 %v2214
        %3673 = vmatmul.mubr.f32.gmra.mrb[0].mxu0 %v2213
        %v3674 = vpop.f32.mrb[0].mxu0
        %v3675 = vadd.f32 %v3532, %v3674
        %v3676 = vpop.f32.mrb[0].mxu0
        %v3677 = vadd.f32 %v3534, %v3676
        %3678 = vmatprep.mubr.f32.mxu0 %v2230
        %3679 = vmatmul.mubr.f32.gmra.mrb[0].mxu0 %v2229
        %v3680 = vpop.f32.mrb[0].mxu0
        %v3681 = vadd.f32 %v3538, %v3680
        %v3682 = vpop.f32.mrb[0].mxu0
        %v3683 = vadd.f32 %v3540, %v3682
        %3684 = vmatprep.mubr.f32.mxu0 %v2246
        %3685 = vmatmul.mubr.f32.gmra.mrb[0].mxu0 %v2245
        %v3686 = vpop.f32.mrb[0].mxu0
        %v3687 = vadd.f32 %v3544, %v3686
        %v3688 = vpop.f32.mrb[0].mxu0
        %v3689 = vadd.f32 %v3546, %v3688
        %3690 = vmatprep.mubr.f32.mxu0 %v2262
        %3691 = vmatmul.mubr.f32.gmra.mrb[0].mxu0 %v2261
        %v3692 = vpop.f32.mrb[0].mxu0
        %v3693 = vadd.f32 %v3550, %v3692
        %v3694 = vpop.f32.mrb[0].mxu0
        %v3695 = vadd.f32 %v3552, %v3694
        %3696 = vmatprep.mubr.f32.mxu0 %v2278
        %3697 = vmatmul.mubr.f32.gmra.mrb[0].mxu0 %v2277
        %v3698 = vpop.f32.mrb[0].mxu0
        %v3699 = vadd.f32 %v3556, %v3698
        %v3700 = vpop.f32.mrb[0].mxu0
        %v3701 = vadd.f32 %v3558, %v3700
        %3702 = vmatprep.mubr.f32.mxu0 %v2294
        %3703 = vmatmul.mubr.f32.gmra.mrb[0].mxu0 %v2293
        %v3704 = vpop.f32.mrb[0].mxu0
        %v3705 = vadd.f32 %v3562, %v3704
        %v3706 = vpop.f32.mrb[0].mxu0
        %v3707 = vadd.f32 %v3564, %v3706
        %3708 = vmatprep.mubr.f32.mxu0 %v2310
        %3709 = vmatmul.mubr.f32.gmra.mrb[0].mxu0 %v2309
        %v3710 = vpop.f32.mrb[0].mxu0
        %v3711 = vadd.f32 %v3568, %v3710
        %v3712 = vpop.f32.mrb[0].mxu0
        %v3713 = vadd.f32 %v3570, %v3712
        %3714 = vmatprep.mubr.f32.mxu0 %v2326
        %3715 = vmatmul.mubr.f32.gmra.mrb[0].mxu0 %v2325
        %v3716 = vpop.f32.mrb[0].mxu0
        %v3717 = vadd.f32 %v3574, %v3716
        %v3718 = vpop.f32.mrb[0].mxu0
        %v3719 = vadd.f32 %v3576, %v3718
        %3720 = vmatprep.mubr.f32.mxu0 %v2342
        %3721 = vmatmul.mubr.f32.gmra.mrb[0].mxu0 %v2341
        %v3722 = vpop.f32.mrb[0].mxu0
        %v3723 = vadd.f32 %v3580, %v3722
        %v3724 = vpop.f32.mrb[0].mxu0
        %v3725 = vadd.f32 %v3582, %v3724
        %3726 = vmatprep.mubr.f32.mxu0 %v2358
        %3727 = vmatmul.mubr.f32.gmra.mrb[0].mxu0 %v2357
        %v3728 = vpop.f32.mrb[0].mxu0
        %v3729 = vadd.f32 %v3586, %v3728
        %v3730 = vpop.f32.mrb[0].mxu0
        %v3731 = vadd.f32 %v3588, %v3730
        %3732 = vdwg.mxu0
        %3733 = vmatprep.subr.mxu0 %v2748
        %3734 = vmatpush1.msra.mxu0 %v2747
        %3735 = vmatprep.subr.mxu0 %v2750
        %3736 = vmatpush1.msra.mxu0 %v2749
        %3737 = vmatprep.subr.mxu0 %v2752
        %3738 = vmatpush1.msra.mxu0 %v2751
        %3739 = vmatprep.subr.mxu0 %v2754
        %3740 = vmatpush1.msra.mxu0 %v2753
        %3741 = vmatprep.subr.mxu0 %v2756
        %3742 = vmatpush1.msra.mxu0 %v2755
        %3743 = vmatprep.subr.mxu0 %v2758
        %3744 = vmatpush1.msra.mxu0 %v2757
        %3745 = vmatprep.subr.mxu0 %v2760
        %3746 = vmatpush1.msra.mxu0 %v2759
        %3747 = vmatprep.subr.mxu0 %v2762
        %3748 = vmatpush1.msra.mxu0 %v2761
        %3749 = vmatprep.subr.mxu0 %v2764
        %3750 = vmatpush1.msra.mxu0 %v2763
        %3751 = vmatprep.subr.mxu0 %v2766
        %3752 = vmatpush1.msra.mxu0 %v2765
        %3753 = vmatprep.subr.mxu0 %v2768
        %3754 = vmatpush1.msra.mxu0 %v2767
        %3755 = vmatprep.subr.mxu0 %v2770
        %3756 = vmatpush1.msra.mxu0 %v2769
        %3757 = vmatprep.subr.mxu0 %v2772
        %3758 = vmatpush1.msra.mxu0 %v2771
        %3759 = vmatprep.subr.mxu0 %v2774
        %3760 = vmatpush1.msra.mxu0 %v2773
        %3761 = vmatprep.subr.mxu0 %v2776
        %3762 = vmatpush1.msra.mxu0 %v2775
        %3763 = vmatprep.subr.mxu0 %v2778
        %3764 = vmatpush1.msra.mxu0 %v2777
        %3765 = vmatprep.subr.mxu0 %v2780
        %3766 = vmatpush1.msra.mxu0 %v2779
        %3767 = vmatprep.subr.mxu0 %v2782
        %3768 = vmatpush1.msra.mxu0 %v2781
        %3769 = vmatprep.subr.mxu0 %v2784
        %3770 = vmatpush1.msra.mxu0 %v2783
        %3771 = vmatprep.subr.mxu0 %v2786
        %3772 = vmatpush1.msra.mxu0 %v2785
        %3773 = vmatprep.subr.mxu0 %v2788
        %3774 = vmatpush1.msra.mxu0 %v2787
        %3775 = vmatprep.subr.mxu0 %v2790
        %3776 = vmatpush1.msra.mxu0 %v2789
        %3777 = vmatprep.subr.mxu0 %v2792
        %3778 = vmatpush1.msra.mxu0 %v2791
        %3779 = vmatprep.subr.mxu0 %v2794
        %3780 = vmatpush1.msra.mxu0 %v2793
        %3781 = vmatprep.subr.mxu0 %v2796
        %3782 = vmatpush1.msra.mxu0 %v2795
        %3783 = vmatprep.subr.mxu0 %v2798
        %3784 = vmatpush1.msra.mxu0 %v2797
        %3785 = vmatprep.subr.mxu0 %v2800
        %3786 = vmatpush1.msra.mxu0 %v2799
        %3787 = vmatprep.subr.mxu0 %v2802
        %3788 = vmatpush1.msra.mxu0 %v2801
        %3789 = vmatprep.subr.mxu0 %v2804
        %3790 = vmatpush1.msra.mxu0 %v2803
        %3791 = vmatprep.subr.mxu0 %v2806
        %3792 = vmatpush1.msra.mxu0 %v2805
        %3793 = vmatprep.subr.mxu0 %v2808
        %3794 = vmatpush1.msra.mxu0 %v2807
        %3795 = vmatprep.subr.mxu0 %v2810
        %3796 = vmatpush1.msra.mxu0 %v2809
        %3797 = vmatprep.mubr.f32.mxu0 %v2168
        %3798 = vmatmul.mubr.f32.gmra.mrb[0].mxu0 %v2167
        %v3799 = vpop.f32.mrb[0].mxu0
        %v3800 = vadd.f32 %v3657, %v3799
        %v3801 = vpop.f32.mrb[0].mxu0
        %v3802 = vadd.f32 %v3659, %v3801
        %3803 = vmatprep.mubr.f32.mxu0 %v2184
        %3804 = vmatmul.mubr.f32.gmra.mrb[0].mxu0 %v2183
        %v3805 = vpop.f32.mrb[0].mxu0
        %v3806 = vadd.f32 %v3663, %v3805
        %v3807 = vpop.f32.mrb[0].mxu0
        %v3808 = vadd.f32 %v3665, %v3807
        %3809 = vmatprep.mubr.f32.mxu0 %v2200
        %3810 = vmatmul.mubr.f32.gmra.mrb[0].mxu0 %v2199
        %v3811 = vpop.f32.mrb[0].mxu0
        %v3812 = vadd.f32 %v3669, %v3811
        %v3813 = vpop.f32.mrb[0].mxu0
        %v3814 = vadd.f32 %v3671, %v3813
        %3815 = vmatprep.mubr.f32.mxu0 %v2216
        %3816 = vmatmul.mubr.f32.gmra.mrb[0].mxu0 %v2215
        %v3817 = vpop.f32.mrb[0].mxu0
        %v3818 = vadd.f32 %v3675, %v3817
        %v3819 = vpop.f32.mrb[0].mxu0
        %v3820 = vadd.f32 %v3677, %v3819
        %3821 = vmatprep.mubr.f32.mxu0 %v2232
        %3822 = vmatmul.mubr.f32.gmra.mrb[0].mxu0 %v2231
        %v3823 = vpop.f32.mrb[0].mxu0
        %v3824 = vadd.f32 %v3681, %v3823
        %v3825 = vpop.f32.mrb[0].mxu0
        %v3826 = vadd.f32 %v3683, %v3825
        %3827 = vmatprep.mubr.f32.mxu0 %v2248
        %3828 = vmatmul.mubr.f32.gmra.mrb[0].mxu0 %v2247
        %v3829 = vpop.f32.mrb[0].mxu0
        %v3830 = vadd.f32 %v3687, %v3829
        %v3831 = vpop.f32.mrb[0].mxu0
        %v3832 = vadd.f32 %v3689, %v3831
        %3833 = vmatprep.mubr.f32.mxu0 %v2264
        %3834 = vmatmul.mubr.f32.gmra.mrb[0].mxu0 %v2263
        %v3835 = vpop.f32.mrb[0].mxu0
        %v3836 = vadd.f32 %v3693, %v3835
        %v3837 = vpop.f32.mrb[0].mxu0
        %v3838 = vadd.f32 %v3695, %v3837
        %3839 = vmatprep.mubr.f32.mxu0 %v2280
        %3840 = vmatmul.mubr.f32.gmra.mrb[0].mxu0 %v2279
        %v3841 = vpop.f32.mrb[0].mxu0
        %v3842 = vadd.f32 %v3699, %v3841
        %v3843 = vpop.f32.mrb[0].mxu0
        %v3844 = vadd.f32 %v3701, %v3843
        %3845 = vmatprep.mubr.f32.mxu0 %v2296
        %3846 = vmatmul.mubr.f32.gmra.mrb[0].mxu0 %v2295
        %v3847 = vpop.f32.mrb[0].mxu0
        %v3848 = vadd.f32 %v3705, %v3847
        %v3849 = vpop.f32.mrb[0].mxu0
        %v3850 = vadd.f32 %v3707, %v3849
        %3851 = vmatprep.mubr.f32.mxu0 %v2312
        %3852 = vmatmul.mubr.f32.gmra.mrb[0].mxu0 %v2311
        %v3853 = vpop.f32.mrb[0].mxu0
        %v3854 = vadd.f32 %v3711, %v3853
        %v3855 = vpop.f32.mrb[0].mxu0
        %v3856 = vadd.f32 %v3713, %v3855
        %3857 = vmatprep.mubr.f32.mxu0 %v2328
        %3858 = vmatmul.mubr.f32.gmra.mrb[0].mxu0 %v2327
        %v3859 = vpop.f32.mrb[0].mxu0
        %v3860 = vadd.f32 %v3717, %v3859
        %v3861 = vpop.f32.mrb[0].mxu0
        %v3862 = vadd.f32 %v3719, %v3861
        %3863 = vmatprep.mubr.f32.mxu0 %v2344
        %3864 = vmatmul.mubr.f32.gmra.mrb[0].mxu0 %v2343
        %v3865 = vpop.f32.mrb[0].mxu0
        %v3866 = vadd.f32 %v3723, %v3865
        %v3867 = vpop.f32.mrb[0].mxu0
        %v3868 = vadd.f32 %v3725, %v3867
        %3869 = vmatprep.mubr.f32.mxu0 %v2360
        %3870 = vmatmul.mubr.f32.gmra.mrb[0].mxu0 %v2359
        %v3871 = vpop.f32.mrb[0].mxu0
        %v3872 = vadd.f32 %v3729, %v3871
        %v3873 = vpop.f32.mrb[0].mxu0
        %v3874 = vadd.f32 %v3731, %v3873
        %3875 = vdwg.mxu0
        %3876 = vmatprep.subr.mxu0 %v2812
        %3877 = vmatpush1.msra.mxu0 %v2811
        %3878 = vmatprep.subr.mxu0 %v2814
        %3879 = vmatpush1.msra.mxu0 %v2813
        %3880 = vmatprep.subr.mxu0 %v2816
        %3881 = vmatpush1.msra.mxu0 %v2815
        %3882 = vmatprep.subr.mxu0 %v2818
        %3883 = vmatpush1.msra.mxu0 %v2817
        %3884 = vmatprep.subr.mxu0 %v2820
        %3885 = vmatpush1.msra.mxu0 %v2819
        %3886 = vmatprep.subr.mxu0 %v2822
        %3887 = vmatpush1.msra.mxu0 %v2821
        %3888 = vmatprep.subr.mxu0 %v2824
        %3889 = vmatpush1.msra.mxu0 %v2823
        %3890 = vmatprep.subr.mxu0 %v2826
        %3891 = vmatpush1.msra.mxu0 %v2825
        %3892 = vmatprep.subr.mxu0 %v2828
        %3893 = vmatpush1.msra.mxu0 %v2827
        %3894 = vmatprep.subr.mxu0 %v2830
        %3895 = vmatpush1.msra.mxu0 %v2829
        %3896 = vmatprep.subr.mxu0 %v2832
        %3897 = vmatpush1.msra.mxu0 %v2831
        %3898 = vmatprep.subr.mxu0 %v2834
        %3899 = vmatpush1.msra.mxu0 %v2833
        %3900 = vmatprep.subr.mxu0 %v2836
        %3901 = vmatpush1.msra.mxu0 %v2835
        %3902 = vmatprep.subr.mxu0 %v2838
        %3903 = vmatpush1.msra.mxu0 %v2837
        %3904 = vmatprep.subr.mxu0 %v2840
        %3905 = vmatpush1.msra.mxu0 %v2839
        %3906 = vmatprep.subr.mxu0 %v2842
        %3907 = vmatpush1.msra.mxu0 %v2841
        %3908 = vmatprep.subr.mxu0 %v2844
        %3909 = vmatpush1.msra.mxu0 %v2843
        %3910 = vmatprep.subr.mxu0 %v2846
        %3911 = vmatpush1.msra.mxu0 %v2845
        %3912 = vmatprep.subr.mxu0 %v2848
        %3913 = vmatpush1.msra.mxu0 %v2847
        %3914 = vmatprep.subr.mxu0 %v2850
        %3915 = vmatpush1.msra.mxu0 %v2849
        %3916 = vmatprep.subr.mxu0 %v2852
        %3917 = vmatpush1.msra.mxu0 %v2851
        %3918 = vmatprep.subr.mxu0 %v2854
        %3919 = vmatpush1.msra.mxu0 %v2853
        %3920 = vmatprep.subr.mxu0 %v2856
        %3921 = vmatpush1.msra.mxu0 %v2855
        %3922 = vmatprep.subr.mxu0 %v2858
        %3923 = vmatpush1.msra.mxu0 %v2857
        %3924 = vmatprep.subr.mxu0 %v2860
        %3925 = vmatpush1.msra.mxu0 %v2859
        %3926 = vmatprep.subr.mxu0 %v2862
        %3927 = vmatpush1.msra.mxu0 %v2861
        %3928 = vmatprep.subr.mxu0 %v2864
        %3929 = vmatpush1.msra.mxu0 %v2863
        %3930 = vmatprep.subr.mxu0 %v2866
        %3931 = vmatpush1.msra.mxu0 %v2865
        %3932 = vmatprep.subr.mxu0 %v2868
        %3933 = vmatpush1.msra.mxu0 %v2867
        %3934 = vmatprep.subr.mxu0 %v2870
        %3935 = vmatpush1.msra.mxu0 %v2869
        %3936 = vmatprep.subr.mxu0 %v2872
        %3937 = vmatpush1.msra.mxu0 %v2871
        %3938 = vmatprep.subr.mxu0 %v2874
        %3939 = vmatpush1.msra.mxu0 %v2873
        %3940 = vmatprep.mubr.f32.mxu0 %v2170
        %3941 = vmatmul.mubr.f32.gmra.mrb[0].mxu0 %v2169
        %v3942 = vpop.f32.mrb[0].mxu0
        %v3943 = vadd.f32 %v3800, %v3942
        %v3944 = vpop.f32.mrb[0].mxu0
        %v3945 = vadd.f32 %v3802, %v3944
        %3946 = vmatprep.mubr.f32.mxu0 %v2186
        %3947 = vmatmul.mubr.f32.gmra.mrb[0].mxu0 %v2185
        %v3948 = vpop.f32.mrb[0].mxu0
        %v3949 = vadd.f32 %v3806, %v3948
        %v3950 = vpop.f32.mrb[0].mxu0
        %v3951 = vadd.f32 %v3808, %v3950
        %3952 = vmatprep.mubr.f32.mxu0 %v2202
        %3953 = vmatmul.mubr.f32.gmra.mrb[0].mxu0 %v2201
        %v3954 = vpop.f32.mrb[0].mxu0
        %v3955 = vadd.f32 %v3812, %v3954
        %v3956 = vpop.f32.mrb[0].mxu0
        %v3957 = vadd.f32 %v3814, %v3956
        %3958 = vmatprep.mubr.f32.mxu0 %v2218
        %3959 = vmatmul.mubr.f32.gmra.mrb[0].mxu0 %v2217
        %v3960 = vpop.f32.mrb[0].mxu0
        %v3961 = vadd.f32 %v3818, %v3960
        %v3962 = vpop.f32.mrb[0].mxu0
        %v3963 = vadd.f32 %v3820, %v3962
        %3964 = vmatprep.mubr.f32.mxu0 %v2234
        %3965 = vmatmul.mubr.f32.gmra.mrb[0].mxu0 %v2233
        %v3966 = vpop.f32.mrb[0].mxu0
        %v3967 = vadd.f32 %v3824, %v3966
        %v3968 = vpop.f32.mrb[0].mxu0
        %v3969 = vadd.f32 %v3826, %v3968
        %3970 = vmatprep.mubr.f32.mxu0 %v2250
        %3971 = vmatmul.mubr.f32.gmra.mrb[0].mxu0 %v2249
        %v3972 = vpop.f32.mrb[0].mxu0
        %v3973 = vadd.f32 %v3830, %v3972
        %v3974 = vpop.f32.mrb[0].mxu0
        %v3975 = vadd.f32 %v3832, %v3974
        %3976 = vmatprep.mubr.f32.mxu0 %v2266
        %3977 = vmatmul.mubr.f32.gmra.mrb[0].mxu0 %v2265
        %v3978 = vpop.f32.mrb[0].mxu0
        %v3979 = vadd.f32 %v3836, %v3978
        %v3980 = vpop.f32.mrb[0].mxu0
        %v3981 = vadd.f32 %v3838, %v3980
        %3982 = vmatprep.mubr.f32.mxu0 %v2282
        %3983 = vmatmul.mubr.f32.gmra.mrb[0].mxu0 %v2281
        %v3984 = vpop.f32.mrb[0].mxu0
        %v3985 = vadd.f32 %v3842, %v3984
        %v3986 = vpop.f32.mrb[0].mxu0
        %v3987 = vadd.f32 %v3844, %v3986
        %3988 = vmatprep.mubr.f32.mxu0 %v2298
        %3989 = vmatmul.mubr.f32.gmra.mrb[0].mxu0 %v2297
        %v3990 = vpop.f32.mrb[0].mxu0
        %v3991 = vadd.f32 %v3848, %v3990
        %v3992 = vpop.f32.mrb[0].mxu0
        %v3993 = vadd.f32 %v3850, %v3992
        %3994 = vmatprep.mubr.f32.mxu0 %v2314
        %3995 = vmatmul.mubr.f32.gmra.mrb[0].mxu0 %v2313
        %v3996 = vpop.f32.mrb[0].mxu0
        %v3997 = vadd.f32 %v3854, %v3996
        %v3998 = vpop.f32.mrb[0].mxu0
        %v3999 = vadd.f32 %v3856, %v3998
        %4000 = vmatprep.mubr.f32.mxu0 %v2330
        %4001 = vmatmul.mubr.f32.gmra.mrb[0].mxu0 %v2329
        %v4002 = vpop.f32.mrb[0].mxu0
        %v4003 = vadd.f32 %v3860, %v4002
        %v4004 = vpop.f32.mrb[0].mxu0
        %v4005 = vadd.f32 %v3862, %v4004
        %4006 = vmatprep.mubr.f32.mxu0 %v2346
        %4007 = vmatmul.mubr.f32.gmra.mrb[0].mxu0 %v2345
        %v4008 = vpop.f32.mrb[0].mxu0
        %v4009 = vadd.f32 %v3866, %v4008
        %v4010 = vpop.f32.mrb[0].mxu0
        %v4011 = vadd.f32 %v3868, %v4010
        %4012 = vmatprep.mubr.f32.mxu0 %v2362
        %4013 = vmatmul.mubr.f32.gmra.mrb[0].mxu0 %v2361
        %v4014 = vpop.f32.mrb[0].mxu0
        %v4015 = vadd.f32 %v3872, %v4014
        %v4016 = vpop.f32.mrb[0].mxu0
        %v4017 = vadd.f32 %v3874, %v4016
        %4018 = vdwg.mxu0
        %v4019 = vadd.f32 %v389, %v3943
        %v4020 = vadd.f32 %v390, %v3945
        %v4021 = vadd.f32 %v391, %v3949
        %v4022 = vadd.f32 %v392, %v3951
        %v4023 = vadd.f32 %v393, %v3955
        %v4024 = vadd.f32 %v394, %v3957
        %v4025 = vadd.f32 %v395, %v3961
        %v4026 = vadd.f32 %v396, %v3963
        %v4027 = vadd.f32 %v397, %v3967
        %v4028 = vadd.f32 %v398, %v3969
        %v4029 = vadd.f32 %v399, %v3973
        %v4030 = vadd.f32 %v400, %v3975
        %v4031 = vadd.f32 %v401, %v3979
        %v4032 = vadd.f32 %v402, %v3981
        %v4033 = vadd.f32 %v403, %v3985
        %v4034 = vadd.f32 %v404, %v3987
        %v4035 = vadd.f32 %v405, %v3991
        %v4036 = vadd.f32 %v406, %v3993
        %v4037 = vadd.f32 %v407, %v3997
        %v4038 = vadd.f32 %v408, %v3999
        %v4039 = vadd.f32 %v409, %v4003
        %v4040 = vadd.f32 %v410, %v4005
        %v4041 = vadd.f32 %v411, %v4009
        %v4042 = vadd.f32 %v412, %v4011
        %v4043 = vadd.f32 %v413, %v4015
        %v4044 = vadd.f32 %v414, %v4017
        %v4045 = vld [vmem:[#allocation7] sm:$0x3]
        %v4047 = vlaneseq
        %v4048 = vshrl.u32 %v4047, 7
        %v4049 = vsub.s32 0, %v4048
        %v4050 = vrot.slane %v4045, %v4049
        %v4051 = vlaneseq
        %v4052 = vshrl.u32 %v4051, 7
        %v4053 = vsub.s32 1, %v4052
        %v4054 = vrot.slane %v4045, %v4053
        %v4057 = vadd.f32 %v4019, %v4050
        %v4058 = vadd.f32 %v4020, %v4054
        %v4059 = vadd.f32 %v4021, %v4050
        %v4060 = vadd.f32 %v4022, %v4054
        %v4061 = vadd.f32 %v4023, %v4050
        %v4062 = vadd.f32 %v4024, %v4054
        %v4063 = vadd.f32 %v4025, %v4050
        %v4064 = vadd.f32 %v4026, %v4054
        %v4065 = vadd.f32 %v4027, %v4050
        %v4066 = vadd.f32 %v4028, %v4054
        %v4067 = vadd.f32 %v4029, %v4050
        %v4068 = vadd.f32 %v4030, %v4054
        %v4069 = vadd.f32 %v4031, %v4050
        %v4070 = vadd.f32 %v4032, %v4054
        %v4071 = vadd.f32 %v4033, %v4050
        %v4072 = vadd.f32 %v4034, %v4054
        %v4073 = vadd.f32 %v4035, %v4050
        %v4074 = vadd.f32 %v4036, %v4054
        %v4075 = vadd.f32 %v4037, %v4050
        %v4076 = vadd.f32 %v4038, %v4054
        %v4077 = vadd.f32 %v4039, %v4050
        %v4078 = vadd.f32 %v4040, %v4054
        %v4079 = vadd.f32 %v4041, %v4050
        %v4080 = vadd.f32 %v4042, %v4054
        %v4081 = vadd.f32 %v4043, %v4050
        %v4082 = vadd.f32 %v4044, %v4054
        %v4083 = vadd.f32 %v4057, %v4058
        %4084 = vadd.xlane.f32.xlu0 %v4083
        %v4085 = vpop.xlane.xlu0 %4084
        %v4086 = vadd.f32 %v4059, %v4060
        %4087 = vadd.xlane.f32.xlu0 %v4086
        %v4088 = vpop.xlane.xlu0 %4087
        %v4089 = vadd.f32 %v4061, %v4062
        %4090 = vadd.xlane.f32.xlu0 %v4089
        %v4091 = vpop.xlane.xlu0 %4090
        %v4092 = vadd.f32 %v4063, %v4064
        %4093 = vadd.xlane.f32.xlu0 %v4092
        %v4094 = vpop.xlane.xlu0 %4093
        %v4095 = vadd.f32 %v4065, %v4066
        %4096 = vadd.xlane.f32.xlu0 %v4095
        %v4097 = vpop.xlane.xlu0 %4096
        %v4098 = vadd.f32 %v4067, %v4068
        %4099 = vadd.xlane.f32.xlu0 %v4098
        %v4100 = vpop.xlane.xlu0 %4099
        %v4101 = vadd.f32 %v4069, %v4070
        %4102 = vadd.xlane.f32.xlu0 %v4101
        %v4103 = vpop.xlane.xlu0 %4102
        %v4104 = vadd.f32 %v4071, %v4072
        %4105 = vadd.xlane.f32.xlu0 %v4104
        %v4106 = vpop.xlane.xlu0 %4105
        %v4107 = vadd.f32 %v4073, %v4074
        %4108 = vadd.xlane.f32.xlu0 %v4107
        %v4109 = vpop.xlane.xlu0 %4108
        %v4110 = vadd.f32 %v4075, %v4076
        %4111 = vadd.xlane.f32.xlu0 %v4110
        %v4112 = vpop.xlane.xlu0 %4111
        %v4113 = vadd.f32 %v4077, %v4078
        %4114 = vadd.xlane.f32.xlu0 %v4113
        %v4115 = vpop.xlane.xlu0 %4114
        %v4116 = vadd.f32 %v4079, %v4080
        %4117 = vadd.xlane.f32.xlu0 %v4116
        %v4118 = vpop.xlane.xlu0 %4117
        %v4119 = vadd.f32 %v4081, %v4082
        %4120 = vadd.xlane.f32.xlu0 %v4119
        %v4121 = vpop.xlane.xlu0 %4120
        %v4122 = vmul.f32 %v4057, %v4057
        %v4123 = vmul.f32 %v4058, %v4058
        %v4124 = vmul.f32 %v4059, %v4059
        %v4125 = vmul.f32 %v4060, %v4060
        %v4126 = vmul.f32 %v4061, %v4061
        %v4127 = vmul.f32 %v4062, %v4062
        %v4128 = vmul.f32 %v4063, %v4063
        %v4129 = vmul.f32 %v4064, %v4064
        %v4130 = vmul.f32 %v4065, %v4065
        %v4131 = vmul.f32 %v4066, %v4066
        %v4132 = vmul.f32 %v4067, %v4067
        %v4133 = vmul.f32 %v4068, %v4068
        %v4134 = vmul.f32 %v4069, %v4069
        %v4135 = vmul.f32 %v4070, %v4070
        %v4136 = vmul.f32 %v4071, %v4071
        %v4137 = vmul.f32 %v4072, %v4072
        %v4138 = vmul.f32 %v4073, %v4073
        %v4139 = vmul.f32 %v4074, %v4074
        %v4140 = vmul.f32 %v4075, %v4075
        %v4141 = vmul.f32 %v4076, %v4076
        %v4142 = vmul.f32 %v4077, %v4077
        %v4143 = vmul.f32 %v4078, %v4078
        %v4144 = vmul.f32 %v4079, %v4079
        %v4145 = vmul.f32 %v4080, %v4080
        %v4146 = vmul.f32 %v4081, %v4081
        %v4147 = vmul.f32 %v4082, %v4082
        %v4148 = vadd.f32 %v4122, %v4123
        %4149 = vadd.xlane.f32.xlu0 %v4148
        %v4150 = vpop.xlane.xlu0 %4149
        %v4151 = vadd.f32 %v4124, %v4125
        %4152 = vadd.xlane.f32.xlu0 %v4151
        %v4153 = vpop.xlane.xlu0 %4152
        %v4154 = vadd.f32 %v4126, %v4127
        %4155 = vadd.xlane.f32.xlu0 %v4154
        %v4156 = vpop.xlane.xlu0 %4155
        %v4157 = vadd.f32 %v4128, %v4129
        %4158 = vadd.xlane.f32.xlu0 %v4157
        %v4159 = vpop.xlane.xlu0 %4158
        %v4160 = vadd.f32 %v4130, %v4131
        %4161 = vadd.xlane.f32.xlu0 %v4160
        %v4162 = vpop.xlane.xlu0 %4161
        %v4163 = vadd.f32 %v4132, %v4133
        %4164 = vadd.xlane.f32.xlu0 %v4163
        %v4165 = vpop.xlane.xlu0 %4164
        %v4166 = vadd.f32 %v4134, %v4135
        %4167 = vadd.xlane.f32.xlu0 %v4166
        %v4168 = vpop.xlane.xlu0 %4167
        %v4169 = vadd.f32 %v4136, %v4137
        %4170 = vadd.xlane.f32.xlu0 %v4169
        %v4171 = vpop.xlane.xlu0 %4170
        %v4172 = vadd.f32 %v4138, %v4139
        %4173 = vadd.xlane.f32.xlu0 %v4172
        %v4174 = vpop.xlane.xlu0 %4173
        %v4175 = vadd.f32 %v4140, %v4141
        %4176 = vadd.xlane.f32.xlu0 %v4175
        %v4177 = vpop.xlane.xlu0 %4176
        %v4178 = vadd.f32 %v4142, %v4143
        %4179 = vadd.xlane.f32.xlu0 %v4178
        %v4180 = vpop.xlane.xlu0 %4179
        %v4181 = vadd.f32 %v4144, %v4145
        %4182 = vadd.xlane.f32.xlu0 %v4181
        %v4183 = vpop.xlane.xlu0 %4182
        %v4184 = vadd.f32 %v4146, %v4147
        %4185 = vadd.xlane.f32.xlu0 %v4184
        %v4186 = vpop.xlane.xlu0 %4185
        %v4187 = vmul.f32 %v4085, 0.00390625
        %v4188 = vmul.f32 %v4088, 0.00390625
        %v4189 = vmul.f32 %v4091, 0.00390625
        %v4190 = vmul.f32 %v4094, 0.00390625
        %v4191 = vmul.f32 %v4097, 0.00390625
        %v4192 = vmul.f32 %v4100, 0.00390625
        %v4193 = vmul.f32 %v4103, 0.00390625
        %v4194 = vmul.f32 %v4106, 0.00390625
        %v4195 = vmul.f32 %v4109, 0.00390625
        %v4196 = vmul.f32 %v4112, 0.00390625
        %v4197 = vmul.f32 %v4115, 0.00390625
        %v4198 = vmul.f32 %v4118, 0.00390625
        %v4199 = vmul.f32 %v4121, 0.00390625
        %v4200 = vmul.f32 %v4150, 0.00390625
        %v4201 = vmul.f32 %v4153, 0.00390625
        %v4202 = vmul.f32 %v4156, 0.00390625
        %v4203 = vmul.f32 %v4159, 0.00390625
        %v4204 = vmul.f32 %v4162, 0.00390625
        %v4205 = vmul.f32 %v4165, 0.00390625
        %v4206 = vmul.f32 %v4168, 0.00390625
        %v4207 = vmul.f32 %v4171, 0.00390625
        %v4208 = vmul.f32 %v4174, 0.00390625
        %v4209 = vmul.f32 %v4177, 0.00390625
        %v4210 = vmul.f32 %v4180, 0.00390625
        %v4211 = vmul.f32 %v4183, 0.00390625
        %v4212 = vmul.f32 %v4186, 0.00390625
        %v4213 = vmul.f32 %v4187, %v4187
        %v4214 = vmul.f32 %v4188, %v4188
        %v4215 = vmul.f32 %v4189, %v4189
        %v4216 = vmul.f32 %v4190, %v4190
        %v4217 = vmul.f32 %v4191, %v4191
        %v4218 = vmul.f32 %v4192, %v4192
        %v4219 = vmul.f32 %v4193, %v4193
        %v4220 = vmul.f32 %v4194, %v4194
        %v4221 = vmul.f32 %v4195, %v4195
        %v4222 = vmul.f32 %v4196, %v4196
        %v4223 = vmul.f32 %v4197, %v4197
        %v4224 = vmul.f32 %v4198, %v4198
        %v4225 = vmul.f32 %v4199, %v4199
        %v4226 = vsub.f32 %v4200, %v4213
        %v4227 = vsub.f32 %v4201, %v4214
        %v4228 = vsub.f32 %v4202, %v4215
        %v4229 = vsub.f32 %v4203, %v4216
        %v4230 = vsub.f32 %v4204, %v4217
        %v4231 = vsub.f32 %v4205, %v4218
        %v4232 = vsub.f32 %v4206, %v4219
        %v4233 = vsub.f32 %v4207, %v4220
        %v4234 = vsub.f32 %v4208, %v4221
        %v4235 = vsub.f32 %v4209, %v4222
        %v4236 = vsub.f32 %v4210, %v4223
        %v4237 = vsub.f32 %v4211, %v4224
        %v4238 = vsub.f32 %v4212, %v4225
        %v4239 = vmax.f32 %v4226, 0.0
        %v4240 = vmax.f32 %v4227, 0.0
        %v4241 = vmax.f32 %v4228, 0.0
        %v4242 = vmax.f32 %v4229, 0.0
        %v4243 = vmax.f32 %v4230, 0.0
        %v4244 = vmax.f32 %v4231, 0.0
        %v4245 = vmax.f32 %v4232, 0.0
        %v4246 = vmax.f32 %v4233, 0.0
        %v4247 = vmax.f32 %v4234, 0.0
        %v4248 = vmax.f32 %v4235, 0.0
        %v4249 = vmax.f32 %v4236, 0.0
        %v4250 = vmax.f32 %v4237, 0.0
        %v4251 = vmax.f32 %v4238, 0.0
        %v4252 = vsub.f32 %v4057, %v4187
        %v4253 = vsub.f32 %v4058, %v4187
        %v4254 = vsub.f32 %v4059, %v4188
        %v4255 = vsub.f32 %v4060, %v4188
        %v4256 = vsub.f32 %v4061, %v4189
        %v4257 = vsub.f32 %v4062, %v4189
        %v4258 = vsub.f32 %v4063, %v4190
        %v4259 = vsub.f32 %v4064, %v4190
        %v4260 = vsub.f32 %v4065, %v4191
        %v4261 = vsub.f32 %v4066, %v4191
        %v4262 = vsub.f32 %v4067, %v4192
        %v4263 = vsub.f32 %v4068, %v4192
        %v4264 = vsub.f32 %v4069, %v4193
        %v4265 = vsub.f32 %v4070, %v4193
        %v4266 = vsub.f32 %v4071, %v4194
        %v4267 = vsub.f32 %v4072, %v4194
        %v4268 = vsub.f32 %v4073, %v4195
        %v4269 = vsub.f32 %v4074, %v4195
        %v4270 = vsub.f32 %v4075, %v4196
        %v4271 = vsub.f32 %v4076, %v4196
        %v4272 = vsub.f32 %v4077, %v4197
        %v4273 = vsub.f32 %v4078, %v4197
        %v4274 = vsub.f32 %v4079, %v4198
        %v4275 = vsub.f32 %v4080, %v4198
        %v4276 = vsub.f32 %v4081, %v4199
        %v4277 = vsub.f32 %v4082, %v4199
        %v4278 = vadd.f32 %v4239, 1e-05
        %v4279 = vadd.f32 %v4240, 1e-05
        %v4280 = vadd.f32 %v4241, 1e-05
        %v4281 = vadd.f32 %v4242, 1e-05
        %v4282 = vadd.f32 %v4243, 1e-05
        %v4283 = vadd.f32 %v4244, 1e-05
        %v4284 = vadd.f32 %v4245, 1e-05
        %v4285 = vadd.f32 %v4246, 1e-05
        %v4286 = vadd.f32 %v4247, 1e-05
        %v4287 = vadd.f32 %v4248, 1e-05
        %v4288 = vadd.f32 %v4249, 1e-05
        %v4289 = vadd.f32 %v4250, 1e-05
        %v4290 = vadd.f32 %v4251, 1e-05
        %v4291 = vrsqrt.pop %v4278
        %v4292 = vrsqrt.pop %v4279
        %v4293 = vrsqrt.pop %v4280
        %v4294 = vrsqrt.pop %v4281
        %v4295 = vrsqrt.pop %v4282
        %v4296 = vrsqrt.pop %v4283
        %v4297 = vrsqrt.pop %v4284
        %v4298 = vrsqrt.pop %v4285
        %v4299 = vrsqrt.pop %v4286
        %v4300 = vrsqrt.pop %v4287
        %v4301 = vrsqrt.pop %v4288
        %v4302 = vrsqrt.pop %v4289
        %v4303 = vrsqrt.pop %v4290
        %v4304 = vmul.f32 %v4252, %v4291
        %v4305 = vmul.f32 %v4253, %v4291
        %v4306 = vmul.f32 %v4254, %v4292
        %v4307 = vmul.f32 %v4255, %v4292
        %v4308 = vmul.f32 %v4256, %v4293
        %v4309 = vmul.f32 %v4257, %v4293
        %v4310 = vmul.f32 %v4258, %v4294
        %v4311 = vmul.f32 %v4259, %v4294
        %v4312 = vmul.f32 %v4260, %v4295
        %v4313 = vmul.f32 %v4261, %v4295
        %v4314 = vmul.f32 %v4262, %v4296
        %v4315 = vmul.f32 %v4263, %v4296
        %v4316 = vmul.f32 %v4264, %v4297
        %v4317 = vmul.f32 %v4265, %v4297
        %v4318 = vmul.f32 %v4266, %v4298
        %v4319 = vmul.f32 %v4267, %v4298
        %v4320 = vmul.f32 %v4268, %v4299
        %v4321 = vmul.f32 %v4269, %v4299
        %v4322 = vmul.f32 %v4270, %v4300
        %v4323 = vmul.f32 %v4271, %v4300
        %v4324 = vmul.f32 %v4272, %v4301
        %v4325 = vmul.f32 %v4273, %v4301
        %v4326 = vmul.f32 %v4274, %v4302
        %v4327 = vmul.f32 %v4275, %v4302
        %v4328 = vmul.f32 %v4276, %v4303
        %v4329 = vmul.f32 %v4277, %v4303
        %v4330 = vld [vmem:[#allocation9] sm:$0x3]
        %v4332 = vlaneseq
        %v4333 = vshrl.u32 %v4332, 7
        %v4334 = vsub.s32 0, %v4333
        %v4335 = vrot.slane %v4330, %v4334
        %v4336 = vlaneseq
        %v4337 = vshrl.u32 %v4336, 7
        %v4338 = vsub.s32 1, %v4337
        %v4339 = vrot.slane %v4330, %v4338
        %v4342 = vmul.f32 %v4304, %v4335
        %v4343 = vmul.f32 %v4305, %v4339
        %v4344 = vmul.f32 %v4306, %v4335
        %v4345 = vmul.f32 %v4307, %v4339
        %v4346 = vmul.f32 %v4308, %v4335
        %v4347 = vmul.f32 %v4309, %v4339
        %v4348 = vmul.f32 %v4310, %v4335
        %v4349 = vmul.f32 %v4311, %v4339
        %v4350 = vmul.f32 %v4312, %v4335
        %v4351 = vmul.f32 %v4313, %v4339
        %v4352 = vmul.f32 %v4314, %v4335
        %v4353 = vmul.f32 %v4315, %v4339
        %v4354 = vmul.f32 %v4316, %v4335
        %v4355 = vmul.f32 %v4317, %v4339
        %v4356 = vmul.f32 %v4318, %v4335
        %v4357 = vmul.f32 %v4319, %v4339
        %v4358 = vmul.f32 %v4320, %v4335
        %v4359 = vmul.f32 %v4321, %v4339
        %v4360 = vmul.f32 %v4322, %v4335
        %v4361 = vmul.f32 %v4323, %v4339
        %v4362 = vmul.f32 %v4324, %v4335
        %v4363 = vmul.f32 %v4325, %v4339
        %v4364 = vmul.f32 %v4326, %v4335
        %v4365 = vmul.f32 %v4327, %v4339
        %v4366 = vmul.f32 %v4328, %v4335
        %v4367 = vmul.f32 %v4329, %v4339
        %v4368 = vld [vmem:[#allocation10] sm:$0x3]
        %v4370 = vlaneseq
        %v4371 = vshrl.u32 %v4370, 7
        %v4372 = vsub.s32 0, %v4371
        %v4373 = vrot.slane %v4368, %v4372
        %v4374 = vlaneseq
        %v4375 = vshrl.u32 %v4374, 7
        %v4376 = vsub.s32 1, %v4375
        %v4377 = vrot.slane %v4368, %v4376
        %v4380 = vadd.f32 %v4342, %v4373
        %v4381 = vadd.f32 %v4343, %v4377
        %v4382 = vadd.f32 %v4344, %v4373
        %v4383 = vadd.f32 %v4345, %v4377
        %v4384 = vadd.f32 %v4346, %v4373
        %v4385 = vadd.f32 %v4347, %v4377
        %v4386 = vadd.f32 %v4348, %v4373
        %v4387 = vadd.f32 %v4349, %v4377
        %v4388 = vadd.f32 %v4350, %v4373
        %v4389 = vadd.f32 %v4351, %v4377
        %v4390 = vadd.f32 %v4352, %v4373
        %v4391 = vadd.f32 %v4353, %v4377
        %v4392 = vadd.f32 %v4354, %v4373
        %v4393 = vadd.f32 %v4355, %v4377
        %v4394 = vadd.f32 %v4356, %v4373
        %v4395 = vadd.f32 %v4357, %v4377
        %v4396 = vadd.f32 %v4358, %v4373
        %v4397 = vadd.f32 %v4359, %v4377
        %v4398 = vadd.f32 %v4360, %v4373
        %v4399 = vadd.f32 %v4361, %v4377
        %v4400 = vadd.f32 %v4362, %v4373
        %v4401 = vadd.f32 %v4363, %v4377
        %v4402 = vadd.f32 %v4364, %v4373
        %v4403 = vadd.f32 %v4365, %v4377
        %v4404 = vadd.f32 %v4366, %v4373
        %v4405 = vadd.f32 %v4367, %v4377
        %4406 = vst [vmem:[%s365] sm:$0xff] %v4380
        %4407 = vst [vmem:[%s365 + $0x8] sm:$0xff] %v4381
        %4408 = vst [vmem:[%s365 + $0x10] sm:$0xff] %v4382
        %4409 = vst [vmem:[%s365 + $0x18] sm:$0xff] %v4383
        %4410 = vst [vmem:[%s365 + $0x20] sm:$0xff] %v4384
        %4411 = vst [vmem:[%s365 + $0x28] sm:$0xff] %v4385
        %4412 = vst [vmem:[%s365 + $0x30] sm:$0xff] %v4386
        %4413 = vst [vmem:[%s365 + $0x38] sm:$0xff] %v4387
        %4414 = vst [vmem:[%s365 + $0x40] sm:$0xff] %v4388
        %4415 = vst [vmem:[%s365 + $0x48] sm:$0xff] %v4389
        %4416 = vst [vmem:[%s365 + $0x50] sm:$0xff] %v4390
        %4417 = vst [vmem:[%s365 + $0x58] sm:$0xff] %v4391
        %4418 = vst [vmem:[%s365 + $0x60] sm:$0xff] %v4392
        %4419 = vst [vmem:[%s365 + $0x68] sm:$0xff] %v4393
        %4420 = vst [vmem:[%s365 + $0x70] sm:$0xff] %v4394
        %4421 = vst [vmem:[%s365 + $0x78] sm:$0xff] %v4395
        %4422 = vst [vmem:[%s365 + $0x80] sm:$0xff] %v4396
        %4423 = vst [vmem:[%s365 + $0x88] sm:$0xff] %v4397
        %4424 = vst [vmem:[%s365 + $0x90] sm:$0xff] %v4398
        %4425 = vst [vmem:[%s365 + $0x98] sm:$0xff] %v4399
        %4426 = vst [vmem:[%s365 + $0xa0] sm:$0xff] %v4400
        %4427 = vst [vmem:[%s365 + $0xa8] sm:$0xff] %v4401
        %4428 = vst [vmem:[%s365 + $0xb0] sm:$0xff] %v4402
        %4429 = vst [vmem:[%s365 + $0xb8] sm:$0xff] %v4403
        %4430 = vst [vmem:[%s365 + $0xc0] sm:$0xff] %v4404
        %4431 = vst [vmem:[%s365 + $0xc8] sm:$0xff] %v4405
        %s4432 = sand.u32 %s182, 1
        %s4433 = sand.u32 %s182, 1
        %s4434 = smul.addr %s4433, 208
        %s4435 = scalar_lea.vmem [#allocation12], %s4434
        // Predicated region
        $region73: #{ffn_layer_forward.1} parent=47 // pred_check
          %p4436 = pneg %p192
        $region74: #{ffn_layer_forward.1} parent=47 // pred_check_branch
          %4438 = sbr.rel (%p4436) target = $region76
        $region75: #{ffn_layer_forward.1} parent=47 // pred_region
          %s4439 = smul.u32 13, %s22
          %s4440 = ssub.s32 25, %s4439
          %p4441 = scmp.lt.s32.totalorder %s4440, 13
          %s4442 = scalar_select %p4441, %s4440, 13
          %s4443 = smul.u32 128, %s4442
          %s4444 = smul.u32 %s4443, 2
          %p4445 = scmp.ne.s32.totalorder 0, %s4444
          %s4446 = smul.addr %s4439, 2
          %s4447 = smul.addr %s4446, 8
          %s4448 = scalar_lea.vmem %s7, %s4447
          // Predicated region
          $region77: #{ffn_layer_forward.1} parent=75 // pred_check
            %p4449 = pneg %p4445
          $region78: #{ffn_layer_forward.1} parent=75 // pred_check_branch
            %4451 = sbr.rel (%p4449) target = $region80
          $region79: #{ffn_layer_forward.1} parent=75 // pred_region
            // Predicated region
            $region81: #{ffn_layer_forward.1} parent=79 // pred_check
              _
            $region82: #{ffn_layer_forward.1} parent=79 // pred_check_branch
              %4453 = sbr.rel (0) target = $region84
            $region83: #{ffn_layer_forward.1} parent=79 // pred_region
              %s4454 = sdiv.u32.pop %s4442, 13
              %s4455 = srem.u32.pop %s4442, 13
              // While loop
              $region85: #{ffn_layer_forward.1} parent=83 // loop_pre_header
                _
              $region86: #{ffn_layer_forward.1} parent=83 // loop_header
                %s4457 = sphi 0, %s4459
                %p4458 = scmp.ge.s32.totalorder %s4457, %s4454
                %s4462 = sphi 0, %s4519
                %s4463 = sphi %s4435, %s4522
                %s4464 = sphi %s4448, %s4523
              $region87: #{ffn_layer_forward.1} parent=83 // loop_header_branch
                %4461 = sbr.rel (%p4458) target = $region91
              $region88: #{ffn_layer_forward.1} parent=83 // loop_body
                %v4465 = vld [vmem:[%s4463] sm:$0xff]
                %4466 = vst [vmem:[%s4464] sm:$0xff] %v4465
                %v4467 = vld [vmem:[%s4463 + $0x10] sm:$0xff]
                %4468 = vst [vmem:[%s4464 + $0x10] sm:$0xff] %v4467
                %v4469 = vld [vmem:[%s4463 + $0x20] sm:$0xff]
                %4470 = vst [vmem:[%s4464 + $0x20] sm:$0xff] %v4469
                %v4471 = vld [vmem:[%s4463 + $0x30] sm:$0xff]
                %4472 = vst [vmem:[%s4464 + $0x30] sm:$0xff] %v4471
                %v4473 = vld [vmem:[%s4463 + $0x40] sm:$0xff]
                %4474 = vst [vmem:[%s4464 + $0x40] sm:$0xff] %v4473
                %v4475 = vld [vmem:[%s4463 + $0x50] sm:$0xff]
                %4476 = vst [vmem:[%s4464 + $0x50] sm:$0xff] %v4475
                %v4477 = vld [vmem:[%s4463 + $0x60] sm:$0xff]
                %4478 = vst [vmem:[%s4464 + $0x60] sm:$0xff] %v4477
                %v4479 = vld [vmem:[%s4463 + $0x70] sm:$0xff]
                %4480 = vst [vmem:[%s4464 + $0x70] sm:$0xff] %v4479
                %v4481 = vld [vmem:[%s4463 + $0x80] sm:$0xff]
                %4482 = vst [vmem:[%s4464 + $0x80] sm:$0xff] %v4481
                %v4483 = vld [vmem:[%s4463 + $0x90] sm:$0xff]
                %4484 = vst [vmem:[%s4464 + $0x90] sm:$0xff] %v4483
                %v4485 = vld [vmem:[%s4463 + $0xa0] sm:$0xff]
                %4486 = vst [vmem:[%s4464 + $0xa0] sm:$0xff] %v4485
                %v4487 = vld [vmem:[%s4463 + $0xb0] sm:$0xff]
                %4488 = vst [vmem:[%s4464 + $0xb0] sm:$0xff] %v4487
                %v4489 = vld [vmem:[%s4463 + $0xc0] sm:$0xff]
                %4490 = vst [vmem:[%s4464 + $0xc0] sm:$0xff] %v4489
                %v4491 = vld [vmem:[%s4463 + $0x8] sm:$0xff]
                %4492 = vst [vmem:[%s4464 + $0x8] sm:$0xff] %v4491
                %v4493 = vld [vmem:[%s4463 + $0x18] sm:$0xff]
                %4494 = vst [vmem:[%s4464 + $0x18] sm:$0xff] %v4493
                %v4495 = vld [vmem:[%s4463 + $0x28] sm:$0xff]
                %4496 = vst [vmem:[%s4464 + $0x28] sm:$0xff] %v4495
                %v4497 = vld [vmem:[%s4463 + $0x38] sm:$0xff]
                %4498 = vst [vmem:[%s4464 + $0x38] sm:$0xff] %v4497
                %v4499 = vld [vmem:[%s4463 + $0x48] sm:$0xff]
                %4500 = vst [vmem:[%s4464 + $0x48] sm:$0xff] %v4499
                %v4501 = vld [vmem:[%s4463 + $0x58] sm:$0xff]
                %4502 = vst [vmem:[%s4464 + $0x58] sm:$0xff] %v4501
                %v4503 = vld [vmem:[%s4463 + $0x68] sm:$0xff]
                %4504 = vst [vmem:[%s4464 + $0x68] sm:$0xff] %v4503
                %v4505 = vld [vmem:[%s4463 + $0x78] sm:$0xff]
                %4506 = vst [vmem:[%s4464 + $0x78] sm:$0xff] %v4505
                %v4507 = vld [vmem:[%s4463 + $0x88] sm:$0xff]
                %4508 = vst [vmem:[%s4464 + $0x88] sm:$0xff] %v4507
                %v4509 = vld [vmem:[%s4463 + $0x98] sm:$0xff]
                %4510 = vst [vmem:[%s4464 + $0x98] sm:$0xff] %v4509
                %v4511 = vld [vmem:[%s4463 + $0xa8] sm:$0xff]
                %4512 = vst [vmem:[%s4464 + $0xa8] sm:$0xff] %v4511
                %v4513 = vld [vmem:[%s4463 + $0xb8] sm:$0xff]
                %4514 = vst [vmem:[%s4464 + $0xb8] sm:$0xff] %v4513
                %v4515 = vld [vmem:[%s4463 + $0xc8] sm:$0xff]
                %4516 = vst [vmem:[%s4464 + $0xc8] sm:$0xff] %v4515
                %s4517 = sadd.s32 1, %s4462
                %p4518 = scmp.ge.s32.totalorder %s4517, %s4454
                %s4519 = scalar_select %p4518, 0, %s4517
                %s4520 = smul.u32 %s4519, 208
                %s4521 = smul.u32 %s4519, 208
                %s4522 = scalar_lea.vmem %s4435, %s4520 [#allocation12]
                %s4523 = scalar_lea.vmem %s4448, %s4521
              $region89: #{ffn_layer_forward.1} parent=83 // loop_footer
                %s4459 = sadd.s32 %s4457, 1
              $region90: #{ffn_layer_forward.1} parent=83 // loop_footer_branch
                %4456 = sbr.rel target = $region86
              $region91: #{ffn_layer_forward.1} parent=83 // loop_exit
                _
              %s4524 = sdiv.u32.pop %s4442, 13
              %s4525 = srem.u32.pop %s4442, 13
              %s4526 = smul.u32 %s4524, 13
              %s4527 = smul.u32 16, %s4526
              %s4528 = scalar_lea.vmem %s4435, %s4527 [#allocation12]
              %s4529 = smul.u32 16, %s4526
              %s4530 = scalar_lea.vmem %s4448, %s4529
              // While loop
              $region92: #{ffn_layer_forward.1} parent=83 // loop_pre_header
                _
              $region93: #{ffn_layer_forward.1} parent=83 // loop_header
                %s4532 = sphi 0, %s4534
                %p4533 = scmp.ge.s32.totalorder %s4532, %s4525
                %s4537 = sphi 0, %s4546
                %s4538 = sphi %s4528, %s4549
                %s4539 = sphi %s4530, %s4550
              $region94: #{ffn_layer_forward.1} parent=83 // loop_header_branch
                %4536 = sbr.rel (%p4533) target = $region98
              $region95: #{ffn_layer_forward.1} parent=83 // loop_body
                %v4540 = vld [vmem:[%s4538] sm:$0xff]
                %4541 = vst [vmem:[%s4539] sm:$0xff] %v4540
                %v4542 = vld [vmem:[%s4538 + $0x8] sm:$0xff]
                %4543 = vst [vmem:[%s4539 + $0x8] sm:$0xff] %v4542
                %s4544 = sadd.s32 1, %s4537
                %p4545 = scmp.ge.s32.totalorder %s4544, %s4525
                %s4546 = scalar_select %p4545, 0, %s4544
                %s4547 = smul.u32 %s4546, 16
                %s4548 = smul.u32 %s4546, 16
                %s4549 = scalar_lea.vmem %s4528, %s4547 [#allocation12]
                %s4550 = scalar_lea.vmem %s4530, %s4548
              $region96: #{ffn_layer_forward.1} parent=83 // loop_footer
                %s4534 = sadd.s32 %s4532, 1
              $region97: #{ffn_layer_forward.1} parent=83 // loop_footer_branch
                %4531 = sbr.rel target = $region93
              $region98: #{ffn_layer_forward.1} parent=83 // loop_exit
                _
            $region84: #{ffn_layer_forward.1} parent=79 // pred_fallthru
              _
            // Predicated region
            $region99: #{ffn_layer_forward.1} parent=79 // pred_check
              _
            $region100: #{ffn_layer_forward.1} parent=79 // pred_check_branch
              %4552 = sbr.rel target = $region102
            $region101: #{ffn_layer_forward.1} parent=79 // pred_region
              _
            $region102: #{ffn_layer_forward.1} parent=79 // pred_fallthru
              _
          $region80: #{ffn_layer_forward.1} parent=75 // pred_fallthru
            _
          %4553 = vnop
        $region76: #{ffn_layer_forward.1} parent=47 // pred_fallthru
          _
      $region48: #{ffn_layer_forward.1} parent=5 // pred_fallthru
        _
      %p4554 = scmp.le.s32.totalorder 2, %s17
      // Predicated region
      $region103: #{ffn_layer_forward.1} parent=5 // pred_check
        %p4555 = pneg %p4554
      $region104: #{ffn_layer_forward.1} parent=5 // pred_check_branch
        %4557 = sbr.rel (%p4555) target = $region106
      $region105: #{ffn_layer_forward.1} parent=5 // pred_region
        %s4558 = ssub.s32 %s17, 2
        // Predicated region
        $region107: #{ffn_layer_forward.1} parent=105 // pred_check
          %p4559 = pneg %p198
        $region108: #{ffn_layer_forward.1} parent=105 // pred_check_branch
          %4561 = sbr.rel (%p4559) target = $region110
        $region109: #{ffn_layer_forward.1} parent=105 // pred_region
          %s4562 = sand.u32 %s183, 1
          %s4563 = sand.u32 %s183, 1
          %s4564 = smul.addr %s4563, 208
          %s4565 = scalar_lea.vmem [#allocation12], %s4564
        $region110: #{ffn_layer_forward.1} parent=105 // pred_fallthru
          _
      $region106: #{ffn_layer_forward.1} parent=5 // pred_fallthru
        _
    $region6: #{ffn_layer_forward.1} parent=1 // loop_footer
      %s21 = sadd.s32 1, %s17
    $region7: #{ffn_layer_forward.1} parent=1 // loop_footer_branch
      %16 = sbr.rel target = $region3
    $region8: #{ffn_layer_forward.1} parent=1 // loop_exit
      _
    %4566 = vsyncpa [#allocation3], 1
    %s4567 = scalar_lea.sflag [#allocation3], 1
    %4568 = vsyncpa %s4567, 1
    %4569 = vsyncpa [#allocation5], 1
    %4570 = vsyncpa [#allocation8], 1
    %4571 = vsyncpa [#allocation11], 1

// kernel: ffn_layer_forward.1
$region0: #{ffn_layer_forward.1}
  #allocation0 [shape = 'u32[]', space=smem, size = 0x4, offset = 0x4, fixed_abs, tag = 'smem constant byte address 0x4 - core index']
  #allocation1 [shape = 'u32[144,128]{1,0:T(1,128)}', space=vmem, size = 0x12000, scoped, tag = 'internal scratch']
  %s0 = inlined_call_operand.vmem [shape: f32[200,256], index: 0, kind: input, shape index: {}]
  %s1 = inlined_call_operand.hbm [shape: f32[256,2048], index: 1, kind: input, shape index: {}]
  %s2 = inlined_call_operand.hbm [shape: f32[1,2048], index: 2, kind: input, shape index: {}]
  %s3 = inlined_call_operand.hbm [shape: f32[2048,256], index: 3, kind: input, shape index: {}]
  %s4 = inlined_call_operand.hbm [shape: f32[1,256], index: 4, kind: input, shape index: {}]
  %s5 = inlined_call_operand.hbm [shape: f32[1,256], index: 5, kind: input, shape index: {}]
  %s6 = inlined_call_operand.hbm [shape: f32[1,256], index: 6, kind: input, shape index: {}]
  %s7 = inlined_call_operand.vmem [shape: f32[200,256], index: 7, kind: output, shape index: {}]
  %s8 = sld [smem:[#allocation0]]
  $region111: #{ffn_layer_forward.1} parent=0
    _
  %s10 = ssub.s32 1, %s8
  %s11 = scalar_select 0, %s10, %s8
  $region1: #{ffn_layer_forward.1} parent=0
    #allocation2 [shape = 'u8[2097152]{0}', space=vmem, size = 0x200000, scoped, tag = 'input window, operand 1, single buffered']
    #allocation3 [shape = 's32[2]{0}', space=sflag, size = 0x8, scoped, tag = 'scoped memory for ffn_layer_forward.1']
    #allocation4 [shape = 'u8[8192]{0}', space=vmem, size = 0x2000, scoped, tag = 'input window, operand 2, single buffered']
    #allocation5 [shape = 's32[1]{0}', space=sflag, size = 0x4, scoped, tag = 'scoped memory for ffn_layer_forward.1']
    #allocation6 [shape = 'u8[2097152]{0}', space=vmem, size = 0x200000, scoped, tag = 'input window, operand 3, single buffered']
    #allocation7 [shape = 'u8[1024]{0}', space=vmem, size = 0x400, scoped, tag = 'input window, operand 4, single buffered']
    #allocation8 [shape = 's32[1]{0}', space=sflag, size = 0x4, scoped, tag = 'scoped memory for ffn_layer_forward.1']
    #allocation9 [shape = 'u8[1024]{0}', space=vmem, size = 0x400, scoped, tag = 'input window, operand 5, single buffered']
    #allocation10 [shape = 'u8[1024]{0}', space=vmem, size = 0x400, scoped, tag = 'input window, operand 6, single buffered']
    #allocation11 [shape = 's32[1]{0}', space=sflag, size = 0x4, scoped, tag = 'scoped memory for ffn_layer_forward.1']
    #allocation12 [shape = 'u8[212992]{0}', space=vmem, size = 0x34000, scoped, tag = 'output window, operand 0']
    %12 = vsyncpa [#allocation3], 0
    %13 = vsyncpa [#allocation5], 0
    %14 = vsyncpa [#allocation8], 0
    %15 = vsyncpa [#allocation11], 0
    loop: start=0, step=1, limit=4
    $region2: #{ffn_layer_forward.1} parent=1 // loop_pre_header
      _
    $region3: #{ffn_layer_forward.1} parent=1 // loop_header
      %s17 = sphi 0, %s21
      %p18 = scmp.ge.s32.totalorder %s17, 4
      %s27 = sphi 0, %s29
      %s30 = sphi 0, %s27
      %s31 = sphi 0, %s30
      %s47 = sphi 0, %s31
      %s51 = sphi 0, %s51
      %s53 = sphi 0, %s51
      %s54 = sphi 0, %s53
      %s68 = sphi 0, %s54
      %s72 = sphi 0, %s72
      %s74 = sphi 0, %s72
      %s75 = sphi 0, %s74
      %s89 = sphi 0, %s75
      %s93 = sphi 0, %s93
      %s95 = sphi 0, %s93
      %s96 = sphi 0, %s95
      %s110 = sphi 0, %s96
      %s114 = sphi 0, %s114
      %s116 = sphi 0, %s114
      %s117 = sphi 0, %s116
      %s131 = sphi 0, %s117
      %s135 = sphi 0, %s135
      %s137 = sphi 0, %s135
      %s138 = sphi 0, %s137
      %s152 = sphi 0, %s138
      %s156 = sphi 0, %s156
      %s158 = sphi 0, %s156
      %s159 = sphi 0, %s158
      %s173 = sphi 0, %s159
      %s179 = sphi 0, %s181
      %s182 = sphi 0, %s179
      %s183 = sphi 0, %s182
      %s199 = sphi 0, %s183
    $region4: #{ffn_layer_forward.1} parent=1 // loop_header_branch
      %20 = sbr.rel (%p18) target = $region8
    $region5: #{ffn_layer_forward.1} parent=1 // loop_body
      %s22 = ssub.s32 %s17, 1
      %s23 = ssub.s32 %s17, 2
      %s24 = sadd.s32 %s17, 1
      %s25 = ssub.s32 %s17, %s24
      %p26 = scmp.eq.s32.totalorder %s25, 0
      %s28 = sadd.s32 %s27, 1
      %s29 = scalar_select %p26, %s27, %s28
      %p32 = pneg %p26
      %p33 = scmp.eq.s32.totalorder %s17, 1
      %p34 = por %p32, %p33
      %p35 = scmp.ne.s32.totalorder %s27, %s30
      %p36 = scmp.eq.s32.totalorder %s17, 0
      %p37 = por %p35, %p36
      %p38 = scmp.ne.s32.totalorder %s27, %s30
      %p39 = scmp.eq.s32.totalorder %s22, 1
      %p40 = por %p38, %p39
      %p41 = scmp.ne.s32.totalorder %s30, %s31
      %p42 = scmp.eq.s32.totalorder %s22, 0
      %p43 = por %p41, %p42
      %p44 = scmp.ne.s32.totalorder %s30, %s31
      %p45 = scmp.eq.s32.totalorder %s23, 1
      %p46 = por %p44, %p45
      %p48 = scmp.ne.s32.totalorder %s31, %s47
      %p49 = scmp.eq.s32.totalorder %s23, 0
      %p50 = por %p48, %p49
      %s52 = sadd.s32 %s51, 1
      %p55 = scmp.eq.s32.totalorder %s17, 1
      %p56 = scmp.ne.s32.totalorder %s51, %s53
      %p57 = scmp.eq.s32.totalorder %s17, 0
      %p58 = por %p56, %p57
      %p59 = scmp.ne.s32.totalorder %s51, %s53
      %p60 = scmp.eq.s32.totalorder %s22, 1
      %p61 = por %p59, %p60
      %p62 = scmp.ne.s32.totalorder %s53, %s54
      %p63 = scmp.eq.s32.totalorder %s22, 0
      %p64 = por %p62, %p63
      %p65 = scmp.ne.s32.totalorder %s53, %s54
      %p66 = scmp.eq.s32.totalorder %s23, 1
      %p67 = por %p65, %p66
      %p69 = scmp.ne.s32.totalorder %s54, %s68
      %p70 = scmp.eq.s32.totalorder %s23, 0
      %p71 = por %p69, %p70
      %s73 = sadd.s32 %s72, 1
      %p76 = scmp.eq.s32.totalorder %s17, 1
      %p77 = scmp.ne.s32.totalorder %s72, %s74
      %p78 = scmp.eq.s32.totalorder %s17, 0
      %p79 = por %p77, %p78
      %p80 = scmp.ne.s32.totalorder %s72, %s74
      %p81 = scmp.eq.s32.totalorder %s22, 1
      %p82 = por %p80, %p81
      %p83 = scmp.ne.s32.totalorder %s74, %s75
      %p84 = scmp.eq.s32.totalorder %s22, 0
      %p85 = por %p83, %p84
      %p86 = scmp.ne.s32.totalorder %s74, %s75
      %p87 = scmp.eq.s32.totalorder %s23, 1
      %p88 = por %p86, %p87
      %p90 = scmp.ne.s32.totalorder %s75, %s89
      %p91 = scmp.eq.s32.totalorder %s23, 0
      %p92 = por %p90, %p91
      %s94 = sadd.s32 %s93, 1
      %p97 = scmp.eq.s32.totalorder %s17, 1
      %p98 = scmp.ne.s32.totalorder %s93, %s95
      %p99 = scmp.eq.s32.totalorder %s17, 0
      %p100 = por %p98, %p99
      %p101 = scmp.ne.s32.totalorder %s93, %s95
      %p102 = scmp.eq.s32.totalorder %s22, 1
      %p103 = por %p101, %p102
      %p104 = scmp.ne.s32.totalorder %s95, %s96
      %p105 = scmp.eq.s32.totalorder %s22, 0
      %p106 = por %p104, %p105
      %p107 = scmp.ne.s32.totalorder %s95, %s96
      %p108 = scmp.eq.s32.totalorder %s23, 1
      %p109 = por %p107, %p108
      %p111 = scmp.ne.s32.totalorder %s96, %s110
      %p112 = scmp.eq.s32.totalorder %s23, 0
      %p113 = por %p111, %p112
      %s115 = sadd.s32 %s114, 1
      %p118 = scmp.eq.s32.totalorder %s17, 1
      %p119 = scmp.ne.s32.totalorder %s114, %s116
      %p120 = scmp.eq.s32.totalorder %s17, 0
      %p121 = por %p119, %p120
      %p122 = scmp.ne.s32.totalorder %s114, %s116
      %p123 = scmp.eq.s32.totalorder %s22, 1
      %p124 = por %p122, %p123
      %p125 = scmp.ne.s32.totalorder %s116, %s117
      %p126 = scmp.eq.s32.totalorder %s22, 0
      %p127 = por %p125, %p126
      %p128 = scmp.ne.s32.totalorder %s116, %s117
      %p129 = scmp.eq.s32.totalorder %s23, 1
      %p130 = por %p128, %p129
      %p132 = scmp.ne.s32.totalorder %s117, %s131
      %p133 = scmp.eq.s32.totalorder %s23, 0
      %p134 = por %p132, %p133
      %s136 = sadd.s32 %s135, 1
      %p139 = scmp.eq.s32.totalorder %s17, 1
      %p140 = scmp.ne.s32.totalorder %s135, %s137
      %p141 = scmp.eq.s32.totalorder %s17, 0
      %p142 = por %p140, %p141
      %p143 = scmp.ne.s32.totalorder %s135, %s137
      %p144 = scmp.eq.s32.totalorder %s22, 1
      %p145 = por %p143, %p144
      %p146 = scmp.ne.s32.totalorder %s137, %s138
      %p147 = scmp.eq.s32.totalorder %s22, 0
      %p148 = por %p146, %p147
      %p149 = scmp.ne.s32.totalorder %s137, %s138
      %p150 = scmp.eq.s32.totalorder %s23, 1
      %p151 = por %p149, %p150
      %p153 = scmp.ne.s32.totalorder %s138, %s152
      %p154 = scmp.eq.s32.totalorder %s23, 0
      %p155 = por %p153, %p154
      %s157 = sadd.s32 %s156, 1
      %p160 = scmp.eq.s32.totalorder %s17, 1
      %p161 = scmp.ne.s32.totalorder %s156, %s158
      %p162 = scmp.eq.s32.totalorder %s17, 0
      %p163 = por %p161, %p162
      %p164 = scmp.ne.s32.totalorder %s156, %s158
      %p165 = scmp.eq.s32.totalorder %s22, 1
      %p166 = por %p164, %p165
      %p167 = scmp.ne.s32.totalorder %s158, %s159
      %p168 = scmp.eq.s32.totalorder %s22, 0
      %p169 = por %p167, %p168
      %p170 = scmp.ne.s32.totalorder %s158, %s159
      %p171 = scmp.eq.s32.totalorder %s23, 1
      %p172 = por %p170, %p171
      %p174 = scmp.ne.s32.totalorder %s159, %s173
      %p175 = scmp.eq.s32.totalorder %s23, 0
      %p176 = por %p174, %p175
      %s177 = ssub.s32 %s17, %s24
      %p178 = scmp.eq.s32.totalorder %s177, 0
      %s180 = sadd.s32 %s179, 1
      %s181 = scalar_select %p178, %s179, %s180
      %p184 = pneg %p178
      %p185 = scmp.eq.s32.totalorder %s17, 1
      %p186 = por %p184, %p185
      %p187 = scmp.ne.s32.totalorder %s179, %s182
      %p188 = scmp.eq.s32.totalorder %s17, 0
      %p189 = por %p187, %p188
      %p190 = scmp.ne.s32.totalorder %s179, %s182
      %p191 = scmp.eq.s32.totalorder %s22, 1
      %p192 = por %p190, %p191
      %p193 = scmp.ne.s32.totalorder %s182, %s183
      %p194 = scmp.eq.s32.totalorder %s22, 0
      %p195 = por %p193, %p194
      %p196 = scmp.ne.s32.totalorder %s182, %s183
      %p197 = scmp.eq.s32.totalorder %s23, 1
      %p198 = por %p196, %p197
      %p200 = scmp.ne.s32.totalorder %s183, %s199
      %p201 = scmp.eq.s32.totalorder %s23, 0
      %p202 = por %p200, %p201
      %p203 = scmp.le.s32.totalorder 1, %s17
      %p204 = scmp.lt.s32.totalorder %s17, 3
      %p205 = pnand %p203, %p204
      %p206 = pneg %p205
      // Predicated region
      $region9: #{ffn_layer_forward.1} parent=5 // pred_check
        _
      $region10: #{ffn_layer_forward.1} parent=5 // pred_check_branch
        %208 = sbr.rel (%p205) target = $region12
      $region11: #{ffn_layer_forward.1} parent=5 // pred_region
        %s209 = ssub.s32 %s17, 1
        // Predicated region
        $region13: #{ffn_layer_forward.1} parent=11 // pred_check
          %p210 = pneg %p64
        $region14: #{ffn_layer_forward.1} parent=11 // pred_check_branch
          %212 = sbr.rel (%p210) target = $region16
        $region15: #{ffn_layer_forward.1} parent=11 // pred_region
          %s214 = ssub.s32 65536, 65536
          %215 = vsyncadd [#allocation3], %s214
          %s216 = sshll.u32 [#allocation2], 4
          %s217 = int_to_ptr.vmem [resolvable:$true] %s216
          %222 = dma.hbm_to_vmem [thread:$0]  %s1, 65536, %s217, [#allocation3], 2048, 2048, 128
        $region16: #{ffn_layer_forward.1} parent=11 // pred_fallthru
          _
        // Predicated region
        $region17: #{ffn_layer_forward.1} parent=11 // pred_check
          %p223 = pneg %p85
        $region18: #{ffn_layer_forward.1} parent=11 // pred_check_branch
          %225 = sbr.rel (%p223) target = $region20
        $region19: #{ffn_layer_forward.1} parent=11 // pred_region
          %s227 = ssub.s32 256, 256
          %228 = vsyncadd [#allocation5], %s227
          %s230 = sshll.u32 [#allocation4], 4
          %s231 = int_to_ptr.vmem [resolvable:$true] %s230
          %233 = dma.hbm_to_vmem [thread:$0]  %s2, 256, %s231, [#allocation5]
        $region20: #{ffn_layer_forward.1} parent=11 // pred_fallthru
          _
        // Predicated region
        $region21: #{ffn_layer_forward.1} parent=11 // pred_check
          %p234 = pneg %p106
        $region22: #{ffn_layer_forward.1} parent=11 // pred_check_branch
          %236 = sbr.rel (%p234) target = $region24
        $region23: #{ffn_layer_forward.1} parent=11 // pred_region
          %s238 = ssub.s32 65536, 65536
          %239 = vsyncadd [#allocation5], %s238
          %s240 = sshll.u32 [#allocation6], 4
          %s241 = int_to_ptr.vmem [resolvable:$true] %s240
          %246 = dma.hbm_to_vmem [thread:$0]  %s3, 65536, %s241, [#allocation5], 256, 256, 16
        $region24: #{ffn_layer_forward.1} parent=11 // pred_fallthru
          _
        // Predicated region
        $region25: #{ffn_layer_forward.1} parent=11 // pred_check
          %p247 = pneg %p127
        $region26: #{ffn_layer_forward.1} parent=11 // pred_check_branch
          %249 = sbr.rel (%p247) target = $region28
        $region27: #{ffn_layer_forward.1} parent=11 // pred_region
          %s251 = ssub.s32 32, 32
          %252 = vsyncadd [#allocation8], %s251
          %s254 = sshll.u32 [#allocation7], 4
          %s255 = int_to_ptr.vmem [resolvable:$true] %s254
          %257 = dma.hbm_to_vmem [thread:$0]  %s4, 32, %s255, [#allocation8]
        $region28: #{ffn_layer_forward.1} parent=11 // pred_fallthru
          _
        // Predicated region
        $region29: #{ffn_layer_forward.1} parent=11 // pred_check
          %p258 = pneg %p148
        $region30: #{ffn_layer_forward.1} parent=11 // pred_check_branch
          %260 = sbr.rel (%p258) target = $region32
        $region31: #{ffn_layer_forward.1} parent=11 // pred_region
          %s262 = ssub.s32 32, 32
          %263 = vsyncadd [#allocation8], %s262
          %s265 = sshll.u32 [#allocation9], 4
          %s266 = int_to_ptr.vmem [resolvable:$true] %s265
          %268 = dma.hbm_to_vmem [thread:$0]  %s5, 32, %s266, [#allocation8]
        $region32: #{ffn_layer_forward.1} parent=11 // pred_fallthru
          _
        // Predicated region
        $region33: #{ffn_layer_forward.1} parent=11 // pred_check
          %p269 = pneg %p169
        $region34: #{ffn_layer_forward.1} parent=11 // pred_check_branch
          %271 = sbr.rel (%p269) target = $region36
        $region35: #{ffn_layer_forward.1} parent=11 // pred_region
          %s273 = ssub.s32 32, 32
          %274 = vsyncadd [#allocation11], %s273
          %s276 = sshll.u32 [#allocation10], 4
          %s277 = int_to_ptr.vmem [resolvable:$true] %s276
          %279 = dma.hbm_to_vmem [thread:$0]  %s6, 32, %s277, [#allocation11]
        $region36: #{ffn_layer_forward.1} parent=11 // pred_fallthru
          _
      $region12: #{ffn_layer_forward.1} parent=5 // pred_fallthru
        _
      %p280 = scmp.lt.s32.totalorder %s17, 2
      // Predicated region
      $region37: #{ffn_layer_forward.1} parent=5 // pred_check
        %p281 = pneg %p280
      $region38: #{ffn_layer_forward.1} parent=5 // pred_check_branch
        %283 = sbr.rel (%p281) target = $region40
      $region39: #{ffn_layer_forward.1} parent=5 // pred_region
        // Predicated region
        $region41: #{ffn_layer_forward.1} parent=39 // pred_check
          %p284 = pneg %p37
        $region42: #{ffn_layer_forward.1} parent=39 // pred_check_branch
          %286 = sbr.rel (%p284) target = $region44
        $region43: #{ffn_layer_forward.1} parent=39 // pred_region
          %s287 = smul.u32 13, %s17
          %s288 = ssub.s32 25, %s287
          %p289 = scmp.lt.s32.totalorder %s288, 13
          %s290 = scalar_select %p289, %s288, 13
          %s291 = smul.u32 128, %s290
          %s292 = smul.u32 %s291, 2
          %p293 = scmp.lt.s32.totalorder %s287, 24
          %s294 = scalar_select %p293, %s287, 24
          %s295 = smul.addr %s294, 2
          %s296 = smul.addr %s295, 8
          %s297 = scalar_lea.vmem %s0, %s296
          %s298 = smul.u32 13, %s17
          %s299 = ssub.s32 25, %s298
          %p300 = scmp.lt.s32.totalorder %s299, 13
          %s301 = scalar_select %p300, %s299, 13
          %s302 = smul.u32 128, %s301
          %s303 = smul.u32 %s302, 2
        $region44: #{ffn_layer_forward.1} parent=39 // pred_fallthru
          _
      $region40: #{ffn_layer_forward.1} parent=5 // pred_fallthru
        _
      %p304 = scmp.le.s32.totalorder 1, %s17
      %p305 = scmp.lt.s32.totalorder %s17, 3
      %p306 = pnand %p304, %p305
      %p307 = pneg %p306
      // Predicated region
      $region45: #{ffn_layer_forward.1} parent=5 // pred_check
        _
      $region46: #{ffn_layer_forward.1} parent=5 // pred_check_branch
        %309 = sbr.rel (%p306) target = $region48
      $region47: #{ffn_layer_forward.1} parent=5 // pred_region
        %s310 = ssub.s32 %s17, 1
        // Predicated region
        $region49: #{ffn_layer_forward.1} parent=47 // pred_check
          %p311 = pneg %p64
        $region50: #{ffn_layer_forward.1} parent=47 // pred_check_branch
          %313 = sbr.rel (%p311) target = $region52
        $region51: #{ffn_layer_forward.1} parent=47 // pred_region
          %314 = dma.done [#allocation3], 65536
        $region52: #{ffn_layer_forward.1} parent=47 // pred_fallthru
          _
        // Predicated region
        $region53: #{ffn_layer_forward.1} parent=47 // pred_check
          %p315 = pneg %p85
        $region54: #{ffn_layer_forward.1} parent=47 // pred_check_branch
          %317 = sbr.rel (%p315) target = $region56
        $region55: #{ffn_layer_forward.1} parent=47 // pred_region
          %318 = dma.done [#allocation5], 256
        $region56: #{ffn_layer_forward.1} parent=47 // pred_fallthru
          _
        // Predicated region
        $region57: #{ffn_layer_forward.1} parent=47 // pred_check
          %p319 = pneg %p106
        $region58: #{ffn_layer_forward.1} parent=47 // pred_check_branch
          %321 = sbr.rel (%p319) target = $region60
        $region59: #{ffn_layer_forward.1} parent=47 // pred_region
          %322 = dma.done [#allocation5], 65536
        $region60: #{ffn_layer_forward.1} parent=47 // pred_fallthru
          _
        // Predicated region
        $region61: #{ffn_layer_forward.1} parent=47 // pred_check
          %p323 = pneg %p127
        $region62: #{ffn_layer_forward.1} parent=47 // pred_check_branch
          %325 = sbr.rel (%p323) target = $region64
        $region63: #{ffn_layer_forward.1} parent=47 // pred_region
          %326 = dma.done [#allocation8], 32
        $region64: #{ffn_layer_forward.1} parent=47 // pred_fallthru
          _
        // Predicated region
        $region65: #{ffn_layer_forward.1} parent=47 // pred_check
          %p327 = pneg %p148
        $region66: #{ffn_layer_forward.1} parent=47 // pred_check_branch
          %329 = sbr.rel (%p327) target = $region68
        $region67: #{ffn_layer_forward.1} parent=47 // pred_region
          %330 = dma.done [#allocation8], 32
        $region68: #{ffn_layer_forward.1} parent=47 // pred_fallthru
          _
        // Predicated region
        $region69: #{ffn_layer_forward.1} parent=47 // pred_check
          %p331 = pneg %p169
        $region70: #{ffn_layer_forward.1} parent=47 // pred_check_branch
          %333 = sbr.rel (%p331) target = $region72
        $region71: #{ffn_layer_forward.1} parent=47 // pred_region
          %334 = dma.done [#allocation11], 32
        $region72: #{ffn_layer_forward.1} parent=47 // pred_fallthru
          _
        %s335 = smul.u32 13, %s22
        %s336 = ssub.s32 25, %s335
        %p337 = scmp.lt.s32.totalorder %s336, 13
        %s338 = scalar_select %p337, %s336, 13
        %s339 = smul.u32 128, %s338
        %s340 = smul.u32 %s339, 2
        %p341 = scmp.lt.s32.totalorder %s335, 24
        %s342 = scalar_select %p341, %s335, 24
        %s343 = smul.addr %s342, 2
        %s344 = smul.addr %s343, 8
        %s345 = scalar_lea.vmem %s0, %s344
        %p346 = pneg %p43
        %p347 = pneg %p40
        %p348 = pneg %p64
        %p349 = pneg %p61
        %p350 = pneg %p85
        %p351 = pneg %p82
        %p352 = pneg %p106
        %p353 = pneg %p103
        %p354 = pneg %p127
        %p355 = pneg %p124
        %p356 = pneg %p148
        %p357 = pneg %p145
        %p358 = pneg %p169
        %p359 = pneg %p166
        %p360 = pneg %p195
        %p361 = pneg %p192
        %s362 = sand.u32 %s182, 1
        %s363 = sand.u32 %s182, 1
        %s364 = smul.addr %s363, 208
        %s365 = scalar_lea.vmem [#allocation12], %s364
        %s366 = smul.u32 13, %s22
        %s367 = ssub.s32 25, %s366
        %p368 = scmp.lt.s32.totalorder %s367, 13
        %s369 = scalar_select %p368, %s367, 13
        %s370 = smul.u32 128, %s369
        %s371 = smul.u32 %s370, 2
        %p372 = scmp.lt.s32.totalorder %s366, 24
        %s373 = scalar_select %p372, %s366, 24
        %s374 = smul.addr %s373, 2
        %s375 = smul.addr %s374, 8
        %s376 = scalar_lea.vmem %s0, %s375
        %s377 = smul.u32 13, %s22
        %s378 = ssub.s32 25, %s377
        %p379 = scmp.lt.s32.totalorder %s378, 13
        %s380 = scalar_select %p379, %s378, 13
        %s381 = smul.u32 128, %s380
        %s382 = smul.u32 %s381, 2
        %s383 = smul.u32 13, %s22
        %s384 = ssub.s32 25, %s383
        %p385 = scmp.lt.s32.totalorder %s384, 13
        %s386 = scalar_select %p385, %s384, 13
        %s387 = smul.u32 128, %s386
        %s388 = smul.u32 %s387, 2
        %v389 = vld [vmem:[%s376] sm:$0xff]
        %v390 = vld [vmem:[%s376 + $0x8] sm:$0xff]
        %v391 = vld [vmem:[%s376 + $0x10] sm:$0xff]
        %v392 = vld [vmem:[%s376 + $0x18] sm:$0xff]
        %v393 = vld [vmem:[%s376 + $0x20] sm:$0xff]
        %v394 = vld [vmem:[%s376 + $0x28] sm:$0xff]
        %v395 = vld [vmem:[%s376 + $0x30] sm:$0xff]
        %v396 = vld [vmem:[%s376 + $0x38] sm:$0xff]
        %v397 = vld [vmem:[%s376 + $0x40] sm:$0xff]
        %v398 = vld [vmem:[%s376 + $0x48] sm:$0xff]
        %v399 = vld [vmem:[%s376 + $0x50] sm:$0xff]
        %v400 = vld [vmem:[%s376 + $0x58] sm:$0xff]
        %v401 = vld [vmem:[%s376 + $0x60] sm:$0xff]
        %v402 = vld [vmem:[%s376 + $0x68] sm:$0xff]
        %v403 = vld [vmem:[%s376 + $0x70] sm:$0xff]
        %v404 = vld [vmem:[%s376 + $0x78] sm:$0xff]
        %v405 = vld [vmem:[%s376 + $0x80] sm:$0xff]
        %v406 = vld [vmem:[%s376 + $0x88] sm:$0xff]
        %v407 = vld [vmem:[%s376 + $0x90] sm:$0xff]
        %v408 = vld [vmem:[%s376 + $0x98] sm:$0xff]
        %v409 = vld [vmem:[%s376 + $0xa0] sm:$0xff]
        %v410 = vld [vmem:[%s376 + $0xa8] sm:$0xff]
        %v411 = vld [vmem:[%s376 + $0xb0] sm:$0xff]
        %v412 = vld [vmem:[%s376 + $0xb8] sm:$0xff]
        %v413 = vld [vmem:[%s376 + $0xc0] sm:$0xff]
        %v414 = vld [vmem:[%s376 + $0xc8] sm:$0xff]
        %v415 = vld [vmem:[#allocation2] sm:$0xff]
        %v416 = vld [vmem:[#allocation2 + $0x8] sm:$0xff]
        %v417 = vld [vmem:[#allocation2 + $0x10] sm:$0xff]
        %v418 = vld [vmem:[#allocation2 + $0x18] sm:$0xff]
        %v419 = vld [vmem:[#allocation2 + $0x20] sm:$0xff]
        %v420 = vld [vmem:[#allocation2 + $0x28] sm:$0xff]
        %v421 = vld [vmem:[#allocation2 + $0x30] sm:$0xff]
        %v422 = vld [vmem:[#allocation2 + $0x38] sm:$0xff]
        %v423 = vld [vmem:[#allocation2 + $0x40] sm:$0xff]
        %v424 = vld [vmem:[#allocation2 + $0x48] sm:$0xff]
        %v425 = vld [vmem:[#allocation2 + $0x50] sm:$0xff]
        %v426 = vld [vmem:[#allocation2 + $0x58] sm:$0xff]
        %v427 = vld [vmem:[#allocation2 + $0x60] sm:$0xff]
        %v428 = vld [vmem:[#allocation2 + $0x68] sm:$0xff]
        %v429 = vld [vmem:[#allocation2 + $0x70] sm:$0xff]
        %v430 = vld [vmem:[#allocation2 + $0x78] sm:$0xff]
        %v431 = vld [vmem:[#allocation2 + $0x80] sm:$0xff]
        %v432 = vld [vmem:[#allocation2 + $0x88] sm:$0xff]
        %v433 = vld [vmem:[#allocation2 + $0x90] sm:$0xff]
        %v434 = vld [vmem:[#allocation2 + $0x98] sm:$0xff]
        %v435 = vld [vmem:[#allocation2 + $0xa0] sm:$0xff]
        %v436 = vld [vmem:[#allocation2 + $0xa8] sm:$0xff]
        %v437 = vld [vmem:[#allocation2 + $0xb0] sm:$0xff]
        %v438 = vld [vmem:[#allocation2 + $0xb8] sm:$0xff]
        %v439 = vld [vmem:[#allocation2 + $0xc0] sm:$0xff]
        %v440 = vld [vmem:[#allocation2 + $0xc8] sm:$0xff]
        %v441 = vld [vmem:[#allocation2 + $0xd0] sm:$0xff]
        %v442 = vld [vmem:[#allocation2 + $0xd8] sm:$0xff]
        %v443 = vld [vmem:[#allocation2 + $0xe0] sm:$0xff]
        %v444 = vld [vmem:[#allocation2 + $0xe8] sm:$0xff]
        %v445 = vld [vmem:[#allocation2 + $0xf0] sm:$0xff]
        %v446 = vld [vmem:[#allocation2 + $0xf8] sm:$0xff]
        %v447 = vld [vmem:[#allocation2 + $0x100] sm:$0xff]
        %v448 = vld [vmem:[#allocation2 + $0x108] sm:$0xff]
        %v449 = vld [vmem:[#allocation2 + $0x110] sm:$0xff]
        %v450 = vld [vmem:[#allocation2 + $0x118] sm:$0xff]
        %v451 = vld [vmem:[#allocation2 + $0x120] sm:$0xff]
        %v452 = vld [vmem:[#allocation2 + $0x128] sm:$0xff]
        %v453 = vld [vmem:[#allocation2 + $0x130] sm:$0xff]
        %v454 = vld [vmem:[#allocation2 + $0x138] sm:$0xff]
        %v455 = vld [vmem:[#allocation2 + $0x140] sm:$0xff]
        %v456 = vld [vmem:[#allocation2 + $0x148] sm:$0xff]
        %v457 = vld [vmem:[#allocation2 + $0x150] sm:$0xff]
        %v458 = vld [vmem:[#allocation2 + $0x158] sm:$0xff]
        %v459 = vld [vmem:[#allocation2 + $0x160] sm:$0xff]
        %v460 = vld [vmem:[#allocation2 + $0x168] sm:$0xff]
        %v461 = vld [vmem:[#allocation2 + $0x170] sm:$0xff]
        %v462 = vld [vmem:[#allocation2 + $0x178] sm:$0xff]
        %v463 = vld [vmem:[#allocation2 + $0x180] sm:$0xff]
        %v464 = vld [vmem:[#allocation2 + $0x188] sm:$0xff]
        %v465 = vld [vmem:[#allocation2 + $0x190] sm:$0xff]
        %v466 = vld [vmem:[#allocation2 + $0x198] sm:$0xff]
        %v467 = vld [vmem:[#allocation2 + $0x1a0] sm:$0xff]
        %v468 = vld [vmem:[#allocation2 + $0x1a8] sm:$0xff]
        %v469 = vld [vmem:[#allocation2 + $0x1b0] sm:$0xff]
        %v470 = vld [vmem:[#allocation2 + $0x1b8] sm:$0xff]
        %v471 = vld [vmem:[#allocation2 + $0x1c0] sm:$0xff]
        %v472 = vld [vmem:[#allocation2 + $0x1c8] sm:$0xff]
        %v473 = vld [vmem:[#allocation2 + $0x1d0] sm:$0xff]
        %v474 = vld [vmem:[#allocation2 + $0x1d8] sm:$0xff]
        %v475 = vld [vmem:[#allocation2 + $0x1e0] sm:$0xff]
        %v476 = vld [vmem:[#allocation2 + $0x1e8] sm:$0xff]
        %v477 = vld [vmem:[#allocation2 + $0x1f0] sm:$0xff]
        %v478 = vld [vmem:[#allocation2 + $0x1f8] sm:$0xff]
        %v479 = vld [vmem:[#allocation2 + $0x200] sm:$0xff]
        %v480 = vld [vmem:[#allocation2 + $0x208] sm:$0xff]
        %v481 = vld [vmem:[#allocation2 + $0x210] sm:$0xff]
        %v482 = vld [vmem:[#allocation2 + $0x218] sm:$0xff]
        %v483 = vld [vmem:[#allocation2 + $0x220] sm:$0xff]
        %v484 = vld [vmem:[#allocation2 + $0x228] sm:$0xff]
        %v485 = vld [vmem:[#allocation2 + $0x230] sm:$0xff]
        %v486 = vld [vmem:[#allocation2 + $0x238] sm:$0xff]
        %v487 = vld [vmem:[#allocation2 + $0x240] sm:$0xff]
        %v488 = vld [vmem:[#allocation2 + $0x248] sm:$0xff]
        %v489 = vld [vmem:[#allocation2 + $0x250] sm:$0xff]
        %v490 = vld [vmem:[#allocation2 + $0x258] sm:$0xff]
        %v491 = vld [vmem:[#allocation2 + $0x260] sm:$0xff]
        %v492 = vld [vmem:[#allocation2 + $0x268] sm:$0xff]
        %v493 = vld [vmem:[#allocation2 + $0x270] sm:$0xff]
        %v494 = vld [vmem:[#allocation2 + $0x278] sm:$0xff]
        %v495 = vld [vmem:[#allocation2 + $0x280] sm:$0xff]
        %v496 = vld [vmem:[#allocation2 + $0x288] sm:$0xff]
        %v497 = vld [vmem:[#allocation2 + $0x290] sm:$0xff]
        %v498 = vld [vmem:[#allocation2 + $0x298] sm:$0xff]
        %v499 = vld [vmem:[#allocation2 + $0x2a0] sm:$0xff]
        %v500 = vld [vmem:[#allocation2 + $0x2a8] sm:$0xff]
        %v501 = vld [vmem:[#allocation2 + $0x2b0] sm:$0xff]
        %v502 = vld [vmem:[#allocation2 + $0x2b8] sm:$0xff]
        %v503 = vld [vmem:[#allocation2 + $0x2c0] sm:$0xff]
        %v504 = vld [vmem:[#allocation2 + $0x2c8] sm:$0xff]
        %v505 = vld [vmem:[#allocation2 + $0x2d0] sm:$0xff]
        %v506 = vld [vmem:[#allocation2 + $0x2d8] sm:$0xff]
        %v507 = vld [vmem:[#allocation2 + $0x2e0] sm:$0xff]
        %v508 = vld [vmem:[#allocation2 + $0x2e8] sm:$0xff]
        %v509 = vld [vmem:[#allocation2 + $0x2f0] sm:$0xff]
        %v510 = vld [vmem:[#allocation2 + $0x2f8] sm:$0xff]
        %v511 = vld [vmem:[#allocation2 + $0x300] sm:$0xff]
        %v512 = vld [vmem:[#allocation2 + $0x308] sm:$0xff]
        %v513 = vld [vmem:[#allocation2 + $0x310] sm:$0xff]
        %v514 = vld [vmem:[#allocation2 + $0x318] sm:$0xff]
        %v515 = vld [vmem:[#allocation2 + $0x320] sm:$0xff]
        %v516 = vld [vmem:[#allocation2 + $0x328] sm:$0xff]
        %v517 = vld [vmem:[#allocation2 + $0x330] sm:$0xff]
        %v518 = vld [vmem:[#allocation2 + $0x338] sm:$0xff]
        %v519 = vld [vmem:[#allocation2 + $0x340] sm:$0xff]
        %v520 = vld [vmem:[#allocation2 + $0x348] sm:$0xff]
        %v521 = vld [vmem:[#allocation2 + $0x350] sm:$0xff]
        %v522 = vld [vmem:[#allocation2 + $0x358] sm:$0xff]
        %v523 = vld [vmem:[#allocation2 + $0x360] sm:$0xff]
        %v524 = vld [vmem:[#allocation2 + $0x368] sm:$0xff]
        %v525 = vld [vmem:[#allocation2 + $0x370] sm:$0xff]
        %v526 = vld [vmem:[#allocation2 + $0x378] sm:$0xff]
        %v527 = vld [vmem:[#allocation2 + $0x380] sm:$0xff]
        %v528 = vld [vmem:[#allocation2 + $0x388] sm:$0xff]
        %v529 = vld [vmem:[#allocation2 + $0x390] sm:$0xff]
        %v530 = vld [vmem:[#allocation2 + $0x398] sm:$0xff]
        %v531 = vld [vmem:[#allocation2 + $0x3a0] sm:$0xff]
        %v532 = vld [vmem:[#allocation2 + $0x3a8] sm:$0xff]
        %v533 = vld [vmem:[#allocation2 + $0x3b0] sm:$0xff]
        %v534 = vld [vmem:[#allocation2 + $0x3b8] sm:$0xff]
        %v535 = vld [vmem:[#allocation2 + $0x3c0] sm:$0xff]
        %v536 = vld [vmem:[#allocation2 + $0x3c8] sm:$0xff]
        %v537 = vld [vmem:[#allocation2 + $0x3d0] sm:$0xff]
        %v538 = vld [vmem:[#allocation2 + $0x3d8] sm:$0xff]
        %v539 = vld [vmem:[#allocation2 + $0x3e0] sm:$0xff]
        %v540 = vld [vmem:[#allocation2 + $0x3e8] sm:$0xff]
        %v541 = vld [vmem:[#allocation2 + $0x3f0] sm:$0xff]
        %v542 = vld [vmem:[#allocation2 + $0x3f8] sm:$0xff]
        %v543 = vld [vmem:[#allocation2 + $0x400] sm:$0xff]
        %v544 = vld [vmem:[#allocation2 + $0x408] sm:$0xff]
        %v545 = vld [vmem:[#allocation2 + $0x410] sm:$0xff]
        %v546 = vld [vmem:[#allocation2 + $0x418] sm:$0xff]
        %v547 = vld [vmem:[#allocation2 + $0x420] sm:$0xff]
        %v548 = vld [vmem:[#allocation2 + $0x428] sm:$0xff]
        %v549 = vld [vmem:[#allocation2 + $0x430] sm:$0xff]
        %v550 = vld [vmem:[#allocation2 + $0x438] sm:$0xff]
        %v551 = vld [vmem:[#allocation2 + $0x440] sm:$0xff]
        %v552 = vld [vmem:[#allocation2 + $0x448] sm:$0xff]
        %v553 = vld [vmem:[#allocation2 + $0x450] sm:$0xff]
        %v554 = vld [vmem:[#allocation2 + $0x458] sm:$0xff]
        %v555 = vld [vmem:[#allocation2 + $0x460] sm:$0xff]
        %v556 = vld [vmem:[#allocation2 + $0x468] sm:$0xff]
        %v557 = vld [vmem:[#allocation2 + $0x470] sm:$0xff]
        %v558 = vld [vmem:[#allocation2 + $0x478] sm:$0xff]
        %v559 = vld [vmem:[#allocation2 + $0x480] sm:$0xff]
        %v560 = vld [vmem:[#allocation2 + $0x488] sm:$0xff]
        %v561 = vld [vmem:[#allocation2 + $0x490] sm:$0xff]
        %v562 = vld [vmem:[#allocation2 + $0x498] sm:$0xff]
        %v563 = vld [vmem:[#allocation2 + $0x4a0] sm:$0xff]
        %v564 = vld [vmem:[#allocation2 + $0x4a8] sm:$0xff]
        %v565 = vld [vmem:[#allocation2 + $0x4b0] sm:$0xff]
        %v566 = vld [vmem:[#allocation2 + $0x4b8] sm:$0xff]
        %v567 = vld [vmem:[#allocation2 + $0x4c0] sm:$0xff]
        %v568 = vld [vmem:[#allocation2 + $0x4c8] sm:$0xff]
        %v569 = vld [vmem:[#allocation2 + $0x4d0] sm:$0xff]
        %v570 = vld [vmem:[#allocation2 + $0x4d8] sm:$0xff]
        %v571 = vld [vmem:[#allocation2 + $0x4e0] sm:$0xff]
        %v572 = vld [vmem:[#allocation2 + $0x4e8] sm:$0xff]
        %v573 = vld [vmem:[#allocation2 + $0x4f0] sm:$0xff]
        %v574 = vld [vmem:[#allocation2 + $0x4f8] sm:$0xff]
        %v575 = vld [vmem:[#allocation2 + $0x500] sm:$0xff]
        %v576 = vld [vmem:[#allocation2 + $0x508] sm:$0xff]
        %v577 = vld [vmem:[#allocation2 + $0x510] sm:$0xff]
        %v578 = vld [vmem:[#allocation2 + $0x518] sm:$0xff]
        %v579 = vld [vmem:[#allocation2 + $0x520] sm:$0xff]
        %v580 = vld [vmem:[#allocation2 + $0x528] sm:$0xff]
        %v581 = vld [vmem:[#allocation2 + $0x530] sm:$0xff]
        %v582 = vld [vmem:[#allocation2 + $0x538] sm:$0xff]
        %v583 = vld [vmem:[#allocation2 + $0x540] sm:$0xff]
        %v584 = vld [vmem:[#allocation2 + $0x548] sm:$0xff]
        %v585 = vld [vmem:[#allocation2 + $0x550] sm:$0xff]
        %v586 = vld [vmem:[#allocation2 + $0x558] sm:$0xff]
        %v587 = vld [vmem:[#allocation2 + $0x560] sm:$0xff]
        %v588 = vld [vmem:[#allocation2 + $0x568] sm:$0xff]
        %v589 = vld [vmem:[#allocation2 + $0x570] sm:$0xff]
        %v590 = vld [vmem:[#allocation2 + $0x578] sm:$0xff]
        %v591 = vld [vmem:[#allocation2 + $0x580] sm:$0xff]
        %v592 = vld [vmem:[#allocation2 + $0x588] sm:$0xff]
        %v593 = vld [vmem:[#allocation2 + $0x590] sm:$0xff]
        %v594 = vld [vmem:[#allocation2 + $0x598] sm:$0xff]
        %v595 = vld [vmem:[#allocation2 + $0x5a0] sm:$0xff]
        %v596 = vld [vmem:[#allocation2 + $0x5a8] sm:$0xff]
        %v597 = vld [vmem:[#allocation2 + $0x5b0] sm:$0xff]
        %v598 = vld [vmem:[#allocation2 + $0x5b8] sm:$0xff]
        %v599 = vld [vmem:[#allocation2 + $0x5c0] sm:$0xff]
        %v600 = vld [vmem:[#allocation2 + $0x5c8] sm:$0xff]
        %v601 = vld [vmem:[#allocation2 + $0x5d0] sm:$0xff]
        %v602 = vld [vmem:[#allocation2 + $0x5d8] sm:$0xff]
        %v603 = vld [vmem:[#allocation2 + $0x5e0] sm:$0xff]
        %v604 = vld [vmem:[#allocation2 + $0x5e8] sm:$0xff]
        %v605 = vld [vmem:[#allocation2 + $0x5f0] sm:$0xff]
        %v606 = vld [vmem:[#allocation2 + $0x5f8] sm:$0xff]
        %v607 = vld [vmem:[#allocation2 + $0x600] sm:$0xff]
        %v608 = vld [vmem:[#allocation2 + $0x608] sm:$0xff]
        %v609 = vld [vmem:[#allocation2 + $0x610] sm:$0xff]
        %v610 = vld [vmem:[#allocation2 + $0x618] sm:$0xff]
        %v611 = vld [vmem:[#allocation2 + $0x620] sm:$0xff]
        %v612 = vld [vmem:[#allocation2 + $0x628] sm:$0xff]
        %v613 = vld [vmem:[#allocation2 + $0x630] sm:$0xff]
        %v614 = vld [vmem:[#allocation2 + $0x638] sm:$0xff]
        %v615 = vld [vmem:[#allocation2 + $0x640] sm:$0xff]
        %v616 = vld [vmem:[#allocation2 + $0x648] sm:$0xff]
        %v617 = vld [vmem:[#allocation2 + $0x650] sm:$0xff]
        %v618 = vld [vmem:[#allocation2 + $0x658] sm:$0xff]
        %v619 = vld [vmem:[#allocation2 + $0x660] sm:$0xff]
        %v620 = vld [vmem:[#allocation2 + $0x668] sm:$0xff]
        %v621 = vld [vmem:[#allocation2 + $0x670] sm:$0xff]
        %v622 = vld [vmem:[#allocation2 + $0x678] sm:$0xff]
        %v623 = vld [vmem:[#allocation2 + $0x680] sm:$0xff]
        %v624 = vld [vmem:[#allocation2 + $0x688] sm:$0xff]
        %v625 = vld [vmem:[#allocation2 + $0x690] sm:$0xff]
        %v626 = vld [vmem:[#allocation2 + $0x698] sm:$0xff]
        %v627 = vld [vmem:[#allocation2 + $0x6a0] sm:$0xff]
        %v628 = vld [vmem:[#allocation2 + $0x6a8] sm:$0xff]
        %v629 = vld [vmem:[#allocation2 + $0x6b0] sm:$0xff]
        %v630 = vld [vmem:[#allocation2 + $0x6b8] sm:$0xff]
        %v631 = vld [vmem:[#allocation2 + $0x6c0] sm:$0xff]
        %v632 = vld [vmem:[#allocation2 + $0x6c8] sm:$0xff]
        %v633 = vld [vmem:[#allocation2 + $0x6d0] sm:$0xff]
        %v634 = vld [vmem:[#allocation2 + $0x6d8] sm:$0xff]
        %v635 = vld [vmem:[#allocation2 + $0x6e0] sm:$0xff]
        %v636 = vld [vmem:[#allocation2 + $0x6e8] sm:$0xff]
        %v637 = vld [vmem:[#allocation2 + $0x6f0] sm:$0xff]
        %v638 = vld [vmem:[#allocation2 + $0x6f8] sm:$0xff]
        %v639 = vld [vmem:[#allocation2 + $0x700] sm:$0xff]
        %v640 = vld [vmem:[#allocation2 + $0x708] sm:$0xff]
        %v641 = vld [vmem:[#allocation2 + $0x710] sm:$0xff]
        %v642 = vld [vmem:[#allocation2 + $0x718] sm:$0xff]
        %v643 = vld [vmem:[#allocation2 + $0x720] sm:$0xff]
        %v644 = vld [vmem:[#allocation2 + $0x728] sm:$0xff]
        %v645 = vld [vmem:[#allocation2 + $0x730] sm:$0xff]
        %v646 = vld [vmem:[#allocation2 + $0x738] sm:$0xff]
        %v647 = vld [vmem:[#allocation2 + $0x740] sm:$0xff]
        %v648 = vld [vmem:[#allocation2 + $0x748] sm:$0xff]
        %v649 = vld [vmem:[#allocation2 + $0x750] sm:$0xff]
        %v650 = vld [vmem:[#allocation2 + $0x758] sm:$0xff]
        %v651 = vld [vmem:[#allocation2 + $0x760] sm:$0xff]
        %v652 = vld [vmem:[#allocation2 + $0x768] sm:$0xff]
        %v653 = vld [vmem:[#allocation2 + $0x770] sm:$0xff]
        %v654 = vld [vmem:[#allocation2 + $0x778] sm:$0xff]
        %v655 = vld [vmem:[#allocation2 + $0x780] sm:$0xff]
        %v656 = vld [vmem:[#allocation2 + $0x788] sm:$0xff]
        %v657 = vld [vmem:[#allocation2 + $0x790] sm:$0xff]
        %v658 = vld [vmem:[#allocation2 + $0x798] sm:$0xff]
        %v659 = vld [vmem:[#allocation2 + $0x7a0] sm:$0xff]
        %v660 = vld [vmem:[#allocation2 + $0x7a8] sm:$0xff]
        %v661 = vld [vmem:[#allocation2 + $0x7b0] sm:$0xff]
        %v662 = vld [vmem:[#allocation2 + $0x7b8] sm:$0xff]
        %v663 = vld [vmem:[#allocation2 + $0x7c0] sm:$0xff]
        %v664 = vld [vmem:[#allocation2 + $0x7c8] sm:$0xff]
        %v665 = vld [vmem:[#allocation2 + $0x7d0] sm:$0xff]
        %v666 = vld [vmem:[#allocation2 + $0x7d8] sm:$0xff]
        %v667 = vld [vmem:[#allocation2 + $0x7e0] sm:$0xff]
        %v668 = vld [vmem:[#allocation2 + $0x7e8] sm:$0xff]
        %v669 = vld [vmem:[#allocation2 + $0x7f0] sm:$0xff]
        %v670 = vld [vmem:[#allocation2 + $0x7f8] sm:$0xff]
        %v671 = vld [vmem:[#allocation2 + $0x800] sm:$0xff]
        %v672 = vld [vmem:[#allocation2 + $0x808] sm:$0xff]
        %v673 = vld [vmem:[#allocation2 + $0x810] sm:$0xff]
        %v674 = vld [vmem:[#allocation2 + $0x818] sm:$0xff]
        %v675 = vld [vmem:[#allocation2 + $0x820] sm:$0xff]
        %v676 = vld [vmem:[#allocation2 + $0x828] sm:$0xff]
        %v677 = vld [vmem:[#allocation2 + $0x830] sm:$0xff]
        %v678 = vld [vmem:[#allocation2 + $0x838] sm:$0xff]
        %v679 = vld [vmem:[#allocation2 + $0x840] sm:$0xff]
        %v680 = vld [vmem:[#allocation2 + $0x848] sm:$0xff]
        %v681 = vld [vmem:[#allocation2 + $0x850] sm:$0xff]
        %v682 = vld [vmem:[#allocation2 + $0x858] sm:$0xff]
        %v683 = vld [vmem:[#allocation2 + $0x860] sm:$0xff]
        %v684 = vld [vmem:[#allocation2 + $0x868] sm:$0xff]
        %v685 = vld [vmem:[#allocation2 + $0x870] sm:$0xff]
        %v686 = vld [vmem:[#allocation2 + $0x878] sm:$0xff]
        %v687 = vld [vmem:[#allocation2 + $0x880] sm:$0xff]
        %v688 = vld [vmem:[#allocation2 + $0x888] sm:$0xff]
        %v689 = vld [vmem:[#allocation2 + $0x890] sm:$0xff]
        %v690 = vld [vmem:[#allocation2 + $0x898] sm:$0xff]
        %v691 = vld [vmem:[#allocation2 + $0x8a0] sm:$0xff]
        %v692 = vld [vmem:[#allocation2 + $0x8a8] sm:$0xff]
        %v693 = vld [vmem:[#allocation2 + $0x8b0] sm:$0xff]
        %v694 = vld [vmem:[#allocation2 + $0x8b8] sm:$0xff]
        %v695 = vld [vmem:[#allocation2 + $0x8c0] sm:$0xff]
        %v696 = vld [vmem:[#allocation2 + $0x8c8] sm:$0xff]
        %v697 = vld [vmem:[#allocation2 + $0x8d0] sm:$0xff]
        %v698 = vld [vmem:[#allocation2 + $0x8d8] sm:$0xff]
        %v699 = vld [vmem:[#allocation2 + $0x8e0] sm:$0xff]
        %v700 = vld [vmem:[#allocation2 + $0x8e8] sm:$0xff]
        %v701 = vld [vmem:[#allocation2 + $0x8f0] sm:$0xff]
        %v702 = vld [vmem:[#allocation2 + $0x8f8] sm:$0xff]
        %v703 = vld [vmem:[#allocation2 + $0x900] sm:$0xff]
        %v704 = vld [vmem:[#allocation2 + $0x908] sm:$0xff]
        %v705 = vld [vmem:[#allocation2 + $0x910] sm:$0xff]
        %v706 = vld [vmem:[#allocation2 + $0x918] sm:$0xff]
        %v707 = vld [vmem:[#allocation2 + $0x920] sm:$0xff]
        %v708 = vld [vmem:[#allocation2 + $0x928] sm:$0xff]
        %v709 = vld [vmem:[#allocation2 + $0x930] sm:$0xff]
        %v710 = vld [vmem:[#allocation2 + $0x938] sm:$0xff]
        %v711 = vld [vmem:[#allocation2 + $0x940] sm:$0xff]
        %v712 = vld [vmem:[#allocation2 + $0x948] sm:$0xff]
        %v713 = vld [vmem:[#allocation2 + $0x950] sm:$0xff]
        %v714 = vld [vmem:[#allocation2 + $0x958] sm:$0xff]
        %v715 = vld [vmem:[#allocation2 + $0x960] sm:$0xff]
        %v716 = vld [vmem:[#allocation2 + $0x968] sm:$0xff]
        %v717 = vld [vmem:[#allocation2 + $0x970] sm:$0xff]
        %v718 = vld [vmem:[#allocation2 + $0x978] sm:$0xff]
        %v719 = vld [vmem:[#allocation2 + $0x980] sm:$0xff]
        %v720 = vld [vmem:[#allocation2 + $0x988] sm:$0xff]
        %v721 = vld [vmem:[#allocation2 + $0x990] sm:$0xff]
        %v722 = vld [vmem:[#allocation2 + $0x998] sm:$0xff]
        %v723 = vld [vmem:[#allocation2 + $0x9a0] sm:$0xff]
        %v724 = vld [vmem:[#allocation2 + $0x9a8] sm:$0xff]
        %v725 = vld [vmem:[#allocation2 + $0x9b0] sm:$0xff]
        %v726 = vld [vmem:[#allocation2 + $0x9b8] sm:$0xff]
        %v727 = vld [vmem:[#allocation2 + $0x9c0] sm:$0xff]
        %v728 = vld [vmem:[#allocation2 + $0x9c8] sm:$0xff]
        %v729 = vld [vmem:[#allocation2 + $0x9d0] sm:$0xff]
        %v730 = vld [vmem:[#allocation2 + $0x9d8] sm:$0xff]
        %v731 = vld [vmem:[#allocation2 + $0x9e0] sm:$0xff]
        %v732 = vld [vmem:[#allocation2 + $0x9e8] sm:$0xff]
        %v733 = vld [vmem:[#allocation2 + $0x9f0] sm:$0xff]
        %v734 = vld [vmem:[#allocation2 + $0x9f8] sm:$0xff]
        %v735 = vld [vmem:[#allocation2 + $0xa00] sm:$0xff]
        %v736 = vld [vmem:[#allocation2 + $0xa08] sm:$0xff]
        %v737 = vld [vmem:[#allocation2 + $0xa10] sm:$0xff]
        %v738 = vld [vmem:[#allocation2 + $0xa18] sm:$0xff]
        %v739 = vld [vmem:[#allocation2 + $0xa20] sm:$0xff]
        %v740 = vld [vmem:[#allocation2 + $0xa28] sm:$0xff]
        %v741 = vld [vmem:[#allocation2 + $0xa30] sm:$0xff]
        %v742 = vld [vmem:[#allocation2 + $0xa38] sm:$0xff]
        %v743 = vld [vmem:[#allocation2 + $0xa40] sm:$0xff]
        %v744 = vld [vmem:[#allocation2 + $0xa48] sm:$0xff]
        %v745 = vld [vmem:[#allocation2 + $0xa50] sm:$0xff]
        %v746 = vld [vmem:[#allocation2 + $0xa58] sm:$0xff]
        %v747 = vld [vmem:[#allocation2 + $0xa60] sm:$0xff]
        %v748 = vld [vmem:[#allocation2 + $0xa68] sm:$0xff]
        %v749 = vld [vmem:[#allocation2 + $0xa70] sm:$0xff]
        %v750 = vld [vmem:[#allocation2 + $0xa78] sm:$0xff]
        %v751 = vld [vmem:[#allocation2 + $0xa80] sm:$0xff]
        %v752 = vld [vmem:[#allocation2 + $0xa88] sm:$0xff]
        %v753 = vld [vmem:[#allocation2 + $0xa90] sm:$0xff]
        %v754 = vld [vmem:[#allocation2 + $0xa98] sm:$0xff]
        %v755 = vld [vmem:[#allocation2 + $0xaa0] sm:$0xff]
        %v756 = vld [vmem:[#allocation2 + $0xaa8] sm:$0xff]
        %v757 = vld [vmem:[#allocation2 + $0xab0] sm:$0xff]
        %v758 = vld [vmem:[#allocation2 + $0xab8] sm:$0xff]
        %v759 = vld [vmem:[#allocation2 + $0xac0] sm:$0xff]
        %v760 = vld [vmem:[#allocation2 + $0xac8] sm:$0xff]
        %v761 = vld [vmem:[#allocation2 + $0xad0] sm:$0xff]
        %v762 = vld [vmem:[#allocation2 + $0xad8] sm:$0xff]
        %v763 = vld [vmem:[#allocation2 + $0xae0] sm:$0xff]
        %v764 = vld [vmem:[#allocation2 + $0xae8] sm:$0xff]
        %v765 = vld [vmem:[#allocation2 + $0xaf0] sm:$0xff]
        %v766 = vld [vmem:[#allocation2 + $0xaf8] sm:$0xff]
        %v767 = vld [vmem:[#allocation2 + $0xb00] sm:$0xff]
        %v768 = vld [vmem:[#allocation2 + $0xb08] sm:$0xff]
        %v769 = vld [vmem:[#allocation2 + $0xb10] sm:$0xff]
        %v770 = vld [vmem:[#allocation2 + $0xb18] sm:$0xff]
        %v771 = vld [vmem:[#allocation2 + $0xb20] sm:$0xff]
        %v772 = vld [vmem:[#allocation2 + $0xb28] sm:$0xff]
        %v773 = vld [vmem:[#allocation2 + $0xb30] sm:$0xff]
        %v774 = vld [vmem:[#allocation2 + $0xb38] sm:$0xff]
        %v775 = vld [vmem:[#allocation2 + $0xb40] sm:$0xff]
        %v776 = vld [vmem:[#allocation2 + $0xb48] sm:$0xff]
        %v777 = vld [vmem:[#allocation2 + $0xb50] sm:$0xff]
        %v778 = vld [vmem:[#allocation2 + $0xb58] sm:$0xff]
        %v779 = vld [vmem:[#allocation2 + $0xb60] sm:$0xff]
        %v780 = vld [vmem:[#allocation2 + $0xb68] sm:$0xff]
        %v781 = vld [vmem:[#allocation2 + $0xb70] sm:$0xff]
        %v782 = vld [vmem:[#allocation2 + $0xb78] sm:$0xff]
        %v783 = vld [vmem:[#allocation2 + $0xb80] sm:$0xff]
        %v784 = vld [vmem:[#allocation2 + $0xb88] sm:$0xff]
        %v785 = vld [vmem:[#allocation2 + $0xb90] sm:$0xff]
        %v786 = vld [vmem:[#allocation2 + $0xb98] sm:$0xff]
        %v787 = vld [vmem:[#allocation2 + $0xba0] sm:$0xff]
        %v788 = vld [vmem:[#allocation2 + $0xba8] sm:$0xff]
        %v789 = vld [vmem:[#allocation2 + $0xbb0] sm:$0xff]
        %v790 = vld [vmem:[#allocation2 + $0xbb8] sm:$0xff]
        %v791 = vld [vmem:[#allocation2 + $0xbc0] sm:$0xff]
        %v792 = vld [vmem:[#allocation2 + $0xbc8] sm:$0xff]
        %v793 = vld [vmem:[#allocation2 + $0xbd0] sm:$0xff]
        %v794 = vld [vmem:[#allocation2 + $0xbd8] sm:$0xff]
        %v795 = vld [vmem:[#allocation2 + $0xbe0] sm:$0xff]
        %v796 = vld [vmem:[#allocation2 + $0xbe8] sm:$0xff]
        %v797 = vld [vmem:[#allocation2 + $0xbf0] sm:$0xff]
        %v798 = vld [vmem:[#allocation2 + $0xbf8] sm:$0xff]
        %v799 = vld [vmem:[#allocation2 + $0xc00] sm:$0xff]
        %v800 = vld [vmem:[#allocation2 + $0xc08] sm:$0xff]
        %v801 = vld [vmem:[#allocation2 + $0xc10] sm:$0xff]
        %v802 = vld [vmem:[#allocation2 + $0xc18] sm:$0xff]
        %v803 = vld [vmem:[#allocation2 + $0xc20] sm:$0xff]
        %v804 = vld [vmem:[#allocation2 + $0xc28] sm:$0xff]
        %v805 = vld [vmem:[#allocation2 + $0xc30] sm:$0xff]
        %v806 = vld [vmem:[#allocation2 + $0xc38] sm:$0xff]
        %v807 = vld [vmem:[#allocation2 + $0xc40] sm:$0xff]
        %v808 = vld [vmem:[#allocation2 + $0xc48] sm:$0xff]
        %v809 = vld [vmem:[#allocation2 + $0xc50] sm:$0xff]
        %v810 = vld [vmem:[#allocation2 + $0xc58] sm:$0xff]
        %v811 = vld [vmem:[#allocation2 + $0xc60] sm:$0xff]
        %v812 = vld [vmem:[#allocation2 + $0xc68] sm:$0xff]
        %v813 = vld [vmem:[#allocation2 + $0xc70] sm:$0xff]
        %v814 = vld [vmem:[#allocation2 + $0xc78] sm:$0xff]
        %v815 = vld [vmem:[#allocation2 + $0xc80] sm:$0xff]
        %v816 = vld [vmem:[#allocation2 + $0xc88] sm:$0xff]
        %v817 = vld [vmem:[#allocation2 + $0xc90] sm:$0xff]
        %v818 = vld [vmem:[#allocation2 + $0xc98] sm:$0xff]
        %v819 = vld [vmem:[#allocation2 + $0xca0] sm:$0xff]
        %v820 = vld [vmem:[#allocation2 + $0xca8] sm:$0xff]
        %v821 = vld [vmem:[#allocation2 + $0xcb0] sm:$0xff]
        %v822 = vld [vmem:[#allocation2 + $0xcb8] sm:$0xff]
        %v823 = vld [vmem:[#allocation2 + $0xcc0] sm:$0xff]
        %v824 = vld [vmem:[#allocation2 + $0xcc8] sm:$0xff]
        %v825 = vld [vmem:[#allocation2 + $0xcd0] sm:$0xff]
        %v826 = vld [vmem:[#allocation2 + $0xcd8] sm:$0xff]
        %v827 = vld [vmem:[#allocation2 + $0xce0] sm:$0xff]
        %v828 = vld [vmem:[#allocation2 + $0xce8] sm:$0xff]
        %v829 = vld [vmem:[#allocation2 + $0xcf0] sm:$0xff]
        %v830 = vld [vmem:[#allocation2 + $0xcf8] sm:$0xff]
        %v831 = vld [vmem:[#allocation2 + $0xd00] sm:$0xff]
        %v832 = vld [vmem:[#allocation2 + $0xd08] sm:$0xff]
        %v833 = vld [vmem:[#allocation2 + $0xd10] sm:$0xff]
        %v834 = vld [vmem:[#allocation2 + $0xd18] sm:$0xff]
        %v835 = vld [vmem:[#allocation2 + $0xd20] sm:$0xff]
        %v836 = vld [vmem:[#allocation2 + $0xd28] sm:$0xff]
        %v837 = vld [vmem:[#allocation2 + $0xd30] sm:$0xff]
        %v838 = vld [vmem:[#allocation2 + $0xd38] sm:$0xff]
        %v839 = vld [vmem:[#allocation2 + $0xd40] sm:$0xff]
        %v840 = vld [vmem:[#allocation2 + $0xd48] sm:$0xff]
        %v841 = vld [vmem:[#allocation2 + $0xd50] sm:$0xff]
        %v842 = vld [vmem:[#allocation2 + $0xd58] sm:$0xff]
        %v843 = vld [vmem:[#allocation2 + $0xd60] sm:$0xff]
        %v844 = vld [vmem:[#allocation2 + $0xd68] sm:$0xff]
        %v845 = vld [vmem:[#allocation2 + $0xd70] sm:$0xff]
        %v846 = vld [vmem:[#allocation2 + $0xd78] sm:$0xff]
        %v847 = vld [vmem:[#allocation2 + $0xd80] sm:$0xff]
        %v848 = vld [vmem:[#allocation2 + $0xd88] sm:$0xff]
        %v849 = vld [vmem:[#allocation2 + $0xd90] sm:$0xff]
        %v850 = vld [vmem:[#allocation2 + $0xd98] sm:$0xff]
        %v851 = vld [vmem:[#allocation2 + $0xda0] sm:$0xff]
        %v852 = vld [vmem:[#allocation2 + $0xda8] sm:$0xff]
        %v853 = vld [vmem:[#allocation2 + $0xdb0] sm:$0xff]
        %v854 = vld [vmem:[#allocation2 + $0xdb8] sm:$0xff]
        %v855 = vld [vmem:[#allocation2 + $0xdc0] sm:$0xff]
        %v856 = vld [vmem:[#allocation2 + $0xdc8] sm:$0xff]
        %v857 = vld [vmem:[#allocation2 + $0xdd0] sm:$0xff]
        %v858 = vld [vmem:[#allocation2 + $0xdd8] sm:$0xff]
        %v859 = vld [vmem:[#allocation2 + $0xde0] sm:$0xff]
        %v860 = vld [vmem:[#allocation2 + $0xde8] sm:$0xff]
        %v861 = vld [vmem:[#allocation2 + $0xdf0] sm:$0xff]
        %v862 = vld [vmem:[#allocation2 + $0xdf8] sm:$0xff]
        %v863 = vld [vmem:[#allocation2 + $0xe00] sm:$0xff]
        %v864 = vld [vmem:[#allocation2 + $0xe08] sm:$0xff]
        %v865 = vld [vmem:[#allocation2 + $0xe10] sm:$0xff]
        %v866 = vld [vmem:[#allocation2 + $0xe18] sm:$0xff]
        %v867 = vld [vmem:[#allocation2 + $0xe20] sm:$0xff]
        %v868 = vld [vmem:[#allocation2 + $0xe28] sm:$0xff]
        %v869 = vld [vmem:[#allocation2 + $0xe30] sm:$0xff]
        %v870 = vld [vmem:[#allocation2 + $0xe38] sm:$0xff]
        %v871 = vld [vmem:[#allocation2 + $0xe40] sm:$0xff]
        %v872 = vld [vmem:[#allocation2 + $0xe48] sm:$0xff]
        %v873 = vld [vmem:[#allocation2 + $0xe50] sm:$0xff]
        %v874 = vld [vmem:[#allocation2 + $0xe58] sm:$0xff]
        %v875 = vld [vmem:[#allocation2 + $0xe60] sm:$0xff]
        %v876 = vld [vmem:[#allocation2 + $0xe68] sm:$0xff]
        %v877 = vld [vmem:[#allocation2 + $0xe70] sm:$0xff]
        %v878 = vld [vmem:[#allocation2 + $0xe78] sm:$0xff]
        %v879 = vld [vmem:[#allocation2 + $0xe80] sm:$0xff]
        %v880 = vld [vmem:[#allocation2 + $0xe88] sm:$0xff]
        %v881 = vld [vmem:[#allocation2 + $0xe90] sm:$0xff]
        %v882 = vld [vmem:[#allocation2 + $0xe98] sm:$0xff]
        %v883 = vld [vmem:[#allocation2 + $0xea0] sm:$0xff]
        %v884 = vld [vmem:[#allocation2 + $0xea8] sm:$0xff]
        %v885 = vld [vmem:[#allocation2 + $0xeb0] sm:$0xff]
        %v886 = vld [vmem:[#allocation2 + $0xeb8] sm:$0xff]
        %v887 = vld [vmem:[#allocation2 + $0xec0] sm:$0xff]
        %v888 = vld [vmem:[#allocation2 + $0xec8] sm:$0xff]
        %v889 = vld [vmem:[#allocation2 + $0xed0] sm:$0xff]
        %v890 = vld [vmem:[#allocation2 + $0xed8] sm:$0xff]
        %v891 = vld [vmem:[#allocation2 + $0xee0] sm:$0xff]
        %v892 = vld [vmem:[#allocation2 + $0xee8] sm:$0xff]
        %v893 = vld [vmem:[#allocation2 + $0xef0] sm:$0xff]
        %v894 = vld [vmem:[#allocation2 + $0xef8] sm:$0xff]
        %v895 = vld [vmem:[#allocation2 + $0xf00] sm:$0xff]
        %v896 = vld [vmem:[#allocation2 + $0xf08] sm:$0xff]
        %v897 = vld [vmem:[#allocation2 + $0xf10] sm:$0xff]
        %v898 = vld [vmem:[#allocation2 + $0xf18] sm:$0xff]
        %v899 = vld [vmem:[#allocation2 + $0xf20] sm:$0xff]
        %v900 = vld [vmem:[#allocation2 + $0xf28] sm:$0xff]
        %v901 = vld [vmem:[#allocation2 + $0xf30] sm:$0xff]
        %v902 = vld [vmem:[#allocation2 + $0xf38] sm:$0xff]
        %v903 = vld [vmem:[#allocation2 + $0xf40] sm:$0xff]
        %v904 = vld [vmem:[#allocation2 + $0xf48] sm:$0xff]
        %v905 = vld [vmem:[#allocation2 + $0xf50] sm:$0xff]
        %v906 = vld [vmem:[#allocation2 + $0xf58] sm:$0xff]
        %v907 = vld [vmem:[#allocation2 + $0xf60] sm:$0xff]
        %v908 = vld [vmem:[#allocation2 + $0xf68] sm:$0xff]
        %v909 = vld [vmem:[#allocation2 + $0xf70] sm:$0xff]
        %v910 = vld [vmem:[#allocation2 + $0xf78] sm:$0xff]
        %v911 = vld [vmem:[#allocation2 + $0xf80] sm:$0xff]
        %v912 = vld [vmem:[#allocation2 + $0xf88] sm:$0xff]
        %v913 = vld [vmem:[#allocation2 + $0xf90] sm:$0xff]
        %v914 = vld [vmem:[#allocation2 + $0xf98] sm:$0xff]
        %v915 = vld [vmem:[#allocation2 + $0xfa0] sm:$0xff]
        %v916 = vld [vmem:[#allocation2 + $0xfa8] sm:$0xff]
        %v917 = vld [vmem:[#allocation2 + $0xfb0] sm:$0xff]
        %v918 = vld [vmem:[#allocation2 + $0xfb8] sm:$0xff]
        %v919 = vld [vmem:[#allocation2 + $0xfc0] sm:$0xff]
        %v920 = vld [vmem:[#allocation2 + $0xfc8] sm:$0xff]
        %v921 = vld [vmem:[#allocation2 + $0xfd0] sm:$0xff]
        %v922 = vld [vmem:[#allocation2 + $0xfd8] sm:$0xff]
        %v923 = vld [vmem:[#allocation2 + $0xfe0] sm:$0xff]
        %v924 = vld [vmem:[#allocation2 + $0xfe8] sm:$0xff]
        %v925 = vld [vmem:[#allocation2 + $0xff0] sm:$0xff]
        %v926 = vld [vmem:[#allocation2 + $0xff8] sm:$0xff]
        %v927 = vld [vmem:[#allocation4] sm:$0xff]
        %v928 = vld [vmem:[#allocation4 + $0x8] sm:$0xff]
        %v931 = vlaneseq
        %v932 = vshrl.u32 %v931, 7
        %v933 = vsub.s32 0, %v932
        %v934 = vrot.slane %v927, %v933
        %v935 = vlaneseq
        %v936 = vshrl.u32 %v935, 7
        %v937 = vsub.s32 1, %v936
        %v938 = vrot.slane %v927, %v937
        %v939 = vlaneseq
        %v940 = vshrl.u32 %v939, 7
        %v941 = vsub.s32 2, %v940
        %v942 = vrot.slane %v927, %v941
        %v943 = vlaneseq
        %v944 = vshrl.u32 %v943, 7
        %v945 = vsub.s32 3, %v944
        %v946 = vrot.slane %v927, %v945
        %v947 = vlaneseq
        %v948 = vshrl.u32 %v947, 7
        %v949 = vsub.s32 4, %v948
        %v950 = vrot.slane %v927, %v949
        %v951 = vlaneseq
        %v952 = vshrl.u32 %v951, 7
        %v953 = vsub.s32 5, %v952
        %v954 = vrot.slane %v927, %v953
        %v955 = vlaneseq
        %v956 = vshrl.u32 %v955, 7
        %v957 = vsub.s32 6, %v956
        %v958 = vrot.slane %v927, %v957
        %v959 = vlaneseq
        %v960 = vshrl.u32 %v959, 7
        %v961 = vsub.s32 7, %v960
        %v962 = vrot.slane %v927, %v961
        %v963 = vlaneseq
        %v964 = vshrl.u32 %v963, 7
        %v965 = vsub.s32 0, %v964
        %v966 = vrot.slane %v928, %v965
        %v967 = vlaneseq
        %v968 = vshrl.u32 %v967, 7
        %v969 = vsub.s32 1, %v968
        %v970 = vrot.slane %v928, %v969
        %v971 = vlaneseq
        %v972 = vshrl.u32 %v971, 7
        %v973 = vsub.s32 2, %v972
        %v974 = vrot.slane %v928, %v973
        %v975 = vlaneseq
        %v976 = vshrl.u32 %v975, 7
        %v977 = vsub.s32 3, %v976
        %v978 = vrot.slane %v928, %v977
        %v979 = vlaneseq
        %v980 = vshrl.u32 %v979, 7
        %v981 = vsub.s32 4, %v980
        %v982 = vrot.slane %v928, %v981
        %v983 = vlaneseq
        %v984 = vshrl.u32 %v983, 7
        %v985 = vsub.s32 5, %v984
        %v986 = vrot.slane %v928, %v985
        %v987 = vlaneseq
        %v988 = vshrl.u32 %v987, 7
        %v989 = vsub.s32 6, %v988
        %v990 = vrot.slane %v928, %v989
        %v991 = vlaneseq
        %v992 = vshrl.u32 %v991, 7
        %v993 = vsub.s32 7, %v992
        %v994 = vrot.slane %v928, %v993
        %1011 = vmatprep.subr.mxu0 %v416
        %1012 = vmatpush1.msra.mxu0 %v415
        %1013 = vmatprep.subr.mxu0 %v432
        %1014 = vmatpush1.msra.mxu0 %v431
        %1015 = vmatprep.subr.mxu0 %v448
        %1016 = vmatpush1.msra.mxu0 %v447
        %1017 = vmatprep.subr.mxu0 %v464
        %1018 = vmatpush1.msra.mxu0 %v463
        %1019 = vmatprep.subr.mxu0 %v480
        %1020 = vmatpush1.msra.mxu0 %v479
        %1021 = vmatprep.subr.mxu0 %v496
        %1022 = vmatpush1.msra.mxu0 %v495
        %1023 = vmatprep.subr.mxu0 %v512
        %1024 = vmatpush1.msra.mxu0 %v511
        %1025 = vmatprep.subr.mxu0 %v528
        %1026 = vmatpush1.msra.mxu0 %v527
        %1027 = vmatprep.subr.mxu0 %v544
        %1028 = vmatpush1.msra.mxu0 %v543
        %1029 = vmatprep.subr.mxu0 %v560
        %1030 = vmatpush1.msra.mxu0 %v559
        %1031 = vmatprep.subr.mxu0 %v576
        %1032 = vmatpush1.msra.mxu0 %v575
        %1033 = vmatprep.subr.mxu0 %v592
        %1034 = vmatpush1.msra.mxu0 %v591
        %1035 = vmatprep.subr.mxu0 %v608
        %1036 = vmatpush1.msra.mxu0 %v607
        %1037 = vmatprep.subr.mxu0 %v624
        %1038 = vmatpush1.msra.mxu0 %v623
        %1039 = vmatprep.subr.mxu0 %v640
        %1040 = vmatpush1.msra.mxu0 %v639
        %1041 = vmatprep.subr.mxu0 %v656
        %1042 = vmatpush1.msra.mxu0 %v655
        %1043 = vmatprep.subr.mxu0 %v672
        %1044 = vmatpush1.msra.mxu0 %v671
        %1045 = vmatprep.subr.mxu0 %v688
        %1046 = vmatpush1.msra.mxu0 %v687
        %1047 = vmatprep.subr.mxu0 %v704
        %1048 = vmatpush1.msra.mxu0 %v703
        %1049 = vmatprep.subr.mxu0 %v720
        %1050 = vmatpush1.msra.mxu0 %v719
        %1051 = vmatprep.subr.mxu0 %v736
        %1052 = vmatpush1.msra.mxu0 %v735
        %1053 = vmatprep.subr.mxu0 %v752
        %1054 = vmatpush1.msra.mxu0 %v751
        %1055 = vmatprep.subr.mxu0 %v768
        %1056 = vmatpush1.msra.mxu0 %v767
        %1057 = vmatprep.subr.mxu0 %v784
        %1058 = vmatpush1.msra.mxu0 %v783
        %1059 = vmatprep.subr.mxu0 %v800
        %1060 = vmatpush1.msra.mxu0 %v799
        %1061 = vmatprep.subr.mxu0 %v816
        %1062 = vmatpush1.msra.mxu0 %v815
        %1063 = vmatprep.subr.mxu0 %v832
        %1064 = vmatpush1.msra.mxu0 %v831
        %1065 = vmatprep.subr.mxu0 %v848
        %1066 = vmatpush1.msra.mxu0 %v847
        %1067 = vmatprep.subr.mxu0 %v864
        %1068 = vmatpush1.msra.mxu0 %v863
        %1069 = vmatprep.subr.mxu0 %v880
        %1070 = vmatpush1.msra.mxu0 %v879
        %1071 = vmatprep.subr.mxu0 %v896
        %1072 = vmatpush1.msra.mxu0 %v895
        %1073 = vmatprep.subr.mxu0 %v912
        %1074 = vmatpush1.msra.mxu0 %v911
        %1075 = vmatprep.mubr.f32.mxu0 %v390
        %1076 = vmatmul.mubr.f32.gmra.mrb[0].mxu0 %v389
        %v1077 = vpop.f32.mrb[0].mxu0
        %v1078 = vadd.f32 %v934, %v1077
        %v1079 = vpop.f32.mrb[0].mxu0
        %v1080 = vadd.f32 %v938, %v1079
        %1081 = vmatprep.mubr.f32.mxu0 %v392
        %1082 = vmatmul.mubr.f32.gmra.mrb[0].mxu0 %v391
        %v1083 = vpop.f32.mrb[0].mxu0
        %v1084 = vadd.f32 %v934, %v1083
        %v1085 = vpop.f32.mrb[0].mxu0
        %v1086 = vadd.f32 %v938, %v1085
        %1087 = vmatprep.mubr.f32.mxu0 %v394
        %1088 = vmatmul.mubr.f32.gmra.mrb[0].mxu0 %v393
        %v1089 = vpop.f32.mrb[0].mxu0
        %v1090 = vadd.f32 %v934, %v1089
        %v1091 = vpop.f32.mrb[0].mxu0
        %v1092 = vadd.f32 %v938, %v1091
        %1093 = vmatprep.mubr.f32.mxu0 %v396
        %1094 = vmatmul.mubr.f32.gmra.mrb[0].mxu0 %v395
        %v1095 = vpop.f32.mrb[0].mxu0
        %v1096 = vadd.f32 %v934, %v1095
        %v1097 = vpop.f32.mrb[0].mxu0
        %v1098 = vadd.f32 %v938, %v1097
        %1099 = vmatprep.mubr.f32.mxu0 %v398
        %1100 = vmatmul.mubr.f32.gmra.mrb[0].mxu0 %v397
        %v1101 = vpop.f32.mrb[0].mxu0
        %v1102 = vadd.f32 %v934, %v1101
        %v1103 = vpop.f32.mrb[0].mxu0
        %v1104 = vadd.f32 %v938, %v1103
        %1105 = vmatprep.mubr.f32.mxu0 %v400
        %1106 = vmatmul.mubr.f32.gmra.mrb[0].mxu0 %v399
        %v1107 = vpop.f32.mrb[0].mxu0
        %v1108 = vadd.f32 %v934, %v1107
        %v1109 = vpop.f32.mrb[0].mxu0
        %v1110 = vadd.f32 %v938, %v1109
        %1111 = vmatprep.mubr.f32.mxu0 %v402
        %1112 = vmatmul.mubr.f32.gmra.mrb[0].mxu0 %v401
        %v1113 = vpop.f32.mrb[0].mxu0
        %v1114 = vadd.f32 %v934, %v1113
        %v1115 = vpop.f32.mrb[0].mxu0
        %v1116 = vadd.f32 %v938, %v1115
        %1117 = vmatprep.mubr.f32.mxu0 %v404
        %1118 = vmatmul.mubr.f32.gmra.mrb[0].mxu0 %v403
        %v1119 = vpop.f32.mrb[0].mxu0
        %v1120 = vadd.f32 %v934, %v1119
        %v1121 = vpop.f32.mrb[0].mxu0
        %v1122 = vadd.f32 %v938, %v1121
        %1123 = vmatprep.mubr.f32.mxu0 %v406
        %1124 = vmatmul.mubr.f32.gmra.mrb[0].mxu0 %v405
        %v1125 = vpop.f32.mrb[0].mxu0
        %v1126 = vadd.f32 %v934, %v1125
        %v1127 = vpop.f32.mrb[0].mxu0
        %v1128 = vadd.f32 %v938, %v1127
        %1129 = vmatprep.mubr.f32.mxu0 %v408
        %1130 = vmatmul.mubr.f32.gmra.mrb[0].mxu0 %v407
        %v1131 = vpop.f32.mrb[0].mxu0
        %v1132 = vadd.f32 %v934, %v1131
        %v1133 = vpop.f32.mrb[0].mxu0
        %v1134 = vadd.f32 %v938, %v1133
        %1135 = vmatprep.mubr.f32.mxu0 %v410
        %1136 = vmatmul.mubr.f32.gmra.mrb[0].mxu0 %v409
        %v1137 = vpop.f32.mrb[0].mxu0
        %v1138 = vadd.f32 %v934, %v1137
        %v1139 = vpop.f32.mrb[0].mxu0
        %v1140 = vadd.f32 %v938, %v1139
        %1141 = vmatprep.mubr.f32.mxu0 %v412
        %1142 = vmatmul.mubr.f32.gmra.mrb[0].mxu0 %v411
        %v1143 = vpop.f32.mrb[0].mxu0
        %v1144 = vadd.f32 %v934, %v1143
        %v1145 = vpop.f32.mrb[0].mxu0
        %v1146 = vadd.f32 %v938, %v1145
        %1147 = vmatprep.mubr.f32.mxu0 %v414
        %1148 = vmatmul.mubr.f32.gmra.mrb[0].mxu0 %v413
        %v1149 = vpop.f32.mrb[0].mxu0
        %v1150 = vadd.f32 %v934, %v1149
        %v1151 = vpop.f32.mrb[0].mxu0
        %v1152 = vadd.f32 %v938, %v1151
        %1153 = vdwg.mxu0
        %1154 = vmatprep.subr.mxu0 %v418
        %1155 = vmatpush1.msra.mxu0 %v417
        %1156 = vmatprep.subr.mxu0 %v434
        %1157 = vmatpush1.msra.mxu0 %v433
        %1158 = vmatprep.subr.mxu0 %v450
        %1159 = vmatpush1.msra.mxu0 %v449
        %1160 = vmatprep.subr.mxu0 %v466
        %1161 = vmatpush1.msra.mxu0 %v465
        %1162 = vmatprep.subr.mxu0 %v482
        %1163 = vmatpush1.msra.mxu0 %v481
        %1164 = vmatprep.subr.mxu0 %v498
        %1165 = vmatpush1.msra.mxu0 %v497
        %1166 = vmatprep.subr.mxu0 %v514
        %1167 = vmatpush1.msra.mxu0 %v513
        %1168 = vmatprep.subr.mxu0 %v530
        %1169 = vmatpush1.msra.mxu0 %v529
        %1170 = vmatprep.subr.mxu0 %v546
        %1171 = vmatpush1.msra.mxu0 %v545
        %1172 = vmatprep.subr.mxu0 %v562
        %1173 = vmatpush1.msra.mxu0 %v561
        %1174 = vmatprep.subr.mxu0 %v578
        %1175 = vmatpush1.msra.mxu0 %v577
        %1176 = vmatprep.subr.mxu0 %v594
        %1177 = vmatpush1.msra.mxu0 %v593
        %1178 = vmatprep.subr.mxu0 %v610
        %1179 = vmatpush1.msra.mxu0 %v609
        %1180 = vmatprep.subr.mxu0 %v626
        %1181 = vmatpush1.msra.mxu0 %v625
        %1182 = vmatprep.subr.mxu0 %v642
        %1183 = vmatpush1.msra.mxu0 %v641
        %1184 = vmatprep.subr.mxu0 %v658
        %1185 = vmatpush1.msra.mxu0 %v657
        %1186 = vmatprep.subr.mxu0 %v674
        %1187 = vmatpush1.msra.mxu0 %v673
        %1188 = vmatprep.subr.mxu0 %v690
        %1189 = vmatpush1.msra.mxu0 %v689
        %1190 = vmatprep.subr.mxu0 %v706
        %1191 = vmatpush1.msra.mxu0 %v705
        %1192 = vmatprep.subr.mxu0 %v722
        %1193 = vmatpush1.msra.mxu0 %v721
        %1194 = vmatprep.subr.mxu0 %v738
        %1195 = vmatpush1.msra.mxu0 %v737
        %1196 = vmatprep.subr.mxu0 %v754
        %1197 = vmatpush1.msra.mxu0 %v753
        %1198 = vmatprep.subr.mxu0 %v770
        %1199 = vmatpush1.msra.mxu0 %v769
        %1200 = vmatprep.subr.mxu0 %v786
        %1201 = vmatpush1.msra.mxu0 %v785
        %1202 = vmatprep.subr.mxu0 %v802
        %1203 = vmatpush1.msra.mxu0 %v801
        %1204 = vmatprep.subr.mxu0 %v818
        %1205 = vmatpush1.msra.mxu0 %v817
        %1206 = vmatprep.subr.mxu0 %v834
        %1207 = vmatpush1.msra.mxu0 %v833
        %1208 = vmatprep.subr.mxu0 %v850
        %1209 = vmatpush1.msra.mxu0 %v849
        %1210 = vmatprep.subr.mxu0 %v866
        %1211 = vmatpush1.msra.mxu0 %v865
        %1212 = vmatprep.subr.mxu0 %v882
        %1213 = vmatpush1.msra.mxu0 %v881
        %1214 = vmatprep.subr.mxu0 %v898
        %1215 = vmatpush1.msra.mxu0 %v897
        %1216 = vmatprep.subr.mxu0 %v914
        %1217 = vmatpush1.msra.mxu0 %v913
        %1218 = vmatprep.mubr.f32.mxu0 %v390
        %1219 = vmatmul.mubr.f32.gmra.mrb[0].mxu0 %v389
        %v1220 = vpop.f32.mrb[0].mxu0
        %v1221 = vadd.f32 %v942, %v1220
        %v1222 = vpop.f32.mrb[0].mxu0
        %v1223 = vadd.f32 %v946, %v1222
        %1224 = vmatprep.mubr.f32.mxu0 %v392
        %1225 = vmatmul.mubr.f32.gmra.mrb[0].mxu0 %v391
        %v1226 = vpop.f32.mrb[0].mxu0
        %v1227 = vadd.f32 %v942, %v1226
        %v1228 = vpop.f32.mrb[0].mxu0
        %v1229 = vadd.f32 %v946, %v1228
        %1230 = vmatprep.mubr.f32.mxu0 %v394
        %1231 = vmatmul.mubr.f32.gmra.mrb[0].mxu0 %v393
        %v1232 = vpop.f32.mrb[0].mxu0
        %v1233 = vadd.f32 %v942, %v1232
        %v1234 = vpop.f32.mrb[0].mxu0
        %v1235 = vadd.f32 %v946, %v1234
        %1236 = vmatprep.mubr.f32.mxu0 %v396
        %1237 = vmatmul.mubr.f32.gmra.mrb[0].mxu0 %v395
        %v1238 = vpop.f32.mrb[0].mxu0
        %v1239 = vadd.f32 %v942, %v1238
        %v1240 = vpop.f32.mrb[0].mxu0
        %v1241 = vadd.f32 %v946, %v1240
        %1242 = vmatprep.mubr.f32.mxu0 %v398
        %1243 = vmatmul.mubr.f32.gmra.mrb[0].mxu0 %v397
        %v1244 = vpop.f32.mrb[0].mxu0
        %v1245 = vadd.f32 %v942, %v1244
        %v1246 = vpop.f32.mrb[0].mxu0
        %v1247 = vadd.f32 %v946, %v1246
        %1248 = vmatprep.mubr.f32.mxu0 %v400
        %1249 = vmatmul.mubr.f32.gmra.mrb[0].mxu0 %v399
        %v1250 = vpop.f32.mrb[0].mxu0
        %v1251 = vadd.f32 %v942, %v1250
        %v1252 = vpop.f32.mrb[0].mxu0
        %v1253 = vadd.f32 %v946, %v1252
        %1254 = vmatprep.mubr.f32.mxu0 %v402
        %1255 = vmatmul.mubr.f32.gmra.mrb[0].mxu0 %v401
        %v1256 = vpop.f32.mrb[0].mxu0
        %v1257 = vadd.f32 %v942, %v1256
        %v1258 = vpop.f32.mrb[0].mxu0
        %v1259 = vadd.f32 %v946, %v1258
        %1260 = vmatprep.mubr.f32.mxu0 %v404
        %1261 = vmatmul.mubr.f32.gmra.mrb[0].mxu0 %v403
        %v1262 = vpop.f32.mrb[0].mxu0
        %v1263 = vadd.f32 %v942, %v1262
        %v1264 = vpop.f32.mrb[0].mxu0
        %v1265 = vadd.f32 %v946, %v1264
        %1266 = vmatprep.mubr.f32.mxu0 %v406
        %1267 = vmatmul.mubr.f32.gmra.mrb[0].mxu0 %v405
        %v1268 = vpop.f32.mrb[0].mxu0
        %v1269 = vadd.f32 %v942, %v1268
        %v1270 = vpop.f32.mrb[0].mxu0
        %v1271 = vadd.f32 %v946, %v1270
        %1272 = vmatprep.mubr.f32.mxu0 %v408
        %1273 = vmatmul.mubr.f32.gmra.mrb[0].mxu0 %v407
        %v1274 = vpop.f32.mrb[0].mxu0
        %v1275 = vadd.f32 %v942, %v1274
        %v1276 = vpop.f32.mrb[0].mxu0
        %v1277 = vadd.f32 %v946, %v1276
        %1278 = vmatprep.mubr.f32.mxu0 %v410
        %1279 = vmatmul.mubr.f32.gmra.mrb[0].mxu0 %v409
        %v1280 = vpop.f32.mrb[0].mxu0
        %v1281 = vadd.f32 %v942, %v1280
        %v1282 = vpop.f32.mrb[0].mxu0
        %v1283 = vadd.f32 %v946, %v1282
        %1284 = vmatprep.mubr.f32.mxu0 %v412
        %1285 = vmatmul.mubr.f32.gmra.mrb[0].mxu0 %v411
        %v1286 = vpop.f32.mrb[0].mxu0
        %v1287 = vadd.f32 %v942, %v1286
        %v1288 = vpop.f32.mrb[0].mxu0
        %v1289 = vadd.f32 %v946, %v1288
        %1290 = vmatprep.mubr.f32.mxu0 %v414
        %1291 = vmatmul.mubr.f32.gmra.mrb[0].mxu0 %v413
        %v1292 = vpop.f32.mrb[0].mxu0
        %v1293 = vadd.f32 %v942, %v1292
        %v1294 = vpop.f32.mrb[0].mxu0
        %v1295 = vadd.f32 %v946, %v1294
        %1296 = vdwg.mxu0
        %1297 = vmatprep.subr.mxu0 %v420
        %1298 = vmatpush1.msra.mxu0 %v419
        %1299 = vmatprep.subr.mxu0 %v436
        %1300 = vmatpush1.msra.mxu0 %v435
        %1301 = vmatprep.subr.mxu0 %v452
        %1302 = vmatpush1.msra.mxu0 %v451
        %1303 = vmatprep.subr.mxu0 %v468
        %1304 = vmatpush1.msra.mxu0 %v467
        %1305 = vmatprep.subr.mxu0 %v484
        %1306 = vmatpush1.msra.mxu0 %v483
        %1307 = vmatprep.subr.mxu0 %v500
        %1308 = vmatpush1.msra.mxu0 %v499
        %1309 = vmatprep.subr.mxu0 %v516
        %1310 = vmatpush1.msra.mxu0 %v515
        %1311 = vmatprep.subr.mxu0 %v532
        %1312 = vmatpush1.msra.mxu0 %v531
        %1313 = vmatprep.subr.mxu0 %v548
        %1314 = vmatpush1.msra.mxu0 %v547
        %1315 = vmatprep.subr.mxu0 %v564
        %1316 = vmatpush1.msra.mxu0 %v563
        %1317 = vmatprep.subr.mxu0 %v580
        %1318 = vmatpush1.msra.mxu0 %v579
        %1319 = vmatprep.subr.mxu0 %v596
        %1320 = vmatpush1.msra.mxu0 %v595
        %1321 = vmatprep.subr.mxu0 %v612
        %1322 = vmatpush1.msra.mxu0 %v611
        %1323 = vmatprep.subr.mxu0 %v628
        %1324 = vmatpush1.msra.mxu0 %v627
        %1325 = vmatprep.subr.mxu0 %v644
        %1326 = vmatpush1.msra.mxu0 %v643
        %1327 = vmatprep.subr.mxu0 %v660
        %1328 = vmatpush1.msra.mxu0 %v659
        %1329 = vmatprep.subr.mxu0 %v676
        %1330 = vmatpush1.msra.mxu0 %v675
        %1331 = vmatprep.subr.mxu0 %v692
        %1332 = vmatpush1.msra.mxu0 %v691
        %1333 = vmatprep.subr.mxu0 %v708
        %1334 = vmatpush1.msra.mxu0 %v707
        %1335 = vmatprep.subr.mxu0 %v724
        %1336 = vmatpush1.msra.mxu0 %v723
        %1337 = vmatprep.subr.mxu0 %v740
        %1338 = vmatpush1.msra.mxu0 %v739
        %1339 = vmatprep.subr.mxu0 %v756
        %1340 = vmatpush1.msra.mxu0 %v755
        %1341 = vmatprep.subr.mxu0 %v772
        %1342 = vmatpush1.msra.mxu0 %v771
        %1343 = vmatprep.subr.mxu0 %v788
        %1344 = vmatpush1.msra.mxu0 %v787
        %1345 = vmatprep.subr.mxu0 %v804
        %1346 = vmatpush1.msra.mxu0 %v803
        %1347 = vmatprep.subr.mxu0 %v820
        %1348 = vmatpush1.msra.mxu0 %v819
        %1349 = vmatprep.subr.mxu0 %v836
        %1350 = vmatpush1.msra.mxu0 %v835
        %1351 = vmatprep.subr.mxu0 %v852
        %1352 = vmatpush1.msra.mxu0 %v851
        %1353 = vmatprep.subr.mxu0 %v868
        %1354 = vmatpush1.msra.mxu0 %v867
        %1355 = vmatprep.subr.mxu0 %v884
        %1356 = vmatpush1.msra.mxu0 %v883
        %1357 = vmatprep.subr.mxu0 %v900
        %1358 = vmatpush1.msra.mxu0 %v899
        %1359 = vmatprep.subr.mxu0 %v916
        %1360 = vmatpush1.msra.mxu0 %v915
        %1361 = vmatprep.mubr.f32.mxu0 %v390
        %1362 = vmatmul.mubr.f32.gmra.mrb[0].mxu0 %v389
        %v1363 = vpop.f32.mrb[0].mxu0
        %v1364 = vadd.f32 %v950, %v1363
        %v1365 = vpop.f32.mrb[0].mxu0
        %v1366 = vadd.f32 %v954, %v1365
        %1367 = vmatprep.mubr.f32.mxu0 %v392
        %1368 = vmatmul.mubr.f32.gmra.mrb[0].mxu0 %v391
        %v1369 = vpop.f32.mrb[0].mxu0
        %v1370 = vadd.f32 %v950, %v1369
        %v1371 = vpop.f32.mrb[0].mxu0
        %v1372 = vadd.f32 %v954, %v1371
        %1373 = vmatprep.mubr.f32.mxu0 %v394
        %1374 = vmatmul.mubr.f32.gmra.mrb[0].mxu0 %v393
        %v1375 = vpop.f32.mrb[0].mxu0
        %v1376 = vadd.f32 %v950, %v1375
        %v1377 = vpop.f32.mrb[0].mxu0
        %v1378 = vadd.f32 %v954, %v1377
        %1379 = vmatprep.mubr.f32.mxu0 %v396
        %1380 = vmatmul.mubr.f32.gmra.mrb[0].mxu0 %v395
        %v1381 = vpop.f32.mrb[0].mxu0
        %v1382 = vadd.f32 %v950, %v1381
        %v1383 = vpop.f32.mrb[0].mxu0
        %v1384 = vadd.f32 %v954, %v1383
        %1385 = vmatprep.mubr.f32.mxu0 %v398
        %1386 = vmatmul.mubr.f32.gmra.mrb[0].mxu0 %v397
        %v1387 = vpop.f32.mrb[0].mxu0
        %v1388 = vadd.f32 %v950, %v1387
        %v1389 = vpop.f32.mrb[0].mxu0
        %v1390 = vadd.f32 %v954, %v1389
        %1391 = vmatprep.mubr.f32.mxu0 %v400
        %1392 = vmatmul.mubr.f32.gmra.mrb[0].mxu0 %v399
        %v1393 = vpop.f32.mrb[0].mxu0
        %v1394 = vadd.f32 %v950, %v1393
        %v1395 = vpop.f32.mrb[0].mxu0
        %v1396 = vadd.f32 %v954, %v1395
        %1397 = vmatprep.mubr.f32.mxu0 %v402
        %1398 = vmatmul.mubr.f32.gmra.mrb[0].mxu0 %v401
        %v1399 = vpop.f32.mrb[0].mxu0
        %v1400 = vadd.f32 %v950, %v1399
        %v1401 = vpop.f32.mrb[0].mxu0
        %v1402 = vadd.f32 %v954, %v1401
        %1403 = vmatprep.mubr.f32.mxu0 %v404
        %1404 = vmatmul.mubr.f32.gmra.mrb[0].mxu0 %v403
        %v1405 = vpop.f32.mrb[0].mxu0
        %v1406 = vadd.f32 %v950, %v1405
        %v1407 = vpop.f32.mrb[0].mxu0
        %v1408 = vadd.f32 %v954, %v1407
        %1409 = vmatprep.mubr.f32.mxu0 %v406
        %1410 = vmatmul.mubr.f32.gmra.mrb[0].mxu0 %v405
        %v1411 = vpop.f32.mrb[0].mxu0
        %v1412 = vadd.f32 %v950, %v1411
        %v1413 = vpop.f32.mrb[0].mxu0
        %v1414 = vadd.f32 %v954, %v1413
        %1415 = vmatprep.mubr.f32.mxu0 %v408
        %1416 = vmatmul.mubr.f32.gmra.mrb[0].mxu0 %v407
        %v1417 = vpop.f32.mrb[0].mxu0
        %v1418 = vadd.f32 %v950, %v1417
        %v1419 = vpop.f32.mrb[0].mxu0
        %v1420 = vadd.f32 %v954, %v1419
        %1421 = vmatprep.mubr.f32.mxu0 %v410
        %1422 = vmatmul.mubr.f32.gmra.mrb[0].mxu0 %v409
        %v1423 = vpop.f32.mrb[0].mxu0
        %v1424 = vadd.f32 %v950, %v1423
        %v1425 = vpop.f32.mrb[0].mxu0
        %v1426 = vadd.f32 %v954, %v1425
        %1427 = vmatprep.mubr.f32.mxu0 %v412
        %1428 = vmatmul.mubr.f32.gmra.mrb[0].mxu0 %v411
        %v1429 = vpop.f32.mrb[0].mxu0
        %v1430 = vadd.f32 %v950, %v1429
        %v1431 = vpop.f32.mrb[0].mxu0
        %v1432 = vadd.f32 %v954, %v1431
        %1433 = vmatprep.mubr.f32.mxu0 %v414
        %1434 = vmatmul.mubr.f32.gmra.mrb[0].mxu0 %v413
        %v1435 = vpop.f32.mrb[0].mxu0
        %v1436 = vadd.f32 %v950, %v1435
        %v1437 = vpop.f32.mrb[0].mxu0
        %v1438 = vadd.f32 %v954, %v1437
        %1439 = vdwg.mxu0
        %1440 = vmatprep.subr.mxu0 %v422
        %1441 = vmatpush1.msra.mxu0 %v421
        %1442 = vmatprep.subr.mxu0 %v438
        %1443 = vmatpush1.msra.mxu0 %v437
        %1444 = vmatprep.subr.mxu0 %v454
        %1445 = vmatpush1.msra.mxu0 %v453
        %1446 = vmatprep.subr.mxu0 %v470
        %1447 = vmatpush1.msra.mxu0 %v469
        %1448 = vmatprep.subr.mxu0 %v486
        %1449 = vmatpush1.msra.mxu0 %v485
        %1450 = vmatprep.subr.mxu0 %v502
        %1451 = vmatpush1.msra.mxu0 %v501
        %1452 = vmatprep.subr.mxu0 %v518
        %1453 = vmatpush1.msra.mxu0 %v517
        %1454 = vmatprep.subr.mxu0 %v534
        %1455 = vmatpush1.msra.mxu0 %v533
        %1456 = vmatprep.subr.mxu0 %v550
        %1457 = vmatpush1.msra.mxu0 %v549
        %1458 = vmatprep.subr.mxu0 %v566
        %1459 = vmatpush1.msra.mxu0 %v565
        %1460 = vmatprep.subr.mxu0 %v582
        %1461 = vmatpush1.msra.mxu0 %v581
        %1462 = vmatprep.subr.mxu0 %v598
        %1463 = vmatpush1.msra.mxu0 %v597
        %1464 = vmatprep.subr.mxu0 %v614
        %1465 = vmatpush1.msra.mxu0 %v613
        %1466 = vmatprep.subr.mxu0 %v630
        %1467 = vmatpush1.msra.mxu0 %v629
        %1468 = vmatprep.subr.mxu0 %v646
        %1469 = vmatpush1.msra.mxu0 %v645
        %1470 = vmatprep.subr.mxu0 %v662
        %1471 = vmatpush1.msra.mxu0 %v661
        %1472 = vmatprep.subr.mxu0 %v678
        %1473 = vmatpush1.msra.mxu0 %v677
        %1474 = vmatprep.subr.mxu0 %v694
        %1475 = vmatpush1.msra.mxu0 %v693
        %1476 = vmatprep.subr.mxu0 %v710
        %1477 = vmatpush1.msra.mxu0 %v709
        %1478 = vmatprep.subr.mxu0 %v726
        %1479 = vmatpush1.msra.mxu0 %v725
        %1480 = vmatprep.subr.mxu0 %v742
        %1481 = vmatpush1.msra.mxu0 %v741
        %1482 = vmatprep.subr.mxu0 %v758
        %1483 = vmatpush1.msra.mxu0 %v757
        %1484 = vmatprep.subr.mxu0 %v774
        %1485 = vmatpush1.msra.mxu0 %v773
        %1486 = vmatprep.subr.mxu0 %v790
        %1487 = vmatpush1.msra.mxu0 %v789
        %1488 = vmatprep.subr.mxu0 %v806
        %1489 = vmatpush1.msra.mxu0 %v805
        %1490 = vmatprep.subr.mxu0 %v822
        %1491 = vmatpush1.msra.mxu0 %v821
        %1492 = vmatprep.subr.mxu0 %v838
        %1493 = vmatpush1.msra.mxu0 %v837
        %1494 = vmatprep.subr.mxu0 %v854
        %1495 = vmatpush1.msra.mxu0 %v853
        %1496 = vmatprep.subr.mxu0 %v870
        %1497 = vmatpush1.msra.mxu0 %v869
        %1498 = vmatprep.subr.mxu0 %v886
        %1499 = vmatpush1.msra.mxu0 %v885
        %1500 = vmatprep.subr.mxu0 %v902
        %1501 = vmatpush1.msra.mxu0 %v901
        %1502 = vmatprep.subr.mxu0 %v918
        %1503 = vmatpush1.msra.mxu0 %v917
        %1504 = vmatprep.mubr.f32.mxu0 %v390
        %1505 = vmatmul.mubr.f32.gmra.mrb[0].mxu0 %v389
        %v1506 = vpop.f32.mrb[0].mxu0
        %v1507 = vadd.f32 %v958, %v1506
        %v1508 = vpop.f32.mrb[0].mxu0
        %v1509 = vadd.f32 %v962, %v1508
        %1510 = vmatprep.mubr.f32.mxu0 %v392
        %1511 = vmatmul.mubr.f32.gmra.mrb[0].mxu0 %v391
        %v1512 = vpop.f32.mrb[0].mxu0
        %v1513 = vadd.f32 %v958, %v1512
        %v1514 = vpop.f32.mrb[0].mxu0
        %v1515 = vadd.f32 %v962, %v1514
        %1516 = vmatprep.mubr.f32.mxu0 %v394
        %1517 = vmatmul.mubr.f32.gmra.mrb[0].mxu0 %v393
        %v1518 = vpop.f32.mrb[0].mxu0
        %v1519 = vadd.f32 %v958, %v1518
        %v1520 = vpop.f32.mrb[0].mxu0
        %v1521 = vadd.f32 %v962, %v1520
        %1522 = vmatprep.mubr.f32.mxu0 %v396
        %1523 = vmatmul.mubr.f32.gmra.mrb[0].mxu0 %v395
        %v1524 = vpop.f32.mrb[0].mxu0
        %v1525 = vadd.f32 %v958, %v1524
        %v1526 = vpop.f32.mrb[0].mxu0
        %v1527 = vadd.f32 %v962, %v1526
        %1528 = vmatprep.mubr.f32.mxu0 %v398
        %1529 = vmatmul.mubr.f32.gmra.mrb[0].mxu0 %v397
        %v1530 = vpop.f32.mrb[0].mxu0
        %v1531 = vadd.f32 %v958, %v1530
        %v1532 = vpop.f32.mrb[0].mxu0
        %v1533 = vadd.f32 %v962, %v1532
        %1534 = vmatprep.mubr.f32.mxu0 %v400
        %1535 = vmatmul.mubr.f32.gmra.mrb[0].mxu0 %v399
        %v1536 = vpop.f32.mrb[0].mxu0
        %v1537 = vadd.f32 %v958, %v1536
        %v1538 = vpop.f32.mrb[0].mxu0
        %v1539 = vadd.f32 %v962, %v1538
        %1540 = vmatprep.mubr.f32.mxu0 %v402
        %1541 = vmatmul.mubr.f32.gmra.mrb[0].mxu0 %v401
        %v1542 = vpop.f32.mrb[0].mxu0
        %v1543 = vadd.f32 %v958, %v1542
        %v1544 = vpop.f32.mrb[0].mxu0
        %v1545 = vadd.f32 %v962, %v1544
        %1546 = vmatprep.mubr.f32.mxu0 %v404
        %1547 = vmatmul.mubr.f32.gmra.mrb[0].mxu0 %v403
        %v1548 = vpop.f32.mrb[0].mxu0
        %v1549 = vadd.f32 %v958, %v1548
        %v1550 = vpop.f32.mrb[0].mxu0
        %v1551 = vadd.f32 %v962, %v1550
        %1552 = vmatprep.mubr.f32.mxu0 %v406
        %1553 = vmatmul.mubr.f32.gmra.mrb[0].mxu0 %v405
        %v1554 = vpop.f32.mrb[0].mxu0
        %v1555 = vadd.f32 %v958, %v1554
        %v1556 = vpop.f32.mrb[0].mxu0
        %v1557 = vadd.f32 %v962, %v1556
        %1558 = vmatprep.mubr.f32.mxu0 %v408
        %1559 = vmatmul.mubr.f32.gmra.mrb[0].mxu0 %v407
        %v1560 = vpop.f32.mrb[0].mxu0
        %v1561 = vadd.f32 %v958, %v1560
        %v1562 = vpop.f32.mrb[0].mxu0
        %v1563 = vadd.f32 %v962, %v1562
        %1564 = vmatprep.mubr.f32.mxu0 %v410
        %1565 = vmatmul.mubr.f32.gmra.mrb[0].mxu0 %v409
        %v1566 = vpop.f32.mrb[0].mxu0
        %v1567 = vadd.f32 %v958, %v1566
        %v1568 = vpop.f32.mrb[0].mxu0
        %v1569 = vadd.f32 %v962, %v1568
        %1570 = vmatprep.mubr.f32.mxu0 %v412
        %1571 = vmatmul.mubr.f32.gmra.mrb[0].mxu0 %v411
        %v1572 = vpop.f32.mrb[0].mxu0
        %v1573 = vadd.f32 %v958, %v1572
        %v1574 = vpop.f32.mrb[0].mxu0
        %v1575 = vadd.f32 %v962, %v1574
        %1576 = vmatprep.mubr.f32.mxu0 %v414
        %1577 = vmatmul.mubr.f32.gmra.mrb[0].mxu0 %v413
        %v1578 = vpop.f32.mrb[0].mxu0
        %v1579 = vadd.f32 %v958, %v1578
        %v1580 = vpop.f32.mrb[0].mxu0
        %v1581 = vadd.f32 %v962, %v1580
        %1582 = vdwg.mxu0
        %1583 = vmatprep.subr.mxu0 %v424
        %1584 = vmatpush1.msra.mxu0 %v423
        %1585 = vmatprep.subr.mxu0 %v440
        %1586 = vmatpush1.msra.mxu0 %v439
        %1587 = vmatprep.subr.mxu0 %v456
        %1588 = vmatpush1.msra.mxu0 %v455
        %1589 = vmatprep.subr.mxu0 %v472
        %1590 = vmatpush1.msra.mxu0 %v471
        %1591 = vmatprep.subr.mxu0 %v488
        %1592 = vmatpush1.msra.mxu0 %v487
        %1593 = vmatprep.subr.mxu0 %v504
        %1594 = vmatpush1.msra.mxu0 %v503
        %1595 = vmatprep.subr.mxu0 %v520
        %1596 = vmatpush1.msra.mxu0 %v519
        %1597 = vmatprep.subr.mxu0 %v536
        %1598 = vmatpush1.msra.mxu0 %v535
        %1599 = vmatprep.subr.mxu0 %v552
        %1600 = vmatpush1.msra.mxu0 %v551
        %1601 = vmatprep.subr.mxu0 %v568
        %1602 = vmatpush1.msra.mxu0 %v567
        %1603 = vmatprep.subr.mxu0 %v584
        %1604 = vmatpush1.msra.mxu0 %v583
        %1605 = vmatprep.subr.mxu0 %v600
        %1606 = vmatpush1.msra.mxu0 %v599
        %1607 = vmatprep.subr.mxu0 %v616
        %1608 = vmatpush1.msra.mxu0 %v615
        %1609 = vmatprep.subr.mxu0 %v632
        %1610 = vmatpush1.msra.mxu0 %v631
        %1611 = vmatprep.subr.mxu0 %v648
        %1612 = vmatpush1.msra.mxu0 %v647
        %1613 = vmatprep.subr.mxu0 %v664
        %1614 = vmatpush1.msra.mxu0 %v663
        %1615 = vmatprep.subr.mxu0 %v680
        %1616 = vmatpush1.msra.mxu0 %v679
        %1617 = vmatprep.subr.mxu0 %v696
        %1618 = vmatpush1.msra.mxu0 %v695
        %1619 = vmatprep.subr.mxu0 %v712
        %1620 = vmatpush1.msra.mxu0 %v711
        %1621 = vmatprep.subr.mxu0 %v728
        %1622 = vmatpush1.msra.mxu0 %v727
        %1623 = vmatprep.subr.mxu0 %v744
        %1624 = vmatpush1.msra.mxu0 %v743
        %1625 = vmatprep.subr.mxu0 %v760
        %1626 = vmatpush1.msra.mxu0 %v759
        %1627 = vmatprep.subr.mxu0 %v776
        %1628 = vmatpush1.msra.mxu0 %v775
        %1629 = vmatprep.subr.mxu0 %v792
        %1630 = vmatpush1.msra.mxu0 %v791
        %1631 = vmatprep.subr.mxu0 %v808
        %1632 = vmatpush1.msra.mxu0 %v807
        %1633 = vmatprep.subr.mxu0 %v824
        %1634 = vmatpush1.msra.mxu0 %v823
        %1635 = vmatprep.subr.mxu0 %v840
        %1636 = vmatpush1.msra.mxu0 %v839
        %1637 = vmatprep.subr.mxu0 %v856
        %1638 = vmatpush1.msra.mxu0 %v855
        %1639 = vmatprep.subr.mxu0 %v872
        %1640 = vmatpush1.msra.mxu0 %v871
        %1641 = vmatprep.subr.mxu0 %v888
        %1642 = vmatpush1.msra.mxu0 %v887
        %1643 = vmatprep.subr.mxu0 %v904
        %1644 = vmatpush1.msra.mxu0 %v903
        %1645 = vmatprep.subr.mxu0 %v920
        %1646 = vmatpush1.msra.mxu0 %v919
        %1647 = vmatprep.mubr.f32.mxu0 %v390
        %1648 = vmatmul.mubr.f32.gmra.mrb[0].mxu0 %v389
        %v1649 = vpop.f32.mrb[0].mxu0
        %v1650 = vadd.f32 %v966, %v1649
        %v1651 = vpop.f32.mrb[0].mxu0
        %v1652 = vadd.f32 %v970, %v1651
        %1653 = vmatprep.mubr.f32.mxu0 %v392
        %1654 = vmatmul.mubr.f32.gmra.mrb[0].mxu0 %v391
        %v1655 = vpop.f32.mrb[0].mxu0
        %v1656 = vadd.f32 %v966, %v1655
        %v1657 = vpop.f32.mrb[0].mxu0
        %v1658 = vadd.f32 %v970, %v1657
        %1659 = vmatprep.mubr.f32.mxu0 %v394
        %1660 = vmatmul.mubr.f32.gmra.mrb[0].mxu0 %v393
        %v1661 = vpop.f32.mrb[0].mxu0
        %v1662 = vadd.f32 %v966, %v1661
        %v1663 = vpop.f32.mrb[0].mxu0
        %v1664 = vadd.f32 %v970, %v1663
        %1665 = vmatprep.mubr.f32.mxu0 %v396
        %1666 = vmatmul.mubr.f32.gmra.mrb[0].mxu0 %v395
        %v1667 = vpop.f32.mrb[0].mxu0
        %v1668 = vadd.f32 %v966, %v1667
        %v1669 = vpop.f32.mrb[0].mxu0
        %v1670 = vadd.f32 %v970, %v1669
        %1671 = vmatprep.mubr.f32.mxu0 %v398
        %1672 = vmatmul.mubr.f32.gmra.mrb[0].mxu0 %v397
        %v1673 = vpop.f32.mrb[0].mxu0
        %v1674 = vadd.f32 %v966, %v1673
        %v1675 = vpop.f32.mrb[0].mxu0
        %v1676 = vadd.f32 %v970, %v1675
        %1677 = vmatprep.mubr.f32.mxu0 %v400
        %1678 = vmatmul.mubr.f32.gmra.mrb[0].mxu0 %v399
        %v1679 = vpop.f32.mrb[0].mxu0
        %v1680 = vadd.f32 %v966, %v1679
        %v1681 = vpop.f32.mrb[0].mxu0
        %v1682 = vadd.f32 %v970, %v1681
        %1683 = vmatprep.mubr.f32.mxu0 %v402
        %1684 = vmatmul.mubr.f32.gmra.mrb[0].mxu0 %v401
        %v1685 = vpop.f32.mrb[0].mxu0
        %v1686 = vadd.f32 %v966, %v1685
        %v1687 = vpop.f32.mrb[0].mxu0
        %v1688 = vadd.f32 %v970, %v1687
        %1689 = vmatprep.mubr.f32.mxu0 %v404
        %1690 = vmatmul.mubr.f32.gmra.mrb[0].mxu0 %v403
        %v1691 = vpop.f32.mrb[0].mxu0
        %v1692 = vadd.f32 %v966, %v1691
        %v1693 = vpop.f32.mrb[0].mxu0
        %v1694 = vadd.f32 %v970, %v1693
        %1695 = vmatprep.mubr.f32.mxu0 %v406
        %1696 = vmatmul.mubr.f32.gmra.mrb[0].mxu0 %v405
        %v1697 = vpop.f32.mrb[0].mxu0
        %v1698 = vadd.f32 %v966, %v1697
        %v1699 = vpop.f32.mrb[0].mxu0
        %v1700 = vadd.f32 %v970, %v1699
        %1701 = vmatprep.mubr.f32.mxu0 %v408
        %1702 = vmatmul.mubr.f32.gmra.mrb[0].mxu0 %v407
        %v1703 = vpop.f32.mrb[0].mxu0
        %v1704 = vadd.f32 %v966, %v1703
        %v1705 = vpop.f32.mrb[0].mxu0
        %v1706 = vadd.f32 %v970, %v1705
        %1707 = vmatprep.mubr.f32.mxu0 %v410
        %1708 = vmatmul.mubr.f32.gmra.mrb[0].mxu0 %v409
        %v1709 = vpop.f32.mrb[0].mxu0
        %v1710 = vadd.f32 %v966, %v1709
        %v1711 = vpop.f32.mrb[0].mxu0
        %v1712 = vadd.f32 %v970, %v1711
        %1713 = vmatprep.mubr.f32.mxu0 %v412
        %1714 = vmatmul.mubr.f32.gmra.mrb[0].mxu0 %v411
        %v1715 = vpop.f32.mrb[0].mxu0
        %v1716 = vadd.f32 %v966, %v1715
        %v1717 = vpop.f32.mrb[0].mxu0
        %v1718 = vadd.f32 %v970, %v1717
        %1719 = vmatprep.mubr.f32.mxu0 %v414
        %1720 = vmatmul.mubr.f32.gmra.mrb[0].mxu0 %v413
        %v1721 = vpop.f32.mrb[0].mxu0
        %v1722 = vadd.f32 %v966, %v1721
        %v1723 = vpop.f32.mrb[0].mxu0
        %v1724 = vadd.f32 %v970, %v1723
        %1725 = vdwg.mxu0
        %1726 = vmatprep.subr.mxu0 %v426
        %1727 = vmatpush1.msra.mxu0 %v425
        %1728 = vmatprep.subr.mxu0 %v442
        %1729 = vmatpush1.msra.mxu0 %v441
        %1730 = vmatprep.subr.mxu0 %v458
        %1731 = vmatpush1.msra.mxu0 %v457
        %1732 = vmatprep.subr.mxu0 %v474
        %1733 = vmatpush1.msra.mxu0 %v473
        %1734 = vmatprep.subr.mxu0 %v490
        %1735 = vmatpush1.msra.mxu0 %v489
        %1736 = vmatprep.subr.mxu0 %v506
        %1737 = vmatpush1.msra.mxu0 %v505
        %1738 = vmatprep.subr.mxu0 %v522
        %1739 = vmatpush1.msra.mxu0 %v521
        %1740 = vmatprep.subr.mxu0 %v538
        %1741 = vmatpush1.msra.mxu0 %v537
        %1742 = vmatprep.subr.mxu0 %v554
        %1743 = vmatpush1.msra.mxu0 %v553
        %1744 = vmatprep.subr.mxu0 %v570
        %1745 = vmatpush1.msra.mxu0 %v569
        %1746 = vmatprep.subr.mxu0 %v586
        %1747 = vmatpush1.msra.mxu0 %v585
        %1748 = vmatprep.subr.mxu0 %v602
        %1749 = vmatpush1.msra.mxu0 %v601
        %1750 = vmatprep.subr.mxu0 %v618
        %1751 = vmatpush1.msra.mxu0 %v617
        %1752 = vmatprep.subr.mxu0 %v634
        %1753 = vmatpush1.msra.mxu0 %v633
        %1754 = vmatprep.subr.mxu0 %v650
        %1755 = vmatpush1.msra.mxu0 %v649
        %1756 = vmatprep.subr.mxu0 %v666
        %1757 = vmatpush1.msra.mxu0 %v665
        %1758 = vmatprep.subr.mxu0 %v682
        %1759 = vmatpush1.msra.mxu0 %v681
        %1760 = vmatprep.subr.mxu0 %v698
        %1761 = vmatpush1.msra.mxu0 %v697
        %1762 = vmatprep.subr.mxu0 %v714
        %1763 = vmatpush1.msra.mxu0 %v713
        %1764 = vmatprep.subr.mxu0 %v730
        %1765 = vmatpush1.msra.mxu0 %v729
        %1766 = vmatprep.subr.mxu0 %v746
        %1767 = vmatpush1.msra.mxu0 %v745
        %1768 = vmatprep.subr.mxu0 %v762
        %1769 = vmatpush1.msra.mxu0 %v761
        %1770 = vmatprep.subr.mxu0 %v778
        %1771 = vmatpush1.msra.mxu0 %v777
        %1772 = vmatprep.subr.mxu0 %v794
        %1773 = vmatpush1.msra.mxu0 %v793
        %1774 = vmatprep.subr.mxu0 %v810
        %1775 = vmatpush1.msra.mxu0 %v809
        %1776 = vmatprep.subr.mxu0 %v826
        %1777 = vmatpush1.msra.mxu0 %v825
        %1778 = vmatprep.subr.mxu0 %v842
        %1779 = vmatpush1.msra.mxu0 %v841
        %1780 = vmatprep.subr.mxu0 %v858
        %1781 = vmatpush1.msra.mxu0 %v857
        %1782 = vmatprep.subr.mxu0 %v874
        %1783 = vmatpush1.msra.mxu0 %v873
        %1784 = vmatprep.subr.mxu0 %v890
        %1785 = vmatpush1.msra.mxu0 %v889
        %1786 = vmatprep.subr.mxu0 %v906
        %1787 = vmatpush1.msra.mxu0 %v905
        %1788 = vmatprep.subr.mxu0 %v922
        %1789 = vmatpush1.msra.mxu0 %v921
        %1790 = vmatprep.mubr.f32.mxu0 %v390
        %1791 = vmatmul.mubr.f32.gmra.mrb[0].mxu0 %v389
        %v1792 = vpop.f32.mrb[0].mxu0
        %v1793 = vadd.f32 %v974, %v1792
        %v1794 = vpop.f32.mrb[0].mxu0
        %v1795 = vadd.f32 %v978, %v1794
        %1796 = vmatprep.mubr.f32.mxu0 %v392
        %1797 = vmatmul.mubr.f32.gmra.mrb[0].mxu0 %v391
        %v1798 = vpop.f32.mrb[0].mxu0
        %v1799 = vadd.f32 %v974, %v1798
        %v1800 = vpop.f32.mrb[0].mxu0
        %v1801 = vadd.f32 %v978, %v1800
        %1802 = vmatprep.mubr.f32.mxu0 %v394
        %1803 = vmatmul.mubr.f32.gmra.mrb[0].mxu0 %v393
        %v1804 = vpop.f32.mrb[0].mxu0
        %v1805 = vadd.f32 %v974, %v1804
        %v1806 = vpop.f32.mrb[0].mxu0
        %v1807 = vadd.f32 %v978, %v1806
        %1808 = vmatprep.mubr.f32.mxu0 %v396
        %1809 = vmatmul.mubr.f32.gmra.mrb[0].mxu0 %v395
        %v1810 = vpop.f32.mrb[0].mxu0
        %v1811 = vadd.f32 %v974, %v1810
        %v1812 = vpop.f32.mrb[0].mxu0
        %v1813 = vadd.f32 %v978, %v1812
        %1814 = vmatprep.mubr.f32.mxu0 %v398
        %1815 = vmatmul.mubr.f32.gmra.mrb[0].mxu0 %v397
        %v1816 = vpop.f32.mrb[0].mxu0
        %v1817 = vadd.f32 %v974, %v1816
        %v1818 = vpop.f32.mrb[0].mxu0
        %v1819 = vadd.f32 %v978, %v1818
        %1820 = vmatprep.mubr.f32.mxu0 %v400
        %1821 = vmatmul.mubr.f32.gmra.mrb[0].mxu0 %v399
        %v1822 = vpop.f32.mrb[0].mxu0
        %v1823 = vadd.f32 %v974, %v1822
        %v1824 = vpop.f32.mrb[0].mxu0
        %v1825 = vadd.f32 %v978, %v1824
        %1826 = vmatprep.mubr.f32.mxu0 %v402
        %1827 = vmatmul.mubr.f32.gmra.mrb[0].mxu0 %v401
        %v1828 = vpop.f32.mrb[0].mxu0
        %v1829 = vadd.f32 %v974, %v1828
        %v1830 = vpop.f32.mrb[0].mxu0
        %v1831 = vadd.f32 %v978, %v1830
        %1832 = vmatprep.mubr.f32.mxu0 %v404
        %1833 = vmatmul.mubr.f32.gmra.mrb[0].mxu0 %v403
        %v1834 = vpop.f32.mrb[0].mxu0
        %v1835 = vadd.f32 %v974, %v1834
        %v1836 = vpop.f32.mrb[0].mxu0
        %v1837 = vadd.f32 %v978, %v1836
        %1838 = vmatprep.mubr.f32.mxu0 %v406
        %1839 = vmatmul.mubr.f32.gmra.mrb[0].mxu0 %v405
        %v1840 = vpop.f32.mrb[0].mxu0
        %v1841 = vadd.f32 %v974, %v1840
        %v1842 = vpop.f32.mrb[0].mxu0
        %v1843 = vadd.f32 %v978, %v1842
        %1844 = vmatprep.mubr.f32.mxu0 %v408
        %1845 = vmatmul.mubr.f32.gmra.mrb[0].mxu0 %v407
        %v1846 = vpop.f32.mrb[0].mxu0
        %v1847 = vadd.f32 %v974, %v1846
        %v1848 = vpop.f32.mrb[0].mxu0
        %v1849 = vadd.f32 %v978, %v1848
        %1850 = vmatprep.mubr.f32.mxu0 %v410
        %1851 = vmatmul.mubr.f32.gmra.mrb[0].mxu0 %v409
        %v1852 = vpop.f32.mrb[0].mxu0
        %v1853 = vadd.f32 %v974, %v1852
        %v1854 = vpop.f32.mrb[0].mxu0
        %v1855 = vadd.f32 %v978, %v1854
        %1856 = vmatprep.mubr.f32.mxu0 %v412
        %1857 = vmatmul.mubr.f32.gmra.mrb[0].mxu0 %v411
        %v1858 = vpop.f32.mrb[0].mxu0
        %v1859 = vadd.f32 %v974, %v1858
        %v1860 = vpop.f32.mrb[0].mxu0
        %v1861 = vadd.f32 %v978, %v1860
        %1862 = vmatprep.mubr.f32.mxu0 %v414
        %1863 = vmatmul.mubr.f32.gmra.mrb[0].mxu0 %v413
        %v1864 = vpop.f32.mrb[0].mxu0
        %v1865 = vadd.f32 %v974, %v1864
        %v1866 = vpop.f32.mrb[0].mxu0
        %v1867 = vadd.f32 %v978, %v1866
        %1868 = vdwg.mxu0
        %1869 = vmatprep.subr.mxu0 %v428
        %1870 = vmatpush1.msra.mxu0 %v427
        %1871 = vmatprep.subr.mxu0 %v444
        %1872 = vmatpush1.msra.mxu0 %v443
        %1873 = vmatprep.subr.mxu0 %v460
        %1874 = vmatpush1.msra.mxu0 %v459
        %1875 = vmatprep.subr.mxu0 %v476
        %1876 = vmatpush1.msra.mxu0 %v475
        %1877 = vmatprep.subr.mxu0 %v492
        %1878 = vmatpush1.msra.mxu0 %v491
        %1879 = vmatprep.subr.mxu0 %v508
        %1880 = vmatpush1.msra.mxu0 %v507
        %1881 = vmatprep.subr.mxu0 %v524
        %1882 = vmatpush1.msra.mxu0 %v523
        %1883 = vmatprep.subr.mxu0 %v540
        %1884 = vmatpush1.msra.mxu0 %v539
        %1885 = vmatprep.subr.mxu0 %v556
        %1886 = vmatpush1.msra.mxu0 %v555
        %1887 = vmatprep.subr.mxu0 %v572
        %1888 = vmatpush1.msra.mxu0 %v571
        %1889 = vmatprep.subr.mxu0 %v588
        %1890 = vmatpush1.msra.mxu0 %v587
        %1891 = vmatprep.subr.mxu0 %v604
        %1892 = vmatpush1.msra.mxu0 %v603
        %1893 = vmatprep.subr.mxu0 %v620
        %1894 = vmatpush1.msra.mxu0 %v619
        %1895 = vmatprep.subr.mxu0 %v636
        %1896 = vmatpush1.msra.mxu0 %v635
        %1897 = vmatprep.subr.mxu0 %v652
        %1898 = vmatpush1.msra.mxu0 %v651
        %1899 = vmatprep.subr.mxu0 %v668
        %1900 = vmatpush1.msra.mxu0 %v667
        %1901 = vmatprep.subr.mxu0 %v684
        %1902 = vmatpush1.msra.mxu0 %v683
        %1903 = vmatprep.subr.mxu0 %v700
        %1904 = vmatpush1.msra.mxu0 %v699
        %1905 = vmatprep.subr.mxu0 %v716
        %1906 = vmatpush1.msra.mxu0 %v715
        %1907 = vmatprep.subr.mxu0 %v732
        %1908 = vmatpush1.msra.mxu0 %v731
        %1909 = vmatprep.subr.mxu0 %v748
        %1910 = vmatpush1.msra.mxu0 %v747
        %1911 = vmatprep.subr.mxu0 %v764
        %1912 = vmatpush1.msra.mxu0 %v763
        %1913 = vmatprep.subr.mxu0 %v780
        %1914 = vmatpush1.msra.mxu0 %v779
        %1915 = vmatprep.subr.mxu0 %v796
        %1916 = vmatpush1.msra.mxu0 %v795
        %1917 = vmatprep.subr.mxu0 %v812
        %1918 = vmatpush1.msra.mxu0 %v811
        %1919 = vmatprep.subr.mxu0 %v828
        %1920 = vmatpush1.msra.mxu0 %v827
        %1921 = vmatprep.subr.mxu0 %v844
        %1922 = vmatpush1.msra.mxu0 %v843
        %1923 = vmatprep.subr.mxu0 %v860
        %1924 = vmatpush1.msra.mxu0 %v859
        %1925 = vmatprep.subr.mxu0 %v876
        %1926 = vmatpush1.msra.mxu0 %v875
        %1927 = vmatprep.subr.mxu0 %v892
        %1928 = vmatpush1.msra.mxu0 %v891
        %1929 = vmatprep.subr.mxu0 %v908
        %1930 = vmatpush1.msra.mxu0 %v907
        %1931 = vmatprep.subr.mxu0 %v924
        %1932 = vmatpush1.msra.mxu0 %v923
        %1933 = vmatprep.mubr.f32.mxu0 %v390
        %1934 = vmatmul.mubr.f32.gmra.mrb[0].mxu0 %v389
        %v1935 = vpop.f32.mrb[0].mxu0
        %v1936 = vadd.f32 %v982, %v1935
        %v1937 = vpop.f32.mrb[0].mxu0
        %v1938 = vadd.f32 %v986, %v1937
        %1939 = vmatprep.mubr.f32.mxu0 %v392
        %1940 = vmatmul.mubr.f32.gmra.mrb[0].mxu0 %v391
        %v1941 = vpop.f32.mrb[0].mxu0
        %v1942 = vadd.f32 %v982, %v1941
        %v1943 = vpop.f32.mrb[0].mxu0
        %v1944 = vadd.f32 %v986, %v1943
        %1945 = vmatprep.mubr.f32.mxu0 %v394
        %1946 = vmatmul.mubr.f32.gmra.mrb[0].mxu0 %v393
        %v1947 = vpop.f32.mrb[0].mxu0
        %v1948 = vadd.f32 %v982, %v1947
        %v1949 = vpop.f32.mrb[0].mxu0
        %v1950 = vadd.f32 %v986, %v1949
        %1951 = vmatprep.mubr.f32.mxu0 %v396
        %1952 = vmatmul.mubr.f32.gmra.mrb[0].mxu0 %v395
        %v1953 = vpop.f32.mrb[0].mxu0
        %v1954 = vadd.f32 %v982, %v1953
        %v1955 = vpop.f32.mrb[0].mxu0
        %v1956 = vadd.f32 %v986, %v1955
        %1957 = vmatprep.mubr.f32.mxu0 %v398
        %1958 = vmatmul.mubr.f32.gmra.mrb[0].mxu0 %v397
        %v1959 = vpop.f32.mrb[0].mxu0
        %v1960 = vadd.f32 %v982, %v1959
        %v1961 = vpop.f32.mrb[0].mxu0
        %v1962 = vadd.f32 %v986, %v1961
        %1963 = vmatprep.mubr.f32.mxu0 %v400
        %1964 = vmatmul.mubr.f32.gmra.mrb[0].mxu0 %v399
        %v1965 = vpop.f32.mrb[0].mxu0
        %v1966 = vadd.f32 %v982, %v1965
        %v1967 = vpop.f32.mrb[0].mxu0
        %v1968 = vadd.f32 %v986, %v1967
        %1969 = vmatprep.mubr.f32.mxu0 %v402
        %1970 = vmatmul.mubr.f32.gmra.mrb[0].mxu0 %v401
        %v1971 = vpop.f32.mrb[0].mxu0
        %v1972 = vadd.f32 %v982, %v1971
        %v1973 = vpop.f32.mrb[0].mxu0
        %v1974 = vadd.f32 %v986, %v1973
        %1975 = vmatprep.mubr.f32.mxu0 %v404
        %1976 = vmatmul.mubr.f32.gmra.mrb[0].mxu0 %v403
        %v1977 = vpop.f32.mrb[0].mxu0
        %v1978 = vadd.f32 %v982, %v1977
        %v1979 = vpop.f32.mrb[0].mxu0
        %v1980 = vadd.f32 %v986, %v1979
        %1981 = vmatprep.mubr.f32.mxu0 %v406
        %1982 = vmatmul.mubr.f32.gmra.mrb[0].mxu0 %v405
        %v1983 = vpop.f32.mrb[0].mxu0
        %v1984 = vadd.f32 %v982, %v1983
        %v1985 = vpop.f32.mrb[0].mxu0
        %v1986 = vadd.f32 %v986, %v1985
        %1987 = vmatprep.mubr.f32.mxu0 %v408
        %1988 = vmatmul.mubr.f32.gmra.mrb[0].mxu0 %v407
        %v1989 = vpop.f32.mrb[0].mxu0
        %v1990 = vadd.f32 %v982, %v1989
        %v1991 = vpop.f32.mrb[0].mxu0
        %v1992 = vadd.f32 %v986, %v1991
        %1993 = vmatprep.mubr.f32.mxu0 %v410
        %1994 = vmatmul.mubr.f32.gmra.mrb[0].mxu0 %v409
        %v1995 = vpop.f32.mrb[0].mxu0
        %v1996 = vadd.f32 %v982, %v1995
        %v1997 = vpop.f32.mrb[0].mxu0
        %v1998 = vadd.f32 %v986, %v1997
        %1999 = vmatprep.mubr.f32.mxu0 %v412
        %2000 = vmatmul.mubr.f32.gmra.mrb[0].mxu0 %v411
        %v2001 = vpop.f32.mrb[0].mxu0
        %v2002 = vadd.f32 %v982, %v2001
        %v2003 = vpop.f32.mrb[0].mxu0
        %v2004 = vadd.f32 %v986, %v2003
        %2005 = vmatprep.mubr.f32.mxu0 %v414
        %2006 = vmatmul.mubr.f32.gmra.mrb[0].mxu0 %v413
        %v2007 = vpop.f32.mrb[0].mxu0
        %v2008 = vadd.f32 %v982, %v2007
        %v2009 = vpop.f32.mrb[0].mxu0
        %v2010 = vadd.f32 %v986, %v2009
        %2011 = vdwg.mxu0
        %2012 = vmatprep.subr.mxu0 %v430
        %2013 = vmatpush1.msra.mxu0 %v429
        %2014 = vmatprep.subr.mxu0 %v446
        %2015 = vmatpush1.msra.mxu0 %v445
        %2016 = vmatprep.subr.mxu0 %v462
        %2017 = vmatpush1.msra.mxu0 %v461
        %2018 = vmatprep.subr.mxu0 %v478
        %2019 = vmatpush1.msra.mxu0 %v477
        %2020 = vmatprep.subr.mxu0 %v494
        %2021 = vmatpush1.msra.mxu0 %v493
        %2022 = vmatprep.subr.mxu0 %v510
        %2023 = vmatpush1.msra.mxu0 %v509
        %2024 = vmatprep.subr.mxu0 %v526
        %2025 = vmatpush1.msra.mxu0 %v525
        %2026 = vmatprep.subr.mxu0 %v542
        %2027 = vmatpush1.msra.mxu0 %v541
        %2028 = vmatprep.subr.mxu0 %v558
        %2029 = vmatpush1.msra.mxu0 %v557
        %2030 = vmatprep.subr.mxu0 %v574
        %2031 = vmatpush1.msra.mxu0 %v573
        %2032 = vmatprep.subr.mxu0 %v590
        %2033 = vmatpush1.msra.mxu0 %v589
        %2034 = vmatprep.subr.mxu0 %v606
        %2035 = vmatpush1.msra.mxu0 %v605
        %2036 = vmatprep.subr.mxu0 %v622
        %2037 = vmatpush1.msra.mxu0 %v621
        %2038 = vmatprep.subr.mxu0 %v638
        %2039 = vmatpush1.msra.mxu0 %v637
        %2040 = vmatprep.subr.mxu0 %v654
        %2041 = vmatpush1.msra.mxu0 %v653
        %2042 = vmatprep.subr.mxu0 %v670
        %2043 = vmatpush1.msra.mxu0 %v669
        %2044 = vmatprep.subr.mxu0 %v686
        %2045 = vmatpush1.msra.mxu0 %v685
        %2046 = vmatprep.subr.mxu0 %v702
        %2047 = vmatpush1.msra.mxu0 %v701
        %2048 = vmatprep.subr.mxu0 %v718
        %2049 = vmatpush1.msra.mxu0 %v717
        %2050 = vmatprep.subr.mxu0 %v734
        %2051 = vmatpush1.msra.mxu0 %v733
        %2052 = vmatprep.subr.mxu0 %v750
        %2053 = vmatpush1.msra.mxu0 %v749
        %2054 = vmatprep.subr.mxu0 %v766
        %2055 = vmatpush1.msra.mxu0 %v765
        %2056 = vmatprep.subr.mxu0 %v782
        %2057 = vmatpush1.msra.mxu0 %v781
        %2058 = vmatprep.subr.mxu0 %v798
        %2059 = vmatpush1.msra.mxu0 %v797
        %2060 = vmatprep.subr.mxu0 %v814
        %2061 = vmatpush1.msra.mxu0 %v813
        %2062 = vmatprep.subr.mxu0 %v830
        %2063 = vmatpush1.msra.mxu0 %v829
        %2064 = vmatprep.subr.mxu0 %v846
        %2065 = vmatpush1.msra.mxu0 %v845
        %2066 = vmatprep.subr.mxu0 %v862
        %2067 = vmatpush1.msra.mxu0 %v861
        %2068 = vmatprep.subr.mxu0 %v878
        %2069 = vmatpush1.msra.mxu0 %v877
        %2070 = vmatprep.subr.mxu0 %v894
        %2071 = vmatpush1.msra.mxu0 %v893
        %2072 = vmatprep.subr.mxu0 %v910
        %2073 = vmatpush1.msra.mxu0 %v909
        %2074 = vmatprep.subr.mxu0 %v926
        %2075 = vmatpush1.msra.mxu0 %v925
        %2076 = vmatprep.mubr.f32.mxu0 %v390
        %2077 = vmatmul.mubr.f32.gmra.mrb[0].mxu0 %v389
        %v2078 = vpop.f32.mrb[0].mxu0
        %v2079 = vadd.f32 %v990, %v2078
        %v2080 = vpop.f32.mrb[0].mxu0
        %v2081 = vadd.f32 %v994, %v2080
        %2082 = vmatprep.mubr.f32.mxu0 %v392
        %2083 = vmatmul.mubr.f32.gmra.mrb[0].mxu0 %v391
        %v2084 = vpop.f32.mrb[0].mxu0
        %v2085 = vadd.f32 %v990, %v2084
        %v2086 = vpop.f32.mrb[0].mxu0
        %v2087 = vadd.f32 %v994, %v2086
        %2088 = vmatprep.mubr.f32.mxu0 %v394
        %2089 = vmatmul.mubr.f32.gmra.mrb[0].mxu0 %v393
        %v2090 = vpop.f32.mrb[0].mxu0
        %v2091 = vadd.f32 %v990, %v2090
        %v2092 = vpop.f32.mrb[0].mxu0
        %v2093 = vadd.f32 %v994, %v2092
        %2094 = vmatprep.mubr.f32.mxu0 %v396
        %2095 = vmatmul.mubr.f32.gmra.mrb[0].mxu0 %v395
        %v2096 = vpop.f32.mrb[0].mxu0
        %v2097 = vadd.f32 %v990, %v2096
        %v2098 = vpop.f32.mrb[0].mxu0
        %v2099 = vadd.f32 %v994, %v2098
        %2100 = vmatprep.mubr.f32.mxu0 %v398
        %2101 = vmatmul.mubr.f32.gmra.mrb[0].mxu0 %v397
        %v2102 = vpop.f32.mrb[0].mxu0
        %v2103 = vadd.f32 %v990, %v2102
        %v2104 = vpop.f32.mrb[0].mxu0
        %v2105 = vadd.f32 %v994, %v2104
        %2106 = vmatprep.mubr.f32.mxu0 %v400
        %2107 = vmatmul.mubr.f32.gmra.mrb[0].mxu0 %v399
        %v2108 = vpop.f32.mrb[0].mxu0
        %v2109 = vadd.f32 %v990, %v2108
        %v2110 = vpop.f32.mrb[0].mxu0
        %v2111 = vadd.f32 %v994, %v2110
        %2112 = vmatprep.mubr.f32.mxu0 %v402
        %2113 = vmatmul.mubr.f32.gmra.mrb[0].mxu0 %v401
        %v2114 = vpop.f32.mrb[0].mxu0
        %v2115 = vadd.f32 %v990, %v2114
        %v2116 = vpop.f32.mrb[0].mxu0
        %v2117 = vadd.f32 %v994, %v2116
        %2118 = vmatprep.mubr.f32.mxu0 %v404
        %2119 = vmatmul.mubr.f32.gmra.mrb[0].mxu0 %v403
        %v2120 = vpop.f32.mrb[0].mxu0
        %v2121 = vadd.f32 %v990, %v2120
        %v2122 = vpop.f32.mrb[0].mxu0
        %v2123 = vadd.f32 %v994, %v2122
        %2124 = vmatprep.mubr.f32.mxu0 %v406
        %2125 = vmatmul.mubr.f32.gmra.mrb[0].mxu0 %v405
        %v2126 = vpop.f32.mrb[0].mxu0
        %v2127 = vadd.f32 %v990, %v2126
        %v2128 = vpop.f32.mrb[0].mxu0
        %v2129 = vadd.f32 %v994, %v2128
        %2130 = vmatprep.mubr.f32.mxu0 %v408
        %2131 = vmatmul.mubr.f32.gmra.mrb[0].mxu0 %v407
        %v2132 = vpop.f32.mrb[0].mxu0
        %v2133 = vadd.f32 %v990, %v2132
        %v2134 = vpop.f32.mrb[0].mxu0
        %v2135 = vadd.f32 %v994, %v2134
        %2136 = vmatprep.mubr.f32.mxu0 %v410
        %2137 = vmatmul.mubr.f32.gmra.mrb[0].mxu0 %v409
        %v2138 = vpop.f32.mrb[0].mxu0
        %v2139 = vadd.f32 %v990, %v2138
        %v2140 = vpop.f32.mrb[0].mxu0
        %v2141 = vadd.f32 %v994, %v2140
        %2142 = vmatprep.mubr.f32.mxu0 %v412
        %2143 = vmatmul.mubr.f32.gmra.mrb[0].mxu0 %v411
        %v2144 = vpop.f32.mrb[0].mxu0
        %v2145 = vadd.f32 %v990, %v2144
        %v2146 = vpop.f32.mrb[0].mxu0
        %v2147 = vadd.f32 %v994, %v2146
        %2148 = vmatprep.mubr.f32.mxu0 %v414
        %2149 = vmatmul.mubr.f32.gmra.mrb[0].mxu0 %v413
        %v2150 = vpop.f32.mrb[0].mxu0
        %v2151 = vadd.f32 %v990, %v2150
        %v2152 = vpop.f32.mrb[0].mxu0
        %v2153 = vadd.f32 %v994, %v2152
        %2154 = vdwg.mxu0
        %v2155 = vmax.f32 %v1078, 0.0
        %v2156 = vmax.f32 %v1080, 0.0
        %v2157 = vmax.f32 %v1221, 0.0
        %v2158 = vmax.f32 %v1223, 0.0
        %v2159 = vmax.f32 %v1364, 0.0
        %v2160 = vmax.f32 %v1366, 0.0
        %v2161 = vmax.f32 %v1507, 0.0
        %v2162 = vmax.f32 %v1509, 0.0
        %v2163 = vmax.f32 %v1650, 0.0
        %v2164 = vmax.f32 %v1652, 0.0
        %v2165 = vmax.f32 %v1793, 0.0
        %v2166 = vmax.f32 %v1795, 0.0
        %v2167 = vmax.f32 %v1936, 0.0
        %v2168 = vmax.f32 %v1938, 0.0
        %v2169 = vmax.f32 %v2079, 0.0
        %v2170 = vmax.f32 %v2081, 0.0
        %v2171 = vmax.f32 %v1084, 0.0
        %v2172 = vmax.f32 %v1086, 0.0
        %v2173 = vmax.f32 %v1227, 0.0
        %v2174 = vmax.f32 %v1229, 0.0
        %v2175 = vmax.f32 %v1370, 0.0
        %v2176 = vmax.f32 %v1372, 0.0
        %v2177 = vmax.f32 %v1513, 0.0
        %v2178 = vmax.f32 %v1515, 0.0
        %v2179 = vmax.f32 %v1656, 0.0
        %v2180 = vmax.f32 %v1658, 0.0
        %v2181 = vmax.f32 %v1799, 0.0
        %v2182 = vmax.f32 %v1801, 0.0
        %v2183 = vmax.f32 %v1942, 0.0
        %v2184 = vmax.f32 %v1944, 0.0
        %v2185 = vmax.f32 %v2085, 0.0
        %v2186 = vmax.f32 %v2087, 0.0
        %v2187 = vmax.f32 %v1090, 0.0
        %v2188 = vmax.f32 %v1092, 0.0
        %v2189 = vmax.f32 %v1233, 0.0
        %v2190 = vmax.f32 %v1235, 0.0
        %v2191 = vmax.f32 %v1376, 0.0
        %v2192 = vmax.f32 %v1378, 0.0
        %v2193 = vmax.f32 %v1519, 0.0
        %v2194 = vmax.f32 %v1521, 0.0
        %v2195 = vmax.f32 %v1662, 0.0
        %v2196 = vmax.f32 %v1664, 0.0
        %v2197 = vmax.f32 %v1805, 0.0
        %v2198 = vmax.f32 %v1807, 0.0
        %v2199 = vmax.f32 %v1948, 0.0
        %v2200 = vmax.f32 %v1950, 0.0
        %v2201 = vmax.f32 %v2091, 0.0
        %v2202 = vmax.f32 %v2093, 0.0
        %v2203 = vmax.f32 %v1096, 0.0
        %v2204 = vmax.f32 %v1098, 0.0
        %v2205 = vmax.f32 %v1239, 0.0
        %v2206 = vmax.f32 %v1241, 0.0
        %v2207 = vmax.f32 %v1382, 0.0
        %v2208 = vmax.f32 %v1384, 0.0
        %v2209 = vmax.f32 %v1525, 0.0
        %v2210 = vmax.f32 %v1527, 0.0
        %v2211 = vmax.f32 %v1668, 0.0
        %v2212 = vmax.f32 %v1670, 0.0
        %v2213 = vmax.f32 %v1811, 0.0
        %v2214 = vmax.f32 %v1813, 0.0
        %v2215 = vmax.f32 %v1954, 0.0
        %v2216 = vmax.f32 %v1956, 0.0
        %v2217 = vmax.f32 %v2097, 0.0
        %v2218 = vmax.f32 %v2099, 0.0
        %v2219 = vmax.f32 %v1102, 0.0
        %v2220 = vmax.f32 %v1104, 0.0
        %v2221 = vmax.f32 %v1245, 0.0
        %v2222 = vmax.f32 %v1247, 0.0
        %v2223 = vmax.f32 %v1388, 0.0
        %v2224 = vmax.f32 %v1390, 0.0
        %v2225 = vmax.f32 %v1531, 0.0
        %v2226 = vmax.f32 %v1533, 0.0
        %v2227 = vmax.f32 %v1674, 0.0
        %v2228 = vmax.f32 %v1676, 0.0
        %v2229 = vmax.f32 %v1817, 0.0
        %v2230 = vmax.f32 %v1819, 0.0
        %v2231 = vmax.f32 %v1960, 0.0
        %v2232 = vmax.f32 %v1962, 0.0
        %v2233 = vmax.f32 %v2103, 0.0
        %v2234 = vmax.f32 %v2105, 0.0
        %v2235 = vmax.f32 %v1108, 0.0
        %v2236 = vmax.f32 %v1110, 0.0
        %v2237 = vmax.f32 %v1251, 0.0
        %v2238 = vmax.f32 %v1253, 0.0
        %v2239 = vmax.f32 %v1394, 0.0
        %v2240 = vmax.f32 %v1396, 0.0
        %v2241 = vmax.f32 %v1537, 0.0
        %v2242 = vmax.f32 %v1539, 0.0
        %v2243 = vmax.f32 %v1680, 0.0
        %v2244 = vmax.f32 %v1682, 0.0
        %v2245 = vmax.f32 %v1823, 0.0
        %v2246 = vmax.f32 %v1825, 0.0
        %v2247 = vmax.f32 %v1966, 0.0
        %v2248 = vmax.f32 %v1968, 0.0
        %v2249 = vmax.f32 %v2109, 0.0
        %v2250 = vmax.f32 %v2111, 0.0
        %v2251 = vmax.f32 %v1114, 0.0
        %v2252 = vmax.f32 %v1116, 0.0
        %v2253 = vmax.f32 %v1257, 0.0
        %v2254 = vmax.f32 %v1259, 0.0
        %v2255 = vmax.f32 %v1400, 0.0
        %v2256 = vmax.f32 %v1402, 0.0
        %v2257 = vmax.f32 %v1543, 0.0
        %v2258 = vmax.f32 %v1545, 0.0
        %v2259 = vmax.f32 %v1686, 0.0
        %v2260 = vmax.f32 %v1688, 0.0
        %v2261 = vmax.f32 %v1829, 0.0
        %v2262 = vmax.f32 %v1831, 0.0
        %v2263 = vmax.f32 %v1972, 0.0
        %v2264 = vmax.f32 %v1974, 0.0
        %v2265 = vmax.f32 %v2115, 0.0
        %v2266 = vmax.f32 %v2117, 0.0
        %v2267 = vmax.f32 %v1120, 0.0
        %v2268 = vmax.f32 %v1122, 0.0
        %v2269 = vmax.f32 %v1263, 0.0
        %v2270 = vmax.f32 %v1265, 0.0
        %v2271 = vmax.f32 %v1406, 0.0
        %v2272 = vmax.f32 %v1408, 0.0
        %v2273 = vmax.f32 %v1549, 0.0
        %v2274 = vmax.f32 %v1551, 0.0
        %v2275 = vmax.f32 %v1692, 0.0
        %v2276 = vmax.f32 %v1694, 0.0
        %v2277 = vmax.f32 %v1835, 0.0
        %v2278 = vmax.f32 %v1837, 0.0
        %v2279 = vmax.f32 %v1978, 0.0
        %v2280 = vmax.f32 %v1980, 0.0
        %v2281 = vmax.f32 %v2121, 0.0
        %v2282 = vmax.f32 %v2123, 0.0
        %v2283 = vmax.f32 %v1126, 0.0
        %v2284 = vmax.f32 %v1128, 0.0
        %v2285 = vmax.f32 %v1269, 0.0
        %v2286 = vmax.f32 %v1271, 0.0
        %v2287 = vmax.f32 %v1412, 0.0
        %v2288 = vmax.f32 %v1414, 0.0
        %v2289 = vmax.f32 %v1555, 0.0
        %v2290 = vmax.f32 %v1557, 0.0
        %v2291 = vmax.f32 %v1698, 0.0
        %v2292 = vmax.f32 %v1700, 0.0
        %v2293 = vmax.f32 %v1841, 0.0
        %v2294 = vmax.f32 %v1843, 0.0
        %v2295 = vmax.f32 %v1984, 0.0
        %v2296 = vmax.f32 %v1986, 0.0
        %v2297 = vmax.f32 %v2127, 0.0
        %v2298 = vmax.f32 %v2129, 0.0
        %v2299 = vmax.f32 %v1132, 0.0
        %v2300 = vmax.f32 %v1134, 0.0
        %v2301 = vmax.f32 %v1275, 0.0
        %v2302 = vmax.f32 %v1277, 0.0
        %v2303 = vmax.f32 %v1418, 0.0
        %v2304 = vmax.f32 %v1420, 0.0
        %v2305 = vmax.f32 %v1561, 0.0
        %v2306 = vmax.f32 %v1563, 0.0
        %v2307 = vmax.f32 %v1704, 0.0
        %v2308 = vmax.f32 %v1706, 0.0
        %v2309 = vmax.f32 %v1847, 0.0
        %v2310 = vmax.f32 %v1849, 0.0
        %v2311 = vmax.f32 %v1990, 0.0
        %v2312 = vmax.f32 %v1992, 0.0
        %v2313 = vmax.f32 %v2133, 0.0
        %v2314 = vmax.f32 %v2135, 0.0
        %v2315 = vmax.f32 %v1138, 0.0
        %v2316 = vmax.f32 %v1140, 0.0
        %v2317 = vmax.f32 %v1281, 0.0
        %v2318 = vmax.f32 %v1283, 0.0
        %v2319 = vmax.f32 %v1424, 0.0
        %v2320 = vmax.f32 %v1426, 0.0
        %v2321 = vmax.f32 %v1567, 0.0
        %v2322 = vmax.f32 %v1569, 0.0
        %v2323 = vmax.f32 %v1710, 0.0
        %v2324 = vmax.f32 %v1712, 0.0
        %v2325 = vmax.f32 %v1853, 0.0
        %v2326 = vmax.f32 %v1855, 0.0
        %v2327 = vmax.f32 %v1996, 0.0
        %v2328 = vmax.f32 %v1998, 0.0
        %v2329 = vmax.f32 %v2139, 0.0
        %v2330 = vmax.f32 %v2141, 0.0
        %v2331 = vmax.f32 %v1144, 0.0
        %v2332 = vmax.f32 %v1146, 0.0
        %v2333 = vmax.f32 %v1287, 0.0
        %v2334 = vmax.f32 %v1289, 0.0
        %v2335 = vmax.f32 %v1430, 0.0
        %v2336 = vmax.f32 %v1432, 0.0
        %v2337 = vmax.f32 %v1573, 0.0
        %v2338 = vmax.f32 %v1575, 0.0
        %v2339 = vmax.f32 %v1716, 0.0
        %v2340 = vmax.f32 %v1718, 0.0
        %v2341 = vmax.f32 %v1859, 0.0
        %v2342 = vmax.f32 %v1861, 0.0
        %v2343 = vmax.f32 %v2002, 0.0
        %v2344 = vmax.f32 %v2004, 0.0
        %v2345 = vmax.f32 %v2145, 0.0
        %v2346 = vmax.f32 %v2147, 0.0
        %v2347 = vmax.f32 %v1150, 0.0
        %v2348 = vmax.f32 %v1152, 0.0
        %v2349 = vmax.f32 %v1293, 0.0
        %v2350 = vmax.f32 %v1295, 0.0
        %v2351 = vmax.f32 %v1436, 0.0
        %v2352 = vmax.f32 %v1438, 0.0
        %v2353 = vmax.f32 %v1579, 0.0
        %v2354 = vmax.f32 %v1581, 0.0
        %v2355 = vmax.f32 %v1722, 0.0
        %v2356 = vmax.f32 %v1724, 0.0
        %v2357 = vmax.f32 %v1865, 0.0
        %v2358 = vmax.f32 %v1867, 0.0
        %v2359 = vmax.f32 %v2008, 0.0
        %v2360 = vmax.f32 %v2010, 0.0
        %v2361 = vmax.f32 %v2151, 0.0
        %v2362 = vmax.f32 %v2153, 0.0
        %v2363 = vld [vmem:[#allocation6] sm:$0xff]
        %v2364 = vld [vmem:[#allocation6 + $0x8] sm:$0xff]
        %v2365 = vld [vmem:[#allocation6 + $0x10] sm:$0xff]
        %v2366 = vld [vmem:[#allocation6 + $0x18] sm:$0xff]
        %v2367 = vld [vmem:[#allocation6 + $0x20] sm:$0xff]
        %v2368 = vld [vmem:[#allocation6 + $0x28] sm:$0xff]
        %v2369 = vld [vmem:[#allocation6 + $0x30] sm:$0xff]
        %v2370 = vld [vmem:[#allocation6 + $0x38] sm:$0xff]
        %v2371 = vld [vmem:[#allocation6 + $0x40] sm:$0xff]
        %v2372 = vld [vmem:[#allocation6 + $0x48] sm:$0xff]
        %v2373 = vld [vmem:[#allocation6 + $0x50] sm:$0xff]
        %v2374 = vld [vmem:[#allocation6 + $0x58] sm:$0xff]
        %v2375 = vld [vmem:[#allocation6 + $0x60] sm:$0xff]
        %v2376 = vld [vmem:[#allocation6 + $0x68] sm:$0xff]
        %v2377 = vld [vmem:[#allocation6 + $0x70] sm:$0xff]
        %v2378 = vld [vmem:[#allocation6 + $0x78] sm:$0xff]
        %v2379 = vld [vmem:[#allocation6 + $0x80] sm:$0xff]
        %v2380 = vld [vmem:[#allocation6 + $0x88] sm:$0xff]
        %v2381 = vld [vmem:[#allocation6 + $0x90] sm:$0xff]
        %v2382 = vld [vmem:[#allocation6 + $0x98] sm:$0xff]
        %v2383 = vld [vmem:[#allocation6 + $0xa0] sm:$0xff]
        %v2384 = vld [vmem:[#allocation6 + $0xa8] sm:$0xff]
        %v2385 = vld [vmem:[#allocation6 + $0xb0] sm:$0xff]
        %v2386 = vld [vmem:[#allocation6 + $0xb8] sm:$0xff]
        %v2387 = vld [vmem:[#allocation6 + $0xc0] sm:$0xff]
        %v2388 = vld [vmem:[#allocation6 + $0xc8] sm:$0xff]
        %v2389 = vld [vmem:[#allocation6 + $0xd0] sm:$0xff]
        %v2390 = vld [vmem:[#allocation6 + $0xd8] sm:$0xff]
        %v2391 = vld [vmem:[#allocation6 + $0xe0] sm:$0xff]
        %v2392 = vld [vmem:[#allocation6 + $0xe8] sm:$0xff]
        %v2393 = vld [vmem:[#allocation6 + $0xf0] sm:$0xff]
        %v2394 = vld [vmem:[#allocation6 + $0xf8] sm:$0xff]
        %v2395 = vld [vmem:[#allocation6 + $0x100] sm:$0xff]
        %v2396 = vld [vmem:[#allocation6 + $0x108] sm:$0xff]
        %v2397 = vld [vmem:[#allocation6 + $0x110] sm:$0xff]
        %v2398 = vld [vmem:[#allocation6 + $0x118] sm:$0xff]
        %v2399 = vld [vmem:[#allocation6 + $0x120] sm:$0xff]
        %v2400 = vld [vmem:[#allocation6 + $0x128] sm:$0xff]
        %v2401 = vld [vmem:[#allocation6 + $0x130] sm:$0xff]
        %v2402 = vld [vmem:[#allocation6 + $0x138] sm:$0xff]
        %v2403 = vld [vmem:[#allocation6 + $0x140] sm:$0xff]
        %v2404 = vld [vmem:[#allocation6 + $0x148] sm:$0xff]
        %v2405 = vld [vmem:[#allocation6 + $0x150] sm:$0xff]
        %v2406 = vld [vmem:[#allocation6 + $0x158] sm:$0xff]
        %v2407 = vld [vmem:[#allocation6 + $0x160] sm:$0xff]
        %v2408 = vld [vmem:[#allocation6 + $0x168] sm:$0xff]
        %v2409 = vld [vmem:[#allocation6 + $0x170] sm:$0xff]
        %v2410 = vld [vmem:[#allocation6 + $0x178] sm:$0xff]
        %v2411 = vld [vmem:[#allocation6 + $0x180] sm:$0xff]
        %v2412 = vld [vmem:[#allocation6 + $0x188] sm:$0xff]
        %v2413 = vld [vmem:[#allocation6 + $0x190] sm:$0xff]
        %v2414 = vld [vmem:[#allocation6 + $0x198] sm:$0xff]
        %v2415 = vld [vmem:[#allocation6 + $0x1a0] sm:$0xff]
        %v2416 = vld [vmem:[#allocation6 + $0x1a8] sm:$0xff]
        %v2417 = vld [vmem:[#allocation6 + $0x1b0] sm:$0xff]
        %v2418 = vld [vmem:[#allocation6 + $0x1b8] sm:$0xff]
        %v2419 = vld [vmem:[#allocation6 + $0x1c0] sm:$0xff]
        %v2420 = vld [vmem:[#allocation6 + $0x1c8] sm:$0xff]
        %v2421 = vld [vmem:[#allocation6 + $0x1d0] sm:$0xff]
        %v2422 = vld [vmem:[#allocation6 + $0x1d8] sm:$0xff]
        %v2423 = vld [vmem:[#allocation6 + $0x1e0] sm:$0xff]
        %v2424 = vld [vmem:[#allocation6 + $0x1e8] sm:$0xff]
        %v2425 = vld [vmem:[#allocation6 + $0x1f0] sm:$0xff]
        %v2426 = vld [vmem:[#allocation6 + $0x1f8] sm:$0xff]
        %v2427 = vld [vmem:[#allocation6 + $0x200] sm:$0xff]
        %v2428 = vld [vmem:[#allocation6 + $0x208] sm:$0xff]
        %v2429 = vld [vmem:[#allocation6 + $0x210] sm:$0xff]
        %v2430 = vld [vmem:[#allocation6 + $0x218] sm:$0xff]
        %v2431 = vld [vmem:[#allocation6 + $0x220] sm:$0xff]
        %v2432 = vld [vmem:[#allocation6 + $0x228] sm:$0xff]
        %v2433 = vld [vmem:[#allocation6 + $0x230] sm:$0xff]
        %v2434 = vld [vmem:[#allocation6 + $0x238] sm:$0xff]
        %v2435 = vld [vmem:[#allocation6 + $0x240] sm:$0xff]
        %v2436 = vld [vmem:[#allocation6 + $0x248] sm:$0xff]
        %v2437 = vld [vmem:[#allocation6 + $0x250] sm:$0xff]
        %v2438 = vld [vmem:[#allocation6 + $0x258] sm:$0xff]
        %v2439 = vld [vmem:[#allocation6 + $0x260] sm:$0xff]
        %v2440 = vld [vmem:[#allocation6 + $0x268] sm:$0xff]
        %v2441 = vld [vmem:[#allocation6 + $0x270] sm:$0xff]
        %v2442 = vld [vmem:[#allocation6 + $0x278] sm:$0xff]
        %v2443 = vld [vmem:[#allocation6 + $0x280] sm:$0xff]
        %v2444 = vld [vmem:[#allocation6 + $0x288] sm:$0xff]
        %v2445 = vld [vmem:[#allocation6 + $0x290] sm:$0xff]
        %v2446 = vld [vmem:[#allocation6 + $0x298] sm:$0xff]
        %v2447 = vld [vmem:[#allocation6 + $0x2a0] sm:$0xff]
        %v2448 = vld [vmem:[#allocation6 + $0x2a8] sm:$0xff]
        %v2449 = vld [vmem:[#allocation6 + $0x2b0] sm:$0xff]
        %v2450 = vld [vmem:[#allocation6 + $0x2b8] sm:$0xff]
        %v2451 = vld [vmem:[#allocation6 + $0x2c0] sm:$0xff]
        %v2452 = vld [vmem:[#allocation6 + $0x2c8] sm:$0xff]
        %v2453 = vld [vmem:[#allocation6 + $0x2d0] sm:$0xff]
        %v2454 = vld [vmem:[#allocation6 + $0x2d8] sm:$0xff]
        %v2455 = vld [vmem:[#allocation6 + $0x2e0] sm:$0xff]
        %v2456 = vld [vmem:[#allocation6 + $0x2e8] sm:$0xff]
        %v2457 = vld [vmem:[#allocation6 + $0x2f0] sm:$0xff]
        %v2458 = vld [vmem:[#allocation6 + $0x2f8] sm:$0xff]
        %v2459 = vld [vmem:[#allocation6 + $0x300] sm:$0xff]
        %v2460 = vld [vmem:[#allocation6 + $0x308] sm:$0xff]
        %v2461 = vld [vmem:[#allocation6 + $0x310] sm:$0xff]
        %v2462 = vld [vmem:[#allocation6 + $0x318] sm:$0xff]
        %v2463 = vld [vmem:[#allocation6 + $0x320] sm:$0xff]
        %v2464 = vld [vmem:[#allocation6 + $0x328] sm:$0xff]
        %v2465 = vld [vmem:[#allocation6 + $0x330] sm:$0xff]
        %v2466 = vld [vmem:[#allocation6 + $0x338] sm:$0xff]
        %v2467 = vld [vmem:[#allocation6 + $0x340] sm:$0xff]
        %v2468 = vld [vmem:[#allocation6 + $0x348] sm:$0xff]
        %v2469 = vld [vmem:[#allocation6 + $0x350] sm:$0xff]
        %v2470 = vld [vmem:[#allocation6 + $0x358] sm:$0xff]
        %v2471 = vld [vmem:[#allocation6 + $0x360] sm:$0xff]
        %v2472 = vld [vmem:[#allocation6 + $0x368] sm:$0xff]
        %v2473 = vld [vmem:[#allocation6 + $0x370] sm:$0xff]
        %v2474 = vld [vmem:[#allocation6 + $0x378] sm:$0xff]
        %v2475 = vld [vmem:[#allocation6 + $0x380] sm:$0xff]
        %v2476 = vld [vmem:[#allocation6 + $0x388] sm:$0xff]
        %v2477 = vld [vmem:[#allocation6 + $0x390] sm:$0xff]
        %v2478 = vld [vmem:[#allocation6 + $0x398] sm:$0xff]
        %v2479 = vld [vmem:[#allocation6 + $0x3a0] sm:$0xff]
        %v2480 = vld [vmem:[#allocation6 + $0x3a8] sm:$0xff]
        %v2481 = vld [vmem:[#allocation6 + $0x3b0] sm:$0xff]
        %v2482 = vld [vmem:[#allocation6 + $0x3b8] sm:$0xff]
        %v2483 = vld [vmem:[#allocation6 + $0x3c0] sm:$0xff]
        %v2484 = vld [vmem:[#allocation6 + $0x3c8] sm:$0xff]
        %v2485 = vld [vmem:[#allocation6 + $0x3d0] sm:$0xff]
        %v2486 = vld [vmem:[#allocation6 + $0x3d8] sm:$0xff]
        %v2487 = vld [vmem:[#allocation6 + $0x3e0] sm:$0xff]
        %v2488 = vld [vmem:[#allocation6 + $0x3e8] sm:$0xff]
        %v2489 = vld [vmem:[#allocation6 + $0x3f0] sm:$0xff]
        %v2490 = vld [vmem:[#allocation6 + $0x3f8] sm:$0xff]
        %v2491 = vld [vmem:[#allocation6 + $0x400] sm:$0xff]
        %v2492 = vld [vmem:[#allocation6 + $0x408] sm:$0xff]
        %v2493 = vld [vmem:[#allocation6 + $0x410] sm:$0xff]
        %v2494 = vld [vmem:[#allocation6 + $0x418] sm:$0xff]
        %v2495 = vld [vmem:[#allocation6 + $0x420] sm:$0xff]
        %v2496 = vld [vmem:[#allocation6 + $0x428] sm:$0xff]
        %v2497 = vld [vmem:[#allocation6 + $0x430] sm:$0xff]
        %v2498 = vld [vmem:[#allocation6 + $0x438] sm:$0xff]
        %v2499 = vld [vmem:[#allocation6 + $0x440] sm:$0xff]
        %v2500 = vld [vmem:[#allocation6 + $0x448] sm:$0xff]
        %v2501 = vld [vmem:[#allocation6 + $0x450] sm:$0xff]
        %v2502 = vld [vmem:[#allocation6 + $0x458] sm:$0xff]
        %v2503 = vld [vmem:[#allocation6 + $0x460] sm:$0xff]
        %v2504 = vld [vmem:[#allocation6 + $0x468] sm:$0xff]
        %v2505 = vld [vmem:[#allocation6 + $0x470] sm:$0xff]
        %v2506 = vld [vmem:[#allocation6 + $0x478] sm:$0xff]
        %v2507 = vld [vmem:[#allocation6 + $0x480] sm:$0xff]
        %v2508 = vld [vmem:[#allocation6 + $0x488] sm:$0xff]
        %v2509 = vld [vmem:[#allocation6 + $0x490] sm:$0xff]
        %v2510 = vld [vmem:[#allocation6 + $0x498] sm:$0xff]
        %v2511 = vld [vmem:[#allocation6 + $0x4a0] sm:$0xff]
        %v2512 = vld [vmem:[#allocation6 + $0x4a8] sm:$0xff]
        %v2513 = vld [vmem:[#allocation6 + $0x4b0] sm:$0xff]
        %v2514 = vld [vmem:[#allocation6 + $0x4b8] sm:$0xff]
        %v2515 = vld [vmem:[#allocation6 + $0x4c0] sm:$0xff]
        %v2516 = vld [vmem:[#allocation6 + $0x4c8] sm:$0xff]
        %v2517 = vld [vmem:[#allocation6 + $0x4d0] sm:$0xff]
        %v2518 = vld [vmem:[#allocation6 + $0x4d8] sm:$0xff]
        %v2519 = vld [vmem:[#allocation6 + $0x4e0] sm:$0xff]
        %v2520 = vld [vmem:[#allocation6 + $0x4e8] sm:$0xff]
        %v2521 = vld [vmem:[#allocation6 + $0x4f0] sm:$0xff]
        %v2522 = vld [vmem:[#allocation6 + $0x4f8] sm:$0xff]
        %v2523 = vld [vmem:[#allocation6 + $0x500] sm:$0xff]
        %v2524 = vld [vmem:[#allocation6 + $0x508] sm:$0xff]
        %v2525 = vld [vmem:[#allocation6 + $0x510] sm:$0xff]
        %v2526 = vld [vmem:[#allocation6 + $0x518] sm:$0xff]
        %v2527 = vld [vmem:[#allocation6 + $0x520] sm:$0xff]
        %v2528 = vld [vmem:[#allocation6 + $0x528] sm:$0xff]
        %v2529 = vld [vmem:[#allocation6 + $0x530] sm:$0xff]
        %v2530 = vld [vmem:[#allocation6 + $0x538] sm:$0xff]
        %v2531 = vld [vmem:[#allocation6 + $0x540] sm:$0xff]
        %v2532 = vld [vmem:[#allocation6 + $0x548] sm:$0xff]
        %v2533 = vld [vmem:[#allocation6 + $0x550] sm:$0xff]
        %v2534 = vld [vmem:[#allocation6 + $0x558] sm:$0xff]
        %v2535 = vld [vmem:[#allocation6 + $0x560] sm:$0xff]
        %v2536 = vld [vmem:[#allocation6 + $0x568] sm:$0xff]
        %v2537 = vld [vmem:[#allocation6 + $0x570] sm:$0xff]
        %v2538 = vld [vmem:[#allocation6 + $0x578] sm:$0xff]
        %v2539 = vld [vmem:[#allocation6 + $0x580] sm:$0xff]
        %v2540 = vld [vmem:[#allocation6 + $0x588] sm:$0xff]
        %v2541 = vld [vmem:[#allocation6 + $0x590] sm:$0xff]
        %v2542 = vld [vmem:[#allocation6 + $0x598] sm:$0xff]
        %v2543 = vld [vmem:[#allocation6 + $0x5a0] sm:$0xff]
        %v2544 = vld [vmem:[#allocation6 + $0x5a8] sm:$0xff]
        %v2545 = vld [vmem:[#allocation6 + $0x5b0] sm:$0xff]
        %v2546 = vld [vmem:[#allocation6 + $0x5b8] sm:$0xff]
        %v2547 = vld [vmem:[#allocation6 + $0x5c0] sm:$0xff]
        %v2548 = vld [vmem:[#allocation6 + $0x5c8] sm:$0xff]
        %v2549 = vld [vmem:[#allocation6 + $0x5d0] sm:$0xff]
        %v2550 = vld [vmem:[#allocation6 + $0x5d8] sm:$0xff]
        %v2551 = vld [vmem:[#allocation6 + $0x5e0] sm:$0xff]
        %v2552 = vld [vmem:[#allocation6 + $0x5e8] sm:$0xff]
        %v2553 = vld [vmem:[#allocation6 + $0x5f0] sm:$0xff]
        %v2554 = vld [vmem:[#allocation6 + $0x5f8] sm:$0xff]
        %v2555 = vld [vmem:[#allocation6 + $0x600] sm:$0xff]
        %v2556 = vld [vmem:[#allocation6 + $0x608] sm:$0xff]
        %v2557 = vld [vmem:[#allocation6 + $0x610] sm:$0xff]
        %v2558 = vld [vmem:[#allocation6 + $0x618] sm:$0xff]
        %v2559 = vld [vmem:[#allocation6 + $0x620] sm:$0xff]
        %v2560 = vld [vmem:[#allocation6 + $0x628] sm:$0xff]
        %v2561 = vld [vmem:[#allocation6 + $0x630] sm:$0xff]
        %v2562 = vld [vmem:[#allocation6 + $0x638] sm:$0xff]
        %v2563 = vld [vmem:[#allocation6 + $0x640] sm:$0xff]
        %v2564 = vld [vmem:[#allocation6 + $0x648] sm:$0xff]
        %v2565 = vld [vmem:[#allocation6 + $0x650] sm:$0xff]
        %v2566 = vld [vmem:[#allocation6 + $0x658] sm:$0xff]
        %v2567 = vld [vmem:[#allocation6 + $0x660] sm:$0xff]
        %v2568 = vld [vmem:[#allocation6 + $0x668] sm:$0xff]
        %v2569 = vld [vmem:[#allocation6 + $0x670] sm:$0xff]
        %v2570 = vld [vmem:[#allocation6 + $0x678] sm:$0xff]
        %v2571 = vld [vmem:[#allocation6 + $0x680] sm:$0xff]
        %v2572 = vld [vmem:[#allocation6 + $0x688] sm:$0xff]
        %v2573 = vld [vmem:[#allocation6 + $0x690] sm:$0xff]
        %v2574 = vld [vmem:[#allocation6 + $0x698] sm:$0xff]
        %v2575 = vld [vmem:[#allocation6 + $0x6a0] sm:$0xff]
        %v2576 = vld [vmem:[#allocation6 + $0x6a8] sm:$0xff]
        %v2577 = vld [vmem:[#allocation6 + $0x6b0] sm:$0xff]
        %v2578 = vld [vmem:[#allocation6 + $0x6b8] sm:$0xff]
        %v2579 = vld [vmem:[#allocation6 + $0x6c0] sm:$0xff]
        %v2580 = vld [vmem:[#allocation6 + $0x6c8] sm:$0xff]
        %v2581 = vld [vmem:[#allocation6 + $0x6d0] sm:$0xff]
        %v2582 = vld [vmem:[#allocation6 + $0x6d8] sm:$0xff]
        %v2583 = vld [vmem:[#allocation6 + $0x6e0] sm:$0xff]
        %v2584 = vld [vmem:[#allocation6 + $0x6e8] sm:$0xff]
        %v2585 = vld [vmem:[#allocation6 + $0x6f0] sm:$0xff]
        %v2586 = vld [vmem:[#allocation6 + $0x6f8] sm:$0xff]
        %v2587 = vld [vmem:[#allocation6 + $0x700] sm:$0xff]
        %v2588 = vld [vmem:[#allocation6 + $0x708] sm:$0xff]
        %v2589 = vld [vmem:[#allocation6 + $0x710] sm:$0xff]
        %v2590 = vld [vmem:[#allocation6 + $0x718] sm:$0xff]
        %v2591 = vld [vmem:[#allocation6 + $0x720] sm:$0xff]
        %v2592 = vld [vmem:[#allocation6 + $0x728] sm:$0xff]
        %v2593 = vld [vmem:[#allocation6 + $0x730] sm:$0xff]
        %v2594 = vld [vmem:[#allocation6 + $0x738] sm:$0xff]
        %v2595 = vld [vmem:[#allocation6 + $0x740] sm:$0xff]
        %v2596 = vld [vmem:[#allocation6 + $0x748] sm:$0xff]
        %v2597 = vld [vmem:[#allocation6 + $0x750] sm:$0xff]
        %v2598 = vld [vmem:[#allocation6 + $0x758] sm:$0xff]
        %v2599 = vld [vmem:[#allocation6 + $0x760] sm:$0xff]
        %v2600 = vld [vmem:[#allocation6 + $0x768] sm:$0xff]
        %v2601 = vld [vmem:[#allocation6 + $0x770] sm:$0xff]
        %v2602 = vld [vmem:[#allocation6 + $0x778] sm:$0xff]
        %v2603 = vld [vmem:[#allocation6 + $0x780] sm:$0xff]
        %v2604 = vld [vmem:[#allocation6 + $0x788] sm:$0xff]
        %v2605 = vld [vmem:[#allocation6 + $0x790] sm:$0xff]
        %v2606 = vld [vmem:[#allocation6 + $0x798] sm:$0xff]
        %v2607 = vld [vmem:[#allocation6 + $0x7a0] sm:$0xff]
        %v2608 = vld [vmem:[#allocation6 + $0x7a8] sm:$0xff]
        %v2609 = vld [vmem:[#allocation6 + $0x7b0] sm:$0xff]
        %v2610 = vld [vmem:[#allocation6 + $0x7b8] sm:$0xff]
        %v2611 = vld [vmem:[#allocation6 + $0x7c0] sm:$0xff]
        %v2612 = vld [vmem:[#allocation6 + $0x7c8] sm:$0xff]
        %v2613 = vld [vmem:[#allocation6 + $0x7d0] sm:$0xff]
        %v2614 = vld [vmem:[#allocation6 + $0x7d8] sm:$0xff]
        %v2615 = vld [vmem:[#allocation6 + $0x7e0] sm:$0xff]
        %v2616 = vld [vmem:[#allocation6 + $0x7e8] sm:$0xff]
        %v2617 = vld [vmem:[#allocation6 + $0x7f0] sm:$0xff]
        %v2618 = vld [vmem:[#allocation6 + $0x7f8] sm:$0xff]
        %v2619 = vld [vmem:[#allocation6 + $0x800] sm:$0xff]
        %v2620 = vld [vmem:[#allocation6 + $0x808] sm:$0xff]
        %v2621 = vld [vmem:[#allocation6 + $0x810] sm:$0xff]
        %v2622 = vld [vmem:[#allocation6 + $0x818] sm:$0xff]
        %v2623 = vld [vmem:[#allocation6 + $0x820] sm:$0xff]
        %v2624 = vld [vmem:[#allocation6 + $0x828] sm:$0xff]
        %v2625 = vld [vmem:[#allocation6 + $0x830] sm:$0xff]
        %v2626 = vld [vmem:[#allocation6 + $0x838] sm:$0xff]
        %v2627 = vld [vmem:[#allocation6 + $0x840] sm:$0xff]
        %v2628 = vld [vmem:[#allocation6 + $0x848] sm:$0xff]
        %v2629 = vld [vmem:[#allocation6 + $0x850] sm:$0xff]
        %v2630 = vld [vmem:[#allocation6 + $0x858] sm:$0xff]
        %v2631 = vld [vmem:[#allocation6 + $0x860] sm:$0xff]
        %v2632 = vld [vmem:[#allocation6 + $0x868] sm:$0xff]
        %v2633 = vld [vmem:[#allocation6 + $0x870] sm:$0xff]
        %v2634 = vld [vmem:[#allocation6 + $0x878] sm:$0xff]
        %v2635 = vld [vmem:[#allocation6 + $0x880] sm:$0xff]
        %v2636 = vld [vmem:[#allocation6 + $0x888] sm:$0xff]
        %v2637 = vld [vmem:[#allocation6 + $0x890] sm:$0xff]
        %v2638 = vld [vmem:[#allocation6 + $0x898] sm:$0xff]
        %v2639 = vld [vmem:[#allocation6 + $0x8a0] sm:$0xff]
        %v2640 = vld [vmem:[#allocation6 + $0x8a8] sm:$0xff]
        %v2641 = vld [vmem:[#allocation6 + $0x8b0] sm:$0xff]
        %v2642 = vld [vmem:[#allocation6 + $0x8b8] sm:$0xff]
        %v2643 = vld [vmem:[#allocation6 + $0x8c0] sm:$0xff]
        %v2644 = vld [vmem:[#allocation6 + $0x8c8] sm:$0xff]
        %v2645 = vld [vmem:[#allocation6 + $0x8d0] sm:$0xff]
        %v2646 = vld [vmem:[#allocation6 + $0x8d8] sm:$0xff]
        %v2647 = vld [vmem:[#allocation6 + $0x8e0] sm:$0xff]
        %v2648 = vld [vmem:[#allocation6 + $0x8e8] sm:$0xff]
        %v2649 = vld [vmem:[#allocation6 + $0x8f0] sm:$0xff]
        %v2650 = vld [vmem:[#allocation6 + $0x8f8] sm:$0xff]
        %v2651 = vld [vmem:[#allocation6 + $0x900] sm:$0xff]
        %v2652 = vld [vmem:[#allocation6 + $0x908] sm:$0xff]
        %v2653 = vld [vmem:[#allocation6 + $0x910] sm:$0xff]
        %v2654 = vld [vmem:[#allocation6 + $0x918] sm:$0xff]
        %v2655 = vld [vmem:[#allocation6 + $0x920] sm:$0xff]
        %v2656 = vld [vmem:[#allocation6 + $0x928] sm:$0xff]
        %v2657 = vld [vmem:[#allocation6 + $0x930] sm:$0xff]
        %v2658 = vld [vmem:[#allocation6 + $0x938] sm:$0xff]
        %v2659 = vld [vmem:[#allocation6 + $0x940] sm:$0xff]
        %v2660 = vld [vmem:[#allocation6 + $0x948] sm:$0xff]
        %v2661 = vld [vmem:[#allocation6 + $0x950] sm:$0xff]
        %v2662 = vld [vmem:[#allocation6 + $0x958] sm:$0xff]
        %v2663 = vld [vmem:[#allocation6 + $0x960] sm:$0xff]
        %v2664 = vld [vmem:[#allocation6 + $0x968] sm:$0xff]
        %v2665 = vld [vmem:[#allocation6 + $0x970] sm:$0xff]
        %v2666 = vld [vmem:[#allocation6 + $0x978] sm:$0xff]
        %v2667 = vld [vmem:[#allocation6 + $0x980] sm:$0xff]
        %v2668 = vld [vmem:[#allocation6 + $0x988] sm:$0xff]
        %v2669 = vld [vmem:[#allocation6 + $0x990] sm:$0xff]
        %v2670 = vld [vmem:[#allocation6 + $0x998] sm:$0xff]
        %v2671 = vld [vmem:[#allocation6 + $0x9a0] sm:$0xff]
        %v2672 = vld [vmem:[#allocation6 + $0x9a8] sm:$0xff]
        %v2673 = vld [vmem:[#allocation6 + $0x9b0] sm:$0xff]
        %v2674 = vld [vmem:[#allocation6 + $0x9b8] sm:$0xff]
        %v2675 = vld [vmem:[#allocation6 + $0x9c0] sm:$0xff]
        %v2676 = vld [vmem:[#allocation6 + $0x9c8] sm:$0xff]
        %v2677 = vld [vmem:[#allocation6 + $0x9d0] sm:$0xff]
        %v2678 = vld [vmem:[#allocation6 + $0x9d8] sm:$0xff]
        %v2679 = vld [vmem:[#allocation6 + $0x9e0] sm:$0xff]
        %v2680 = vld [vmem:[#allocation6 + $0x9e8] sm:$0xff]
        %v2681 = vld [vmem:[#allocation6 + $0x9f0] sm:$0xff]
        %v2682 = vld [vmem:[#allocation6 + $0x9f8] sm:$0xff]
        %v2683 = vld [vmem:[#allocation6 + $0xa00] sm:$0xff]
        %v2684 = vld [vmem:[#allocation6 + $0xa08] sm:$0xff]
        %v2685 = vld [vmem:[#allocation6 + $0xa10] sm:$0xff]
        %v2686 = vld [vmem:[#allocation6 + $0xa18] sm:$0xff]
        %v2687 = vld [vmem:[#allocation6 + $0xa20] sm:$0xff]
        %v2688 = vld [vmem:[#allocation6 + $0xa28] sm:$0xff]
        %v2689 = vld [vmem:[#allocation6 + $0xa30] sm:$0xff]
        %v2690 = vld [vmem:[#allocation6 + $0xa38] sm:$0xff]
        %v2691 = vld [vmem:[#allocation6 + $0xa40] sm:$0xff]
        %v2692 = vld [vmem:[#allocation6 + $0xa48] sm:$0xff]
        %v2693 = vld [vmem:[#allocation6 + $0xa50] sm:$0xff]
        %v2694 = vld [vmem:[#allocation6 + $0xa58] sm:$0xff]
        %v2695 = vld [vmem:[#allocation6 + $0xa60] sm:$0xff]
        %v2696 = vld [vmem:[#allocation6 + $0xa68] sm:$0xff]
        %v2697 = vld [vmem:[#allocation6 + $0xa70] sm:$0xff]
        %v2698 = vld [vmem:[#allocation6 + $0xa78] sm:$0xff]
        %v2699 = vld [vmem:[#allocation6 + $0xa80] sm:$0xff]
        %v2700 = vld [vmem:[#allocation6 + $0xa88] sm:$0xff]
        %v2701 = vld [vmem:[#allocation6 + $0xa90] sm:$0xff]
        %v2702 = vld [vmem:[#allocation6 + $0xa98] sm:$0xff]
        %v2703 = vld [vmem:[#allocation6 + $0xaa0] sm:$0xff]
        %v2704 = vld [vmem:[#allocation6 + $0xaa8] sm:$0xff]
        %v2705 = vld [vmem:[#allocation6 + $0xab0] sm:$0xff]
        %v2706 = vld [vmem:[#allocation6 + $0xab8] sm:$0xff]
        %v2707 = vld [vmem:[#allocation6 + $0xac0] sm:$0xff]
        %v2708 = vld [vmem:[#allocation6 + $0xac8] sm:$0xff]
        %v2709 = vld [vmem:[#allocation6 + $0xad0] sm:$0xff]
        %v2710 = vld [vmem:[#allocation6 + $0xad8] sm:$0xff]
        %v2711 = vld [vmem:[#allocation6 + $0xae0] sm:$0xff]
        %v2712 = vld [vmem:[#allocation6 + $0xae8] sm:$0xff]
        %v2713 = vld [vmem:[#allocation6 + $0xaf0] sm:$0xff]
        %v2714 = vld [vmem:[#allocation6 + $0xaf8] sm:$0xff]
        %v2715 = vld [vmem:[#allocation6 + $0xb00] sm:$0xff]
        %v2716 = vld [vmem:[#allocation6 + $0xb08] sm:$0xff]
        %v2717 = vld [vmem:[#allocation6 + $0xb10] sm:$0xff]
        %v2718 = vld [vmem:[#allocation6 + $0xb18] sm:$0xff]
        %v2719 = vld [vmem:[#allocation6 + $0xb20] sm:$0xff]
        %v2720 = vld [vmem:[#allocation6 + $0xb28] sm:$0xff]
        %v2721 = vld [vmem:[#allocation6 + $0xb30] sm:$0xff]
        %v2722 = vld [vmem:[#allocation6 + $0xb38] sm:$0xff]
        %v2723 = vld [vmem:[#allocation6 + $0xb40] sm:$0xff]
        %v2724 = vld [vmem:[#allocation6 + $0xb48] sm:$0xff]
        %v2725 = vld [vmem:[#allocation6 + $0xb50] sm:$0xff]
        %v2726 = vld [vmem:[#allocation6 + $0xb58] sm:$0xff]
        %v2727 = vld [vmem:[#allocation6 + $0xb60] sm:$0xff]
        %v2728 = vld [vmem:[#allocation6 + $0xb68] sm:$0xff]
        %v2729 = vld [vmem:[#allocation6 + $0xb70] sm:$0xff]
        %v2730 = vld [vmem:[#allocation6 + $0xb78] sm:$0xff]
        %v2731 = vld [vmem:[#allocation6 + $0xb80] sm:$0xff]
        %v2732 = vld [vmem:[#allocation6 + $0xb88] sm:$0xff]
        %v2733 = vld [vmem:[#allocation6 + $0xb90] sm:$0xff]
        %v2734 = vld [vmem:[#allocation6 + $0xb98] sm:$0xff]
        %v2735 = vld [vmem:[#allocation6 + $0xba0] sm:$0xff]
        %v2736 = vld [vmem:[#allocation6 + $0xba8] sm:$0xff]
        %v2737 = vld [vmem:[#allocation6 + $0xbb0] sm:$0xff]
        %v2738 = vld [vmem:[#allocation6 + $0xbb8] sm:$0xff]
        %v2739 = vld [vmem:[#allocation6 + $0xbc0] sm:$0xff]
        %v2740 = vld [vmem:[#allocation6 + $0xbc8] sm:$0xff]
        %v2741 = vld [vmem:[#allocation6 + $0xbd0] sm:$0xff]
        %v2742 = vld [vmem:[#allocation6 + $0xbd8] sm:$0xff]
        %v2743 = vld [vmem:[#allocation6 + $0xbe0] sm:$0xff]
        %v2744 = vld [vmem:[#allocation6 + $0xbe8] sm:$0xff]
        %v2745 = vld [vmem:[#allocation6 + $0xbf0] sm:$0xff]
        %v2746 = vld [vmem:[#allocation6 + $0xbf8] sm:$0xff]
        %v2747 = vld [vmem:[#allocation6 + $0xc00] sm:$0xff]
        %v2748 = vld [vmem:[#allocation6 + $0xc08] sm:$0xff]
        %v2749 = vld [vmem:[#allocation6 + $0xc10] sm:$0xff]
        %v2750 = vld [vmem:[#allocation6 + $0xc18] sm:$0xff]
        %v2751 = vld [vmem:[#allocation6 + $0xc20] sm:$0xff]
        %v2752 = vld [vmem:[#allocation6 + $0xc28] sm:$0xff]
        %v2753 = vld [vmem:[#allocation6 + $0xc30] sm:$0xff]
        %v2754 = vld [vmem:[#allocation6 + $0xc38] sm:$0xff]
        %v2755 = vld [vmem:[#allocation6 + $0xc40] sm:$0xff]
        %v2756 = vld [vmem:[#allocation6 + $0xc48] sm:$0xff]
        %v2757 = vld [vmem:[#allocation6 + $0xc50] sm:$0xff]
        %v2758 = vld [vmem:[#allocation6 + $0xc58] sm:$0xff]
        %v2759 = vld [vmem:[#allocation6 + $0xc60] sm:$0xff]
        %v2760 = vld [vmem:[#allocation6 + $0xc68] sm:$0xff]
        %v2761 = vld [vmem:[#allocation6 + $0xc70] sm:$0xff]
        %v2762 = vld [vmem:[#allocation6 + $0xc78] sm:$0xff]
        %v2763 = vld [vmem:[#allocation6 + $0xc80] sm:$0xff]
        %v2764 = vld [vmem:[#allocation6 + $0xc88] sm:$0xff]
        %v2765 = vld [vmem:[#allocation6 + $0xc90] sm:$0xff]
        %v2766 = vld [vmem:[#allocation6 + $0xc98] sm:$0xff]
        %v2767 = vld [vmem:[#allocation6 + $0xca0] sm:$0xff]
        %v2768 = vld [vmem:[#allocation6 + $0xca8] sm:$0xff]
        %v2769 = vld [vmem:[#allocation6 + $0xcb0] sm:$0xff]
        %v2770 = vld [vmem:[#allocation6 + $0xcb8] sm:$0xff]
        %v2771 = vld [vmem:[#allocation6 + $0xcc0] sm:$0xff]
        %v2772 = vld [vmem:[#allocation6 + $0xcc8] sm:$0xff]
        %v2773 = vld [vmem:[#allocation6 + $0xcd0] sm:$0xff]
        %v2774 = vld [vmem:[#allocation6 + $0xcd8] sm:$0xff]
        %v2775 = vld [vmem:[#allocation6 + $0xce0] sm:$0xff]
        %v2776 = vld [vmem:[#allocation6 + $0xce8] sm:$0xff]
        %v2777 = vld [vmem:[#allocation6 + $0xcf0] sm:$0xff]
        %v2778 = vld [vmem:[#allocation6 + $0xcf8] sm:$0xff]
        %v2779 = vld [vmem:[#allocation6 + $0xd00] sm:$0xff]
        %v2780 = vld [vmem:[#allocation6 + $0xd08] sm:$0xff]
        %v2781 = vld [vmem:[#allocation6 + $0xd10] sm:$0xff]
        %v2782 = vld [vmem:[#allocation6 + $0xd18] sm:$0xff]
        %v2783 = vld [vmem:[#allocation6 + $0xd20] sm:$0xff]
        %v2784 = vld [vmem:[#allocation6 + $0xd28] sm:$0xff]
        %v2785 = vld [vmem:[#allocation6 + $0xd30] sm:$0xff]
        %v2786 = vld [vmem:[#allocation6 + $0xd38] sm:$0xff]
        %v2787 = vld [vmem:[#allocation6 + $0xd40] sm:$0xff]
        %v2788 = vld [vmem:[#allocation6 + $0xd48] sm:$0xff]
        %v2789 = vld [vmem:[#allocation6 + $0xd50] sm:$0xff]
        %v2790 = vld [vmem:[#allocation6 + $0xd58] sm:$0xff]
        %v2791 = vld [vmem:[#allocation6 + $0xd60] sm:$0xff]
        %v2792 = vld [vmem:[#allocation6 + $0xd68] sm:$0xff]
        %v2793 = vld [vmem:[#allocation6 + $0xd70] sm:$0xff]
        %v2794 = vld [vmem:[#allocation6 + $0xd78] sm:$0xff]
        %v2795 = vld [vmem:[#allocation6 + $0xd80] sm:$0xff]
        %v2796 = vld [vmem:[#allocation6 + $0xd88] sm:$0xff]
        %v2797 = vld [vmem:[#allocation6 + $0xd90] sm:$0xff]
        %v2798 = vld [vmem:[#allocation6 + $0xd98] sm:$0xff]
        %v2799 = vld [vmem:[#allocation6 + $0xda0] sm:$0xff]
        %v2800 = vld [vmem:[#allocation6 + $0xda8] sm:$0xff]
        %v2801 = vld [vmem:[#allocation6 + $0xdb0] sm:$0xff]
        %v2802 = vld [vmem:[#allocation6 + $0xdb8] sm:$0xff]
        %v2803 = vld [vmem:[#allocation6 + $0xdc0] sm:$0xff]
        %v2804 = vld [vmem:[#allocation6 + $0xdc8] sm:$0xff]
        %v2805 = vld [vmem:[#allocation6 + $0xdd0] sm:$0xff]
        %v2806 = vld [vmem:[#allocation6 + $0xdd8] sm:$0xff]
        %v2807 = vld [vmem:[#allocation6 + $0xde0] sm:$0xff]
        %v2808 = vld [vmem:[#allocation6 + $0xde8] sm:$0xff]
        %v2809 = vld [vmem:[#allocation6 + $0xdf0] sm:$0xff]
        %v2810 = vld [vmem:[#allocation6 + $0xdf8] sm:$0xff]
        %v2811 = vld [vmem:[#allocation6 + $0xe00] sm:$0xff]
        %v2812 = vld [vmem:[#allocation6 + $0xe08] sm:$0xff]
        %v2813 = vld [vmem:[#allocation6 + $0xe10] sm:$0xff]
        %v2814 = vld [vmem:[#allocation6 + $0xe18] sm:$0xff]
        %v2815 = vld [vmem:[#allocation6 + $0xe20] sm:$0xff]
        %v2816 = vld [vmem:[#allocation6 + $0xe28] sm:$0xff]
        %v2817 = vld [vmem:[#allocation6 + $0xe30] sm:$0xff]
        %v2818 = vld [vmem:[#allocation6 + $0xe38] sm:$0xff]
        %v2819 = vld [vmem:[#allocation6 + $0xe40] sm:$0xff]
        %v2820 = vld [vmem:[#allocation6 + $0xe48] sm:$0xff]
        %v2821 = vld [vmem:[#allocation6 + $0xe50] sm:$0xff]
        %v2822 = vld [vmem:[#allocation6 + $0xe58] sm:$0xff]
        %v2823 = vld [vmem:[#allocation6 + $0xe60] sm:$0xff]
        %v2824 = vld [vmem:[#allocation6 + $0xe68] sm:$0xff]
        %v2825 = vld [vmem:[#allocation6 + $0xe70] sm:$0xff]
        %v2826 = vld [vmem:[#allocation6 + $0xe78] sm:$0xff]
        %v2827 = vld [vmem:[#allocation6 + $0xe80] sm:$0xff]
        %v2828 = vld [vmem:[#allocation6 + $0xe88] sm:$0xff]
        %v2829 = vld [vmem:[#allocation6 + $0xe90] sm:$0xff]
        %v2830 = vld [vmem:[#allocation6 + $0xe98] sm:$0xff]
        %v2831 = vld [vmem:[#allocation6 + $0xea0] sm:$0xff]
        %v2832 = vld [vmem:[#allocation6 + $0xea8] sm:$0xff]
        %v2833 = vld [vmem:[#allocation6 + $0xeb0] sm:$0xff]
        %v2834 = vld [vmem:[#allocation6 + $0xeb8] sm:$0xff]
        %v2835 = vld [vmem:[#allocation6 + $0xec0] sm:$0xff]
        %v2836 = vld [vmem:[#allocation6 + $0xec8] sm:$0xff]
        %v2837 = vld [vmem:[#allocation6 + $0xed0] sm:$0xff]
        %v2838 = vld [vmem:[#allocation6 + $0xed8] sm:$0xff]
        %v2839 = vld [vmem:[#allocation6 + $0xee0] sm:$0xff]
        %v2840 = vld [vmem:[#allocation6 + $0xee8] sm:$0xff]
        %v2841 = vld [vmem:[#allocation6 + $0xef0] sm:$0xff]
        %v2842 = vld [vmem:[#allocation6 + $0xef8] sm:$0xff]
        %v2843 = vld [vmem:[#allocation6 + $0xf00] sm:$0xff]
        %v2844 = vld [vmem:[#allocation6 + $0xf08] sm:$0xff]
        %v2845 = vld [vmem:[#allocation6 + $0xf10] sm:$0xff]
        %v2846 = vld [vmem:[#allocation6 + $0xf18] sm:$0xff]
        %v2847 = vld [vmem:[#allocation6 + $0xf20] sm:$0xff]
        %v2848 = vld [vmem:[#allocation6 + $0xf28] sm:$0xff]
        %v2849 = vld [vmem:[#allocation6 + $0xf30] sm:$0xff]
        %v2850 = vld [vmem:[#allocation6 + $0xf38] sm:$0xff]
        %v2851 = vld [vmem:[#allocation6 + $0xf40] sm:$0xff]
        %v2852 = vld [vmem:[#allocation6 + $0xf48] sm:$0xff]
        %v2853 = vld [vmem:[#allocation6 + $0xf50] sm:$0xff]
        %v2854 = vld [vmem:[#allocation6 + $0xf58] sm:$0xff]
        %v2855 = vld [vmem:[#allocation6 + $0xf60] sm:$0xff]
        %v2856 = vld [vmem:[#allocation6 + $0xf68] sm:$0xff]
        %v2857 = vld [vmem:[#allocation6 + $0xf70] sm:$0xff]
        %v2858 = vld [vmem:[#allocation6 + $0xf78] sm:$0xff]
        %v2859 = vld [vmem:[#allocation6 + $0xf80] sm:$0xff]
        %v2860 = vld [vmem:[#allocation6 + $0xf88] sm:$0xff]
        %v2861 = vld [vmem:[#allocation6 + $0xf90] sm:$0xff]
        %v2862 = vld [vmem:[#allocation6 + $0xf98] sm:$0xff]
        %v2863 = vld [vmem:[#allocation6 + $0xfa0] sm:$0xff]
        %v2864 = vld [vmem:[#allocation6 + $0xfa8] sm:$0xff]
        %v2865 = vld [vmem:[#allocation6 + $0xfb0] sm:$0xff]
        %v2866 = vld [vmem:[#allocation6 + $0xfb8] sm:$0xff]
        %v2867 = vld [vmem:[#allocation6 + $0xfc0] sm:$0xff]
        %v2868 = vld [vmem:[#allocation6 + $0xfc8] sm:$0xff]
        %v2869 = vld [vmem:[#allocation6 + $0xfd0] sm:$0xff]
        %v2870 = vld [vmem:[#allocation6 + $0xfd8] sm:$0xff]
        %v2871 = vld [vmem:[#allocation6 + $0xfe0] sm:$0xff]
        %v2872 = vld [vmem:[#allocation6 + $0xfe8] sm:$0xff]
        %v2873 = vld [vmem:[#allocation6 + $0xff0] sm:$0xff]
        %v2874 = vld [vmem:[#allocation6 + $0xff8] sm:$0xff]
        %2875 = vmatprep.subr.mxu0 %v2364
        %2876 = vmatpush1.msra.mxu0 %v2363
        %2877 = vmatprep.subr.mxu0 %v2366
        %2878 = vmatpush1.msra.mxu0 %v2365
        %2879 = vmatprep.subr.mxu0 %v2368
        %2880 = vmatpush1.msra.mxu0 %v2367
        %2881 = vmatprep.subr.mxu0 %v2370
        %2882 = vmatpush1.msra.mxu0 %v2369
        %2883 = vmatprep.subr.mxu0 %v2372
        %2884 = vmatpush1.msra.mxu0 %v2371
        %2885 = vmatprep.subr.mxu0 %v2374
        %2886 = vmatpush1.msra.mxu0 %v2373
        %2887 = vmatprep.subr.mxu0 %v2376
        %2888 = vmatpush1.msra.mxu0 %v2375
        %2889 = vmatprep.subr.mxu0 %v2378
        %2890 = vmatpush1.msra.mxu0 %v2377
        %2891 = vmatprep.subr.mxu0 %v2380
        %2892 = vmatpush1.msra.mxu0 %v2379
        %2893 = vmatprep.subr.mxu0 %v2382
        %2894 = vmatpush1.msra.mxu0 %v2381
        %2895 = vmatprep.subr.mxu0 %v2384
        %2896 = vmatpush1.msra.mxu0 %v2383
        %2897 = vmatprep.subr.mxu0 %v2386
        %2898 = vmatpush1.msra.mxu0 %v2385
        %2899 = vmatprep.subr.mxu0 %v2388
        %2900 = vmatpush1.msra.mxu0 %v2387
        %2901 = vmatprep.subr.mxu0 %v2390
        %2902 = vmatpush1.msra.mxu0 %v2389
        %2903 = vmatprep.subr.mxu0 %v2392
        %2904 = vmatpush1.msra.mxu0 %v2391
        %2905 = vmatprep.subr.mxu0 %v2394
        %2906 = vmatpush1.msra.mxu0 %v2393
        %2907 = vmatprep.subr.mxu0 %v2396
        %2908 = vmatpush1.msra.mxu0 %v2395
        %2909 = vmatprep.subr.mxu0 %v2398
        %2910 = vmatpush1.msra.mxu0 %v2397
        %2911 = vmatprep.subr.mxu0 %v2400
        %2912 = vmatpush1.msra.mxu0 %v2399
        %2913 = vmatprep.subr.mxu0 %v2402
        %2914 = vmatpush1.msra.mxu0 %v2401
        %2915 = vmatprep.subr.mxu0 %v2404
        %2916 = vmatpush1.msra.mxu0 %v2403
        %2917 = vmatprep.subr.mxu0 %v2406
        %2918 = vmatpush1.msra.mxu0 %v2405
        %2919 = vmatprep.subr.mxu0 %v2408
        %2920 = vmatpush1.msra.mxu0 %v2407
        %2921 = vmatprep.subr.mxu0 %v2410
        %2922 = vmatpush1.msra.mxu0 %v2409
        %2923 = vmatprep.subr.mxu0 %v2412
        %2924 = vmatpush1.msra.mxu0 %v2411
        %2925 = vmatprep.subr.mxu0 %v2414
        %2926 = vmatpush1.msra.mxu0 %v2413
        %2927 = vmatprep.subr.mxu0 %v2416
        %2928 = vmatpush1.msra.mxu0 %v2415
        %2929 = vmatprep.subr.mxu0 %v2418
        %2930 = vmatpush1.msra.mxu0 %v2417
        %2931 = vmatprep.subr.mxu0 %v2420
        %2932 = vmatpush1.msra.mxu0 %v2419
        %2933 = vmatprep.subr.mxu0 %v2422
        %2934 = vmatpush1.msra.mxu0 %v2421
        %2935 = vmatprep.subr.mxu0 %v2424
        %2936 = vmatpush1.msra.mxu0 %v2423
        %2937 = vmatprep.subr.mxu0 %v2426
        %2938 = vmatpush1.msra.mxu0 %v2425
        %2939 = vmatprep.mubr.f32.mxu0 %v2156
        %2940 = vmatmul.mubr.f32.gmra.mrb[0].mxu0 %v2155
        %v2941 = vpop.f32.mrb[0].mxu0
        %v2942 = vadd.f32 0.0, %v2941
        %v2943 = vpop.f32.mrb[0].mxu0
        %v2944 = vadd.f32 0.0, %v2943
        %2945 = vmatprep.mubr.f32.mxu0 %v2172
        %2946 = vmatmul.mubr.f32.gmra.mrb[0].mxu0 %v2171
        %v2947 = vpop.f32.mrb[0].mxu0
        %v2948 = vadd.f32 0.0, %v2947
        %v2949 = vpop.f32.mrb[0].mxu0
        %v2950 = vadd.f32 0.0, %v2949
        %2951 = vmatprep.mubr.f32.mxu0 %v2188
        %2952 = vmatmul.mubr.f32.gmra.mrb[0].mxu0 %v2187
        %v2953 = vpop.f32.mrb[0].mxu0
        %v2954 = vadd.f32 0.0, %v2953
        %v2955 = vpop.f32.mrb[0].mxu0
        %v2956 = vadd.f32 0.0, %v2955
        %2957 = vmatprep.mubr.f32.mxu0 %v2204
        %2958 = vmatmul.mubr.f32.gmra.mrb[0].mxu0 %v2203
        %v2959 = vpop.f32.mrb[0].mxu0
        %v2960 = vadd.f32 0.0, %v2959
        %v2961 = vpop.f32.mrb[0].mxu0
        %v2962 = vadd.f32 0.0, %v2961
        %2963 = vmatprep.mubr.f32.mxu0 %v2220
        %2964 = vmatmul.mubr.f32.gmra.mrb[0].mxu0 %v2219
        %v2965 = vpop.f32.mrb[0].mxu0
        %v2966 = vadd.f32 0.0, %v2965
        %v2967 = vpop.f32.mrb[0].mxu0
        %v2968 = vadd.f32 0.0, %v2967
        %2969 = vmatprep.mubr.f32.mxu0 %v2236
        %2970 = vmatmul.mubr.f32.gmra.mrb[0].mxu0 %v2235
        %v2971 = vpop.f32.mrb[0].mxu0
        %v2972 = vadd.f32 0.0, %v2971
        %v2973 = vpop.f32.mrb[0].mxu0
        %v2974 = vadd.f32 0.0, %v2973
        %2975 = vmatprep.mubr.f32.mxu0 %v2252
        %2976 = vmatmul.mubr.f32.gmra.mrb[0].mxu0 %v2251
        %v2977 = vpop.f32.mrb[0].mxu0
        %v2978 = vadd.f32 0.0, %v2977
        %v2979 = vpop.f32.mrb[0].mxu0
        %v2980 = vadd.f32 0.0, %v2979
        %2981 = vmatprep.mubr.f32.mxu0 %v2268
        %2982 = vmatmul.mubr.f32.gmra.mrb[0].mxu0 %v2267
        %v2983 = vpop.f32.mrb[0].mxu0
        %v2984 = vadd.f32 0.0, %v2983
        %v2985 = vpop.f32.mrb[0].mxu0
        %v2986 = vadd.f32 0.0, %v2985
        %2987 = vmatprep.mubr.f32.mxu0 %v2284
        %2988 = vmatmul.mubr.f32.gmra.mrb[0].mxu0 %v2283
        %v2989 = vpop.f32.mrb[0].mxu0
        %v2990 = vadd.f32 0.0, %v2989
        %v2991 = vpop.f32.mrb[0].mxu0
        %v2992 = vadd.f32 0.0, %v2991
        %2993 = vmatprep.mubr.f32.mxu0 %v2300
        %2994 = vmatmul.mubr.f32.gmra.mrb[0].mxu0 %v2299
        %v2995 = vpop.f32.mrb[0].mxu0
        %v2996 = vadd.f32 0.0, %v2995
        %v2997 = vpop.f32.mrb[0].mxu0
        %v2998 = vadd.f32 0.0, %v2997
        %2999 = vmatprep.mubr.f32.mxu0 %v2316
        %3000 = vmatmul.mubr.f32.gmra.mrb[0].mxu0 %v2315
        %v3001 = vpop.f32.mrb[0].mxu0
        %v3002 = vadd.f32 0.0, %v3001
        %v3003 = vpop.f32.mrb[0].mxu0
        %v3004 = vadd.f32 0.0, %v3003
        %3005 = vmatprep.mubr.f32.mxu0 %v2332
        %3006 = vmatmul.mubr.f32.gmra.mrb[0].mxu0 %v2331
        %v3007 = vpop.f32.mrb[0].mxu0
        %v3008 = vadd.f32 0.0, %v3007
        %v3009 = vpop.f32.mrb[0].mxu0
        %v3010 = vadd.f32 0.0, %v3009
        %3011 = vmatprep.mubr.f32.mxu0 %v2348
        %3012 = vmatmul.mubr.f32.gmra.mrb[0].mxu0 %v2347
        %v3013 = vpop.f32.mrb[0].mxu0
        %v3014 = vadd.f32 0.0, %v3013
        %v3015 = vpop.f32.mrb[0].mxu0
        %v3016 = vadd.f32 0.0, %v3015
        %3017 = vdwg.mxu0
        %3018 = vmatprep.subr.mxu0 %v2428
        %3019 = vmatpush1.msra.mxu0 %v2427
        %3020 = vmatprep.subr.mxu0 %v2430
        %3021 = vmatpush1.msra.mxu0 %v2429
        %3022 = vmatprep.subr.mxu0 %v2432
        %3023 = vmatpush1.msra.mxu0 %v2431
        %3024 = vmatprep.subr.mxu0 %v2434
        %3025 = vmatpush1.msra.mxu0 %v2433
        %3026 = vmatprep.subr.mxu0 %v2436
        %3027 = vmatpush1.msra.mxu0 %v2435
        %3028 = vmatprep.subr.mxu0 %v2438
        %3029 = vmatpush1.msra.mxu0 %v2437
        %3030 = vmatprep.subr.mxu0 %v2440
        %3031 = vmatpush1.msra.mxu0 %v2439
        %3032 = vmatprep.subr.mxu0 %v2442
        %3033 = vmatpush1.msra.mxu0 %v2441
        %3034 = vmatprep.subr.mxu0 %v2444
        %3035 = vmatpush1.msra.mxu0 %v2443
        %3036 = vmatprep.subr.mxu0 %v2446
        %3037 = vmatpush1.msra.mxu0 %v2445
        %3038 = vmatprep.subr.mxu0 %v2448
        %3039 = vmatpush1.msra.mxu0 %v2447
        %3040 = vmatprep.subr.mxu0 %v2450
        %3041 = vmatpush1.msra.mxu0 %v2449
        %3042 = vmatprep.subr.mxu0 %v2452
        %3043 = vmatpush1.msra.mxu0 %v2451
        %3044 = vmatprep.subr.mxu0 %v2454
        %3045 = vmatpush1.msra.mxu0 %v2453
        %3046 = vmatprep.subr.mxu0 %v2456
        %3047 = vmatpush1.msra.mxu0 %v2455
        %3048 = vmatprep.subr.mxu0 %v2458
        %3049 = vmatpush1.msra.mxu0 %v2457
        %3050 = vmatprep.subr.mxu0 %v2460
        %3051 = vmatpush1.msra.mxu0 %v2459
        %3052 = vmatprep.subr.mxu0 %v2462
        %3053 = vmatpush1.msra.mxu0 %v2461
        %3054 = vmatprep.subr.mxu0 %v2464
        %3055 = vmatpush1.msra.mxu0 %v2463
        %3056 = vmatprep.subr.mxu0 %v2466
        %3057 = vmatpush1.msra.mxu0 %v2465
        %3058 = vmatprep.subr.mxu0 %v2468
        %3059 = vmatpush1.msra.mxu0 %v2467
        %3060 = vmatprep.subr.mxu0 %v2470
        %3061 = vmatpush1.msra.mxu0 %v2469
        %3062 = vmatprep.subr.mxu0 %v2472
        %3063 = vmatpush1.msra.mxu0 %v2471
        %3064 = vmatprep.subr.mxu0 %v2474
        %3065 = vmatpush1.msra.mxu0 %v2473
        %3066 = vmatprep.subr.mxu0 %v2476
        %3067 = vmatpush1.msra.mxu0 %v2475
        %3068 = vmatprep.subr.mxu0 %v2478
        %3069 = vmatpush1.msra.mxu0 %v2477
        %3070 = vmatprep.subr.mxu0 %v2480
        %3071 = vmatpush1.msra.mxu0 %v2479
        %3072 = vmatprep.subr.mxu0 %v2482
        %3073 = vmatpush1.msra.mxu0 %v2481
        %3074 = vmatprep.subr.mxu0 %v2484
        %3075 = vmatpush1.msra.mxu0 %v2483
        %3076 = vmatprep.subr.mxu0 %v2486
        %3077 = vmatpush1.msra.mxu0 %v2485
        %3078 = vmatprep.subr.mxu0 %v2488
        %3079 = vmatpush1.msra.mxu0 %v2487
        %3080 = vmatprep.subr.mxu0 %v2490
        %3081 = vmatpush1.msra.mxu0 %v2489
        %3082 = vmatprep.mubr.f32.mxu0 %v2158
        %3083 = vmatmul.mubr.f32.gmra.mrb[0].mxu0 %v2157
        %v3084 = vpop.f32.mrb[0].mxu0
        %v3085 = vadd.f32 %v2942, %v3084
        %v3086 = vpop.f32.mrb[0].mxu0
        %v3087 = vadd.f32 %v2944, %v3086
        %3088 = vmatprep.mubr.f32.mxu0 %v2174
        %3089 = vmatmul.mubr.f32.gmra.mrb[0].mxu0 %v2173
        %v3090 = vpop.f32.mrb[0].mxu0
        %v3091 = vadd.f32 %v2948, %v3090
        %v3092 = vpop.f32.mrb[0].mxu0
        %v3093 = vadd.f32 %v2950, %v3092
        %3094 = vmatprep.mubr.f32.mxu0 %v2190
        %3095 = vmatmul.mubr.f32.gmra.mrb[0].mxu0 %v2189
        %v3096 = vpop.f32.mrb[0].mxu0
        %v3097 = vadd.f32 %v2954, %v3096
        %v3098 = vpop.f32.mrb[0].mxu0
        %v3099 = vadd.f32 %v2956, %v3098
        %3100 = vmatprep.mubr.f32.mxu0 %v2206
        %3101 = vmatmul.mubr.f32.gmra.mrb[0].mxu0 %v2205
        %v3102 = vpop.f32.mrb[0].mxu0
        %v3103 = vadd.f32 %v2960, %v3102
        %v3104 = vpop.f32.mrb[0].mxu0
        %v3105 = vadd.f32 %v2962, %v3104
        %3106 = vmatprep.mubr.f32.mxu0 %v2222
        %3107 = vmatmul.mubr.f32.gmra.mrb[0].mxu0 %v2221
        %v3108 = vpop.f32.mrb[0].mxu0
        %v3109 = vadd.f32 %v2966, %v3108
        %v3110 = vpop.f32.mrb[0].mxu0
        %v3111 = vadd.f32 %v2968, %v3110
        %3112 = vmatprep.mubr.f32.mxu0 %v2238
        %3113 = vmatmul.mubr.f32.gmra.mrb[0].mxu0 %v2237
        %v3114 = vpop.f32.mrb[0].mxu0
        %v3115 = vadd.f32 %v2972, %v3114
        %v3116 = vpop.f32.mrb[0].mxu0
        %v3117 = vadd.f32 %v2974, %v3116
        %3118 = vmatprep.mubr.f32.mxu0 %v2254
        %3119 = vmatmul.mubr.f32.gmra.mrb[0].mxu0 %v2253
        %v3120 = vpop.f32.mrb[0].mxu0
        %v3121 = vadd.f32 %v2978, %v3120
        %v3122 = vpop.f32.mrb[0].mxu0
        %v3123 = vadd.f32 %v2980, %v3122
        %3124 = vmatprep.mubr.f32.mxu0 %v2270
        %3125 = vmatmul.mubr.f32.gmra.mrb[0].mxu0 %v2269
        %v3126 = vpop.f32.mrb[0].mxu0
        %v3127 = vadd.f32 %v2984, %v3126
        %v3128 = vpop.f32.mrb[0].mxu0
        %v3129 = vadd.f32 %v2986, %v3128
        %3130 = vmatprep.mubr.f32.mxu0 %v2286
        %3131 = vmatmul.mubr.f32.gmra.mrb[0].mxu0 %v2285
        %v3132 = vpop.f32.mrb[0].mxu0
        %v3133 = vadd.f32 %v2990, %v3132
        %v3134 = vpop.f32.mrb[0].mxu0
        %v3135 = vadd.f32 %v2992, %v3134
        %3136 = vmatprep.mubr.f32.mxu0 %v2302
        %3137 = vmatmul.mubr.f32.gmra.mrb[0].mxu0 %v2301
        %v3138 = vpop.f32.mrb[0].mxu0
        %v3139 = vadd.f32 %v2996, %v3138
        %v3140 = vpop.f32.mrb[0].mxu0
        %v3141 = vadd.f32 %v2998, %v3140
        %3142 = vmatprep.mubr.f32.mxu0 %v2318
        %3143 = vmatmul.mubr.f32.gmra.mrb[0].mxu0 %v2317
        %v3144 = vpop.f32.mrb[0].mxu0
        %v3145 = vadd.f32 %v3002, %v3144
        %v3146 = vpop.f32.mrb[0].mxu0
        %v3147 = vadd.f32 %v3004, %v3146
        %3148 = vmatprep.mubr.f32.mxu0 %v2334
        %3149 = vmatmul.mubr.f32.gmra.mrb[0].mxu0 %v2333
        %v3150 = vpop.f32.mrb[0].mxu0
        %v3151 = vadd.f32 %v3008, %v3150
        %v3152 = vpop.f32.mrb[0].mxu0
        %v3153 = vadd.f32 %v3010, %v3152
        %3154 = vmatprep.mubr.f32.mxu0 %v2350
        %3155 = vmatmul.mubr.f32.gmra.mrb[0].mxu0 %v2349
        %v3156 = vpop.f32.mrb[0].mxu0
        %v3157 = vadd.f32 %v3014, %v3156
        %v3158 = vpop.f32.mrb[0].mxu0
        %v3159 = vadd.f32 %v3016, %v3158
        %3160 = vdwg.mxu0
        %3161 = vmatprep.subr.mxu0 %v2492
        %3162 = vmatpush1.msra.mxu0 %v2491
        %3163 = vmatprep.subr.mxu0 %v2494
        %3164 = vmatpush1.msra.mxu0 %v2493
        %3165 = vmatprep.subr.mxu0 %v2496
        %3166 = vmatpush1.msra.mxu0 %v2495
        %3167 = vmatprep.subr.mxu0 %v2498
        %3168 = vmatpush1.msra.mxu0 %v2497
        %3169 = vmatprep.subr.mxu0 %v2500
        %3170 = vmatpush1.msra.mxu0 %v2499
        %3171 = vmatprep.subr.mxu0 %v2502
        %3172 = vmatpush1.msra.mxu0 %v2501
        %3173 = vmatprep.subr.mxu0 %v2504
        %3174 = vmatpush1.msra.mxu0 %v2503
        %3175 = vmatprep.subr.mxu0 %v2506
        %3176 = vmatpush1.msra.mxu0 %v2505
        %3177 = vmatprep.subr.mxu0 %v2508
        %3178 = vmatpush1.msra.mxu0 %v2507
        %3179 = vmatprep.subr.mxu0 %v2510
        %3180 = vmatpush1.msra.mxu0 %v2509
        %3181 = vmatprep.subr.mxu0 %v2512
        %3182 = vmatpush1.msra.mxu0 %v2511
        %3183 = vmatprep.subr.mxu0 %v2514
        %3184 = vmatpush1.msra.mxu0 %v2513
        %3185 = vmatprep.subr.mxu0 %v2516
        %3186 = vmatpush1.msra.mxu0 %v2515
        %3187 = vmatprep.subr.mxu0 %v2518
        %3188 = vmatpush1.msra.mxu0 %v2517
        %3189 = vmatprep.subr.mxu0 %v2520
        %3190 = vmatpush1.msra.mxu0 %v2519
        %3191 = vmatprep.subr.mxu0 %v2522
        %3192 = vmatpush1.msra.mxu0 %v2521
        %3193 = vmatprep.subr.mxu0 %v2524
        %3194 = vmatpush1.msra.mxu0 %v2523
        %3195 = vmatprep.subr.mxu0 %v2526
        %3196 = vmatpush1.msra.mxu0 %v2525
        %3197 = vmatprep.subr.mxu0 %v2528
        %3198 = vmatpush1.msra.mxu0 %v2527
        %3199 = vmatprep.subr.mxu0 %v2530
        %3200 = vmatpush1.msra.mxu0 %v2529
        %3201 = vmatprep.subr.mxu0 %v2532
        %3202 = vmatpush1.msra.mxu0 %v2531
        %3203 = vmatprep.subr.mxu0 %v2534
        %3204 = vmatpush1.msra.mxu0 %v2533
        %3205 = vmatprep.subr.mxu0 %v2536
        %3206 = vmatpush1.msra.mxu0 %v2535
        %3207 = vmatprep.subr.mxu0 %v2538
        %3208 = vmatpush1.msra.mxu0 %v2537
        %3209 = vmatprep.subr.mxu0 %v2540
        %3210 = vmatpush1.msra.mxu0 %v2539
        %3211 = vmatprep.subr.mxu0 %v2542
        %3212 = vmatpush1.msra.mxu0 %v2541
        %3213 = vmatprep.subr.mxu0 %v2544
        %3214 = vmatpush1.msra.mxu0 %v2543
        %3215 = vmatprep.subr.mxu0 %v2546
        %3216 = vmatpush1.msra.mxu0 %v2545
        %3217 = vmatprep.subr.mxu0 %v2548
        %3218 = vmatpush1.msra.mxu0 %v2547
        %3219 = vmatprep.subr.mxu0 %v2550
        %3220 = vmatpush1.msra.mxu0 %v2549
        %3221 = vmatprep.subr.mxu0 %v2552
        %3222 = vmatpush1.msra.mxu0 %v2551
        %3223 = vmatprep.subr.mxu0 %v2554
        %3224 = vmatpush1.msra.mxu0 %v2553
        %3225 = vmatprep.mubr.f32.mxu0 %v2160
        %3226 = vmatmul.mubr.f32.gmra.mrb[0].mxu0 %v2159
        %v3227 = vpop.f32.mrb[0].mxu0
        %v3228 = vadd.f32 %v3085, %v3227
        %v3229 = vpop.f32.mrb[0].mxu0
        %v3230 = vadd.f32 %v3087, %v3229
        %3231 = vmatprep.mubr.f32.mxu0 %v2176
        %3232 = vmatmul.mubr.f32.gmra.mrb[0].mxu0 %v2175
        %v3233 = vpop.f32.mrb[0].mxu0
        %v3234 = vadd.f32 %v3091, %v3233
        %v3235 = vpop.f32.mrb[0].mxu0
        %v3236 = vadd.f32 %v3093, %v3235
        %3237 = vmatprep.mubr.f32.mxu0 %v2192
        %3238 = vmatmul.mubr.f32.gmra.mrb[0].mxu0 %v2191
        %v3239 = vpop.f32.mrb[0].mxu0
        %v3240 = vadd.f32 %v3097, %v3239
        %v3241 = vpop.f32.mrb[0].mxu0
        %v3242 = vadd.f32 %v3099, %v3241
        %3243 = vmatprep.mubr.f32.mxu0 %v2208
        %3244 = vmatmul.mubr.f32.gmra.mrb[0].mxu0 %v2207
        %v3245 = vpop.f32.mrb[0].mxu0
        %v3246 = vadd.f32 %v3103, %v3245
        %v3247 = vpop.f32.mrb[0].mxu0
        %v3248 = vadd.f32 %v3105, %v3247
        %3249 = vmatprep.mubr.f32.mxu0 %v2224
        %3250 = vmatmul.mubr.f32.gmra.mrb[0].mxu0 %v2223
        %v3251 = vpop.f32.mrb[0].mxu0
        %v3252 = vadd.f32 %v3109, %v3251
        %v3253 = vpop.f32.mrb[0].mxu0
        %v3254 = vadd.f32 %v3111, %v3253
        %3255 = vmatprep.mubr.f32.mxu0 %v2240
        %3256 = vmatmul.mubr.f32.gmra.mrb[0].mxu0 %v2239
        %v3257 = vpop.f32.mrb[0].mxu0
        %v3258 = vadd.f32 %v3115, %v3257
        %v3259 = vpop.f32.mrb[0].mxu0
        %v3260 = vadd.f32 %v3117, %v3259
        %3261 = vmatprep.mubr.f32.mxu0 %v2256
        %3262 = vmatmul.mubr.f32.gmra.mrb[0].mxu0 %v2255
        %v3263 = vpop.f32.mrb[0].mxu0
        %v3264 = vadd.f32 %v3121, %v3263
        %v3265 = vpop.f32.mrb[0].mxu0
        %v3266 = vadd.f32 %v3123, %v3265
        %3267 = vmatprep.mubr.f32.mxu0 %v2272
        %3268 = vmatmul.mubr.f32.gmra.mrb[0].mxu0 %v2271
        %v3269 = vpop.f32.mrb[0].mxu0
        %v3270 = vadd.f32 %v3127, %v3269
        %v3271 = vpop.f32.mrb[0].mxu0
        %v3272 = vadd.f32 %v3129, %v3271
        %3273 = vmatprep.mubr.f32.mxu0 %v2288
        %3274 = vmatmul.mubr.f32.gmra.mrb[0].mxu0 %v2287
        %v3275 = vpop.f32.mrb[0].mxu0
        %v3276 = vadd.f32 %v3133, %v3275
        %v3277 = vpop.f32.mrb[0].mxu0
        %v3278 = vadd.f32 %v3135, %v3277
        %3279 = vmatprep.mubr.f32.mxu0 %v2304
        %3280 = vmatmul.mubr.f32.gmra.mrb[0].mxu0 %v2303
        %v3281 = vpop.f32.mrb[0].mxu0
        %v3282 = vadd.f32 %v3139, %v3281
        %v3283 = vpop.f32.mrb[0].mxu0
        %v3284 = vadd.f32 %v3141, %v3283
        %3285 = vmatprep.mubr.f32.mxu0 %v2320
        %3286 = vmatmul.mubr.f32.gmra.mrb[0].mxu0 %v2319
        %v3287 = vpop.f32.mrb[0].mxu0
        %v3288 = vadd.f32 %v3145, %v3287
        %v3289 = vpop.f32.mrb[0].mxu0
        %v3290 = vadd.f32 %v3147, %v3289
        %3291 = vmatprep.mubr.f32.mxu0 %v2336
        %3292 = vmatmul.mubr.f32.gmra.mrb[0].mxu0 %v2335
        %v3293 = vpop.f32.mrb[0].mxu0
        %v3294 = vadd.f32 %v3151, %v3293
        %v3295 = vpop.f32.mrb[0].mxu0
        %v3296 = vadd.f32 %v3153, %v3295
        %3297 = vmatprep.mubr.f32.mxu0 %v2352
        %3298 = vmatmul.mubr.f32.gmra.mrb[0].mxu0 %v2351
        %v3299 = vpop.f32.mrb[0].mxu0
        %v3300 = vadd.f32 %v3157, %v3299
        %v3301 = vpop.f32.mrb[0].mxu0
        %v3302 = vadd.f32 %v3159, %v3301
        %3303 = vdwg.mxu0
        %3304 = vmatprep.subr.mxu0 %v2556
        %3305 = vmatpush1.msra.mxu0 %v2555
        %3306 = vmatprep.subr.mxu0 %v2558
        %3307 = vmatpush1.msra.mxu0 %v2557
        %3308 = vmatprep.subr.mxu0 %v2560
        %3309 = vmatpush1.msra.mxu0 %v2559
        %3310 = vmatprep.subr.mxu0 %v2562
        %3311 = vmatpush1.msra.mxu0 %v2561
        %3312 = vmatprep.subr.mxu0 %v2564
        %3313 = vmatpush1.msra.mxu0 %v2563
        %3314 = vmatprep.subr.mxu0 %v2566
        %3315 = vmatpush1.msra.mxu0 %v2565
        %3316 = vmatprep.subr.mxu0 %v2568
        %3317 = vmatpush1.msra.mxu0 %v2567
        %3318 = vmatprep.subr.mxu0 %v2570
        %3319 = vmatpush1.msra.mxu0 %v2569
        %3320 = vmatprep.subr.mxu0 %v2572
        %3321 = vmatpush1.msra.mxu0 %v2571
        %3322 = vmatprep.subr.mxu0 %v2574
        %3323 = vmatpush1.msra.mxu0 %v2573
        %3324 = vmatprep.subr.mxu0 %v2576
        %3325 = vmatpush1.msra.mxu0 %v2575
        %3326 = vmatprep.subr.mxu0 %v2578
        %3327 = vmatpush1.msra.mxu0 %v2577
        %3328 = vmatprep.subr.mxu0 %v2580
        %3329 = vmatpush1.msra.mxu0 %v2579
        %3330 = vmatprep.subr.mxu0 %v2582
        %3331 = vmatpush1.msra.mxu0 %v2581
        %3332 = vmatprep.subr.mxu0 %v2584
        %3333 = vmatpush1.msra.mxu0 %v2583
        %3334 = vmatprep.subr.mxu0 %v2586
        %3335 = vmatpush1.msra.mxu0 %v2585
        %3336 = vmatprep.subr.mxu0 %v2588
        %3337 = vmatpush1.msra.mxu0 %v2587
        %3338 = vmatprep.subr.mxu0 %v2590
        %3339 = vmatpush1.msra.mxu0 %v2589
        %3340 = vmatprep.subr.mxu0 %v2592
        %3341 = vmatpush1.msra.mxu0 %v2591
        %3342 = vmatprep.subr.mxu0 %v2594
        %3343 = vmatpush1.msra.mxu0 %v2593
        %3344 = vmatprep.subr.mxu0 %v2596
        %3345 = vmatpush1.msra.mxu0 %v2595
        %3346 = vmatprep.subr.mxu0 %v2598
        %3347 = vmatpush1.msra.mxu0 %v2597
        %3348 = vmatprep.subr.mxu0 %v2600
        %3349 = vmatpush1.msra.mxu0 %v2599
        %3350 = vmatprep.subr.mxu0 %v2602
        %3351 = vmatpush1.msra.mxu0 %v2601
        %3352 = vmatprep.subr.mxu0 %v2604
        %3353 = vmatpush1.msra.mxu0 %v2603
        %3354 = vmatprep.subr.mxu0 %v2606
        %3355 = vmatpush1.msra.mxu0 %v2605
        %3356 = vmatprep.subr.mxu0 %v2608
        %3357 = vmatpush1.msra.mxu0 %v2607
        %3358 = vmatprep.subr.mxu0 %v2610
        %3359 = vmatpush1.msra.mxu0 %v2609
        %3360 = vmatprep.subr.mxu0 %v2612
        %3361 = vmatpush1.msra.mxu0 %v2611
        %3362 = vmatprep.subr.mxu0 %v2614
        %3363 = vmatpush1.msra.mxu0 %v2613
        %3364 = vmatprep.subr.mxu0 %v2616
        %3365 = vmatpush1.msra.mxu0 %v2615
        %3366 = vmatprep.subr.mxu0 %v2618
        %3367 = vmatpush1.msra.mxu0 %v2617
        %3368 = vmatprep.mubr.f32.mxu0 %v2162
        %3369 = vmatmul.mubr.f32.gmra.mrb[0].mxu0 %v2161
        %v3370 = vpop.f32.mrb[0].mxu0
        %v3371 = vadd.f32 %v3228, %v3370
        %v3372 = vpop.f32.mrb[0].mxu0
        %v3373 = vadd.f32 %v3230, %v3372
        %3374 = vmatprep.mubr.f32.mxu0 %v2178
        %3375 = vmatmul.mubr.f32.gmra.mrb[0].mxu0 %v2177
        %v3376 = vpop.f32.mrb[0].mxu0
        %v3377 = vadd.f32 %v3234, %v3376
        %v3378 = vpop.f32.mrb[0].mxu0
        %v3379 = vadd.f32 %v3236, %v3378
        %3380 = vmatprep.mubr.f32.mxu0 %v2194
        %3381 = vmatmul.mubr.f32.gmra.mrb[0].mxu0 %v2193
        %v3382 = vpop.f32.mrb[0].mxu0
        %v3383 = vadd.f32 %v3240, %v3382
        %v3384 = vpop.f32.mrb[0].mxu0
        %v3385 = vadd.f32 %v3242, %v3384
        %3386 = vmatprep.mubr.f32.mxu0 %v2210
        %3387 = vmatmul.mubr.f32.gmra.mrb[0].mxu0 %v2209
        %v3388 = vpop.f32.mrb[0].mxu0
        %v3389 = vadd.f32 %v3246, %v3388
        %v3390 = vpop.f32.mrb[0].mxu0
        %v3391 = vadd.f32 %v3248, %v3390
        %3392 = vmatprep.mubr.f32.mxu0 %v2226
        %3393 = vmatmul.mubr.f32.gmra.mrb[0].mxu0 %v2225
        %v3394 = vpop.f32.mrb[0].mxu0
        %v3395 = vadd.f32 %v3252, %v3394
        %v3396 = vpop.f32.mrb[0].mxu0
        %v3397 = vadd.f32 %v3254, %v3396
        %3398 = vmatprep.mubr.f32.mxu0 %v2242
        %3399 = vmatmul.mubr.f32.gmra.mrb[0].mxu0 %v2241
        %v3400 = vpop.f32.mrb[0].mxu0
        %v3401 = vadd.f32 %v3258, %v3400
        %v3402 = vpop.f32.mrb[0].mxu0
        %v3403 = vadd.f32 %v3260, %v3402
        %3404 = vmatprep.mubr.f32.mxu0 %v2258
        %3405 = vmatmul.mubr.f32.gmra.mrb[0].mxu0 %v2257
        %v3406 = vpop.f32.mrb[0].mxu0
        %v3407 = vadd.f32 %v3264, %v3406
        %v3408 = vpop.f32.mrb[0].mxu0
        %v3409 = vadd.f32 %v3266, %v3408
        %3410 = vmatprep.mubr.f32.mxu0 %v2274
        %3411 = vmatmul.mubr.f32.gmra.mrb[0].mxu0 %v2273
        %v3412 = vpop.f32.mrb[0].mxu0
        %v3413 = vadd.f32 %v3270, %v3412
        %v3414 = vpop.f32.mrb[0].mxu0
        %v3415 = vadd.f32 %v3272, %v3414
        %3416 = vmatprep.mubr.f32.mxu0 %v2290
        %3417 = vmatmul.mubr.f32.gmra.mrb[0].mxu0 %v2289
        %v3418 = vpop.f32.mrb[0].mxu0
        %v3419 = vadd.f32 %v3276, %v3418
        %v3420 = vpop.f32.mrb[0].mxu0
        %v3421 = vadd.f32 %v3278, %v3420
        %3422 = vmatprep.mubr.f32.mxu0 %v2306
        %3423 = vmatmul.mubr.f32.gmra.mrb[0].mxu0 %v2305
        %v3424 = vpop.f32.mrb[0].mxu0
        %v3425 = vadd.f32 %v3282, %v3424
        %v3426 = vpop.f32.mrb[0].mxu0
        %v3427 = vadd.f32 %v3284, %v3426
        %3428 = vmatprep.mubr.f32.mxu0 %v2322
        %3429 = vmatmul.mubr.f32.gmra.mrb[0].mxu0 %v2321
        %v3430 = vpop.f32.mrb[0].mxu0
        %v3431 = vadd.f32 %v3288, %v3430
        %v3432 = vpop.f32.mrb[0].mxu0
        %v3433 = vadd.f32 %v3290, %v3432
        %3434 = vmatprep.mubr.f32.mxu0 %v2338
        %3435 = vmatmul.mubr.f32.gmra.mrb[0].mxu0 %v2337
        %v3436 = vpop.f32.mrb[0].mxu0
        %v3437 = vadd.f32 %v3294, %v3436
        %v3438 = vpop.f32.mrb[0].mxu0
        %v3439 = vadd.f32 %v3296, %v3438
        %3440 = vmatprep.mubr.f32.mxu0 %v2354
        %3441 = vmatmul.mubr.f32.gmra.mrb[0].mxu0 %v2353
        %v3442 = vpop.f32.mrb[0].mxu0
        %v3443 = vadd.f32 %v3300, %v3442
        %v3444 = vpop.f32.mrb[0].mxu0
        %v3445 = vadd.f32 %v3302, %v3444
        %3446 = vdwg.mxu0
        %3447 = vmatprep.subr.mxu0 %v2620
        %3448 = vmatpush1.msra.mxu0 %v2619
        %3449 = vmatprep.subr.mxu0 %v2622
        %3450 = vmatpush1.msra.mxu0 %v2621
        %3451 = vmatprep.subr.mxu0 %v2624
        %3452 = vmatpush1.msra.mxu0 %v2623
        %3453 = vmatprep.subr.mxu0 %v2626
        %3454 = vmatpush1.msra.mxu0 %v2625
        %3455 = vmatprep.subr.mxu0 %v2628
        %3456 = vmatpush1.msra.mxu0 %v2627
        %3457 = vmatprep.subr.mxu0 %v2630
        %3458 = vmatpush1.msra.mxu0 %v2629
        %3459 = vmatprep.subr.mxu0 %v2632
        %3460 = vmatpush1.msra.mxu0 %v2631
        %3461 = vmatprep.subr.mxu0 %v2634
        %3462 = vmatpush1.msra.mxu0 %v2633
        %3463 = vmatprep.subr.mxu0 %v2636
        %3464 = vmatpush1.msra.mxu0 %v2635
        %3465 = vmatprep.subr.mxu0 %v2638
        %3466 = vmatpush1.msra.mxu0 %v2637
        %3467 = vmatprep.subr.mxu0 %v2640
        %3468 = vmatpush1.msra.mxu0 %v2639
        %3469 = vmatprep.subr.mxu0 %v2642
        %3470 = vmatpush1.msra.mxu0 %v2641
        %3471 = vmatprep.subr.mxu0 %v2644
        %3472 = vmatpush1.msra.mxu0 %v2643
        %3473 = vmatprep.subr.mxu0 %v2646
        %3474 = vmatpush1.msra.mxu0 %v2645
        %3475 = vmatprep.subr.mxu0 %v2648
        %3476 = vmatpush1.msra.mxu0 %v2647
        %3477 = vmatprep.subr.mxu0 %v2650
        %3478 = vmatpush1.msra.mxu0 %v2649
        %3479 = vmatprep.subr.mxu0 %v2652
        %3480 = vmatpush1.msra.mxu0 %v2651
        %3481 = vmatprep.subr.mxu0 %v2654
        %3482 = vmatpush1.msra.mxu0 %v2653
        %3483 = vmatprep.subr.mxu0 %v2656
        %3484 = vmatpush1.msra.mxu0 %v2655
        %3485 = vmatprep.subr.mxu0 %v2658
        %3486 = vmatpush1.msra.mxu0 %v2657
        %3487 = vmatprep.subr.mxu0 %v2660
        %3488 = vmatpush1.msra.mxu0 %v2659
        %3489 = vmatprep.subr.mxu0 %v2662
        %3490 = vmatpush1.msra.mxu0 %v2661
        %3491 = vmatprep.subr.mxu0 %v2664
        %3492 = vmatpush1.msra.mxu0 %v2663
        %3493 = vmatprep.subr.mxu0 %v2666
        %3494 = vmatpush1.msra.mxu0 %v2665
        %3495 = vmatprep.subr.mxu0 %v2668
        %3496 = vmatpush1.msra.mxu0 %v2667
        %3497 = vmatprep.subr.mxu0 %v2670
        %3498 = vmatpush1.msra.mxu0 %v2669
        %3499 = vmatprep.subr.mxu0 %v2672
        %3500 = vmatpush1.msra.mxu0 %v2671
        %3501 = vmatprep.subr.mxu0 %v2674
        %3502 = vmatpush1.msra.mxu0 %v2673
        %3503 = vmatprep.subr.mxu0 %v2676
        %3504 = vmatpush1.msra.mxu0 %v2675
        %3505 = vmatprep.subr.mxu0 %v2678
        %3506 = vmatpush1.msra.mxu0 %v2677
        %3507 = vmatprep.subr.mxu0 %v2680
        %3508 = vmatpush1.msra.mxu0 %v2679
        %3509 = vmatprep.subr.mxu0 %v2682
        %3510 = vmatpush1.msra.mxu0 %v2681
        %3511 = vmatprep.mubr.f32.mxu0 %v2164
        %3512 = vmatmul.mubr.f32.gmra.mrb[0].mxu0 %v2163
        %v3513 = vpop.f32.mrb[0].mxu0
        %v3514 = vadd.f32 %v3371, %v3513
        %v3515 = vpop.f32.mrb[0].mxu0
        %v3516 = vadd.f32 %v3373, %v3515
        %3517 = vmatprep.mubr.f32.mxu0 %v2180
        %3518 = vmatmul.mubr.f32.gmra.mrb[0].mxu0 %v2179
        %v3519 = vpop.f32.mrb[0].mxu0
        %v3520 = vadd.f32 %v3377, %v3519
        %v3521 = vpop.f32.mrb[0].mxu0
        %v3522 = vadd.f32 %v3379, %v3521
        %3523 = vmatprep.mubr.f32.mxu0 %v2196
        %3524 = vmatmul.mubr.f32.gmra.mrb[0].mxu0 %v2195
        %v3525 = vpop.f32.mrb[0].mxu0
        %v3526 = vadd.f32 %v3383, %v3525
        %v3527 = vpop.f32.mrb[0].mxu0
        %v3528 = vadd.f32 %v3385, %v3527
        %3529 = vmatprep.mubr.f32.mxu0 %v2212
        %3530 = vmatmul.mubr.f32.gmra.mrb[0].mxu0 %v2211
        %v3531 = vpop.f32.mrb[0].mxu0
        %v3532 = vadd.f32 %v3389, %v3531
        %v3533 = vpop.f32.mrb[0].mxu0
        %v3534 = vadd.f32 %v3391, %v3533
        %3535 = vmatprep.mubr.f32.mxu0 %v2228
        %3536 = vmatmul.mubr.f32.gmra.mrb[0].mxu0 %v2227
        %v3537 = vpop.f32.mrb[0].mxu0
        %v3538 = vadd.f32 %v3395, %v3537
        %v3539 = vpop.f32.mrb[0].mxu0
        %v3540 = vadd.f32 %v3397, %v3539
        %3541 = vmatprep.mubr.f32.mxu0 %v2244
        %3542 = vmatmul.mubr.f32.gmra.mrb[0].mxu0 %v2243
        %v3543 = vpop.f32.mrb[0].mxu0
        %v3544 = vadd.f32 %v3401, %v3543
        %v3545 = vpop.f32.mrb[0].mxu0
        %v3546 = vadd.f32 %v3403, %v3545
        %3547 = vmatprep.mubr.f32.mxu0 %v2260
        %3548 = vmatmul.mubr.f32.gmra.mrb[0].mxu0 %v2259
        %v3549 = vpop.f32.mrb[0].mxu0
        %v3550 = vadd.f32 %v3407, %v3549
        %v3551 = vpop.f32.mrb[0].mxu0
        %v3552 = vadd.f32 %v3409, %v3551
        %3553 = vmatprep.mubr.f32.mxu0 %v2276
        %3554 = vmatmul.mubr.f32.gmra.mrb[0].mxu0 %v2275
        %v3555 = vpop.f32.mrb[0].mxu0
        %v3556 = vadd.f32 %v3413, %v3555
        %v3557 = vpop.f32.mrb[0].mxu0
        %v3558 = vadd.f32 %v3415, %v3557
        %3559 = vmatprep.mubr.f32.mxu0 %v2292
        %3560 = vmatmul.mubr.f32.gmra.mrb[0].mxu0 %v2291
        %v3561 = vpop.f32.mrb[0].mxu0
        %v3562 = vadd.f32 %v3419, %v3561
        %v3563 = vpop.f32.mrb[0].mxu0
        %v3564 = vadd.f32 %v3421, %v3563
        %3565 = vmatprep.mubr.f32.mxu0 %v2308
        %3566 = vmatmul.mubr.f32.gmra.mrb[0].mxu0 %v2307
        %v3567 = vpop.f32.mrb[0].mxu0
        %v3568 = vadd.f32 %v3425, %v3567
        %v3569 = vpop.f32.mrb[0].mxu0
        %v3570 = vadd.f32 %v3427, %v3569
        %3571 = vmatprep.mubr.f32.mxu0 %v2324
        %3572 = vmatmul.mubr.f32.gmra.mrb[0].mxu0 %v2323
        %v3573 = vpop.f32.mrb[0].mxu0
        %v3574 = vadd.f32 %v3431, %v3573
        %v3575 = vpop.f32.mrb[0].mxu0
        %v3576 = vadd.f32 %v3433, %v3575
        %3577 = vmatprep.mubr.f32.mxu0 %v2340
        %3578 = vmatmul.mubr.f32.gmra.mrb[0].mxu0 %v2339
        %v3579 = vpop.f32.mrb[0].mxu0
        %v3580 = vadd.f32 %v3437, %v3579
        %v3581 = vpop.f32.mrb[0].mxu0
        %v3582 = vadd.f32 %v3439, %v3581
        %3583 = vmatprep.mubr.f32.mxu0 %v2356
        %3584 = vmatmul.mubr.f32.gmra.mrb[0].mxu0 %v2355
        %v3585 = vpop.f32.mrb[0].mxu0
        %v3586 = vadd.f32 %v3443, %v3585
        %v3587 = vpop.f32.mrb[0].mxu0
        %v3588 = vadd.f32 %v3445, %v3587
        %3589 = vdwg.mxu0
        %3590 = vmatprep.subr.mxu0 %v2684
        %3591 = vmatpush1.msra.mxu0 %v2683
        %3592 = vmatprep.subr.mxu0 %v2686
        %3593 = vmatpush1.msra.mxu0 %v2685
        %3594 = vmatprep.subr.mxu0 %v2688
        %3595 = vmatpush1.msra.mxu0 %v2687
        %3596 = vmatprep.subr.mxu0 %v2690
        %3597 = vmatpush1.msra.mxu0 %v2689
        %3598 = vmatprep.subr.mxu0 %v2692
        %3599 = vmatpush1.msra.mxu0 %v2691
        %3600 = vmatprep.subr.mxu0 %v2694
        %3601 = vmatpush1.msra.mxu0 %v2693
        %3602 = vmatprep.subr.mxu0 %v2696
        %3603 = vmatpush1.msra.mxu0 %v2695
        %3604 = vmatprep.subr.mxu0 %v2698
        %3605 = vmatpush1.msra.mxu0 %v2697
        %3606 = vmatprep.subr.mxu0 %v2700
        %3607 = vmatpush1.msra.mxu0 %v2699
        %3608 = vmatprep.subr.mxu0 %v2702
        %3609 = vmatpush1.msra.mxu0 %v2701
        %3610 = vmatprep.subr.mxu0 %v2704
        %3611 = vmatpush1.msra.mxu0 %v2703
        %3612 = vmatprep.subr.mxu0 %v2706
        %3613 = vmatpush1.msra.mxu0 %v2705
        %3614 = vmatprep.subr.mxu0 %v2708
        %3615 = vmatpush1.msra.mxu0 %v2707
        %3616 = vmatprep.subr.mxu0 %v2710
        %3617 = vmatpush1.msra.mxu0 %v2709
        %3618 = vmatprep.subr.mxu0 %v2712
        %3619 = vmatpush1.msra.mxu0 %v2711
        %3620 = vmatprep.subr.mxu0 %v2714
        %3621 = vmatpush1.msra.mxu0 %v2713
        %3622 = vmatprep.subr.mxu0 %v2716
        %3623 = vmatpush1.msra.mxu0 %v2715
        %3624 = vmatprep.subr.mxu0 %v2718
        %3625 = vmatpush1.msra.mxu0 %v2717
        %3626 = vmatprep.subr.mxu0 %v2720
        %3627 = vmatpush1.msra.mxu0 %v2719
        %3628 = vmatprep.subr.mxu0 %v2722
        %3629 = vmatpush1.msra.mxu0 %v2721
        %3630 = vmatprep.subr.mxu0 %v2724
        %3631 = vmatpush1.msra.mxu0 %v2723
        %3632 = vmatprep.subr.mxu0 %v2726
        %3633 = vmatpush1.msra.mxu0 %v2725
        %3634 = vmatprep.subr.mxu0 %v2728
        %3635 = vmatpush1.msra.mxu0 %v2727
        %3636 = vmatprep.subr.mxu0 %v2730
        %3637 = vmatpush1.msra.mxu0 %v2729
        %3638 = vmatprep.subr.mxu0 %v2732
        %3639 = vmatpush1.msra.mxu0 %v2731
        %3640 = vmatprep.subr.mxu0 %v2734
        %3641 = vmatpush1.msra.mxu0 %v2733
        %3642 = vmatprep.subr.mxu0 %v2736
        %3643 = vmatpush1.msra.mxu0 %v2735
        %3644 = vmatprep.subr.mxu0 %v2738
        %3645 = vmatpush1.msra.mxu0 %v2737
        %3646 = vmatprep.subr.mxu0 %v2740
        %3647 = vmatpush1.msra.mxu0 %v2739
        %3648 = vmatprep.subr.mxu0 %v2742
        %3649 = vmatpush1.msra.mxu0 %v2741
        %3650 = vmatprep.subr.mxu0 %v2744
        %3651 = vmatpush1.msra.mxu0 %v2743
        %3652 = vmatprep.subr.mxu0 %v2746
        %3653 = vmatpush1.msra.mxu0 %v2745
        %3654 = vmatprep.mubr.f32.mxu0 %v2166
        %3655 = vmatmul.mubr.f32.gmra.mrb[0].mxu0 %v2165
        %v3656 = vpop.f32.mrb[0].mxu0
        %v3657 = vadd.f32 %v3514, %v3656
        %v3658 = vpop.f32.mrb[0].mxu0
        %v3659 = vadd.f32 %v3516, %v3658
        %3660 = vmatprep.mubr.f32.mxu0 %v2182
        %3661 = vmatmul.mubr.f32.gmra.mrb[0].mxu0 %v2181
        %v3662 = vpop.f32.mrb[0].mxu0
        %v3663 = vadd.f32 %v3520, %v3662
        %v3664 = vpop.f32.mrb[0].mxu0
        %v3665 = vadd.f32 %v3522, %v3664
        %3666 = vmatprep.mubr.f32.mxu0 %v2198
        %3667 = vmatmul.mubr.f32.gmra.mrb[0].mxu0 %v2197
        %v3668 = vpop.f32.mrb[0].mxu0
        %v3669 = vadd.f32 %v3526, %v3668
        %v3670 = vpop.f32.mrb[0].mxu0
        %v3671 = vadd.f32 %v3528, %v3670
        %3672 = vmatprep.mubr.f32.mxu0 %v2214
        %3673 = vmatmul.mubr.f32.gmra.mrb[0].mxu0 %v2213
        %v3674 = vpop.f32.mrb[0].mxu0
        %v3675 = vadd.f32 %v3532, %v3674
        %v3676 = vpop.f32.mrb[0].mxu0
        %v3677 = vadd.f32 %v3534, %v3676
        %3678 = vmatprep.mubr.f32.mxu0 %v2230
        %3679 = vmatmul.mubr.f32.gmra.mrb[0].mxu0 %v2229
        %v3680 = vpop.f32.mrb[0].mxu0
        %v3681 = vadd.f32 %v3538, %v3680
        %v3682 = vpop.f32.mrb[0].mxu0
        %v3683 = vadd.f32 %v3540, %v3682
        %3684 = vmatprep.mubr.f32.mxu0 %v2246
        %3685 = vmatmul.mubr.f32.gmra.mrb[0].mxu0 %v2245
        %v3686 = vpop.f32.mrb[0].mxu0
        %v3687 = vadd.f32 %v3544, %v3686
        %v3688 = vpop.f32.mrb[0].mxu0
        %v3689 = vadd.f32 %v3546, %v3688
        %3690 = vmatprep.mubr.f32.mxu0 %v2262
        %3691 = vmatmul.mubr.f32.gmra.mrb[0].mxu0 %v2261
        %v3692 = vpop.f32.mrb[0].mxu0
        %v3693 = vadd.f32 %v3550, %v3692
        %v3694 = vpop.f32.mrb[0].mxu0
        %v3695 = vadd.f32 %v3552, %v3694
        %3696 = vmatprep.mubr.f32.mxu0 %v2278
        %3697 = vmatmul.mubr.f32.gmra.mrb[0].mxu0 %v2277
        %v3698 = vpop.f32.mrb[0].mxu0
        %v3699 = vadd.f32 %v3556, %v3698
        %v3700 = vpop.f32.mrb[0].mxu0
        %v3701 = vadd.f32 %v3558, %v3700
        %3702 = vmatprep.mubr.f32.mxu0 %v2294
        %3703 = vmatmul.mubr.f32.gmra.mrb[0].mxu0 %v2293
        %v3704 = vpop.f32.mrb[0].mxu0
        %v3705 = vadd.f32 %v3562, %v3704
        %v3706 = vpop.f32.mrb[0].mxu0
        %v3707 = vadd.f32 %v3564, %v3706
        %3708 = vmatprep.mubr.f32.mxu0 %v2310
        %3709 = vmatmul.mubr.f32.gmra.mrb[0].mxu0 %v2309
        %v3710 = vpop.f32.mrb[0].mxu0
        %v3711 = vadd.f32 %v3568, %v3710
        %v3712 = vpop.f32.mrb[0].mxu0
        %v3713 = vadd.f32 %v3570, %v3712
        %3714 = vmatprep.mubr.f32.mxu0 %v2326
        %3715 = vmatmul.mubr.f32.gmra.mrb[0].mxu0 %v2325
        %v3716 = vpop.f32.mrb[0].mxu0
        %v3717 = vadd.f32 %v3574, %v3716
        %v3718 = vpop.f32.mrb[0].mxu0
        %v3719 = vadd.f32 %v3576, %v3718
        %3720 = vmatprep.mubr.f32.mxu0 %v2342
        %3721 = vmatmul.mubr.f32.gmra.mrb[0].mxu0 %v2341
        %v3722 = vpop.f32.mrb[0].mxu0
        %v3723 = vadd.f32 %v3580, %v3722
        %v3724 = vpop.f32.mrb[0].mxu0
        %v3725 = vadd.f32 %v3582, %v3724
        %3726 = vmatprep.mubr.f32.mxu0 %v2358
        %3727 = vmatmul.mubr.f32.gmra.mrb[0].mxu0 %v2357
        %v3728 = vpop.f32.mrb[0].mxu0
        %v3729 = vadd.f32 %v3586, %v3728
        %v3730 = vpop.f32.mrb[0].mxu0
        %v3731 = vadd.f32 %v3588, %v3730
        %3732 = vdwg.mxu0
        %3733 = vmatprep.subr.mxu0 %v2748
        %3734 = vmatpush1.msra.mxu0 %v2747
        %3735 = vmatprep.subr.mxu0 %v2750
        %3736 = vmatpush1.msra.mxu0 %v2749
        %3737 = vmatprep.subr.mxu0 %v2752
        %3738 = vmatpush1.msra.mxu0 %v2751
        %3739 = vmatprep.subr.mxu0 %v2754
        %3740 = vmatpush1.msra.mxu0 %v2753
        %3741 = vmatprep.subr.mxu0 %v2756
        %3742 = vmatpush1.msra.mxu0 %v2755
        %3743 = vmatprep.subr.mxu0 %v2758
        %3744 = vmatpush1.msra.mxu0 %v2757
        %3745 = vmatprep.subr.mxu0 %v2760
        %3746 = vmatpush1.msra.mxu0 %v2759
        %3747 = vmatprep.subr.mxu0 %v2762
        %3748 = vmatpush1.msra.mxu0 %v2761
        %3749 = vmatprep.subr.mxu0 %v2764
        %3750 = vmatpush1.msra.mxu0 %v2763
        %3751 = vmatprep.subr.mxu0 %v2766
        %3752 = vmatpush1.msra.mxu0 %v2765
        %3753 = vmatprep.subr.mxu0 %v2768
        %3754 = vmatpush1.msra.mxu0 %v2767
        %3755 = vmatprep.subr.mxu0 %v2770
        %3756 = vmatpush1.msra.mxu0 %v2769
        %3757 = vmatprep.subr.mxu0 %v2772
        %3758 = vmatpush1.msra.mxu0 %v2771
        %3759 = vmatprep.subr.mxu0 %v2774
        %3760 = vmatpush1.msra.mxu0 %v2773
        %3761 = vmatprep.subr.mxu0 %v2776
        %3762 = vmatpush1.msra.mxu0 %v2775
        %3763 = vmatprep.subr.mxu0 %v2778
        %3764 = vmatpush1.msra.mxu0 %v2777
        %3765 = vmatprep.subr.mxu0 %v2780
        %3766 = vmatpush1.msra.mxu0 %v2779
        %3767 = vmatprep.subr.mxu0 %v2782
        %3768 = vmatpush1.msra.mxu0 %v2781
        %3769 = vmatprep.subr.mxu0 %v2784
        %3770 = vmatpush1.msra.mxu0 %v2783
        %3771 = vmatprep.subr.mxu0 %v2786
        %3772 = vmatpush1.msra.mxu0 %v2785
        %3773 = vmatprep.subr.mxu0 %v2788
        %3774 = vmatpush1.msra.mxu0 %v2787
        %3775 = vmatprep.subr.mxu0 %v2790
        %3776 = vmatpush1.msra.mxu0 %v2789
        %3777 = vmatprep.subr.mxu0 %v2792
        %3778 = vmatpush1.msra.mxu0 %v2791
        %3779 = vmatprep.subr.mxu0 %v2794
        %3780 = vmatpush1.msra.mxu0 %v2793
        %3781 = vmatprep.subr.mxu0 %v2796
        %3782 = vmatpush1.msra.mxu0 %v2795
        %3783 = vmatprep.subr.mxu0 %v2798
        %3784 = vmatpush1.msra.mxu0 %v2797
        %3785 = vmatprep.subr.mxu0 %v2800
        %3786 = vmatpush1.msra.mxu0 %v2799
        %3787 = vmatprep.subr.mxu0 %v2802
        %3788 = vmatpush1.msra.mxu0 %v2801
        %3789 = vmatprep.subr.mxu0 %v2804
        %3790 = vmatpush1.msra.mxu0 %v2803
        %3791 = vmatprep.subr.mxu0 %v2806
        %3792 = vmatpush1.msra.mxu0 %v2805
        %3793 = vmatprep.subr.mxu0 %v2808
        %3794 = vmatpush1.msra.mxu0 %v2807
        %3795 = vmatprep.subr.mxu0 %v2810
        %3796 = vmatpush1.msra.mxu0 %v2809
        %3797 = vmatprep.mubr.f32.mxu0 %v2168
        %3798 = vmatmul.mubr.f32.gmra.mrb[0].mxu0 %v2167
        %v3799 = vpop.f32.mrb[0].mxu0
        %v3800 = vadd.f32 %v3657, %v3799
        %v3801 = vpop.f32.mrb[0].mxu0
        %v3802 = vadd.f32 %v3659, %v3801
        %3803 = vmatprep.mubr.f32.mxu0 %v2184
        %3804 = vmatmul.mubr.f32.gmra.mrb[0].mxu0 %v2183
        %v3805 = vpop.f32.mrb[0].mxu0
        %v3806 = vadd.f32 %v3663, %v3805
        %v3807 = vpop.f32.mrb[0].mxu0
        %v3808 = vadd.f32 %v3665, %v3807
        %3809 = vmatprep.mubr.f32.mxu0 %v2200
        %3810 = vmatmul.mubr.f32.gmra.mrb[0].mxu0 %v2199
        %v3811 = vpop.f32.mrb[0].mxu0
        %v3812 = vadd.f32 %v3669, %v3811
        %v3813 = vpop.f32.mrb[0].mxu0
        %v3814 = vadd.f32 %v3671, %v3813
        %3815 = vmatprep.mubr.f32.mxu0 %v2216
        %3816 = vmatmul.mubr.f32.gmra.mrb[0].mxu0 %v2215
        %v3817 = vpop.f32.mrb[0].mxu0
        %v3818 = vadd.f32 %v3675, %v3817
        %v3819 = vpop.f32.mrb[0].mxu0
        %v3820 = vadd.f32 %v3677, %v3819
        %3821 = vmatprep.mubr.f32.mxu0 %v2232
        %3822 = vmatmul.mubr.f32.gmra.mrb[0].mxu0 %v2231
        %v3823 = vpop.f32.mrb[0].mxu0
        %v3824 = vadd.f32 %v3681, %v3823
        %v3825 = vpop.f32.mrb[0].mxu0
        %v3826 = vadd.f32 %v3683, %v3825
        %3827 = vmatprep.mubr.f32.mxu0 %v2248
        %3828 = vmatmul.mubr.f32.gmra.mrb[0].mxu0 %v2247
        %v3829 = vpop.f32.mrb[0].mxu0
        %v3830 = vadd.f32 %v3687, %v3829
        %v3831 = vpop.f32.mrb[0].mxu0
        %v3832 = vadd.f32 %v3689, %v3831
        %3833 = vmatprep.mubr.f32.mxu0 %v2264
        %3834 = vmatmul.mubr.f32.gmra.mrb[0].mxu0 %v2263
        %v3835 = vpop.f32.mrb[0].mxu0
        %v3836 = vadd.f32 %v3693, %v3835
        %v3837 = vpop.f32.mrb[0].mxu0
        %v3838 = vadd.f32 %v3695, %v3837
        %3839 = vmatprep.mubr.f32.mxu0 %v2280
        %3840 = vmatmul.mubr.f32.gmra.mrb[0].mxu0 %v2279
        %v3841 = vpop.f32.mrb[0].mxu0
        %v3842 = vadd.f32 %v3699, %v3841
        %v3843 = vpop.f32.mrb[0].mxu0
        %v3844 = vadd.f32 %v3701, %v3843
        %3845 = vmatprep.mubr.f32.mxu0 %v2296
        %3846 = vmatmul.mubr.f32.gmra.mrb[0].mxu0 %v2295
        %v3847 = vpop.f32.mrb[0].mxu0
        %v3848 = vadd.f32 %v3705, %v3847
        %v3849 = vpop.f32.mrb[0].mxu0
        %v3850 = vadd.f32 %v3707, %v3849
        %3851 = vmatprep.mubr.f32.mxu0 %v2312
        %3852 = vmatmul.mubr.f32.gmra.mrb[0].mxu0 %v2311
        %v3853 = vpop.f32.mrb[0].mxu0
        %v3854 = vadd.f32 %v3711, %v3853
        %v3855 = vpop.f32.mrb[0].mxu0
        %v3856 = vadd.f32 %v3713, %v3855
        %3857 = vmatprep.mubr.f32.mxu0 %v2328
        %3858 = vmatmul.mubr.f32.gmra.mrb[0].mxu0 %v2327
        %v3859 = vpop.f32.mrb[0].mxu0
        %v3860 = vadd.f32 %v3717, %v3859
        %v3861 = vpop.f32.mrb[0].mxu0
        %v3862 = vadd.f32 %v3719, %v3861
        %3863 = vmatprep.mubr.f32.mxu0 %v2344
        %3864 = vmatmul.mubr.f32.gmra.mrb[0].mxu0 %v2343
        %v3865 = vpop.f32.mrb[0].mxu0
        %v3866 = vadd.f32 %v3723, %v3865
        %v3867 = vpop.f32.mrb[0].mxu0
        %v3868 = vadd.f32 %v3725, %v3867
        %3869 = vmatprep.mubr.f32.mxu0 %v2360
        %3870 = vmatmul.mubr.f32.gmra.mrb[0].mxu0 %v2359
        %v3871 = vpop.f32.mrb[0].mxu0
        %v3872 = vadd.f32 %v3729, %v3871
        %v3873 = vpop.f32.mrb[0].mxu0
        %v3874 = vadd.f32 %v3731, %v3873
        %3875 = vdwg.mxu0
        %3876 = vmatprep.subr.mxu0 %v2812
        %3877 = vmatpush1.msra.mxu0 %v2811
        %3878 = vmatprep.subr.mxu0 %v2814
        %3879 = vmatpush1.msra.mxu0 %v2813
        %3880 = vmatprep.subr.mxu0 %v2816
        %3881 = vmatpush1.msra.mxu0 %v2815
        %3882 = vmatprep.subr.mxu0 %v2818
        %3883 = vmatpush1.msra.mxu0 %v2817
        %3884 = vmatprep.subr.mxu0 %v2820
        %3885 = vmatpush1.msra.mxu0 %v2819
        %3886 = vmatprep.subr.mxu0 %v2822
        %3887 = vmatpush1.msra.mxu0 %v2821
        %3888 = vmatprep.subr.mxu0 %v2824
        %3889 = vmatpush1.msra.mxu0 %v2823
        %3890 = vmatprep.subr.mxu0 %v2826
        %3891 = vmatpush1.msra.mxu0 %v2825
        %3892 = vmatprep.subr.mxu0 %v2828
        %3893 = vmatpush1.msra.mxu0 %v2827
        %3894 = vmatprep.subr.mxu0 %v2830
        %3895 = vmatpush1.msra.mxu0 %v2829
        %3896 = vmatprep.subr.mxu0 %v2832
        %3897 = vmatpush1.msra.mxu0 %v2831
        %3898 = vmatprep.subr.mxu0 %v2834
        %3899 = vmatpush1.msra.mxu0 %v2833
        %3900 = vmatprep.subr.mxu0 %v2836
        %3901 = vmatpush1.msra.mxu0 %v2835
        %3902 = vmatprep.subr.mxu0 %v2838
        %3903 = vmatpush1.msra.mxu0 %v2837
        %3904 = vmatprep.subr.mxu0 %v2840
        %3905 = vmatpush1.msra.mxu0 %v2839
        %3906 = vmatprep.subr.mxu0 %v2842
        %3907 = vmatpush1.msra.mxu0 %v2841
        %3908 = vmatprep.subr.mxu0 %v2844
        %3909 = vmatpush1.msra.mxu0 %v2843
        %3910 = vmatprep.subr.mxu0 %v2846
        %3911 = vmatpush1.msra.mxu0 %v2845
        %3912 = vmatprep.subr.mxu0 %v2848
        %3913 = vmatpush1.msra.mxu0 %v2847
        %3914 = vmatprep.subr.mxu0 %v2850
        %3915 = vmatpush1.msra.mxu0 %v2849
        %3916 = vmatprep.subr.mxu0 %v2852
        %3917 = vmatpush1.msra.mxu0 %v2851
        %3918 = vmatprep.subr.mxu0 %v2854
        %3919 = vmatpush1.msra.mxu0 %v2853
        %3920 = vmatprep.subr.mxu0 %v2856
        %3921 = vmatpush1.msra.mxu0 %v2855
        %3922 = vmatprep.subr.mxu0 %v2858
        %3923 = vmatpush1.msra.mxu0 %v2857
        %3924 = vmatprep.subr.mxu0 %v2860
        %3925 = vmatpush1.msra.mxu0 %v2859
        %3926 = vmatprep.subr.mxu0 %v2862
        %3927 = vmatpush1.msra.mxu0 %v2861
        %3928 = vmatprep.subr.mxu0 %v2864
        %3929 = vmatpush1.msra.mxu0 %v2863
        %3930 = vmatprep.subr.mxu0 %v2866
        %3931 = vmatpush1.msra.mxu0 %v2865
        %3932 = vmatprep.subr.mxu0 %v2868
        %3933 = vmatpush1.msra.mxu0 %v2867
        %3934 = vmatprep.subr.mxu0 %v2870
        %3935 = vmatpush1.msra.mxu0 %v2869
        %3936 = vmatprep.subr.mxu0 %v2872
        %3937 = vmatpush1.msra.mxu0 %v2871
        %3938 = vmatprep.subr.mxu0 %v2874
        %3939 = vmatpush1.msra.mxu0 %v2873
        %3940 = vmatprep.mubr.f32.mxu0 %v2170
        %3941 = vmatmul.mubr.f32.gmra.mrb[0].mxu0 %v2169
        %v3942 = vpop.f32.mrb[0].mxu0
        %v3943 = vadd.f32 %v3800, %v3942
        %v3944 = vpop.f32.mrb[0].mxu0
        %v3945 = vadd.f32 %v3802, %v3944
        %3946 = vmatprep.mubr.f32.mxu0 %v2186
        %3947 = vmatmul.mubr.f32.gmra.mrb[0].mxu0 %v2185
        %v3948 = vpop.f32.mrb[0].mxu0
        %v3949 = vadd.f32 %v3806, %v3948
        %v3950 = vpop.f32.mrb[0].mxu0
        %v3951 = vadd.f32 %v3808, %v3950
        %3952 = vmatprep.mubr.f32.mxu0 %v2202
        %3953 = vmatmul.mubr.f32.gmra.mrb[0].mxu0 %v2201
        %v3954 = vpop.f32.mrb[0].mxu0
        %v3955 = vadd.f32 %v3812, %v3954
        %v3956 = vpop.f32.mrb[0].mxu0
        %v3957 = vadd.f32 %v3814, %v3956
        %3958 = vmatprep.mubr.f32.mxu0 %v2218
        %3959 = vmatmul.mubr.f32.gmra.mrb[0].mxu0 %v2217
        %v3960 = vpop.f32.mrb[0].mxu0
        %v3961 = vadd.f32 %v3818, %v3960
        %v3962 = vpop.f32.mrb[0].mxu0
        %v3963 = vadd.f32 %v3820, %v3962
        %3964 = vmatprep.mubr.f32.mxu0 %v2234
        %3965 = vmatmul.mubr.f32.gmra.mrb[0].mxu0 %v2233
        %v3966 = vpop.f32.mrb[0].mxu0
        %v3967 = vadd.f32 %v3824, %v3966
        %v3968 = vpop.f32.mrb[0].mxu0
        %v3969 = vadd.f32 %v3826, %v3968
        %3970 = vmatprep.mubr.f32.mxu0 %v2250
        %3971 = vmatmul.mubr.f32.gmra.mrb[0].mxu0 %v2249
        %v3972 = vpop.f32.mrb[0].mxu0
        %v3973 = vadd.f32 %v3830, %v3972
        %v3974 = vpop.f32.mrb[0].mxu0
        %v3975 = vadd.f32 %v3832, %v3974
        %3976 = vmatprep.mubr.f32.mxu0 %v2266
        %3977 = vmatmul.mubr.f32.gmra.mrb[0].mxu0 %v2265
        %v3978 = vpop.f32.mrb[0].mxu0
        %v3979 = vadd.f32 %v3836, %v3978
        %v3980 = vpop.f32.mrb[0].mxu0
        %v3981 = vadd.f32 %v3838, %v3980
        %3982 = vmatprep.mubr.f32.mxu0 %v2282
        %3983 = vmatmul.mubr.f32.gmra.mrb[0].mxu0 %v2281
        %v3984 = vpop.f32.mrb[0].mxu0
        %v3985 = vadd.f32 %v3842, %v3984
        %v3986 = vpop.f32.mrb[0].mxu0
        %v3987 = vadd.f32 %v3844, %v3986
        %3988 = vmatprep.mubr.f32.mxu0 %v2298
        %3989 = vmatmul.mubr.f32.gmra.mrb[0].mxu0 %v2297
        %v3990 = vpop.f32.mrb[0].mxu0
        %v3991 = vadd.f32 %v3848, %v3990
        %v3992 = vpop.f32.mrb[0].mxu0
        %v3993 = vadd.f32 %v3850, %v3992
        %3994 = vmatprep.mubr.f32.mxu0 %v2314
        %3995 = vmatmul.mubr.f32.gmra.mrb[0].mxu0 %v2313
        %v3996 = vpop.f32.mrb[0].mxu0
        %v3997 = vadd.f32 %v3854, %v3996
        %v3998 = vpop.f32.mrb[0].mxu0
        %v3999 = vadd.f32 %v3856, %v3998
        %4000 = vmatprep.mubr.f32.mxu0 %v2330
        %4001 = vmatmul.mubr.f32.gmra.mrb[0].mxu0 %v2329
        %v4002 = vpop.f32.mrb[0].mxu0
        %v4003 = vadd.f32 %v3860, %v4002
        %v4004 = vpop.f32.mrb[0].mxu0
        %v4005 = vadd.f32 %v3862, %v4004
        %4006 = vmatprep.mubr.f32.mxu0 %v2346
        %4007 = vmatmul.mubr.f32.gmra.mrb[0].mxu0 %v2345
        %v4008 = vpop.f32.mrb[0].mxu0
        %v4009 = vadd.f32 %v3866, %v4008
        %v4010 = vpop.f32.mrb[0].mxu0
        %v4011 = vadd.f32 %v3868, %v4010
        %4012 = vmatprep.mubr.f32.mxu0 %v2362
        %4013 = vmatmul.mubr.f32.gmra.mrb[0].mxu0 %v2361
        %v4014 = vpop.f32.mrb[0].mxu0
        %v4015 = vadd.f32 %v3872, %v4014
        %v4016 = vpop.f32.mrb[0].mxu0
        %v4017 = vadd.f32 %v3874, %v4016
        %4018 = vdwg.mxu0
        %v4019 = vadd.f32 %v389, %v3943
        %v4020 = vadd.f32 %v390, %v3945
        %v4021 = vadd.f32 %v391, %v3949
        %v4022 = vadd.f32 %v392, %v3951
        %v4023 = vadd.f32 %v393, %v3955
        %v4024 = vadd.f32 %v394, %v3957
        %v4025 = vadd.f32 %v395, %v3961
        %v4026 = vadd.f32 %v396, %v3963
        %v4027 = vadd.f32 %v397, %v3967
        %v4028 = vadd.f32 %v398, %v3969
        %v4029 = vadd.f32 %v399, %v3973
        %v4030 = vadd.f32 %v400, %v3975
        %v4031 = vadd.f32 %v401, %v3979
        %v4032 = vadd.f32 %v402, %v3981
        %v4033 = vadd.f32 %v403, %v3985
        %v4034 = vadd.f32 %v404, %v3987
        %v4035 = vadd.f32 %v405, %v3991
        %v4036 = vadd.f32 %v406, %v3993
        %v4037 = vadd.f32 %v407, %v3997
        %v4038 = vadd.f32 %v408, %v3999
        %v4039 = vadd.f32 %v409, %v4003
        %v4040 = vadd.f32 %v410, %v4005
        %v4041 = vadd.f32 %v411, %v4009
        %v4042 = vadd.f32 %v412, %v4011
        %v4043 = vadd.f32 %v413, %v4015
        %v4044 = vadd.f32 %v414, %v4017
        %v4045 = vld [vmem:[#allocation7] sm:$0x3]
        %v4047 = vlaneseq
        %v4048 = vshrl.u32 %v4047, 7
        %v4049 = vsub.s32 0, %v4048
        %v4050 = vrot.slane %v4045, %v4049
        %v4051 = vlaneseq
        %v4052 = vshrl.u32 %v4051, 7
        %v4053 = vsub.s32 1, %v4052
        %v4054 = vrot.slane %v4045, %v4053
        %v4057 = vadd.f32 %v4019, %v4050
        %v4058 = vadd.f32 %v4020, %v4054
        %v4059 = vadd.f32 %v4021, %v4050
        %v4060 = vadd.f32 %v4022, %v4054
        %v4061 = vadd.f32 %v4023, %v4050
        %v4062 = vadd.f32 %v4024, %v4054
        %v4063 = vadd.f32 %v4025, %v4050
        %v4064 = vadd.f32 %v4026, %v4054
        %v4065 = vadd.f32 %v4027, %v4050
        %v4066 = vadd.f32 %v4028, %v4054
        %v4067 = vadd.f32 %v4029, %v4050
        %v4068 = vadd.f32 %v4030, %v4054
        %v4069 = vadd.f32 %v4031, %v4050
        %v4070 = vadd.f32 %v4032, %v4054
        %v4071 = vadd.f32 %v4033, %v4050
        %v4072 = vadd.f32 %v4034, %v4054
        %v4073 = vadd.f32 %v4035, %v4050
        %v4074 = vadd.f32 %v4036, %v4054
        %v4075 = vadd.f32 %v4037, %v4050
        %v4076 = vadd.f32 %v4038, %v4054
        %v4077 = vadd.f32 %v4039, %v4050
        %v4078 = vadd.f32 %v4040, %v4054
        %v4079 = vadd.f32 %v4041, %v4050
        %v4080 = vadd.f32 %v4042, %v4054
        %v4081 = vadd.f32 %v4043, %v4050
        %v4082 = vadd.f32 %v4044, %v4054
        %v4083 = vadd.f32 %v4057, %v4058
        %4084 = vadd.xlane.f32.xlu0 %v4083
        %v4085 = vpop.xlane.xlu0 %4084
        %v4086 = vadd.f32 %v4059, %v4060
        %4087 = vadd.xlane.f32.xlu0 %v4086
        %v4088 = vpop.xlane.xlu0 %4087
        %v4089 = vadd.f32 %v4061, %v4062
        %4090 = vadd.xlane.f32.xlu0 %v4089
        %v4091 = vpop.xlane.xlu0 %4090
        %v4092 = vadd.f32 %v4063, %v4064
        %4093 = vadd.xlane.f32.xlu0 %v4092
        %v4094 = vpop.xlane.xlu0 %4093
        %v4095 = vadd.f32 %v4065, %v4066
        %4096 = vadd.xlane.f32.xlu0 %v4095
        %v4097 = vpop.xlane.xlu0 %4096
        %v4098 = vadd.f32 %v4067, %v4068
        %4099 = vadd.xlane.f32.xlu0 %v4098
        %v4100 = vpop.xlane.xlu0 %4099
        %v4101 = vadd.f32 %v4069, %v4070
        %4102 = vadd.xlane.f32.xlu0 %v4101
        %v4103 = vpop.xlane.xlu0 %4102
        %v4104 = vadd.f32 %v4071, %v4072
        %4105 = vadd.xlane.f32.xlu0 %v4104
        %v4106 = vpop.xlane.xlu0 %4105
        %v4107 = vadd.f32 %v4073, %v4074
        %4108 = vadd.xlane.f32.xlu0 %v4107
        %v4109 = vpop.xlane.xlu0 %4108
        %v4110 = vadd.f32 %v4075, %v4076
        %4111 = vadd.xlane.f32.xlu0 %v4110
        %v4112 = vpop.xlane.xlu0 %4111
        %v4113 = vadd.f32 %v4077, %v4078
        %4114 = vadd.xlane.f32.xlu0 %v4113
        %v4115 = vpop.xlane.xlu0 %4114
        %v4116 = vadd.f32 %v4079, %v4080
        %4117 = vadd.xlane.f32.xlu0 %v4116
        %v4118 = vpop.xlane.xlu0 %4117
        %v4119 = vadd.f32 %v4081, %v4082
        %4120 = vadd.xlane.f32.xlu0 %v4119
        %v4121 = vpop.xlane.xlu0 %4120
        %v4122 = vmul.f32 %v4057, %v4057
        %v4123 = vmul.f32 %v4058, %v4058
        %v4124 = vmul.f32 %v4059, %v4059
        %v4125 = vmul.f32 %v4060, %v4060
        %v4126 = vmul.f32 %v4061, %v4061
        %v4127 = vmul.f32 %v4062, %v4062
        %v4128 = vmul.f32 %v4063, %v4063
        %v4129 = vmul.f32 %v4064, %v4064
        %v4130 = vmul.f32 %v4065, %v4065
        %v4131 = vmul.f32 %v4066, %v4066
        %v4132 = vmul.f32 %v4067, %v4067
        %v4133 = vmul.f32 %v4068, %v4068
        %v4134 = vmul.f32 %v4069, %v4069
        %v4135 = vmul.f32 %v4070, %v4070
        %v4136 = vmul.f32 %v4071, %v4071
        %v4137 = vmul.f32 %v4072, %v4072
        %v4138 = vmul.f32 %v4073, %v4073
        %v4139 = vmul.f32 %v4074, %v4074
        %v4140 = vmul.f32 %v4075, %v4075
        %v4141 = vmul.f32 %v4076, %v4076
        %v4142 = vmul.f32 %v4077, %v4077
        %v4143 = vmul.f32 %v4078, %v4078
        %v4144 = vmul.f32 %v4079, %v4079
        %v4145 = vmul.f32 %v4080, %v4080
        %v4146 = vmul.f32 %v4081, %v4081
        %v4147 = vmul.f32 %v4082, %v4082
        %v4148 = vadd.f32 %v4122, %v4123
        %4149 = vadd.xlane.f32.xlu0 %v4148
        %v4150 = vpop.xlane.xlu0 %4149
        %v4151 = vadd.f32 %v4124, %v4125
        %4152 = vadd.xlane.f32.xlu0 %v4151
        %v4153 = vpop.xlane.xlu0 %4152
        %v4154 = vadd.f32 %v4126, %v4127
        %4155 = vadd.xlane.f32.xlu0 %v4154
        %v4156 = vpop.xlane.xlu0 %4155
        %v4157 = vadd.f32 %v4128, %v4129
        %4158 = vadd.xlane.f32.xlu0 %v4157
        %v4159 = vpop.xlane.xlu0 %4158
        %v4160 = vadd.f32 %v4130, %v4131
        %4161 = vadd.xlane.f32.xlu0 %v4160
        %v4162 = vpop.xlane.xlu0 %4161
        %v4163 = vadd.f32 %v4132, %v4133
        %4164 = vadd.xlane.f32.xlu0 %v4163
        %v4165 = vpop.xlane.xlu0 %4164
        %v4166 = vadd.f32 %v4134, %v4135
        %4167 = vadd.xlane.f32.xlu0 %v4166
        %v4168 = vpop.xlane.xlu0 %4167
        %v4169 = vadd.f32 %v4136, %v4137
        %4170 = vadd.xlane.f32.xlu0 %v4169
        %v4171 = vpop.xlane.xlu0 %4170
        %v4172 = vadd.f32 %v4138, %v4139
        %4173 = vadd.xlane.f32.xlu0 %v4172
        %v4174 = vpop.xlane.xlu0 %4173
        %v4175 = vadd.f32 %v4140, %v4141
        %4176 = vadd.xlane.f32.xlu0 %v4175
        %v4177 = vpop.xlane.xlu0 %4176
        %v4178 = vadd.f32 %v4142, %v4143
        %4179 = vadd.xlane.f32.xlu0 %v4178
        %v4180 = vpop.xlane.xlu0 %4179
        %v4181 = vadd.f32 %v4144, %v4145
        %4182 = vadd.xlane.f32.xlu0 %v4181
        %v4183 = vpop.xlane.xlu0 %4182
        %v4184 = vadd.f32 %v4146, %v4147
        %4185 = vadd.xlane.f32.xlu0 %v4184
        %v4186 = vpop.xlane.xlu0 %4185
        %v4187 = vmul.f32 %v4085, 0.00390625
        %v4188 = vmul.f32 %v4088, 0.00390625
        %v4189 = vmul.f32 %v4091, 0.00390625
        %v4190 = vmul.f32 %v4094, 0.00390625
        %v4191 = vmul.f32 %v4097, 0.00390625
        %v4192 = vmul.f32 %v4100, 0.00390625
        %v4193 = vmul.f32 %v4103, 0.00390625
        %v4194 = vmul.f32 %v4106, 0.00390625
        %v4195 = vmul.f32 %v4109, 0.00390625
        %v4196 = vmul.f32 %v4112, 0.00390625
        %v4197 = vmul.f32 %v4115, 0.00390625
        %v4198 = vmul.f32 %v4118, 0.00390625
        %v4199 = vmul.f32 %v4121, 0.00390625
        %v4200 = vmul.f32 %v4150, 0.00390625
        %v4201 = vmul.f32 %v4153, 0.00390625
        %v4202 = vmul.f32 %v4156, 0.00390625
        %v4203 = vmul.f32 %v4159, 0.00390625
        %v4204 = vmul.f32 %v4162, 0.00390625
        %v4205 = vmul.f32 %v4165, 0.00390625
        %v4206 = vmul.f32 %v4168, 0.00390625
        %v4207 = vmul.f32 %v4171, 0.00390625
        %v4208 = vmul.f32 %v4174, 0.00390625
        %v4209 = vmul.f32 %v4177, 0.00390625
        %v4210 = vmul.f32 %v4180, 0.00390625
        %v4211 = vmul.f32 %v4183, 0.00390625
        %v4212 = vmul.f32 %v4186, 0.00390625
        %v4213 = vmul.f32 %v4187, %v4187
        %v4214 = vmul.f32 %v4188, %v4188
        %v4215 = vmul.f32 %v4189, %v4189
        %v4216 = vmul.f32 %v4190, %v4190
        %v4217 = vmul.f32 %v4191, %v4191
        %v4218 = vmul.f32 %v4192, %v4192
        %v4219 = vmul.f32 %v4193, %v4193
        %v4220 = vmul.f32 %v4194, %v4194
        %v4221 = vmul.f32 %v4195, %v4195
        %v4222 = vmul.f32 %v4196, %v4196
        %v4223 = vmul.f32 %v4197, %v4197
        %v4224 = vmul.f32 %v4198, %v4198
        %v4225 = vmul.f32 %v4199, %v4199
        %v4226 = vsub.f32 %v4200, %v4213
        %v4227 = vsub.f32 %v4201, %v4214
        %v4228 = vsub.f32 %v4202, %v4215
        %v4229 = vsub.f32 %v4203, %v4216
        %v4230 = vsub.f32 %v4204, %v4217
        %v4231 = vsub.f32 %v4205, %v4218
        %v4232 = vsub.f32 %v4206, %v4219
        %v4233 = vsub.f32 %v4207, %v4220
        %v4234 = vsub.f32 %v4208, %v4221
        %v4235 = vsub.f32 %v4209, %v4222
        %v4236 = vsub.f32 %v4210, %v4223
        %v4237 = vsub.f32 %v4211, %v4224
        %v4238 = vsub.f32 %v4212, %v4225
        %v4239 = vmax.f32 %v4226, 0.0
        %v4240 = vmax.f32 %v4227, 0.0
        %v4241 = vmax.f32 %v4228, 0.0
        %v4242 = vmax.f32 %v4229, 0.0
        %v4243 = vmax.f32 %v4230, 0.0
        %v4244 = vmax.f32 %v4231, 0.0
        %v4245 = vmax.f32 %v4232, 0.0
        %v4246 = vmax.f32 %v4233, 0.0
        %v4247 = vmax.f32 %v4234, 0.0
        %v4248 = vmax.f32 %v4235, 0.0
        %v4249 = vmax.f32 %v4236, 0.0
        %v4250 = vmax.f32 %v4237, 0.0
        %v4251 = vmax.f32 %v4238, 0.0
        %v4252 = vsub.f32 %v4057, %v4187
        %v4253 = vsub.f32 %v4058, %v4187
        %v4254 = vsub.f32 %v4059, %v4188
        %v4255 = vsub.f32 %v4060, %v4188
        %v4256 = vsub.f32 %v4061, %v4189
        %v4257 = vsub.f32 %v4062, %v4189
        %v4258 = vsub.f32 %v4063, %v4190
        %v4259 = vsub.f32 %v4064, %v4190
        %v4260 = vsub.f32 %v4065, %v4191
        %v4261 = vsub.f32 %v4066, %v4191
        %v4262 = vsub.f32 %v4067, %v4192
        %v4263 = vsub.f32 %v4068, %v4192
        %v4264 = vsub.f32 %v4069, %v4193
        %v4265 = vsub.f32 %v4070, %v4193
        %v4266 = vsub.f32 %v4071, %v4194
        %v4267 = vsub.f32 %v4072, %v4194
        %v4268 = vsub.f32 %v4073, %v4195
        %v4269 = vsub.f32 %v4074, %v4195
        %v4270 = vsub.f32 %v4075, %v4196
        %v4271 = vsub.f32 %v4076, %v4196
        %v4272 = vsub.f32 %v4077, %v4197
        %v4273 = vsub.f32 %v4078, %v4197
        %v4274 = vsub.f32 %v4079, %v4198
        %v4275 = vsub.f32 %v4080, %v4198
        %v4276 = vsub.f32 %v4081, %v4199
        %v4277 = vsub.f32 %v4082, %v4199
        %v4278 = vadd.f32 %v4239, 1e-05
        %v4279 = vadd.f32 %v4240, 1e-05
        %v4280 = vadd.f32 %v4241, 1e-05
        %v4281 = vadd.f32 %v4242, 1e-05
        %v4282 = vadd.f32 %v4243, 1e-05
        %v4283 = vadd.f32 %v4244, 1e-05
        %v4284 = vadd.f32 %v4245, 1e-05
        %v4285 = vadd.f32 %v4246, 1e-05
        %v4286 = vadd.f32 %v4247, 1e-05
        %v4287 = vadd.f32 %v4248, 1e-05
        %v4288 = vadd.f32 %v4249, 1e-05
        %v4289 = vadd.f32 %v4250, 1e-05
        %v4290 = vadd.f32 %v4251, 1e-05
        %v4291 = vrsqrt.pop %v4278
        %v4292 = vrsqrt.pop %v4279
        %v4293 = vrsqrt.pop %v4280
        %v4294 = vrsqrt.pop %v4281
        %v4295 = vrsqrt.pop %v4282
        %v4296 = vrsqrt.pop %v4283
        %v4297 = vrsqrt.pop %v4284
        %v4298 = vrsqrt.pop %v4285
        %v4299 = vrsqrt.pop %v4286
        %v4300 = vrsqrt.pop %v4287
        %v4301 = vrsqrt.pop %v4288
        %v4302 = vrsqrt.pop %v4289
        %v4303 = vrsqrt.pop %v4290
        %v4304 = vmul.f32 %v4252, %v4291
        %v4305 = vmul.f32 %v4253, %v4291
        %v4306 = vmul.f32 %v4254, %v4292
        %v4307 = vmul.f32 %v4255, %v4292
        %v4308 = vmul.f32 %v4256, %v4293
        %v4309 = vmul.f32 %v4257, %v4293
        %v4310 = vmul.f32 %v4258, %v4294
        %v4311 = vmul.f32 %v4259, %v4294
        %v4312 = vmul.f32 %v4260, %v4295
        %v4313 = vmul.f32 %v4261, %v4295
        %v4314 = vmul.f32 %v4262, %v4296
        %v4315 = vmul.f32 %v4263, %v4296
        %v4316 = vmul.f32 %v4264, %v4297
        %v4317 = vmul.f32 %v4265, %v4297
        %v4318 = vmul.f32 %v4266, %v4298
        %v4319 = vmul.f32 %v4267, %v4298
        %v4320 = vmul.f32 %v4268, %v4299
        %v4321 = vmul.f32 %v4269, %v4299
        %v4322 = vmul.f32 %v4270, %v4300
        %v4323 = vmul.f32 %v4271, %v4300
        %v4324 = vmul.f32 %v4272, %v4301
        %v4325 = vmul.f32 %v4273, %v4301
        %v4326 = vmul.f32 %v4274, %v4302
        %v4327 = vmul.f32 %v4275, %v4302
        %v4328 = vmul.f32 %v4276, %v4303
        %v4329 = vmul.f32 %v4277, %v4303
        %v4330 = vld [vmem:[#allocation9] sm:$0x3]
        %v4332 = vlaneseq
        %v4333 = vshrl.u32 %v4332, 7
        %v4334 = vsub.s32 0, %v4333
        %v4335 = vrot.slane %v4330, %v4334
        %v4336 = vlaneseq
        %v4337 = vshrl.u32 %v4336, 7
        %v4338 = vsub.s32 1, %v4337
        %v4339 = vrot.slane %v4330, %v4338
        %v4342 = vmul.f32 %v4304, %v4335
        %v4343 = vmul.f32 %v4305, %v4339
        %v4344 = vmul.f32 %v4306, %v4335
        %v4345 = vmul.f32 %v4307, %v4339
        %v4346 = vmul.f32 %v4308, %v4335
        %v4347 = vmul.f32 %v4309, %v4339
        %v4348 = vmul.f32 %v4310, %v4335
        %v4349 = vmul.f32 %v4311, %v4339
        %v4350 = vmul.f32 %v4312, %v4335
        %v4351 = vmul.f32 %v4313, %v4339
        %v4352 = vmul.f32 %v4314, %v4335
        %v4353 = vmul.f32 %v4315, %v4339
        %v4354 = vmul.f32 %v4316, %v4335
        %v4355 = vmul.f32 %v4317, %v4339
        %v4356 = vmul.f32 %v4318, %v4335
        %v4357 = vmul.f32 %v4319, %v4339
        %v4358 = vmul.f32 %v4320, %v4335
        %v4359 = vmul.f32 %v4321, %v4339
        %v4360 = vmul.f32 %v4322, %v4335
        %v4361 = vmul.f32 %v4323, %v4339
        %v4362 = vmul.f32 %v4324, %v4335
        %v4363 = vmul.f32 %v4325, %v4339
        %v4364 = vmul.f32 %v4326, %v4335
        %v4365 = vmul.f32 %v4327, %v4339
        %v4366 = vmul.f32 %v4328, %v4335
        %v4367 = vmul.f32 %v4329, %v4339
        %v4368 = vld [vmem:[#allocation10] sm:$0x3]
        %v4370 = vlaneseq
        %v4371 = vshrl.u32 %v4370, 7
        %v4372 = vsub.s32 0, %v4371
        %v4373 = vrot.slane %v4368, %v4372
        %v4374 = vlaneseq
        %v4375 = vshrl.u32 %v4374, 7
        %v4376 = vsub.s32 1, %v4375
        %v4377 = vrot.slane %v4368, %v4376
        %v4380 = vadd.f32 %v4342, %v4373
        %v4381 = vadd.f32 %v4343, %v4377
        %v4382 = vadd.f32 %v4344, %v4373
        %v4383 = vadd.f32 %v4345, %v4377
        %v4384 = vadd.f32 %v4346, %v4373
        %v4385 = vadd.f32 %v4347, %v4377
        %v4386 = vadd.f32 %v4348, %v4373
        %v4387 = vadd.f32 %v4349, %v4377
        %v4388 = vadd.f32 %v4350, %v4373
        %v4389 = vadd.f32 %v4351, %v4377
        %v4390 = vadd.f32 %v4352, %v4373
        %v4391 = vadd.f32 %v4353, %v4377
        %v4392 = vadd.f32 %v4354, %v4373
        %v4393 = vadd.f32 %v4355, %v4377
        %v4394 = vadd.f32 %v4356, %v4373
        %v4395 = vadd.f32 %v4357, %v4377
        %v4396 = vadd.f32 %v4358, %v4373
        %v4397 = vadd.f32 %v4359, %v4377
        %v4398 = vadd.f32 %v4360, %v4373
        %v4399 = vadd.f32 %v4361, %v4377
        %v4400 = vadd.f32 %v4362, %v4373
        %v4401 = vadd.f32 %v4363, %v4377
        %v4402 = vadd.f32 %v4364, %v4373
        %v4403 = vadd.f32 %v4365, %v4377
        %v4404 = vadd.f32 %v4366, %v4373
        %v4405 = vadd.f32 %v4367, %v4377
        %4406 = vst [vmem:[%s365] sm:$0xff] %v4380
        %4407 = vst [vmem:[%s365 + $0x8] sm:$0xff] %v4381
        %4408 = vst [vmem:[%s365 + $0x10] sm:$0xff] %v4382
        %4409 = vst [vmem:[%s365 + $0x18] sm:$0xff] %v4383
        %4410 = vst [vmem:[%s365 + $0x20] sm:$0xff] %v4384
        %4411 = vst [vmem:[%s365 + $0x28] sm:$0xff] %v4385
        %4412 = vst [vmem:[%s365 + $0x30] sm:$0xff] %v4386
        %4413 = vst [vmem:[%s365 + $0x38] sm:$0xff] %v4387
        %4414 = vst [vmem:[%s365 + $0x40] sm:$0xff] %v4388
        %4415 = vst [vmem:[%s365 + $0x48] sm:$0xff] %v4389
        %4416 = vst [vmem:[%s365 + $0x50] sm:$0xff] %v4390
        %4417 = vst [vmem:[%s365 + $0x58] sm:$0xff] %v4391
        %4418 = vst [vmem:[%s365 + $0x60] sm:$0xff] %v4392
        %4419 = vst [vmem:[%s365 + $0x68] sm:$0xff] %v4393
        %4420 = vst [vmem:[%s365 + $0x70] sm:$0xff] %v4394
        %4421 = vst [vmem:[%s365 + $0x78] sm:$0xff] %v4395
        %4422 = vst [vmem:[%s365 + $0x80] sm:$0xff] %v4396
        %4423 = vst [vmem:[%s365 + $0x88] sm:$0xff] %v4397
        %4424 = vst [vmem:[%s365 + $0x90] sm:$0xff] %v4398
        %4425 = vst [vmem:[%s365 + $0x98] sm:$0xff] %v4399
        %4426 = vst [vmem:[%s365 + $0xa0] sm:$0xff] %v4400
        %4427 = vst [vmem:[%s365 + $0xa8] sm:$0xff] %v4401
        %4428 = vst [vmem:[%s365 + $0xb0] sm:$0xff] %v4402
        %4429 = vst [vmem:[%s365 + $0xb8] sm:$0xff] %v4403
        %4430 = vst [vmem:[%s365 + $0xc0] sm:$0xff] %v4404
        %4431 = vst [vmem:[%s365 + $0xc8] sm:$0xff] %v4405
        %s4432 = sand.u32 %s182, 1
        %s4433 = sand.u32 %s182, 1
        %s4434 = smul.addr %s4433, 208
        %s4435 = scalar_lea.vmem [#allocation12], %s4434
        // Predicated region
        $region73: #{ffn_layer_forward.1} parent=47 // pred_check
          %p4436 = pneg %p192
        $region74: #{ffn_layer_forward.1} parent=47 // pred_check_branch
          %4438 = sbr.rel (%p4436) target = $region76
        $region75: #{ffn_layer_forward.1} parent=47 // pred_region
          %s4439 = smul.u32 13, %s22
          %s4440 = ssub.s32 25, %s4439
          %p4441 = scmp.lt.s32.totalorder %s4440, 13
          %s4442 = scalar_select %p4441, %s4440, 13
          %s4443 = smul.u32 128, %s4442
          %s4444 = smul.u32 %s4443, 2
          %p4445 = scmp.ne.s32.totalorder 0, %s4444
          %s4446 = smul.addr %s4439, 2
          %s4447 = smul.addr %s4446, 8
          %s4448 = scalar_lea.vmem %s7, %s4447
          // Predicated region
          $region77: #{ffn_layer_forward.1} parent=75 // pred_check
            %p4449 = pneg %p4445
          $region78: #{ffn_layer_forward.1} parent=75 // pred_check_branch
            %4451 = sbr.rel (%p4449) target = $region80
          $region79: #{ffn_layer_forward.1} parent=75 // pred_region
            // Predicated region
            $region81: #{ffn_layer_forward.1} parent=79 // pred_check
              _
            $region82: #{ffn_layer_forward.1} parent=79 // pred_check_branch
              %4453 = sbr.rel (0) target = $region84
            $region83: #{ffn_layer_forward.1} parent=79 // pred_region
              %s4454 = sdiv.u32.pop %s4442, 13
              %s4455 = srem.u32.pop %s4442, 13
              // While loop
              $region85: #{ffn_layer_forward.1} parent=83 // loop_pre_header
                _
              $region86: #{ffn_layer_forward.1} parent=83 // loop_header
                %s4457 = sphi 0, %s4459
                %p4458 = scmp.ge.s32.totalorder %s4457, %s4454
                %s4462 = sphi 0, %s4519
                %s4463 = sphi %s4435, %s4522
                %s4464 = sphi %s4448, %s4523
              $region87: #{ffn_layer_forward.1} parent=83 // loop_header_branch
                %4461 = sbr.rel (%p4458) target = $region91
              $region88: #{ffn_layer_forward.1} parent=83 // loop_body
                %v4465 = vld [vmem:[%s4463] sm:$0xff]
                %4466 = vst [vmem:[%s4464] sm:$0xff] %v4465
                %v4467 = vld [vmem:[%s4463 + $0x10] sm:$0xff]
                %4468 = vst [vmem:[%s4464 + $0x10] sm:$0xff] %v4467
                %v4469 = vld [vmem:[%s4463 + $0x20] sm:$0xff]
                %4470 = vst [vmem:[%s4464 + $0x20] sm:$0xff] %v4469
                %v4471 = vld [vmem:[%s4463 + $0x30] sm:$0xff]
                %4472 = vst [vmem:[%s4464 + $0x30] sm:$0xff] %v4471
                %v4473 = vld [vmem:[%s4463 + $0x40] sm:$0xff]
                %4474 = vst [vmem:[%s4464 + $0x40] sm:$0xff] %v4473
                %v4475 = vld [vmem:[%s4463 + $0x50] sm:$0xff]
                %4476 = vst [vmem:[%s4464 + $0x50] sm:$0xff] %v4475
                %v4477 = vld [vmem:[%s4463 + $0x60] sm:$0xff]
                %4478 = vst [vmem:[%s4464 + $0x60] sm:$0xff] %v4477
                %v4479 = vld [vmem:[%s4463 + $0x70] sm:$0xff]
                %4480 = vst [vmem:[%s4464 + $0x70] sm:$0xff] %v4479
                %v4481 = vld [vmem:[%s4463 + $0x80] sm:$0xff]
                %4482 = vst [vmem:[%s4464 + $0x80] sm:$0xff] %v4481
                %v4483 = vld [vmem:[%s4463 + $0x90] sm:$0xff]
                %4484 = vst [vmem:[%s4464 + $0x90] sm:$0xff] %v4483
                %v4485 = vld [vmem:[%s4463 + $0xa0] sm:$0xff]
                %4486 = vst [vmem:[%s4464 + $0xa0] sm:$0xff] %v4485
                %v4487 = vld [vmem:[%s4463 + $0xb0] sm:$0xff]
                %4488 = vst [vmem:[%s4464 + $0xb0] sm:$0xff] %v4487
                %v4489 = vld [vmem:[%s4463 + $0xc0] sm:$0xff]
                %4490 = vst [vmem:[%s4464 + $0xc0] sm:$0xff] %v4489
                %v4491 = vld [vmem:[%s4463 + $0x8] sm:$0xff]
                %4492 = vst [vmem:[%s4464 + $0x8] sm:$0xff] %v4491
                %v4493 = vld [vmem:[%s4463 + $0x18] sm:$0xff]
                %4494 = vst [vmem:[%s4464 + $0x18] sm:$0xff] %v4493
                %v4495 = vld [vmem:[%s4463 + $0x28] sm:$0xff]
                %4496 = vst [vmem:[%s4464 + $0x28] sm:$0xff] %v4495
                %v4497 = vld [vmem:[%s4463 + $0x38] sm:$0xff]
                %4498 = vst [vmem:[%s4464 + $0x38] sm:$0xff] %v4497
                %v4499 = vld [vmem:[%s4463 + $0x48] sm:$0xff]
                %4500 = vst [vmem:[%s4464 + $0x48] sm:$0xff] %v4499
                %v4501 = vld [vmem:[%s4463 + $0x58] sm:$0xff]
                %4502 = vst [vmem:[%s4464 + $0x58] sm:$0xff] %v4501
                %v4503 = vld [vmem:[%s4463 + $0x68] sm:$0xff]
                %4504 = vst [vmem:[%s4464 + $0x68] sm:$0xff] %v4503
                %v4505 = vld [vmem:[%s4463 + $0x78] sm:$0xff]
                %4506 = vst [vmem:[%s4464 + $0x78] sm:$0xff] %v4505
                %v4507 = vld [vmem:[%s4463 + $0x88] sm:$0xff]
                %4508 = vst [vmem:[%s4464 + $0x88] sm:$0xff] %v4507
                %v4509 = vld [vmem:[%s4463 + $0x98] sm:$0xff]
                %4510 = vst [vmem:[%s4464 + $0x98] sm:$0xff] %v4509
                %v4511 = vld [vmem:[%s4463 + $0xa8] sm:$0xff]
                %4512 = vst [vmem:[%s4464 + $0xa8] sm:$0xff] %v4511
                %v4513 = vld [vmem:[%s4463 + $0xb8] sm:$0xff]
                %4514 = vst [vmem:[%s4464 + $0xb8] sm:$0xff] %v4513
                %v4515 = vld [vmem:[%s4463 + $0xc8] sm:$0xff]
                %4516 = vst [vmem:[%s4464 + $0xc8] sm:$0xff] %v4515
                %s4517 = sadd.s32 1, %s4462
                %p4518 = scmp.ge.s32.totalorder %s4517, %s4454
                %s4519 = scalar_select %p4518, 0, %s4517
                %s4520 = smul.u32 %s4519, 208
                %s4521 = smul.u32 %s4519, 208
                %s4522 = scalar_lea.vmem %s4435, %s4520 [#allocation12]
                %s4523 = scalar_lea.vmem %s4448, %s4521
              $region89: #{ffn_layer_forward.1} parent=83 // loop_footer
                %s4459 = sadd.s32 %s4457, 1
              $region90: #{ffn_layer_forward.1} parent=83 // loop_footer_branch
                %4456 = sbr.rel target = $region86
              $region91: #{ffn_layer_forward.1} parent=83 // loop_exit
                _
              %s4524 = sdiv.u32.pop %s4442, 13
              %s4525 = srem.u32.pop %s4442, 13
              %s4526 = smul.u32 %s4524, 13
              %s4527 = smul.u32 16, %s4526
              %s4528 = scalar_lea.vmem %s4435, %s4527 [#allocation12]
              %s4529 = smul.u32 16, %s4526
              %s4530 = scalar_lea.vmem %s4448, %s4529
              // While loop
              $region92: #{ffn_layer_forward.1} parent=83 // loop_pre_header
                _
              $region93: #{ffn_layer_forward.1} parent=83 // loop_header
                %s4532 = sphi 0, %s4534
                %p4533 = scmp.ge.s32.totalorder %s4532, %s4525
                %s4537 = sphi 0, %s4546
                %s4538 = sphi %s4528, %s4549
                %s4539 = sphi %s4530, %s4550
              $region94: #{ffn_layer_forward.1} parent=83 // loop_header_branch
                %4536 = sbr.rel (%p4533) target = $region98
              $region95: #{ffn_layer_forward.1} parent=83 // loop_body
                %v4540 = vld [vmem:[%s4538] sm:$0xff]
                %4541 = vst [vmem:[%s4539] sm:$0xff] %v4540
                %v4542 = vld [vmem:[%s4538 + $0x8] sm:$0xff]
                %4543 = vst [vmem:[%s4539 + $0x8] sm:$0xff] %v4542
                %s4544 = sadd.s32 1, %s4537
                %p4545 = scmp.ge.s32.totalorder %s4544, %s4525
                %s4546 = scalar_select %p4545, 0, %s4544
                %s4547 = smul.u32 %s4546, 16
                %s4548 = smul.u32 %s4546, 16
                %s4549 = scalar_lea.vmem %s4528, %s4547 [#allocation12]
                %s4550 = scalar_lea.vmem %s4530, %s4548
              $region96: #{ffn_layer_forward.1} parent=83 // loop_footer
                %s4534 = sadd.s32 %s4532, 1
              $region97: #{ffn_layer_forward.1} parent=83 // loop_footer_branch
                %4531 = sbr.rel target = $region93
              $region98: #{ffn_layer_forward.1} parent=83 // loop_exit
                _
            $region84: #{ffn_layer_forward.1} parent=79 // pred_fallthru
              _
            // Predicated region
            $region99: #{ffn_layer_forward.1} parent=79 // pred_check
              _
            $region100: #{ffn_layer_forward.1} parent=79 // pred_check_branch
              %4552 = sbr.rel target = $region102
            $region101: #{ffn_layer_forward.1} parent=79 // pred_region
              _
            $region102: #{ffn_layer_forward.1} parent=79 // pred_fallthru
              _
          $region80: #{ffn_layer_forward.1} parent=75 // pred_fallthru
            _
          %4553 = vnop
        $region76: #{ffn_layer_forward.1} parent=47 // pred_fallthru
          _
      $region48: #{ffn_layer_forward.1} parent=5 // pred_fallthru
        _
      %p4554 = scmp.le.s32.totalorder 2, %s17
      // Predicated region
      $region103: #{ffn_layer_forward.1} parent=5 // pred_check
        %p4555 = pneg %p4554
      $region104: #{ffn_layer_forward.1} parent=5 // pred_check_branch
        %4557 = sbr.rel (%p4555) target = $region106
      $region105: #{ffn_layer_forward.1} parent=5 // pred_region
        %s4558 = ssub.s32 %s17, 2
        // Predicated region
        $region107: #{ffn_layer_forward.1} parent=105 // pred_check
          %p4559 = pneg %p198
        $region108: #{ffn_layer_forward.1} parent=105 // pred_check_branch
          %4561 = sbr.rel (%p4559) target = $region110
        $region109: #{ffn_layer_forward.1} parent=105 // pred_region
          %s4562 = sand.u32 %s183, 1
          %s4563 = sand.u32 %s183, 1
          %s4564 = smul.addr %s4563, 208
          %s4565 = scalar_lea.vmem [#allocation12], %s4564
        $region110: #{ffn_layer_forward.1} parent=105 // pred_fallthru
          _
      $region106: #{ffn_layer_forward.1} parent=5 // pred_fallthru
        _
    $region6: #{ffn_layer_forward.1} parent=1 // loop_footer
      %s21 = sadd.s32 1, %s17
    $region7: #{ffn_layer_forward.1} parent=1 // loop_footer_branch
      %16 = sbr.rel target = $region3
    $region8: #{ffn_layer_forward.1} parent=1 // loop_exit
      _
    %4566 = vsyncpa [#allocation3], 1
    %s4567 = scalar_lea.sflag [#allocation3], 1
    %4568 = vsyncpa %s4567, 1
    %4569 = vsyncpa [#allocation5], 1
    %4570 = vsyncpa [#allocation8], 1
    %4571 = vsyncpa [#allocation11], 1

</llo_original>
